<compile_context>
chip_gen: v7x
topology: tpu7x:2x2x1
jax: 0.10.0
libtpu: 0.0.40
codegen_flags: <defaults>
</compile_context>

<pallas_src>
import functools

import jax
import jax.numpy as jnp
from jax import lax
from jax.experimental import pallas as pl
from jax.experimental.pallas import tpu as pltpu


LANE = 128  # TPU lane width; FC output is padded to this for dense stores.


# ----------------------------------------------------------------------------
# In-kernel helpers
# ----------------------------------------------------------------------------
def _proj(chunks, w_ref, bias):
    """sum_i chunks[i] @ w_ref[off_i:off_i+F_i, :]  + bias.

    Equivalent to concat(chunks, axis=-1) @ w_ref + bias, but avoids lane
    concatenation of the feature chunks.  bf16 MXU operands, f32 accumulation.
    """
    acc = bias
    off = 0
    for ch in chunks:
        f = ch.shape[-1]
        acc = acc + jnp.dot(ch.astype(jnp.bfloat16), w_ref[off:off + f, :],
                            preferred_element_type=jnp.float32)
        off += f
    return acc


def _lstm_cell(gates_x, h, c, whh, hidden):
    """One LSTM cell update.  gates_x already holds x @ W_ih^T + b (f32)."""
    gates = gates_x + jnp.dot(h.astype(whh.dtype), whh,
                              preferred_element_type=jnp.float32)
    i = jax.nn.sigmoid(gates[:, 0 * hidden:1 * hidden])
    f = jax.nn.sigmoid(gates[:, 1 * hidden:2 * hidden])
    g = jnp.tanh(gates[:, 2 * hidden:3 * hidden])
    o = jax.nn.sigmoid(gates[:, 3 * hidden:4 * hidden])
    c_new = f * c + i * g
    h_new = o * jnp.tanh(c_new)
    return h_new, c_new


def _make_vad_kernel(num_layers, T, B, hidden):
    """Build the fused VAD_LSTM kernel for a fixed (static) configuration."""

    def kernel(*refs):
        # ---- unpack refs: inputs..., output, scratch ------------------------
        idx = 0
        x_ref = refs[idx]; idx += 1
        layers = []
        for _ in range(num_layers):
            layers.append(refs[idx:idx + 6]); idx += 6
        fc_w_ref = refs[idx]; idx += 1
        fc_b_ref = refs[idx]; idx += 1
        out_ref = refs[idx]; idx += 1
        gxf_ref, gxb_ref, actf_ref, actb_ref = refs[idx:idx + 4]

        H = hidden

        # Layer input as a list of (T*B, F_i) feature chunks.
        chunks = [x_ref[...].reshape(T * B, x_ref.shape[-1])]

        for (wih_f, whh_f, b_f, wih_b, whh_b, b_b) in layers:
            # Hoisted input projections for every timestep (both directions):
            # one MXU matmul each, outside the serial dependence chain.
            gxf_ref[...] = _proj(chunks, wih_f, b_f[...]).reshape(T, B, 4 * H)
            gxb_ref[...] = _proj(chunks, wih_b, b_b[...]).reshape(T, B, 4 * H)

            # Hoist the recurrent weights out of the time loop.
            whhf = whh_f[...]          # (H, 4H) bf16
            whhb = whh_b[...]

            def step(t, carry):
                h_f, c_f, h_b, c_b = carry
                tr = T - 1 - t
                h_f, c_f = _lstm_cell(gxf_ref[t], h_f, c_f, whhf, H)
                h_b, c_b = _lstm_cell(gxb_ref[tr], h_b, c_b, whhb, H)
                actf_ref[t] = h_f
                actb_ref[tr] = h_b
                return h_f, c_f, h_b, c_b

            z = jnp.zeros((B, H), jnp.float32)
            lax.fori_loop(0, T, step, (z, z, z, z), unroll=True)

            chunks = [actf_ref[...].reshape(T * B, H),
                      actb_ref[...].reshape(T * B, H)]

        # Fused FC epilogue; lane-dense (T*B, 128) output slab.
        out_ref[...] = _proj(chunks, fc_w_ref, fc_b_ref[...])

    return kernel


# ----------------------------------------------------------------------------
# Wrapper
# ----------------------------------------------------------------------------
def _full_spec(shape):
    return pl.BlockSpec(shape, lambda: (0,) * len(shape))


def rnn_input(X, seq_size, num_delay):
    """Faithful port of VAD_LSTM.rnn_input (pure reshaping glue, stays in XLA)."""
    len_input, input_size = X.shape
    assert len_input % seq_size == 0
    batch_size = len_input // seq_size
    x = jnp.concatenate(
        [X, jnp.zeros((num_delay, input_size), X.dtype)], axis=0)
    temp1 = x.reshape(-1, input_size)
    temp2 = temp1[:len_input].reshape(batch_size, seq_size, -1)
    temp3 = temp2[1:batch_size, :num_delay]
    temp4 = temp1[len_input:].reshape(1, num_delay, -1)
    temp5 = jnp.concatenate([temp3, temp4], axis=0)
    return jnp.concatenate([temp2, temp5], axis=1)      # [B, seq+delay, D]


def vad_lstm_forward(X, params, *, seq_size, hidden_size, num_delay):
    H = hidden_size
    inp = rnn_input(X, seq_size, num_delay)             # [B, T, D]
    B, T, _ = inp.shape
    x = jnp.transpose(inp, (1, 0, 2)).astype(jnp.float32)   # time-major [T, B, D]

    operands = [x]
    specs = [_full_spec(x.shape)]
    for layer in params["lstm"]:
        for tag in ("f", "b"):
            wih = jnp.asarray(layer[f"w_ih_{tag}"].T, jnp.bfloat16)    # (Din, 4H)
            whh = jnp.asarray(layer[f"w_hh_{tag}"].T, jnp.bfloat16)    # (H, 4H)
            bias = jnp.asarray(
                (layer[f"b_ih_{tag}"] + layer[f"b_hh_{tag}"]).reshape(1, 4 * H),
                jnp.float32)
            operands += [wih, whh, bias]
            specs += [_full_spec(wih.shape), _full_spec(whh.shape),
                      _full_spec(bias.shape)]

    # FC weights: pad output features to 128 lanes so the kernel's writeback
    # is lane-dense (unmasked vst); padded columns are zero and sliced off.
    O = params["fc_w"].shape[0]
    fc_w = jnp.zeros((2 * H, LANE), jnp.bfloat16).at[:, :O].set(
        jnp.asarray(params["fc_w"].T, jnp.bfloat16))
    fc_b = jnp.zeros((1, LANE), jnp.float32).at[0, :O].set(
        jnp.asarray(params["fc_b"], jnp.float32))
    operands += [fc_w, fc_b]
    specs += [_full_spec(fc_w.shape), _full_spec(fc_b.shape)]

    num_layers = len(params["lstm"])
    out = pl.pallas_call(
        _make_vad_kernel(num_layers, T, B, H),
        out_shape=jax.ShapeDtypeStruct((T * B, LANE), jnp.float32),
        in_specs=specs,
        out_specs=_full_spec((T * B, LANE)),
        scratch_shapes=[
            pltpu.VMEM((T, B, 4 * H), jnp.float32),   # gates_x fwd
            pltpu.VMEM((T, B, 4 * H), jnp.float32),   # gates_x bwd
            pltpu.VMEM((T, B, H), jnp.float32),       # hidden outputs fwd
            pltpu.VMEM((T, B, H), jnp.float32),       # hidden outputs bwd
        ],
    )(*operands)

    # [T*B, 128] (time-major rows) -> [B*seq, O]
    # (matches output[:, :seq].reshape(-1, H).view(N//2, 2H) -> fc in PyTorch,
    #  which is an identity re-pairing of the [B, seq, 2H] rows).
    y = out.reshape(T, B, LANE)[:seq_size]              # (seq, B, 128)
    y = jnp.transpose(y, (1, 0, 2)).reshape(B * seq_size, LANE)[:, :O]
    # Dropout: identity (eval mode).
    return y


# ----------------------------------------------------------------------------
# Deterministic parameter construction
# ----------------------------------------------------------------------------
def init_params(key, *, input_size, hidden_size, num_layers, output_size):
    params = {"lstm": []}
    scale = 0.1
    for l in range(num_layers):
        d_in = input_size if l == 0 else 2 * hidden_size
        layer = {}
        for tag in ("f", "b"):  # forward / backward direction
            key, k1, k2, k3, k4 = jax.random.split(key, 5)
            layer[f"w_ih_{tag}"] = scale * jax.random.normal(
                k1, (4 * hidden_size, d_in), jnp.float32)
            layer[f"w_hh_{tag}"] = scale * jax.random.normal(
                k2, (4 * hidden_size, hidden_size), jnp.float32)
            layer[f"b_ih_{tag}"] = scale * jax.random.normal(
                k3, (4 * hidden_size,), jnp.float32)
            layer[f"b_hh_{tag}"] = scale * jax.random.normal(
                k4, (4 * hidden_size,), jnp.float32)
        params["lstm"].append(layer)
    key, kw, kb = jax.random.split(key, 3)
    params["fc_w"] = scale * jax.random.normal(
        kw, (output_size, 2 * hidden_size), jnp.float32)
    params["fc_b"] = scale * jax.random.normal(kb, (output_size,), jnp.float32)
    return params


# ----------------------------------------------------------------------------
# Main
# ----------------------------------------------------------------------------
if __name__ == "__main__":
    # Small synthetic config (mirrors the conf.* attributes of the module).
    seq_size = 8
    hidden_size = 32
    num_layers = 2
    output_size = 2
    input_size = 16
    num_delay = 4
    len_input = 2 * seq_size  # batch_size = 2

    key = jax.random.PRNGKey(0)
    key, kx = jax.random.split(key)
    X = jax.random.normal(kx, (len_input, input_size), jnp.float32)

    params = init_params(
        key,
        input_size=input_size,
        hidden_size=hidden_size,
        num_layers=num_layers,
        output_size=output_size,
    )

    fwd = functools.partial(
        vad_lstm_forward,
        seq_size=seq_size,
        hidden_size=hidden_size,
        num_delay=num_delay,
    )
    out = jax.jit(lambda x: fwd(x, params))(X)
    out = jax.block_until_ready(out)

    assert out.shape == (len_input, output_size), out.shape
    assert bool(jnp.all(jnp.isfinite(out)))
    print("KERNEL_OK")
</pallas_src>

<mosaic_0001>
module attributes {stable_mosaic.version = 11 : i64} {
  func.func @kernel(%arg0: memref<12x2x16xf32, #tpu.memory_space<vmem>>, %arg1: memref<16x128xbf16, #tpu.memory_space<vmem>>, %arg2: memref<32x128xbf16, #tpu.memory_space<vmem>>, %arg3: memref<1x128xf32, #tpu.memory_space<vmem>>, %arg4: memref<16x128xbf16, #tpu.memory_space<vmem>>, %arg5: memref<32x128xbf16, #tpu.memory_space<vmem>>, %arg6: memref<1x128xf32, #tpu.memory_space<vmem>>, %arg7: memref<64x128xbf16, #tpu.memory_space<vmem>>, %arg8: memref<32x128xbf16, #tpu.memory_space<vmem>>, %arg9: memref<1x128xf32, #tpu.memory_space<vmem>>, %arg10: memref<64x128xbf16, #tpu.memory_space<vmem>>, %arg11: memref<32x128xbf16, #tpu.memory_space<vmem>>, %arg12: memref<1x128xf32, #tpu.memory_space<vmem>>, %arg13: memref<64x128xbf16, #tpu.memory_space<vmem>>, %arg14: memref<1x128xf32, #tpu.memory_space<vmem>>, %arg15: memref<24x128xf32, #tpu.memory_space<vmem>>, %arg16: memref<12x2x128xf32, #tpu.memory_space<vmem>>, %arg17: memref<12x2x128xf32, #tpu.memory_space<vmem>>, %arg18: memref<12x2x32xf32, #tpu.memory_space<vmem>>, %arg19: memref<12x2x32xf32, #tpu.memory_space<vmem>>) attributes {dimension_semantics = [], scalar_prefetch = 0 : i64, scratch_operands = 4 : i64, tpu.core_type = #tpu.core_type<tc>} {
    %c0 = arith.constant 0 : index
    %c0_0 = arith.constant 0 : index
    %c0_1 = arith.constant 0 : index
    %0 = vector.load %arg0[%c0, %c0_0, %c0_1] : memref<12x2x16xf32, #tpu.memory_space<vmem>>, vector<12x2x16xf32>
    %1 = vector.shape_cast %0 : vector<12x2x16xf32> to vector<24x16xf32>
    %c0_2 = arith.constant 0 : index
    %c0_3 = arith.constant 0 : index
    %2 = vector.load %arg3[%c0_2, %c0_3] : memref<1x128xf32, #tpu.memory_space<vmem>>, vector<1x128xf32>
    %3 = arith.truncf %1 : vector<24x16xf32> to vector<24x16xbf16>
    %c0_4 = arith.constant 0 : index
    %c0_5 = arith.constant 0 : index
    %4 = vector.load %arg1[%c0_4, %c0_5] : memref<16x128xbf16, #tpu.memory_space<vmem>>, vector<16x128xbf16>
    %cst = arith.constant dense<0.000000e+00> : vector<24x128xf32>
    %5 = tpu.matmul %3, %4, %cst {dimension_numbers = #tpu.dot_dimension_numbers<[1], [0], [0], [1], [0, 0, 1, 1], [], []>} : vector<24x16xbf16>, vector<16x128xbf16>, vector<24x128xf32> -> vector<24x128xf32>
    %6 = vector.broadcast %2 : vector<1x128xf32> to vector<24x128xf32>
    %7 = arith.addf %6, %5 : vector<24x128xf32>
    %8 = vector.shape_cast %7 : vector<24x128xf32> to vector<12x2x128xf32>
    %c0_6 = arith.constant 0 : index
    %c0_7 = arith.constant 0 : index
    %c0_8 = arith.constant 0 : index
    %9 = vector.load %arg16[%c0_6, %c0_7, %c0_8] : memref<12x2x128xf32, #tpu.memory_space<vmem>>, vector<12x2x128xf32>
    tpu.vector_store %arg16[%c0_6, %c0_7, %c0_8], %8 {strides = array<i32>} : memref<12x2x128xf32, #tpu.memory_space<vmem>>, vector<12x2x128xf32>,
    %c0_9 = arith.constant 0 : index
    %c0_10 = arith.constant 0 : index
    %10 = vector.load %arg6[%c0_9, %c0_10] : memref<1x128xf32, #tpu.memory_space<vmem>>, vector<1x128xf32>
    %11 = arith.truncf %1 : vector<24x16xf32> to vector<24x16xbf16>
    %c0_11 = arith.constant 0 : index
    %c0_12 = arith.constant 0 : index
    %12 = vector.load %arg4[%c0_11, %c0_12] : memref<16x128xbf16, #tpu.memory_space<vmem>>, vector<16x128xbf16>
    %cst_13 = arith.constant dense<0.000000e+00> : vector<24x128xf32>
    %13 = tpu.matmul %11, %12, %cst_13 {dimension_numbers = #tpu.dot_dimension_numbers<[1], [0], [0], [1], [0, 0, 1, 1], [], []>} : vector<24x16xbf16>, vector<16x128xbf16>, vector<24x128xf32> -> vector<24x128xf32>
    %14 = vector.broadcast %10 : vector<1x128xf32> to vector<24x128xf32>
    %15 = arith.addf %14, %13 : vector<24x128xf32>
    %16 = vector.shape_cast %15 : vector<24x128xf32> to vector<12x2x128xf32>
    %c0_14 = arith.constant 0 : index
    %c0_15 = arith.constant 0 : index
    %c0_16 = arith.constant 0 : index
    %17 = vector.load %arg17[%c0_14, %c0_15, %c0_16] : memref<12x2x128xf32, #tpu.memory_space<vmem>>, vector<12x2x128xf32>
    tpu.vector_store %arg17[%c0_14, %c0_15, %c0_16], %16 {strides = array<i32>} : memref<12x2x128xf32, #tpu.memory_space<vmem>>, vector<12x2x128xf32>,
    %c0_17 = arith.constant 0 : index
    %c0_18 = arith.constant 0 : index
    %18 = vector.load %arg2[%c0_17, %c0_18] : memref<32x128xbf16, #tpu.memory_space<vmem>>, vector<32x128xbf16>
    %c0_19 = arith.constant 0 : index
    %c0_20 = arith.constant 0 : index
    %19 = vector.load %arg5[%c0_19, %c0_20] : memref<32x128xbf16, #tpu.memory_space<vmem>>, vector<32x128xbf16>
    %cst_21 = arith.constant 0.000000e+00 : f32
    %20 = vector.broadcast %cst_21 : f32 to vector<2x32xf32>
    %c0_i32 = arith.constant 0 : i32
    %c11_i32 = arith.constant 11 : i32
    %21 = arith.subi %c11_i32, %c0_i32 : i32
    %22 = arith.index_cast %c0_i32 : i32 to index
    %c0_22 = arith.constant 0 : index
    %c0_23 = arith.constant 0 : index
    %23 = vector.load %arg16[%22, %c0_22, %c0_23] : memref<12x2x128xf32, #tpu.memory_space<vmem>>, vector<1x2x128xf32>
    %24 = vector.shape_cast %23 : vector<1x2x128xf32> to vector<2x128xf32>
    %25 = arith.truncf %20 : vector<2x32xf32> to vector<2x32xbf16>
    %cst_24 = arith.constant dense<0.000000e+00> : vector<2x128xf32>
    %26 = tpu.matmul %25, %18, %cst_24 {dimension_numbers = #tpu.dot_dimension_numbers<[1], [0], [0], [1], [0, 0, 1, 1], [], []>} : vector<2x32xbf16>, vector<32x128xbf16>, vector<2x128xf32> -> vector<2x128xf32>
    %27 = arith.addf %24, %26 : vector<2x128xf32>
    %28 = vector.extract_strided_slice %27 {offsets = [0, 0], sizes = [2, 32], strides = [1, 1]} : vector<2x128xf32> to vector<2x32xf32>
    %29 = arith.negf %28 : vector<2x32xf32>
    %30 = math.exp %29 : vector<2x32xf32>
    %cst_25 = arith.constant 1.000000e+00 : f32
    %31 = vector.broadcast %cst_25 : f32 to vector<2x32xf32>
    %32 = arith.addf %31, %30 : vector<2x32xf32>
    %33 = arith.divf %31, %32 : vector<2x32xf32>
    %34 = vector.extract_strided_slice %27 {offsets = [0, 32], sizes = [2, 32], strides = [1, 1]} : vector<2x128xf32> to vector<2x32xf32>
    %35 = arith.negf %34 : vector<2x32xf32>
    %36 = math.exp %35 : vector<2x32xf32>
    %cst_26 = arith.constant 1.000000e+00 : f32
    %37 = vector.broadcast %cst_26 : f32 to vector<2x32xf32>
    %38 = arith.addf %37, %36 : vector<2x32xf32>
    %39 = arith.divf %37, %38 : vector<2x32xf32>
    %40 = vector.extract_strided_slice %27 {offsets = [0, 64], sizes = [2, 32], strides = [1, 1]} : vector<2x128xf32> to vector<2x32xf32>
    %41 = math.tanh %40 : vector<2x32xf32>
    %42 = vector.extract_strided_slice %27 {offsets = [0, 96], sizes = [2, 32], strides = [1, 1]} : vector<2x128xf32> to vector<2x32xf32>
    %43 = arith.negf %42 : vector<2x32xf32>
    %44 = math.exp %43 : vector<2x32xf32>
    %cst_27 = arith.constant 1.000000e+00 : f32
    %45 = vector.broadcast %cst_27 : f32 to vector<2x32xf32>
    %46 = arith.addf %45, %44 : vector<2x32xf32>
    %47 = arith.divf %45, %46 : vector<2x32xf32>
    %48 = arith.mulf %39, %20 : vector<2x32xf32>
    %49 = arith.mulf %33, %41 : vector<2x32xf32>
    %50 = arith.addf %48, %49 : vector<2x32xf32>
    %51 = math.tanh %50 : vector<2x32xf32>
    %52 = arith.mulf %47, %51 : vector<2x32xf32>
    %53 = arith.index_cast %21 : i32 to index
    %c0_28 = arith.constant 0 : index
    %c0_29 = arith.constant 0 : index
    %54 = vector.load %arg17[%53, %c0_28, %c0_29] : memref<12x2x128xf32, #tpu.memory_space<vmem>>, vector<1x2x128xf32>
    %55 = vector.shape_cast %54 : vector<1x2x128xf32> to vector<2x128xf32>
    %56 = arith.truncf %20 : vector<2x32xf32> to vector<2x32xbf16>
    %cst_30 = arith.constant dense<0.000000e+00> : vector<2x128xf32>
    %57 = tpu.matmul %56, %19, %cst_30 {dimension_numbers = #tpu.dot_dimension_numbers<[1], [0], [0], [1], [0, 0, 1, 1], [], []>} : vector<2x32xbf16>, vector<32x128xbf16>, vector<2x128xf32> -> vector<2x128xf32>
    %58 = arith.addf %55, %57 : vector<2x128xf32>
    %59 = vector.extract_strided_slice %58 {offsets = [0, 0], sizes = [2, 32], strides = [1, 1]} : vector<2x128xf32> to vector<2x32xf32>
    %60 = arith.negf %59 : vector<2x32xf32>
    %61 = math.exp %60 : vector<2x32xf32>
    %cst_31 = arith.constant 1.000000e+00 : f32
    %62 = vector.broadcast %cst_31 : f32 to vector<2x32xf32>
    %63 = arith.addf %62, %61 : vector<2x32xf32>
    %64 = arith.divf %62, %63 : vector<2x32xf32>
    %65 = vector.extract_strided_slice %58 {offsets = [0, 32], sizes = [2, 32], strides = [1, 1]} : vector<2x128xf32> to vector<2x32xf32>
    %66 = arith.negf %65 : vector<2x32xf32>
    %67 = math.exp %66 : vector<2x32xf32>
    %cst_32 = arith.constant 1.000000e+00 : f32
    %68 = vector.broadcast %cst_32 : f32 to vector<2x32xf32>
    %69 = arith.addf %68, %67 : vector<2x32xf32>
    %70 = arith.divf %68, %69 : vector<2x32xf32>
    %71 = vector.extract_strided_slice %58 {offsets = [0, 64], sizes = [2, 32], strides = [1, 1]} : vector<2x128xf32> to vector<2x32xf32>
    %72 = math.tanh %71 : vector<2x32xf32>
    %73 = vector.extract_strided_slice %58 {offsets = [0, 96], sizes = [2, 32], strides = [1, 1]} : vector<2x128xf32> to vector<2x32xf32>
    %74 = arith.negf %73 : vector<2x32xf32>
    %75 = math.exp %74 : vector<2x32xf32>
    %cst_33 = arith.constant 1.000000e+00 : f32
    %76 = vector.broadcast %cst_33 : f32 to vector<2x32xf32>
    %77 = arith.addf %76, %75 : vector<2x32xf32>
    %78 = arith.divf %76, %77 : vector<2x32xf32>
    %79 = arith.mulf %70, %20 : vector<2x32xf32>
    %80 = arith.mulf %64, %72 : vector<2x32xf32>
    %81 = arith.addf %79, %80 : vector<2x32xf32>
    %82 = math.tanh %81 : vector<2x32xf32>
    %83 = arith.mulf %78, %82 : vector<2x32xf32>
    %84 = arith.index_cast %c0_i32 : i32 to index
    %c0_34 = arith.constant 0 : index
    %c0_35 = arith.constant 0 : index
    %85 = vector.load %arg18[%84, %c0_34, %c0_35] : memref<12x2x32xf32, #tpu.memory_space<vmem>>, vector<1x2x32xf32>
    %86 = vector.shape_cast %85 : vector<1x2x32xf32> to vector<2x32xf32>
    %87 = vector.shape_cast %52 : vector<2x32xf32> to vector<1x2x32xf32>
    tpu.vector_store %arg18[%84, %c0_34, %c0_35], %87 {strides = array<i32>} : memref<12x2x32xf32, #tpu.memory_space<vmem>>, vector<1x2x32xf32>,
    %88 = arith.index_cast %21 : i32 to index
    %c0_36 = arith.constant 0 : index
    %c0_37 = arith.constant 0 : index
    %89 = vector.load %arg19[%88, %c0_36, %c0_37] : memref<12x2x32xf32, #tpu.memory_space<vmem>>, vector<1x2x32xf32>
    %90 = vector.shape_cast %89 : vector<1x2x32xf32> to vector<2x32xf32>
    %91 = vector.shape_cast %83 : vector<2x32xf32> to vector<1x2x32xf32>
    tpu.vector_store %arg19[%88, %c0_36, %c0_37], %91 {strides = array<i32>} : memref<12x2x32xf32, #tpu.memory_space<vmem>>, vector<1x2x32xf32>,
    %c1_i32 = arith.constant 1 : i32
    %c11_i32_38 = arith.constant 11 : i32
    %92 = arith.subi %c11_i32_38, %c1_i32 : i32
    %93 = arith.index_cast %c1_i32 : i32 to index
    %c0_39 = arith.constant 0 : index
    %c0_40 = arith.constant 0 : index
    %94 = vector.load %arg16[%93, %c0_39, %c0_40] : memref<12x2x128xf32, #tpu.memory_space<vmem>>, vector<1x2x128xf32>
    %95 = vector.shape_cast %94 : vector<1x2x128xf32> to vector<2x128xf32>
    %96 = arith.truncf %52 : vector<2x32xf32> to vector<2x32xbf16>
    %cst_41 = arith.constant dense<0.000000e+00> : vector<2x128xf32>
    %97 = tpu.matmul %96, %18, %cst_41 {dimension_numbers = #tpu.dot_dimension_numbers<[1], [0], [0], [1], [0, 0, 1, 1], [], []>} : vector<2x32xbf16>, vector<32x128xbf16>, vector<2x128xf32> -> vector<2x128xf32>
    %98 = arith.addf %95, %97 : vector<2x128xf32>
    %99 = vector.extract_strided_slice %98 {offsets = [0, 0], sizes = [2, 32], strides = [1, 1]} : vector<2x128xf32> to vector<2x32xf32>
    %100 = arith.negf %99 : vector<2x32xf32>
    %101 = math.exp %100 : vector<2x32xf32>
    %cst_42 = arith.constant 1.000000e+00 : f32
    %102 = vector.broadcast %cst_42 : f32 to vector<2x32xf32>
    %103 = arith.addf %102, %101 : vector<2x32xf32>
    %104 = arith.divf %102, %103 : vector<2x32xf32>
    %105 = vector.extract_strided_slice %98 {offsets = [0, 32], sizes = [2, 32], strides = [1, 1]} : vector<2x128xf32> to vector<2x32xf32>
    %106 = arith.negf %105 : vector<2x32xf32>
    %107 = math.exp %106 : vector<2x32xf32>
    %cst_43 = arith.constant 1.000000e+00 : f32
    %108 = vector.broadcast %cst_43 : f32 to vector<2x32xf32>
    %109 = arith.addf %108, %107 : vector<2x32xf32>
    %110 = arith.divf %108, %109 : vector<2x32xf32>
    %111 = vector.extract_strided_slice %98 {offsets = [0, 64], sizes = [2, 32], strides = [1, 1]} : vector<2x128xf32> to vector<2x32xf32>
    %112 = math.tanh %111 : vector<2x32xf32>
    %113 = vector.extract_strided_slice %98 {offsets = [0, 96], sizes = [2, 32], strides = [1, 1]} : vector<2x128xf32> to vector<2x32xf32>
    %114 = arith.negf %113 : vector<2x32xf32>
    %115 = math.exp %114 : vector<2x32xf32>
    %cst_44 = arith.constant 1.000000e+00 : f32
    %116 = vector.broadcast %cst_44 : f32 to vector<2x32xf32>
    %117 = arith.addf %116, %115 : vector<2x32xf32>
    %118 = arith.divf %116, %117 : vector<2x32xf32>
    %119 = arith.mulf %110, %50 : vector<2x32xf32>
    %120 = arith.mulf %104, %112 : vector<2x32xf32>
    %121 = arith.addf %119, %120 : vector<2x32xf32>
    %122 = math.tanh %121 : vector<2x32xf32>
    %123 = arith.mulf %118, %122 : vector<2x32xf32>
    %124 = arith.index_cast %92 : i32 to index
    %c0_45 = arith.constant 0 : index
    %c0_46 = arith.constant 0 : index
    %125 = vector.load %arg17[%124, %c0_45, %c0_46] : memref<12x2x128xf32, #tpu.memory_space<vmem>>, vector<1x2x128xf32>
    %126 = vector.shape_cast %125 : vector<1x2x128xf32> to vector<2x128xf32>
    %127 = arith.truncf %83 : vector<2x32xf32> to vector<2x32xbf16>
    %cst_47 = arith.constant dense<0.000000e+00> : vector<2x128xf32>
    %128 = tpu.matmul %127, %19, %cst_47 {dimension_numbers = #tpu.dot_dimension_numbers<[1], [0], [0], [1], [0, 0, 1, 1], [], []>} : vector<2x32xbf16>, vector<32x128xbf16>, vector<2x128xf32> -> vector<2x128xf32>
    %129 = arith.addf %126, %128 : vector<2x128xf32>
    %130 = vector.extract_strided_slice %129 {offsets = [0, 0], sizes = [2, 32], strides = [1, 1]} : vector<2x128xf32> to vector<2x32xf32>
    %131 = arith.negf %130 : vector<2x32xf32>
    %132 = math.exp %131 : vector<2x32xf32>
    %cst_48 = arith.constant 1.000000e+00 : f32
    %133 = vector.broadcast %cst_48 : f32 to vector<2x32xf32>
    %134 = arith.addf %133, %132 : vector<2x32xf32>
    %135 = arith.divf %133, %134 : vector<2x32xf32>
    %136 = vector.extract_strided_slice %129 {offsets = [0, 32], sizes = [2, 32], strides = [1, 1]} : vector<2x128xf32> to vector<2x32xf32>
    %137 = arith.negf %136 : vector<2x32xf32>
    %138 = math.exp %137 : vector<2x32xf32>
    %cst_49 = arith.constant 1.000000e+00 : f32
    %139 = vector.broadcast %cst_49 : f32 to vector<2x32xf32>
    %140 = arith.addf %139, %138 : vector<2x32xf32>
    %141 = arith.divf %139, %140 : vector<2x32xf32>
    %142 = vector.extract_strided_slice %129 {offsets = [0, 64], sizes = [2, 32], strides = [1, 1]} : vector<2x128xf32> to vector<2x32xf32>
    %143 = math.tanh %142 : vector<2x32xf32>
    %144 = vector.extract_strided_slice %129 {offsets = [0, 96], sizes = [2, 32], strides = [1, 1]} : vector<2x128xf32> to vector<2x32xf32>
    %145 = arith.negf %144 : vector<2x32xf32>
    %146 = math.exp %145 : vector<2x32xf32>
    %cst_50 = arith.constant 1.000000e+00 : f32
    %147 = vector.broadcast %cst_50 : f32 to vector<2x32xf32>
    %148 = arith.addf %147, %146 : vector<2x32xf32>
    %149 = arith.divf %147, %148 : vector<2x32xf32>
    %150 = arith.mulf %141, %81 : vector<2x32xf32>
    %151 = arith.mulf %135, %143 : vector<2x32xf32>
    %152 = arith.addf %150, %151 : vector<2x32xf32>
    %153 = math.tanh %152 : vector<2x32xf32>
    %154 = arith.mulf %149, %153 : vector<2x32xf32>
    %155 = arith.index_cast %c1_i32 : i32 to index
    %c0_51 = arith.constant 0 : index
    %c0_52 = arith.constant 0 : index
    %156 = vector.load %arg18[%155, %c0_51, %c0_52] : memref<12x2x32xf32, #tpu.memory_space<vmem>>, vector<1x2x32xf32>
    %157 = vector.shape_cast %156 : vector<1x2x32xf32> to vector<2x32xf32>
    %158 = vector.shape_cast %123 : vector<2x32xf32> to vector<1x2x32xf32>
    tpu.vector_store %arg18[%155, %c0_51, %c0_52], %158 {strides = array<i32>} : memref<12x2x32xf32, #tpu.memory_space<vmem>>, vector<1x2x32xf32>,
    %159 = arith.index_cast %92 : i32 to index
    %c0_53 = arith.constant 0 : index
    %c0_54 = arith.constant 0 : index
    %160 = vector.load %arg19[%159, %c0_53, %c0_54] : memref<12x2x32xf32, #tpu.memory_space<vmem>>, vector<1x2x32xf32>
    %161 = vector.shape_cast %160 : vector<1x2x32xf32> to vector<2x32xf32>
    %162 = vector.shape_cast %154 : vector<2x32xf32> to vector<1x2x32xf32>
    tpu.vector_store %arg19[%159, %c0_53, %c0_54], %162 {strides = array<i32>} : memref<12x2x32xf32, #tpu.memory_space<vmem>>, vector<1x2x32xf32>,
    %c2_i32 = arith.constant 2 : i32
    %c11_i32_55 = arith.constant 11 : i32
    %163 = arith.subi %c11_i32_55, %c2_i32 : i32
    %164 = arith.index_cast %c2_i32 : i32 to index
    %c0_56 = arith.constant 0 : index
    %c0_57 = arith.constant 0 : index
    %165 = vector.load %arg16[%164, %c0_56, %c0_57] : memref<12x2x128xf32, #tpu.memory_space<vmem>>, vector<1x2x128xf32>
    %166 = vector.shape_cast %165 : vector<1x2x128xf32> to vector<2x128xf32>
    %167 = arith.truncf %123 : vector<2x32xf32> to vector<2x32xbf16>
    %cst_58 = arith.constant dense<0.000000e+00> : vector<2x128xf32>
    %168 = tpu.matmul %167, %18, %cst_58 {dimension_numbers = #tpu.dot_dimension_numbers<[1], [0], [0], [1], [0, 0, 1, 1], [], []>} : vector<2x32xbf16>, vector<32x128xbf16>, vector<2x128xf32> -> vector<2x128xf32>
    %169 = arith.addf %166, %168 : vector<2x128xf32>
    %170 = vector.extract_strided_slice %169 {offsets = [0, 0], sizes = [2, 32], strides = [1, 1]} : vector<2x128xf32> to vector<2x32xf32>
    %171 = arith.negf %170 : vector<2x32xf32>
    %172 = math.exp %171 : vector<2x32xf32>
    %cst_59 = arith.constant 1.000000e+00 : f32
    %173 = vector.broadcast %cst_59 : f32 to vector<2x32xf32>
    %174 = arith.addf %173, %172 : vector<2x32xf32>
    %175 = arith.divf %173, %174 : vector<2x32xf32>
    %176 = vector.extract_strided_slice %169 {offsets = [0, 32], sizes = [2, 32], strides = [1, 1]} : vector<2x128xf32> to vector<2x32xf32>
    %177 = arith.negf %176 : vector<2x32xf32>
    %178 = math.exp %177 : vector<2x32xf32>
    %cst_60 = arith.constant 1.000000e+00 : f32
    %179 = vector.broadcast %cst_60 : f32 to vector<2x32xf32>
    %180 = arith.addf %179, %178 : vector<2x32xf32>
    %181 = arith.divf %179, %180 : vector<2x32xf32>
    %182 = vector.extract_strided_slice %169 {offsets = [0, 64], sizes = [2, 32], strides = [1, 1]} : vector<2x128xf32> to vector<2x32xf32>
    %183 = math.tanh %182 : vector<2x32xf32>
    %184 = vector.extract_strided_slice %169 {offsets = [0, 96], sizes = [2, 32], strides = [1, 1]} : vector<2x128xf32> to vector<2x32xf32>
    %185 = arith.negf %184 : vector<2x32xf32>
    %186 = math.exp %185 : vector<2x32xf32>
    %cst_61 = arith.constant 1.000000e+00 : f32
    %187 = vector.broadcast %cst_61 : f32 to vector<2x32xf32>
    %188 = arith.addf %187, %186 : vector<2x32xf32>
    %189 = arith.divf %187, %188 : vector<2x32xf32>
    %190 = arith.mulf %181, %121 : vector<2x32xf32>
    %191 = arith.mulf %175, %183 : vector<2x32xf32>
    %192 = arith.addf %190, %191 : vector<2x32xf32>
    %193 = math.tanh %192 : vector<2x32xf32>
    %194 = arith.mulf %189, %193 : vector<2x32xf32>
    %195 = arith.index_cast %163 : i32 to index
    %c0_62 = arith.constant 0 : index
    %c0_63 = arith.constant 0 : index
    %196 = vector.load %arg17[%195, %c0_62, %c0_63] : memref<12x2x128xf32, #tpu.memory_space<vmem>>, vector<1x2x128xf32>
    %197 = vector.shape_cast %196 : vector<1x2x128xf32> to vector<2x128xf32>
    %198 = arith.truncf %154 : vector<2x32xf32> to vector<2x32xbf16>
    %cst_64 = arith.constant dense<0.000000e+00> : vector<2x128xf32>
    %199 = tpu.matmul %198, %19, %cst_64 {dimension_numbers = #tpu.dot_dimension_numbers<[1], [0], [0], [1], [0, 0, 1, 1], [], []>} : vector<2x32xbf16>, vector<32x128xbf16>, vector<2x128xf32> -> vector<2x128xf32>
    %200 = arith.addf %197, %199 : vector<2x128xf32>
    %201 = vector.extract_strided_slice %200 {offsets = [0, 0], sizes = [2, 32], strides = [1, 1]} : vector<2x128xf32> to vector<2x32xf32>
    %202 = arith.negf %201 : vector<2x32xf32>
    %203 = math.exp %202 : vector<2x32xf32>
    %cst_65 = arith.constant 1.000000e+00 : f32
    %204 = vector.broadcast %cst_65 : f32 to vector<2x32xf32>
    %205 = arith.addf %204, %203 : vector<2x32xf32>
    %206 = arith.divf %204, %205 : vector<2x32xf32>
    %207 = vector.extract_strided_slice %200 {offsets = [0, 32], sizes = [2, 32], strides = [1, 1]} : vector<2x128xf32> to vector<2x32xf32>
    %208 = arith.negf %207 : vector<2x32xf32>
    %209 = math.exp %208 : vector<2x32xf32>
    %cst_66 = arith.constant 1.000000e+00 : f32
    %210 = vector.broadcast %cst_66 : f32 to vector<2x32xf32>
    %211 = arith.addf %210, %209 : vector<2x32xf32>
    %212 = arith.divf %210, %211 : vector<2x32xf32>
    %213 = vector.extract_strided_slice %200 {offsets = [0, 64], sizes = [2, 32], strides = [1, 1]} : vector<2x128xf32> to vector<2x32xf32>
    %214 = math.tanh %213 : vector<2x32xf32>
    %215 = vector.extract_strided_slice %200 {offsets = [0, 96], sizes = [2, 32], strides = [1, 1]} : vector<2x128xf32> to vector<2x32xf32>
    %216 = arith.negf %215 : vector<2x32xf32>
    %217 = math.exp %216 : vector<2x32xf32>
    %cst_67 = arith.constant 1.000000e+00 : f32
    %218 = vector.broadcast %cst_67 : f32 to vector<2x32xf32>
    %219 = arith.addf %218, %217 : vector<2x32xf32>
    %220 = arith.divf %218, %219 : vector<2x32xf32>
    %221 = arith.mulf %212, %152 : vector<2x32xf32>
    %222 = arith.mulf %206, %214 : vector<2x32xf32>
    %223 = arith.addf %221, %222 : vector<2x32xf32>
    %224 = math.tanh %223 : vector<2x32xf32>
    %225 = arith.mulf %220, %224 : vector<2x32xf32>
    %226 = arith.index_cast %c2_i32 : i32 to index
    %c0_68 = arith.constant 0 : index
    %c0_69 = arith.constant 0 : index
    %227 = vector.load %arg18[%226, %c0_68, %c0_69] : memref<12x2x32xf32, #tpu.memory_space<vmem>>, vector<1x2x32xf32>
    %228 = vector.shape_cast %227 : vector<1x2x32xf32> to vector<2x32xf32>
    %229 = vector.shape_cast %194 : vector<2x32xf32> to vector<1x2x32xf32>
    tpu.vector_store %arg18[%226, %c0_68, %c0_69], %229 {strides = array<i32>} : memref<12x2x32xf32, #tpu.memory_space<vmem>>, vector<1x2x32xf32>,
    %230 = arith.index_cast %163 : i32 to index
    %c0_70 = arith.constant 0 : index
    %c0_71 = arith.constant 0 : index
    %231 = vector.load %arg19[%230, %c0_70, %c0_71] : memref<12x2x32xf32, #tpu.memory_space<vmem>>, vector<1x2x32xf32>
    %232 = vector.shape_cast %231 : vector<1x2x32xf32> to vector<2x32xf32>
    %233 = vector.shape_cast %225 : vector<2x32xf32> to vector<1x2x32xf32>
    tpu.vector_store %arg19[%230, %c0_70, %c0_71], %233 {strides = array<i32>} : memref<12x2x32xf32, #tpu.memory_space<vmem>>, vector<1x2x32xf32>,
    %c3_i32 = arith.constant 3 : i32
    %c11_i32_72 = arith.constant 11 : i32
    %234 = arith.subi %c11_i32_72, %c3_i32 : i32
    %235 = arith.index_cast %c3_i32 : i32 to index
    %c0_73 = arith.constant 0 : index
    %c0_74 = arith.constant 0 : index
    %236 = vector.load %arg16[%235, %c0_73, %c0_74] : memref<12x2x128xf32, #tpu.memory_space<vmem>>, vector<1x2x128xf32>
    %237 = vector.shape_cast %236 : vector<1x2x128xf32> to vector<2x128xf32>
    %238 = arith.truncf %194 : vector<2x32xf32> to vector<2x32xbf16>
    %cst_75 = arith.constant dense<0.000000e+00> : vector<2x128xf32>
    %239 = tpu.matmul %238, %18, %cst_75 {dimension_numbers = #tpu.dot_dimension_numbers<[1], [0], [0], [1], [0, 0, 1, 1], [], []>} : vector<2x32xbf16>, vector<32x128xbf16>, vector<2x128xf32> -> vector<2x128xf32>
    %240 = arith.addf %237, %239 : vector<2x128xf32>
    %241 = vector.extract_strided_slice %240 {offsets = [0, 0], sizes = [2, 32], strides = [1, 1]} : vector<2x128xf32> to vector<2x32xf32>
    %242 = arith.negf %241 : vector<2x32xf32>
    %243 = math.exp %242 : vector<2x32xf32>
    %cst_76 = arith.constant 1.000000e+00 : f32
    %244 = vector.broadcast %cst_76 : f32 to vector<2x32xf32>
    %245 = arith.addf %244, %243 : vector<2x32xf32>
    %246 = arith.divf %244, %245 : vector<2x32xf32>
    %247 = vector.extract_strided_slice %240 {offsets = [0, 32], sizes = [2, 32], strides = [1, 1]} : vector<2x128xf32> to vector<2x32xf32>
    %248 = arith.negf %247 : vector<2x32xf32>
    %249 = math.exp %248 : vector<2x32xf32>
    %cst_77 = arith.constant 1.000000e+00 : f32
    %250 = vector.broadcast %cst_77 : f32 to vector<2x32xf32>
    %251 = arith.addf %250, %249 : vector<2x32xf32>
    %252 = arith.divf %250, %251 : vector<2x32xf32>
    %253 = vector.extract_strided_slice %240 {offsets = [0, 64], sizes = [2, 32], strides = [1, 1]} : vector<2x128xf32> to vector<2x32xf32>
    %254 = math.tanh %253 : vector<2x32xf32>
    %255 = vector.extract_strided_slice %240 {offsets = [0, 96], sizes = [2, 32], strides = [1, 1]} : vector<2x128xf32> to vector<2x32xf32>
    %256 = arith.negf %255 : vector<2x32xf32>
    %257 = math.exp %256 : vector<2x32xf32>
    %cst_78 = arith.constant 1.000000e+00 : f32
    %258 = vector.broadcast %cst_78 : f32 to vector<2x32xf32>
    %259 = arith.addf %258, %257 : vector<2x32xf32>
    %260 = arith.divf %258, %259 : vector<2x32xf32>
    %261 = arith.mulf %252, %192 : vector<2x32xf32>
    %262 = arith.mulf %246, %254 : vector<2x32xf32>
    %263 = arith.addf %261, %262 : vector<2x32xf32>
    %264 = math.tanh %263 : vector<2x32xf32>
    %265 = arith.mulf %260, %264 : vector<2x32xf32>
    %266 = arith.index_cast %234 : i32 to index
    %c0_79 = arith.constant 0 : index
    %c0_80 = arith.constant 0 : index
    %267 = vector.load %arg17[%266, %c0_79, %c0_80] : memref<12x2x128xf32, #tpu.memory_space<vmem>>, vector<1x2x128xf32>
    %268 = vector.shape_cast %267 : vector<1x2x128xf32> to vector<2x128xf32>
    %269 = arith.truncf %225 : vector<2x32xf32> to vector<2x32xbf16>
    %cst_81 = arith.constant dense<0.000000e+00> : vector<2x128xf32>
    %270 = tpu.matmul %269, %19, %cst_81 {dimension_numbers = #tpu.dot_dimension_numbers<[1], [0], [0], [1], [0, 0, 1, 1], [], []>} : vector<2x32xbf16>, vector<32x128xbf16>, vector<2x128xf32> -> vector<2x128xf32>
    %271 = arith.addf %268, %270 : vector<2x128xf32>
    %272 = vector.extract_strided_slice %271 {offsets = [0, 0], sizes = [2, 32], strides = [1, 1]} : vector<2x128xf32> to vector<2x32xf32>
    %273 = arith.negf %272 : vector<2x32xf32>
    %274 = math.exp %273 : vector<2x32xf32>
    %cst_82 = arith.constant 1.000000e+00 : f32
    %275 = vector.broadcast %cst_82 : f32 to vector<2x32xf32>
    %276 = arith.addf %275, %274 : vector<2x32xf32>
    %277 = arith.divf %275, %276 : vector<2x32xf32>
    %278 = vector.extract_strided_slice %271 {offsets = [0, 32], sizes = [2, 32], strides = [1, 1]} : vector<2x128xf32> to vector<2x32xf32>
    %279 = arith.negf %278 : vector<2x32xf32>
    %280 = math.exp %279 : vector<2x32xf32>
    %cst_83 = arith.constant 1.000000e+00 : f32
    %281 = vector.broadcast %cst_83 : f32 to vector<2x32xf32>
    %282 = arith.addf %281, %280 : vector<2x32xf32>
    %283 = arith.divf %281, %282 : vector<2x32xf32>
    %284 = vector.extract_strided_slice %271 {offsets = [0, 64], sizes = [2, 32], strides = [1, 1]} : vector<2x128xf32> to vector<2x32xf32>
    %285 = math.tanh %284 : vector<2x32xf32>
    %286 = vector.extract_strided_slice %271 {offsets = [0, 96], sizes = [2, 32], strides = [1, 1]} : vector<2x128xf32> to vector<2x32xf32>
    %287 = arith.negf %286 : vector<2x32xf32>
    %288 = math.exp %287 : vector<2x32xf32>
    %cst_84 = arith.constant 1.000000e+00 : f32
    %289 = vector.broadcast %cst_84 : f32 to vector<2x32xf32>
    %290 = arith.addf %289, %288 : vector<2x32xf32>
    %291 = arith.divf %289, %290 : vector<2x32xf32>
    %292 = arith.mulf %283, %223 : vector<2x32xf32>
    %293 = arith.mulf %277, %285 : vector<2x32xf32>
    %294 = arith.addf %292, %293 : vector<2x32xf32>
    %295 = math.tanh %294 : vector<2x32xf32>
    %296 = arith.mulf %291, %295 : vector<2x32xf32>
    %297 = arith.index_cast %c3_i32 : i32 to index
    %c0_85 = arith.constant 0 : index
    %c0_86 = arith.constant 0 : index
    %298 = vector.load %arg18[%297, %c0_85, %c0_86] : memref<12x2x32xf32, #tpu.memory_space<vmem>>, vector<1x2x32xf32>
    %299 = vector.shape_cast %298 : vector<1x2x32xf32> to vector<2x32xf32>
    %300 = vector.shape_cast %265 : vector<2x32xf32> to vector<1x2x32xf32>
    tpu.vector_store %arg18[%297, %c0_85, %c0_86], %300 {strides = array<i32>} : memref<12x2x32xf32, #tpu.memory_space<vmem>>, vector<1x2x32xf32>,
    %301 = arith.index_cast %234 : i32 to index
    %c0_87 = arith.constant 0 : index
    %c0_88 = arith.constant 0 : index
    %302 = vector.load %arg19[%301, %c0_87, %c0_88] : memref<12x2x32xf32, #tpu.memory_space<vmem>>, vector<1x2x32xf32>
    %303 = vector.shape_cast %302 : vector<1x2x32xf32> to vector<2x32xf32>
    %304 = vector.shape_cast %296 : vector<2x32xf32> to vector<1x2x32xf32>
    tpu.vector_store %arg19[%301, %c0_87, %c0_88], %304 {strides = array<i32>} : memref<12x2x32xf32, #tpu.memory_space<vmem>>, vector<1x2x32xf32>,
    %c4_i32 = arith.constant 4 : i32
    %c11_i32_89 = arith.constant 11 : i32
    %305 = arith.subi %c11_i32_89, %c4_i32 : i32
    %306 = arith.index_cast %c4_i32 : i32 to index
    %c0_90 = arith.constant 0 : index
    %c0_91 = arith.constant 0 : index
    %307 = vector.load %arg16[%306, %c0_90, %c0_91] : memref<12x2x128xf32, #tpu.memory_space<vmem>>, vector<1x2x128xf32>
    %308 = vector.shape_cast %307 : vector<1x2x128xf32> to vector<2x128xf32>
    %309 = arith.truncf %265 : vector<2x32xf32> to vector<2x32xbf16>
    %cst_92 = arith.constant dense<0.000000e+00> : vector<2x128xf32>
    %310 = tpu.matmul %309, %18, %cst_92 {dimension_numbers = #tpu.dot_dimension_numbers<[1], [0], [0], [1], [0, 0, 1, 1], [], []>} : vector<2x32xbf16>, vector<32x128xbf16>, vector<2x128xf32> -> vector<2x128xf32>
    %311 = arith.addf %308, %310 : vector<2x128xf32>
    %312 = vector.extract_strided_slice %311 {offsets = [0, 0], sizes = [2, 32], strides = [1, 1]} : vector<2x128xf32> to vector<2x32xf32>
    %313 = arith.negf %312 : vector<2x32xf32>
    %314 = math.exp %313 : vector<2x32xf32>
    %cst_93 = arith.constant 1.000000e+00 : f32
    %315 = vector.broadcast %cst_93 : f32 to vector<2x32xf32>
    %316 = arith.addf %315, %314 : vector<2x32xf32>
    %317 = arith.divf %315, %316 : vector<2x32xf32>
    %318 = vector.extract_strided_slice %311 {offsets = [0, 32], sizes = [2, 32], strides = [1, 1]} : vector<2x128xf32> to vector<2x32xf32>
    %319 = arith.negf %318 : vector<2x32xf32>
    %320 = math.exp %319 : vector<2x32xf32>
    %cst_94 = arith.constant 1.000000e+00 : f32
    %321 = vector.broadcast %cst_94 : f32 to vector<2x32xf32>
    %322 = arith.addf %321, %320 : vector<2x32xf32>
    %323 = arith.divf %321, %322 : vector<2x32xf32>
    %324 = vector.extract_strided_slice %311 {offsets = [0, 64], sizes = [2, 32], strides = [1, 1]} : vector<2x128xf32> to vector<2x32xf32>
    %325 = math.tanh %324 : vector<2x32xf32>
    %326 = vector.extract_strided_slice %311 {offsets = [0, 96], sizes = [2, 32], strides = [1, 1]} : vector<2x128xf32> to vector<2x32xf32>
    %327 = arith.negf %326 : vector<2x32xf32>
    %328 = math.exp %327 : vector<2x32xf32>
    %cst_95 = arith.constant 1.000000e+00 : f32
    %329 = vector.broadcast %cst_95 : f32 to vector<2x32xf32>
    %330 = arith.addf %329, %328 : vector<2x32xf32>
    %331 = arith.divf %329, %330 : vector<2x32xf32>
    %332 = arith.mulf %323, %263 : vector<2x32xf32>
    %333 = arith.mulf %317, %325 : vector<2x32xf32>
    %334 = arith.addf %332, %333 : vector<2x32xf32>
    %335 = math.tanh %334 : vector<2x32xf32>
    %336 = arith.mulf %331, %335 : vector<2x32xf32>
    %337 = arith.index_cast %305 : i32 to index
    %c0_96 = arith.constant 0 : index
    %c0_97 = arith.constant 0 : index
    %338 = vector.load %arg17[%337, %c0_96, %c0_97] : memref<12x2x128xf32, #tpu.memory_space<vmem>>, vector<1x2x128xf32>
    %339 = vector.shape_cast %338 : vector<1x2x128xf32> to vector<2x128xf32>
    %340 = arith.truncf %296 : vector<2x32xf32> to vector<2x32xbf16>
    %cst_98 = arith.constant dense<0.000000e+00> : vector<2x128xf32>
    %341 = tpu.matmul %340, %19, %cst_98 {dimension_numbers = #tpu.dot_dimension_numbers<[1], [0], [0], [1], [0, 0, 1, 1], [], []>} : vector<2x32xbf16>, vector<32x128xbf16>, vector<2x128xf32> -> vector<2x128xf32>
    %342 = arith.addf %339, %341 : vector<2x128xf32>
    %343 = vector.extract_strided_slice %342 {offsets = [0, 0], sizes = [2, 32], strides = [1, 1]} : vector<2x128xf32> to vector<2x32xf32>
    %344 = arith.negf %343 : vector<2x32xf32>
    %345 = math.exp %344 : vector<2x32xf32>
    %cst_99 = arith.constant 1.000000e+00 : f32
    %346 = vector.broadcast %cst_99 : f32 to vector<2x32xf32>
    %347 = arith.addf %346, %345 : vector<2x32xf32>
    %348 = arith.divf %346, %347 : vector<2x32xf32>
    %349 = vector.extract_strided_slice %342 {offsets = [0, 32], sizes = [2, 32], strides = [1, 1]} : vector<2x128xf32> to vector<2x32xf32>
    %350 = arith.negf %349 : vector<2x32xf32>
    %351 = math.exp %350 : vector<2x32xf32>
    %cst_100 = arith.constant 1.000000e+00 : f32
    %352 = vector.broadcast %cst_100 : f32 to vector<2x32xf32>
    %353 = arith.addf %352, %351 : vector<2x32xf32>
    %354 = arith.divf %352, %353 : vector<2x32xf32>
    %355 = vector.extract_strided_slice %342 {offsets = [0, 64], sizes = [2, 32], strides = [1, 1]} : vector<2x128xf32> to vector<2x32xf32>
    %356 = math.tanh %355 : vector<2x32xf32>
    %357 = vector.extract_strided_slice %342 {offsets = [0, 96], sizes = [2, 32], strides = [1, 1]} : vector<2x128xf32> to vector<2x32xf32>
    %358 = arith.negf %357 : vector<2x32xf32>
    %359 = math.exp %358 : vector<2x32xf32>
    %cst_101 = arith.constant 1.000000e+00 : f32
    %360 = vector.broadcast %cst_101 : f32 to vector<2x32xf32>
    %361 = arith.addf %360, %359 : vector<2x32xf32>
    %362 = arith.divf %360, %361 : vector<2x32xf32>
    %363 = arith.mulf %354, %294 : vector<2x32xf32>
    %364 = arith.mulf %348, %356 : vector<2x32xf32>
    %365 = arith.addf %363, %364 : vector<2x32xf32>
    %366 = math.tanh %365 : vector<2x32xf32>
    %367 = arith.mulf %362, %366 : vector<2x32xf32>
    %368 = arith.index_cast %c4_i32 : i32 to index
    %c0_102 = arith.constant 0 : index
    %c0_103 = arith.constant 0 : index
    %369 = vector.load %arg18[%368, %c0_102, %c0_103] : memref<12x2x32xf32, #tpu.memory_space<vmem>>, vector<1x2x32xf32>
    %370 = vector.shape_cast %369 : vector<1x2x32xf32> to vector<2x32xf32>
    %371 = vector.shape_cast %336 : vector<2x32xf32> to vector<1x2x32xf32>
    tpu.vector_store %arg18[%368, %c0_102, %c0_103], %371 {strides = array<i32>} : memref<12x2x32xf32, #tpu.memory_space<vmem>>, vector<1x2x32xf32>,
    %372 = arith.index_cast %305 : i32 to index
    %c0_104 = arith.constant 0 : index
    %c0_105 = arith.constant 0 : index
    %373 = vector.load %arg19[%372, %c0_104, %c0_105] : memref<12x2x32xf32, #tpu.memory_space<vmem>>, vector<1x2x32xf32>
    %374 = vector.shape_cast %373 : vector<1x2x32xf32> to vector<2x32xf32>
    %375 = vector.shape_cast %367 : vector<2x32xf32> to vector<1x2x32xf32>
    tpu.vector_store %arg19[%372, %c0_104, %c0_105], %375 {strides = array<i32>} : memref<12x2x32xf32, #tpu.memory_space<vmem>>, vector<1x2x32xf32>,
    %c5_i32 = arith.constant 5 : i32
    %c11_i32_106 = arith.constant 11 : i32
    %376 = arith.subi %c11_i32_106, %c5_i32 : i32
    %377 = arith.index_cast %c5_i32 : i32 to index
    %c0_107 = arith.constant 0 : index
    %c0_108 = arith.constant 0 : index
    %378 = vector.load %arg16[%377, %c0_107, %c0_108] : memref<12x2x128xf32, #tpu.memory_space<vmem>>, vector<1x2x128xf32>
    %379 = vector.shape_cast %378 : vector<1x2x128xf32> to vector<2x128xf32>
    %380 = arith.truncf %336 : vector<2x32xf32> to vector<2x32xbf16>
    %cst_109 = arith.constant dense<0.000000e+00> : vector<2x128xf32>
    %381 = tpu.matmul %380, %18, %cst_109 {dimension_numbers = #tpu.dot_dimension_numbers<[1], [0], [0], [1], [0, 0, 1, 1], [], []>} : vector<2x32xbf16>, vector<32x128xbf16>, vector<2x128xf32> -> vector<2x128xf32>
    %382 = arith.addf %379, %381 : vector<2x128xf32>
    %383 = vector.extract_strided_slice %382 {offsets = [0, 0], sizes = [2, 32], strides = [1, 1]} : vector<2x128xf32> to vector<2x32xf32>
    %384 = arith.negf %383 : vector<2x32xf32>
    %385 = math.exp %384 : vector<2x32xf32>
    %cst_110 = arith.constant 1.000000e+00 : f32
    %386 = vector.broadcast %cst_110 : f32 to vector<2x32xf32>
    %387 = arith.addf %386, %385 : vector<2x32xf32>
    %388 = arith.divf %386, %387 : vector<2x32xf32>
    %389 = vector.extract_strided_slice %382 {offsets = [0, 32], sizes = [2, 32], strides = [1, 1]} : vector<2x128xf32> to vector<2x32xf32>
    %390 = arith.negf %389 : vector<2x32xf32>
    %391 = math.exp %390 : vector<2x32xf32>
    %cst_111 = arith.constant 1.000000e+00 : f32
    %392 = vector.broadcast %cst_111 : f32 to vector<2x32xf32>
    %393 = arith.addf %392, %391 : vector<2x32xf32>
    %394 = arith.divf %392, %393 : vector<2x32xf32>
    %395 = vector.extract_strided_slice %382 {offsets = [0, 64], sizes = [2, 32], strides = [1, 1]} : vector<2x128xf32> to vector<2x32xf32>
    %396 = math.tanh %395 : vector<2x32xf32>
    %397 = vector.extract_strided_slice %382 {offsets = [0, 96], sizes = [2, 32], strides = [1, 1]} : vector<2x128xf32> to vector<2x32xf32>
    %398 = arith.negf %397 : vector<2x32xf32>
    %399 = math.exp %398 : vector<2x32xf32>
    %cst_112 = arith.constant 1.000000e+00 : f32
    %400 = vector.broadcast %cst_112 : f32 to vector<2x32xf32>
    %401 = arith.addf %400, %399 : vector<2x32xf32>
    %402 = arith.divf %400, %401 : vector<2x32xf32>
    %403 = arith.mulf %394, %334 : vector<2x32xf32>
    %404 = arith.mulf %388, %396 : vector<2x32xf32>
    %405 = arith.addf %403, %404 : vector<2x32xf32>
    %406 = math.tanh %405 : vector<2x32xf32>
    %407 = arith.mulf %402, %406 : vector<2x32xf32>
    %408 = arith.index_cast %376 : i32 to index
    %c0_113 = arith.constant 0 : index
    %c0_114 = arith.constant 0 : index
    %409 = vector.load %arg17[%408, %c0_113, %c0_114] : memref<12x2x128xf32, #tpu.memory_space<vmem>>, vector<1x2x128xf32>
    %410 = vector.shape_cast %409 : vector<1x2x128xf32> to vector<2x128xf32>
    %411 = arith.truncf %367 : vector<2x32xf32> to vector<2x32xbf16>
    %cst_115 = arith.constant dense<0.000000e+00> : vector<2x128xf32>
    %412 = tpu.matmul %411, %19, %cst_115 {dimension_numbers = #tpu.dot_dimension_numbers<[1], [0], [0], [1], [0, 0, 1, 1], [], []>} : vector<2x32xbf16>, vector<32x128xbf16>, vector<2x128xf32> -> vector<2x128xf32>
    %413 = arith.addf %410, %412 : vector<2x128xf32>
    %414 = vector.extract_strided_slice %413 {offsets = [0, 0], sizes = [2, 32], strides = [1, 1]} : vector<2x128xf32> to vector<2x32xf32>
    %415 = arith.negf %414 : vector<2x32xf32>
    %416 = math.exp %415 : vector<2x32xf32>
    %cst_116 = arith.constant 1.000000e+00 : f32
    %417 = vector.broadcast %cst_116 : f32 to vector<2x32xf32>
    %418 = arith.addf %417, %416 : vector<2x32xf32>
    %419 = arith.divf %417, %418 : vector<2x32xf32>
    %420 = vector.extract_strided_slice %413 {offsets = [0, 32], sizes = [2, 32], strides = [1, 1]} : vector<2x128xf32> to vector<2x32xf32>
    %421 = arith.negf %420 : vector<2x32xf32>
    %422 = math.exp %421 : vector<2x32xf32>
    %cst_117 = arith.constant 1.000000e+00 : f32
    %423 = vector.broadcast %cst_117 : f32 to vector<2x32xf32>
    %424 = arith.addf %423, %422 : vector<2x32xf32>
    %425 = arith.divf %423, %424 : vector<2x32xf32>
    %426 = vector.extract_strided_slice %413 {offsets = [0, 64], sizes = [2, 32], strides = [1, 1]} : vector<2x128xf32> to vector<2x32xf32>
    %427 = math.tanh %426 : vector<2x32xf32>
    %428 = vector.extract_strided_slice %413 {offsets = [0, 96], sizes = [2, 32], strides = [1, 1]} : vector<2x128xf32> to vector<2x32xf32>
    %429 = arith.negf %428 : vector<2x32xf32>
    %430 = math.exp %429 : vector<2x32xf32>
    %cst_118 = arith.constant 1.000000e+00 : f32
    %431 = vector.broadcast %cst_118 : f32 to vector<2x32xf32>
    %432 = arith.addf %431, %430 : vector<2x32xf32>
    %433 = arith.divf %431, %432 : vector<2x32xf32>
    %434 = arith.mulf %425, %365 : vector<2x32xf32>
    %435 = arith.mulf %419, %427 : vector<2x32xf32>
    %436 = arith.addf %434, %435 : vector<2x32xf32>
    %437 = math.tanh %436 : vector<2x32xf32>
    %438 = arith.mulf %433, %437 : vector<2x32xf32>
    %439 = arith.index_cast %c5_i32 : i32 to index
    %c0_119 = arith.constant 0 : index
    %c0_120 = arith.constant 0 : index
    %440 = vector.load %arg18[%439, %c0_119, %c0_120] : memref<12x2x32xf32, #tpu.memory_space<vmem>>, vector<1x2x32xf32>
    %441 = vector.shape_cast %440 : vector<1x2x32xf32> to vector<2x32xf32>
    %442 = vector.shape_cast %407 : vector<2x32xf32> to vector<1x2x32xf32>
    tpu.vector_store %arg18[%439, %c0_119, %c0_120], %442 {strides = array<i32>} : memref<12x2x32xf32, #tpu.memory_space<vmem>>, vector<1x2x32xf32>,
    %443 = arith.index_cast %376 : i32 to index
    %c0_121 = arith.constant 0 : index
    %c0_122 = arith.constant 0 : index
    %444 = vector.load %arg19[%443, %c0_121, %c0_122] : memref<12x2x32xf32, #tpu.memory_space<vmem>>, vector<1x2x32xf32>
    %445 = vector.shape_cast %444 : vector<1x2x32xf32> to vector<2x32xf32>
    %446 = vector.shape_cast %438 : vector<2x32xf32> to vector<1x2x32xf32>
    tpu.vector_store %arg19[%443, %c0_121, %c0_122], %446 {strides = array<i32>} : memref<12x2x32xf32, #tpu.memory_space<vmem>>, vector<1x2x32xf32>,
    %c6_i32 = arith.constant 6 : i32
    %c11_i32_123 = arith.constant 11 : i32
    %447 = arith.subi %c11_i32_123, %c6_i32 : i32
    %448 = arith.index_cast %c6_i32 : i32 to index
    %c0_124 = arith.constant 0 : index
    %c0_125 = arith.constant 0 : index
    %449 = vector.load %arg16[%448, %c0_124, %c0_125] : memref<12x2x128xf32, #tpu.memory_space<vmem>>, vector<1x2x128xf32>
    %450 = vector.shape_cast %449 : vector<1x2x128xf32> to vector<2x128xf32>
    %451 = arith.truncf %407 : vector<2x32xf32> to vector<2x32xbf16>
    %cst_126 = arith.constant dense<0.000000e+00> : vector<2x128xf32>
    %452 = tpu.matmul %451, %18, %cst_126 {dimension_numbers = #tpu.dot_dimension_numbers<[1], [0], [0], [1], [0, 0, 1, 1], [], []>} : vector<2x32xbf16>, vector<32x128xbf16>, vector<2x128xf32> -> vector<2x128xf32>
    %453 = arith.addf %450, %452 : vector<2x128xf32>
    %454 = vector.extract_strided_slice %453 {offsets = [0, 0], sizes = [2, 32], strides = [1, 1]} : vector<2x128xf32> to vector<2x32xf32>
    %455 = arith.negf %454 : vector<2x32xf32>
    %456 = math.exp %455 : vector<2x32xf32>
    %cst_127 = arith.constant 1.000000e+00 : f32
    %457 = vector.broadcast %cst_127 : f32 to vector<2x32xf32>
    %458 = arith.addf %457, %456 : vector<2x32xf32>
    %459 = arith.divf %457, %458 : vector<2x32xf32>
    %460 = vector.extract_strided_slice %453 {offsets = [0, 32], sizes = [2, 32], strides = [1, 1]} : vector<2x128xf32> to vector<2x32xf32>
    %461 = arith.negf %460 : vector<2x32xf32>
    %462 = math.exp %461 : vector<2x32xf32>
    %cst_128 = arith.constant 1.000000e+00 : f32
    %463 = vector.broadcast %cst_128 : f32 to vector<2x32xf32>
    %464 = arith.addf %463, %462 : vector<2x32xf32>
    %465 = arith.divf %463, %464 : vector<2x32xf32>
    %466 = vector.extract_strided_slice %453 {offsets = [0, 64], sizes = [2, 32], strides = [1, 1]} : vector<2x128xf32> to vector<2x32xf32>
    %467 = math.tanh %466 : vector<2x32xf32>
    %468 = vector.extract_strided_slice %453 {offsets = [0, 96], sizes = [2, 32], strides = [1, 1]} : vector<2x128xf32> to vector<2x32xf32>
    %469 = arith.negf %468 : vector<2x32xf32>
    %470 = math.exp %469 : vector<2x32xf32>
    %cst_129 = arith.constant 1.000000e+00 : f32
    %471 = vector.broadcast %cst_129 : f32 to vector<2x32xf32>
    %472 = arith.addf %471, %470 : vector<2x32xf32>
    %473 = arith.divf %471, %472 : vector<2x32xf32>
    %474 = arith.mulf %465, %405 : vector<2x32xf32>
    %475 = arith.mulf %459, %467 : vector<2x32xf32>
    %476 = arith.addf %474, %475 : vector<2x32xf32>
    %477 = math.tanh %476 : vector<2x32xf32>
    %478 = arith.mulf %473, %477 : vector<2x32xf32>
    %479 = arith.index_cast %447 : i32 to index
    %c0_130 = arith.constant 0 : index
    %c0_131 = arith.constant 0 : index
    %480 = vector.load %arg17[%479, %c0_130, %c0_131] : memref<12x2x128xf32, #tpu.memory_space<vmem>>, vector<1x2x128xf32>
    %481 = vector.shape_cast %480 : vector<1x2x128xf32> to vector<2x128xf32>
    %482 = arith.truncf %438 : vector<2x32xf32> to vector<2x32xbf16>
    %cst_132 = arith.constant dense<0.000000e+00> : vector<2x128xf32>
    %483 = tpu.matmul %482, %19, %cst_132 {dimension_numbers = #tpu.dot_dimension_numbers<[1], [0], [0], [1], [0, 0, 1, 1], [], []>} : vector<2x32xbf16>, vector<32x128xbf16>, vector<2x128xf32> -> vector<2x128xf32>
    %484 = arith.addf %481, %483 : vector<2x128xf32>
    %485 = vector.extract_strided_slice %484 {offsets = [0, 0], sizes = [2, 32], strides = [1, 1]} : vector<2x128xf32> to vector<2x32xf32>
    %486 = arith.negf %485 : vector<2x32xf32>
    %487 = math.exp %486 : vector<2x32xf32>
    %cst_133 = arith.constant 1.000000e+00 : f32
    %488 = vector.broadcast %cst_133 : f32 to vector<2x32xf32>
    %489 = arith.addf %488, %487 : vector<2x32xf32>
    %490 = arith.divf %488, %489 : vector<2x32xf32>
    %491 = vector.extract_strided_slice %484 {offsets = [0, 32], sizes = [2, 32], strides = [1, 1]} : vector<2x128xf32> to vector<2x32xf32>
    %492 = arith.negf %491 : vector<2x32xf32>
    %493 = math.exp %492 : vector<2x32xf32>
    %cst_134 = arith.constant 1.000000e+00 : f32
    %494 = vector.broadcast %cst_134 : f32 to vector<2x32xf32>
    %495 = arith.addf %494, %493 : vector<2x32xf32>
    %496 = arith.divf %494, %495 : vector<2x32xf32>
    %497 = vector.extract_strided_slice %484 {offsets = [0, 64], sizes = [2, 32], strides = [1, 1]} : vector<2x128xf32> to vector<2x32xf32>
    %498 = math.tanh %497 : vector<2x32xf32>
    %499 = vector.extract_strided_slice %484 {offsets = [0, 96], sizes = [2, 32], strides = [1, 1]} : vector<2x128xf32> to vector<2x32xf32>
    %500 = arith.negf %499 : vector<2x32xf32>
    %501 = math.exp %500 : vector<2x32xf32>
    %cst_135 = arith.constant 1.000000e+00 : f32
    %502 = vector.broadcast %cst_135 : f32 to vector<2x32xf32>
    %503 = arith.addf %502, %501 : vector<2x32xf32>
    %504 = arith.divf %502, %503 : vector<2x32xf32>
    %505 = arith.mulf %496, %436 : vector<2x32xf32>
    %506 = arith.mulf %490, %498 : vector<2x32xf32>
    %507 = arith.addf %505, %506 : vector<2x32xf32>
    %508 = math.tanh %507 : vector<2x32xf32>
    %509 = arith.mulf %504, %508 : vector<2x32xf32>
    %510 = arith.index_cast %c6_i32 : i32 to index
    %c0_136 = arith.constant 0 : index
    %c0_137 = arith.constant 0 : index
    %511 = vector.load %arg18[%510, %c0_136, %c0_137] : memref<12x2x32xf32, #tpu.memory_space<vmem>>, vector<1x2x32xf32>
    %512 = vector.shape_cast %511 : vector<1x2x32xf32> to vector<2x32xf32>
    %513 = vector.shape_cast %478 : vector<2x32xf32> to vector<1x2x32xf32>
    tpu.vector_store %arg18[%510, %c0_136, %c0_137], %513 {strides = array<i32>} : memref<12x2x32xf32, #tpu.memory_space<vmem>>, vector<1x2x32xf32>,
    %514 = arith.index_cast %447 : i32 to index
    %c0_138 = arith.constant 0 : index
    %c0_139 = arith.constant 0 : index
    %515 = vector.load %arg19[%514, %c0_138, %c0_139] : memref<12x2x32xf32, #tpu.memory_space<vmem>>, vector<1x2x32xf32>
    %516 = vector.shape_cast %515 : vector<1x2x32xf32> to vector<2x32xf32>
    %517 = vector.shape_cast %509 : vector<2x32xf32> to vector<1x2x32xf32>
    tpu.vector_store %arg19[%514, %c0_138, %c0_139], %517 {strides = array<i32>} : memref<12x2x32xf32, #tpu.memory_space<vmem>>, vector<1x2x32xf32>,
    %c7_i32 = arith.constant 7 : i32
    %c11_i32_140 = arith.constant 11 : i32
    %518 = arith.subi %c11_i32_140, %c7_i32 : i32
    %519 = arith.index_cast %c7_i32 : i32 to index
    %c0_141 = arith.constant 0 : index
    %c0_142 = arith.constant 0 : index
    %520 = vector.load %arg16[%519, %c0_141, %c0_142] : memref<12x2x128xf32, #tpu.memory_space<vmem>>, vector<1x2x128xf32>
    %521 = vector.shape_cast %520 : vector<1x2x128xf32> to vector<2x128xf32>
    %522 = arith.truncf %478 : vector<2x32xf32> to vector<2x32xbf16>
    %cst_143 = arith.constant dense<0.000000e+00> : vector<2x128xf32>
    %523 = tpu.matmul %522, %18, %cst_143 {dimension_numbers = #tpu.dot_dimension_numbers<[1], [0], [0], [1], [0, 0, 1, 1], [], []>} : vector<2x32xbf16>, vector<32x128xbf16>, vector<2x128xf32> -> vector<2x128xf32>
    %524 = arith.addf %521, %523 : vector<2x128xf32>
    %525 = vector.extract_strided_slice %524 {offsets = [0, 0], sizes = [2, 32], strides = [1, 1]} : vector<2x128xf32> to vector<2x32xf32>
    %526 = arith.negf %525 : vector<2x32xf32>
    %527 = math.exp %526 : vector<2x32xf32>
    %cst_144 = arith.constant 1.000000e+00 : f32
    %528 = vector.broadcast %cst_144 : f32 to vector<2x32xf32>
    %529 = arith.addf %528, %527 : vector<2x32xf32>
    %530 = arith.divf %528, %529 : vector<2x32xf32>
    %531 = vector.extract_strided_slice %524 {offsets = [0, 32], sizes = [2, 32], strides = [1, 1]} : vector<2x128xf32> to vector<2x32xf32>
    %532 = arith.negf %531 : vector<2x32xf32>
    %533 = math.exp %532 : vector<2x32xf32>
    %cst_145 = arith.constant 1.000000e+00 : f32
    %534 = vector.broadcast %cst_145 : f32 to vector<2x32xf32>
    %535 = arith.addf %534, %533 : vector<2x32xf32>
    %536 = arith.divf %534, %535 : vector<2x32xf32>
    %537 = vector.extract_strided_slice %524 {offsets = [0, 64], sizes = [2, 32], strides = [1, 1]} : vector<2x128xf32> to vector<2x32xf32>
    %538 = math.tanh %537 : vector<2x32xf32>
    %539 = vector.extract_strided_slice %524 {offsets = [0, 96], sizes = [2, 32], strides = [1, 1]} : vector<2x128xf32> to vector<2x32xf32>
    %540 = arith.negf %539 : vector<2x32xf32>
    %541 = math.exp %540 : vector<2x32xf32>
    %cst_146 = arith.constant 1.000000e+00 : f32
    %542 = vector.broadcast %cst_146 : f32 to vector<2x32xf32>
    %543 = arith.addf %542, %541 : vector<2x32xf32>
    %544 = arith.divf %542, %543 : vector<2x32xf32>
    %545 = arith.mulf %536, %476 : vector<2x32xf32>
    %546 = arith.mulf %530, %538 : vector<2x32xf32>
    %547 = arith.addf %545, %546 : vector<2x32xf32>
    %548 = math.tanh %547 : vector<2x32xf32>
    %549 = arith.mulf %544, %548 : vector<2x32xf32>
    %550 = arith.index_cast %518 : i32 to index
    %c0_147 = arith.constant 0 : index
    %c0_148 = arith.constant 0 : index
    %551 = vector.load %arg17[%550, %c0_147, %c0_148] : memref<12x2x128xf32, #tpu.memory_space<vmem>>, vector<1x2x128xf32>
    %552 = vector.shape_cast %551 : vector<1x2x128xf32> to vector<2x128xf32>
    %553 = arith.truncf %509 : vector<2x32xf32> to vector<2x32xbf16>
    %cst_149 = arith.constant dense<0.000000e+00> : vector<2x128xf32>
    %554 = tpu.matmul %553, %19, %cst_149 {dimension_numbers = #tpu.dot_dimension_numbers<[1], [0], [0], [1], [0, 0, 1, 1], [], []>} : vector<2x32xbf16>, vector<32x128xbf16>, vector<2x128xf32> -> vector<2x128xf32>
    %555 = arith.addf %552, %554 : vector<2x128xf32>
    %556 = vector.extract_strided_slice %555 {offsets = [0, 0], sizes = [2, 32], strides = [1, 1]} : vector<2x128xf32> to vector<2x32xf32>
    %557 = arith.negf %556 : vector<2x32xf32>
    %558 = math.exp %557 : vector<2x32xf32>
    %cst_150 = arith.constant 1.000000e+00 : f32
    %559 = vector.broadcast %cst_150 : f32 to vector<2x32xf32>
    %560 = arith.addf %559, %558 : vector<2x32xf32>
    %561 = arith.divf %559, %560 : vector<2x32xf32>
    %562 = vector.extract_strided_slice %555 {offsets = [0, 32], sizes = [2, 32], strides = [1, 1]} : vector<2x128xf32> to vector<2x32xf32>
    %563 = arith.negf %562 : vector<2x32xf32>
    %564 = math.exp %563 : vector<2x32xf32>
    %cst_151 = arith.constant 1.000000e+00 : f32
    %565 = vector.broadcast %cst_151 : f32 to vector<2x32xf32>
    %566 = arith.addf %565, %564 : vector<2x32xf32>
    %567 = arith.divf %565, %566 : vector<2x32xf32>
    %568 = vector.extract_strided_slice %555 {offsets = [0, 64], sizes = [2, 32], strides = [1, 1]} : vector<2x128xf32> to vector<2x32xf32>
    %569 = math.tanh %568 : vector<2x32xf32>
    %570 = vector.extract_strided_slice %555 {offsets = [0, 96], sizes = [2, 32], strides = [1, 1]} : vector<2x128xf32> to vector<2x32xf32>
    %571 = arith.negf %570 : vector<2x32xf32>
    %572 = math.exp %571 : vector<2x32xf32>
    %cst_152 = arith.constant 1.000000e+00 : f32
    %573 = vector.broadcast %cst_152 : f32 to vector<2x32xf32>
    %574 = arith.addf %573, %572 : vector<2x32xf32>
    %575 = arith.divf %573, %574 : vector<2x32xf32>
    %576 = arith.mulf %567, %507 : vector<2x32xf32>
    %577 = arith.mulf %561, %569 : vector<2x32xf32>
    %578 = arith.addf %576, %577 : vector<2x32xf32>
    %579 = math.tanh %578 : vector<2x32xf32>
    %580 = arith.mulf %575, %579 : vector<2x32xf32>
    %581 = arith.index_cast %c7_i32 : i32 to index
    %c0_153 = arith.constant 0 : index
    %c0_154 = arith.constant 0 : index
    %582 = vector.load %arg18[%581, %c0_153, %c0_154] : memref<12x2x32xf32, #tpu.memory_space<vmem>>, vector<1x2x32xf32>
    %583 = vector.shape_cast %582 : vector<1x2x32xf32> to vector<2x32xf32>
    %584 = vector.shape_cast %549 : vector<2x32xf32> to vector<1x2x32xf32>
    tpu.vector_store %arg18[%581, %c0_153, %c0_154], %584 {strides = array<i32>} : memref<12x2x32xf32, #tpu.memory_space<vmem>>, vector<1x2x32xf32>,
    %585 = arith.index_cast %518 : i32 to index
    %c0_155 = arith.constant 0 : index
    %c0_156 = arith.constant 0 : index
    %586 = vector.load %arg19[%585, %c0_155, %c0_156] : memref<12x2x32xf32, #tpu.memory_space<vmem>>, vector<1x2x32xf32>
    %587 = vector.shape_cast %586 : vector<1x2x32xf32> to vector<2x32xf32>
    %588 = vector.shape_cast %580 : vector<2x32xf32> to vector<1x2x32xf32>
    tpu.vector_store %arg19[%585, %c0_155, %c0_156], %588 {strides = array<i32>} : memref<12x2x32xf32, #tpu.memory_space<vmem>>, vector<1x2x32xf32>,
    %c8_i32 = arith.constant 8 : i32
    %c11_i32_157 = arith.constant 11 : i32
    %589 = arith.subi %c11_i32_157, %c8_i32 : i32
    %590 = arith.index_cast %c8_i32 : i32 to index
    %c0_158 = arith.constant 0 : index
    %c0_159 = arith.constant 0 : index
    %591 = vector.load %arg16[%590, %c0_158, %c0_159] : memref<12x2x128xf32, #tpu.memory_space<vmem>>, vector<1x2x128xf32>
    %592 = vector.shape_cast %591 : vector<1x2x128xf32> to vector<2x128xf32>
    %593 = arith.truncf %549 : vector<2x32xf32> to vector<2x32xbf16>
    %cst_160 = arith.constant dense<0.000000e+00> : vector<2x128xf32>
    %594 = tpu.matmul %593, %18, %cst_160 {dimension_numbers = #tpu.dot_dimension_numbers<[1], [0], [0], [1], [0, 0, 1, 1], [], []>} : vector<2x32xbf16>, vector<32x128xbf16>, vector<2x128xf32> -> vector<2x128xf32>
    %595 = arith.addf %592, %594 : vector<2x128xf32>
    %596 = vector.extract_strided_slice %595 {offsets = [0, 0], sizes = [2, 32], strides = [1, 1]} : vector<2x128xf32> to vector<2x32xf32>
    %597 = arith.negf %596 : vector<2x32xf32>
    %598 = math.exp %597 : vector<2x32xf32>
    %cst_161 = arith.constant 1.000000e+00 : f32
    %599 = vector.broadcast %cst_161 : f32 to vector<2x32xf32>
    %600 = arith.addf %599, %598 : vector<2x32xf32>
    %601 = arith.divf %599, %600 : vector<2x32xf32>
    %602 = vector.extract_strided_slice %595 {offsets = [0, 32], sizes = [2, 32], strides = [1, 1]} : vector<2x128xf32> to vector<2x32xf32>
    %603 = arith.negf %602 : vector<2x32xf32>
    %604 = math.exp %603 : vector<2x32xf32>
    %cst_162 = arith.constant 1.000000e+00 : f32
    %605 = vector.broadcast %cst_162 : f32 to vector<2x32xf32>
    %606 = arith.addf %605, %604 : vector<2x32xf32>
    %607 = arith.divf %605, %606 : vector<2x32xf32>
    %608 = vector.extract_strided_slice %595 {offsets = [0, 64], sizes = [2, 32], strides = [1, 1]} : vector<2x128xf32> to vector<2x32xf32>
    %609 = math.tanh %608 : vector<2x32xf32>
    %610 = vector.extract_strided_slice %595 {offsets = [0, 96], sizes = [2, 32], strides = [1, 1]} : vector<2x128xf32> to vector<2x32xf32>
    %611 = arith.negf %610 : vector<2x32xf32>
    %612 = math.exp %611 : vector<2x32xf32>
    %cst_163 = arith.constant 1.000000e+00 : f32
    %613 = vector.broadcast %cst_163 : f32 to vector<2x32xf32>
    %614 = arith.addf %613, %612 : vector<2x32xf32>
    %615 = arith.divf %613, %614 : vector<2x32xf32>
    %616 = arith.mulf %607, %547 : vector<2x32xf32>
    %617 = arith.mulf %601, %609 : vector<2x32xf32>
    %618 = arith.addf %616, %617 : vector<2x32xf32>
    %619 = math.tanh %618 : vector<2x32xf32>
    %620 = arith.mulf %615, %619 : vector<2x32xf32>
    %621 = arith.index_cast %589 : i32 to index
    %c0_164 = arith.constant 0 : index
    %c0_165 = arith.constant 0 : index
    %622 = vector.load %arg17[%621, %c0_164, %c0_165] : memref<12x2x128xf32, #tpu.memory_space<vmem>>, vector<1x2x128xf32>
    %623 = vector.shape_cast %622 : vector<1x2x128xf32> to vector<2x128xf32>
    %624 = arith.truncf %580 : vector<2x32xf32> to vector<2x32xbf16>
    %cst_166 = arith.constant dense<0.000000e+00> : vector<2x128xf32>
    %625 = tpu.matmul %624, %19, %cst_166 {dimension_numbers = #tpu.dot_dimension_numbers<[1], [0], [0], [1], [0, 0, 1, 1], [], []>} : vector<2x32xbf16>, vector<32x128xbf16>, vector<2x128xf32> -> vector<2x128xf32>
    %626 = arith.addf %623, %625 : vector<2x128xf32>
    %627 = vector.extract_strided_slice %626 {offsets = [0, 0], sizes = [2, 32], strides = [1, 1]} : vector<2x128xf32> to vector<2x32xf32>
    %628 = arith.negf %627 : vector<2x32xf32>
    %629 = math.exp %628 : vector<2x32xf32>
    %cst_167 = arith.constant 1.000000e+00 : f32
    %630 = vector.broadcast %cst_167 : f32 to vector<2x32xf32>
    %631 = arith.addf %630, %629 : vector<2x32xf32>
    %632 = arith.divf %630, %631 : vector<2x32xf32>
    %633 = vector.extract_strided_slice %626 {offsets = [0, 32], sizes = [2, 32], strides = [1, 1]} : vector<2x128xf32> to vector<2x32xf32>
    %634 = arith.negf %633 : vector<2x32xf32>
    %635 = math.exp %634 : vector<2x32xf32>
    %cst_168 = arith.constant 1.000000e+00 : f32
    %636 = vector.broadcast %cst_168 : f32 to vector<2x32xf32>
    %637 = arith.addf %636, %635 : vector<2x32xf32>
    %638 = arith.divf %636, %637 : vector<2x32xf32>
    %639 = vector.extract_strided_slice %626 {offsets = [0, 64], sizes = [2, 32], strides = [1, 1]} : vector<2x128xf32> to vector<2x32xf32>
    %640 = math.tanh %639 : vector<2x32xf32>
    %641 = vector.extract_strided_slice %626 {offsets = [0, 96], sizes = [2, 32], strides = [1, 1]} : vector<2x128xf32> to vector<2x32xf32>
    %642 = arith.negf %641 : vector<2x32xf32>
    %643 = math.exp %642 : vector<2x32xf32>
    %cst_169 = arith.constant 1.000000e+00 : f32
    %644 = vector.broadcast %cst_169 : f32 to vector<2x32xf32>
    %645 = arith.addf %644, %643 : vector<2x32xf32>
    %646 = arith.divf %644, %645 : vector<2x32xf32>
    %647 = arith.mulf %638, %578 : vector<2x32xf32>
    %648 = arith.mulf %632, %640 : vector<2x32xf32>
    %649 = arith.addf %647, %648 : vector<2x32xf32>
    %650 = math.tanh %649 : vector<2x32xf32>
    %651 = arith.mulf %646, %650 : vector<2x32xf32>
    %652 = arith.index_cast %c8_i32 : i32 to index
    %c0_170 = arith.constant 0 : index
    %c0_171 = arith.constant 0 : index
    %653 = vector.load %arg18[%652, %c0_170, %c0_171] : memref<12x2x32xf32, #tpu.memory_space<vmem>>, vector<1x2x32xf32>
    %654 = vector.shape_cast %653 : vector<1x2x32xf32> to vector<2x32xf32>
    %655 = vector.shape_cast %620 : vector<2x32xf32> to vector<1x2x32xf32>
    tpu.vector_store %arg18[%652, %c0_170, %c0_171], %655 {strides = array<i32>} : memref<12x2x32xf32, #tpu.memory_space<vmem>>, vector<1x2x32xf32>,
    %656 = arith.index_cast %589 : i32 to index
    %c0_172 = arith.constant 0 : index
    %c0_173 = arith.constant 0 : index
    %657 = vector.load %arg19[%656, %c0_172, %c0_173] : memref<12x2x32xf32, #tpu.memory_space<vmem>>, vector<1x2x32xf32>
    %658 = vector.shape_cast %657 : vector<1x2x32xf32> to vector<2x32xf32>
    %659 = vector.shape_cast %651 : vector<2x32xf32> to vector<1x2x32xf32>
    tpu.vector_store %arg19[%656, %c0_172, %c0_173], %659 {strides = array<i32>} : memref<12x2x32xf32, #tpu.memory_space<vmem>>, vector<1x2x32xf32>,
    %c9_i32 = arith.constant 9 : i32
    %c11_i32_174 = arith.constant 11 : i32
    %660 = arith.subi %c11_i32_174, %c9_i32 : i32
    %661 = arith.index_cast %c9_i32 : i32 to index
    %c0_175 = arith.constant 0 : index
    %c0_176 = arith.constant 0 : index
    %662 = vector.load %arg16[%661, %c0_175, %c0_176] : memref<12x2x128xf32, #tpu.memory_space<vmem>>, vector<1x2x128xf32>
    %663 = vector.shape_cast %662 : vector<1x2x128xf32> to vector<2x128xf32>
    %664 = arith.truncf %620 : vector<2x32xf32> to vector<2x32xbf16>
    %cst_177 = arith.constant dense<0.000000e+00> : vector<2x128xf32>
    %665 = tpu.matmul %664, %18, %cst_177 {dimension_numbers = #tpu.dot_dimension_numbers<[1], [0], [0], [1], [0, 0, 1, 1], [], []>} : vector<2x32xbf16>, vector<32x128xbf16>, vector<2x128xf32> -> vector<2x128xf32>
    %666 = arith.addf %663, %665 : vector<2x128xf32>
    %667 = vector.extract_strided_slice %666 {offsets = [0, 0], sizes = [2, 32], strides = [1, 1]} : vector<2x128xf32> to vector<2x32xf32>
    %668 = arith.negf %667 : vector<2x32xf32>
    %669 = math.exp %668 : vector<2x32xf32>
    %cst_178 = arith.constant 1.000000e+00 : f32
    %670 = vector.broadcast %cst_178 : f32 to vector<2x32xf32>
    %671 = arith.addf %670, %669 : vector<2x32xf32>
    %672 = arith.divf %670, %671 : vector<2x32xf32>
    %673 = vector.extract_strided_slice %666 {offsets = [0, 32], sizes = [2, 32], strides = [1, 1]} : vector<2x128xf32> to vector<2x32xf32>
    %674 = arith.negf %673 : vector<2x32xf32>
    %675 = math.exp %674 : vector<2x32xf32>
    %cst_179 = arith.constant 1.000000e+00 : f32
    %676 = vector.broadcast %cst_179 : f32 to vector<2x32xf32>
    %677 = arith.addf %676, %675 : vector<2x32xf32>
    %678 = arith.divf %676, %677 : vector<2x32xf32>
    %679 = vector.extract_strided_slice %666 {offsets = [0, 64], sizes = [2, 32], strides = [1, 1]} : vector<2x128xf32> to vector<2x32xf32>
    %680 = math.tanh %679 : vector<2x32xf32>
    %681 = vector.extract_strided_slice %666 {offsets = [0, 96], sizes = [2, 32], strides = [1, 1]} : vector<2x128xf32> to vector<2x32xf32>
    %682 = arith.negf %681 : vector<2x32xf32>
    %683 = math.exp %682 : vector<2x32xf32>
    %cst_180 = arith.constant 1.000000e+00 : f32
    %684 = vector.broadcast %cst_180 : f32 to vector<2x32xf32>
    %685 = arith.addf %684, %683 : vector<2x32xf32>
    %686 = arith.divf %684, %685 : vector<2x32xf32>
    %687 = arith.mulf %678, %618 : vector<2x32xf32>
    %688 = arith.mulf %672, %680 : vector<2x32xf32>
    %689 = arith.addf %687, %688 : vector<2x32xf32>
    %690 = math.tanh %689 : vector<2x32xf32>
    %691 = arith.mulf %686, %690 : vector<2x32xf32>
    %692 = arith.index_cast %660 : i32 to index
    %c0_181 = arith.constant 0 : index
    %c0_182 = arith.constant 0 : index
    %693 = vector.load %arg17[%692, %c0_181, %c0_182] : memref<12x2x128xf32, #tpu.memory_space<vmem>>, vector<1x2x128xf32>
    %694 = vector.shape_cast %693 : vector<1x2x128xf32> to vector<2x128xf32>
    %695 = arith.truncf %651 : vector<2x32xf32> to vector<2x32xbf16>
    %cst_183 = arith.constant dense<0.000000e+00> : vector<2x128xf32>
    %696 = tpu.matmul %695, %19, %cst_183 {dimension_numbers = #tpu.dot_dimension_numbers<[1], [0], [0], [1], [0, 0, 1, 1], [], []>} : vector<2x32xbf16>, vector<32x128xbf16>, vector<2x128xf32> -> vector<2x128xf32>
    %697 = arith.addf %694, %696 : vector<2x128xf32>
    %698 = vector.extract_strided_slice %697 {offsets = [0, 0], sizes = [2, 32], strides = [1, 1]} : vector<2x128xf32> to vector<2x32xf32>
    %699 = arith.negf %698 : vector<2x32xf32>
    %700 = math.exp %699 : vector<2x32xf32>
    %cst_184 = arith.constant 1.000000e+00 : f32
    %701 = vector.broadcast %cst_184 : f32 to vector<2x32xf32>
    %702 = arith.addf %701, %700 : vector<2x32xf32>
    %703 = arith.divf %701, %702 : vector<2x32xf32>
    %704 = vector.extract_strided_slice %697 {offsets = [0, 32], sizes = [2, 32], strides = [1, 1]} : vector<2x128xf32> to vector<2x32xf32>
    %705 = arith.negf %704 : vector<2x32xf32>
    %706 = math.exp %705 : vector<2x32xf32>
    %cst_185 = arith.constant 1.000000e+00 : f32
    %707 = vector.broadcast %cst_185 : f32 to vector<2x32xf32>
    %708 = arith.addf %707, %706 : vector<2x32xf32>
    %709 = arith.divf %707, %708 : vector<2x32xf32>
    %710 = vector.extract_strided_slice %697 {offsets = [0, 64], sizes = [2, 32], strides = [1, 1]} : vector<2x128xf32> to vector<2x32xf32>
    %711 = math.tanh %710 : vector<2x32xf32>
    %712 = vector.extract_strided_slice %697 {offsets = [0, 96], sizes = [2, 32], strides = [1, 1]} : vector<2x128xf32> to vector<2x32xf32>
    %713 = arith.negf %712 : vector<2x32xf32>
    %714 = math.exp %713 : vector<2x32xf32>
    %cst_186 = arith.constant 1.000000e+00 : f32
    %715 = vector.broadcast %cst_186 : f32 to vector<2x32xf32>
    %716 = arith.addf %715, %714 : vector<2x32xf32>
    %717 = arith.divf %715, %716 : vector<2x32xf32>
    %718 = arith.mulf %709, %649 : vector<2x32xf32>
    %719 = arith.mulf %703, %711 : vector<2x32xf32>
    %720 = arith.addf %718, %719 : vector<2x32xf32>
    %721 = math.tanh %720 : vector<2x32xf32>
    %722 = arith.mulf %717, %721 : vector<2x32xf32>
    %723 = arith.index_cast %c9_i32 : i32 to index
    %c0_187 = arith.constant 0 : index
    %c0_188 = arith.constant 0 : index
    %724 = vector.load %arg18[%723, %c0_187, %c0_188] : memref<12x2x32xf32, #tpu.memory_space<vmem>>, vector<1x2x32xf32>
    %725 = vector.shape_cast %724 : vector<1x2x32xf32> to vector<2x32xf32>
    %726 = vector.shape_cast %691 : vector<2x32xf32> to vector<1x2x32xf32>
    tpu.vector_store %arg18[%723, %c0_187, %c0_188], %726 {strides = array<i32>} : memref<12x2x32xf32, #tpu.memory_space<vmem>>, vector<1x2x32xf32>,
    %727 = arith.index_cast %660 : i32 to index
    %c0_189 = arith.constant 0 : index
    %c0_190 = arith.constant 0 : index
    %728 = vector.load %arg19[%727, %c0_189, %c0_190] : memref<12x2x32xf32, #tpu.memory_space<vmem>>, vector<1x2x32xf32>
    %729 = vector.shape_cast %728 : vector<1x2x32xf32> to vector<2x32xf32>
    %730 = vector.shape_cast %722 : vector<2x32xf32> to vector<1x2x32xf32>
    tpu.vector_store %arg19[%727, %c0_189, %c0_190], %730 {strides = array<i32>} : memref<12x2x32xf32, #tpu.memory_space<vmem>>, vector<1x2x32xf32>,
    %c10_i32 = arith.constant 10 : i32
    %c11_i32_191 = arith.constant 11 : i32
    %731 = arith.subi %c11_i32_191, %c10_i32 : i32
    %732 = arith.index_cast %c10_i32 : i32 to index
    %c0_192 = arith.constant 0 : index
    %c0_193 = arith.constant 0 : index
    %733 = vector.load %arg16[%732, %c0_192, %c0_193] : memref<12x2x128xf32, #tpu.memory_space<vmem>>, vector<1x2x128xf32>
    %734 = vector.shape_cast %733 : vector<1x2x128xf32> to vector<2x128xf32>
    %735 = arith.truncf %691 : vector<2x32xf32> to vector<2x32xbf16>
    %cst_194 = arith.constant dense<0.000000e+00> : vector<2x128xf32>
    %736 = tpu.matmul %735, %18, %cst_194 {dimension_numbers = #tpu.dot_dimension_numbers<[1], [0], [0], [1], [0, 0, 1, 1], [], []>} : vector<2x32xbf16>, vector<32x128xbf16>, vector<2x128xf32> -> vector<2x128xf32>
    %737 = arith.addf %734, %736 : vector<2x128xf32>
    %738 = vector.extract_strided_slice %737 {offsets = [0, 0], sizes = [2, 32], strides = [1, 1]} : vector<2x128xf32> to vector<2x32xf32>
    %739 = arith.negf %738 : vector<2x32xf32>
    %740 = math.exp %739 : vector<2x32xf32>
    %cst_195 = arith.constant 1.000000e+00 : f32
    %741 = vector.broadcast %cst_195 : f32 to vector<2x32xf32>
    %742 = arith.addf %741, %740 : vector<2x32xf32>
    %743 = arith.divf %741, %742 : vector<2x32xf32>
    %744 = vector.extract_strided_slice %737 {offsets = [0, 32], sizes = [2, 32], strides = [1, 1]} : vector<2x128xf32> to vector<2x32xf32>
    %745 = arith.negf %744 : vector<2x32xf32>
    %746 = math.exp %745 : vector<2x32xf32>
    %cst_196 = arith.constant 1.000000e+00 : f32
    %747 = vector.broadcast %cst_196 : f32 to vector<2x32xf32>
    %748 = arith.addf %747, %746 : vector<2x32xf32>
    %749 = arith.divf %747, %748 : vector<2x32xf32>
    %750 = vector.extract_strided_slice %737 {offsets = [0, 64], sizes = [2, 32], strides = [1, 1]} : vector<2x128xf32> to vector<2x32xf32>
    %751 = math.tanh %750 : vector<2x32xf32>
    %752 = vector.extract_strided_slice %737 {offsets = [0, 96], sizes = [2, 32], strides = [1, 1]} : vector<2x128xf32> to vector<2x32xf32>
    %753 = arith.negf %752 : vector<2x32xf32>
    %754 = math.exp %753 : vector<2x32xf32>
    %cst_197 = arith.constant 1.000000e+00 : f32
    %755 = vector.broadcast %cst_197 : f32 to vector<2x32xf32>
    %756 = arith.addf %755, %754 : vector<2x32xf32>
    %757 = arith.divf %755, %756 : vector<2x32xf32>
    %758 = arith.mulf %749, %689 : vector<2x32xf32>
    %759 = arith.mulf %743, %751 : vector<2x32xf32>
    %760 = arith.addf %758, %759 : vector<2x32xf32>
    %761 = math.tanh %760 : vector<2x32xf32>
    %762 = arith.mulf %757, %761 : vector<2x32xf32>
    %763 = arith.index_cast %731 : i32 to index
    %c0_198 = arith.constant 0 : index
    %c0_199 = arith.constant 0 : index
    %764 = vector.load %arg17[%763, %c0_198, %c0_199] : memref<12x2x128xf32, #tpu.memory_space<vmem>>, vector<1x2x128xf32>
    %765 = vector.shape_cast %764 : vector<1x2x128xf32> to vector<2x128xf32>
    %766 = arith.truncf %722 : vector<2x32xf32> to vector<2x32xbf16>
    %cst_200 = arith.constant dense<0.000000e+00> : vector<2x128xf32>
    %767 = tpu.matmul %766, %19, %cst_200 {dimension_numbers = #tpu.dot_dimension_numbers<[1], [0], [0], [1], [0, 0, 1, 1], [], []>} : vector<2x32xbf16>, vector<32x128xbf16>, vector<2x128xf32> -> vector<2x128xf32>
    %768 = arith.addf %765, %767 : vector<2x128xf32>
    %769 = vector.extract_strided_slice %768 {offsets = [0, 0], sizes = [2, 32], strides = [1, 1]} : vector<2x128xf32> to vector<2x32xf32>
    %770 = arith.negf %769 : vector<2x32xf32>
    %771 = math.exp %770 : vector<2x32xf32>
    %cst_201 = arith.constant 1.000000e+00 : f32
    %772 = vector.broadcast %cst_201 : f32 to vector<2x32xf32>
    %773 = arith.addf %772, %771 : vector<2x32xf32>
    %774 = arith.divf %772, %773 : vector<2x32xf32>
    %775 = vector.extract_strided_slice %768 {offsets = [0, 32], sizes = [2, 32], strides = [1, 1]} : vector<2x128xf32> to vector<2x32xf32>
    %776 = arith.negf %775 : vector<2x32xf32>
    %777 = math.exp %776 : vector<2x32xf32>
    %cst_202 = arith.constant 1.000000e+00 : f32
    %778 = vector.broadcast %cst_202 : f32 to vector<2x32xf32>
    %779 = arith.addf %778, %777 : vector<2x32xf32>
    %780 = arith.divf %778, %779 : vector<2x32xf32>
    %781 = vector.extract_strided_slice %768 {offsets = [0, 64], sizes = [2, 32], strides = [1, 1]} : vector<2x128xf32> to vector<2x32xf32>
    %782 = math.tanh %781 : vector<2x32xf32>
    %783 = vector.extract_strided_slice %768 {offsets = [0, 96], sizes = [2, 32], strides = [1, 1]} : vector<2x128xf32> to vector<2x32xf32>
    %784 = arith.negf %783 : vector<2x32xf32>
    %785 = math.exp %784 : vector<2x32xf32>
    %cst_203 = arith.constant 1.000000e+00 : f32
    %786 = vector.broadcast %cst_203 : f32 to vector<2x32xf32>
    %787 = arith.addf %786, %785 : vector<2x32xf32>
    %788 = arith.divf %786, %787 : vector<2x32xf32>
    %789 = arith.mulf %780, %720 : vector<2x32xf32>
    %790 = arith.mulf %774, %782 : vector<2x32xf32>
    %791 = arith.addf %789, %790 : vector<2x32xf32>
    %792 = math.tanh %791 : vector<2x32xf32>
    %793 = arith.mulf %788, %792 : vector<2x32xf32>
    %794 = arith.index_cast %c10_i32 : i32 to index
    %c0_204 = arith.constant 0 : index
    %c0_205 = arith.constant 0 : index
    %795 = vector.load %arg18[%794, %c0_204, %c0_205] : memref<12x2x32xf32, #tpu.memory_space<vmem>>, vector<1x2x32xf32>
    %796 = vector.shape_cast %795 : vector<1x2x32xf32> to vector<2x32xf32>
    %797 = vector.shape_cast %762 : vector<2x32xf32> to vector<1x2x32xf32>
    tpu.vector_store %arg18[%794, %c0_204, %c0_205], %797 {strides = array<i32>} : memref<12x2x32xf32, #tpu.memory_space<vmem>>, vector<1x2x32xf32>,
    %798 = arith.index_cast %731 : i32 to index
    %c0_206 = arith.constant 0 : index
    %c0_207 = arith.constant 0 : index
    %799 = vector.load %arg19[%798, %c0_206, %c0_207] : memref<12x2x32xf32, #tpu.memory_space<vmem>>, vector<1x2x32xf32>
    %800 = vector.shape_cast %799 : vector<1x2x32xf32> to vector<2x32xf32>
    %801 = vector.shape_cast %793 : vector<2x32xf32> to vector<1x2x32xf32>
    tpu.vector_store %arg19[%798, %c0_206, %c0_207], %801 {strides = array<i32>} : memref<12x2x32xf32, #tpu.memory_space<vmem>>, vector<1x2x32xf32>,
    %c11_i32_208 = arith.constant 11 : i32
    %c11_i32_209 = arith.constant 11 : i32
    %802 = arith.subi %c11_i32_209, %c11_i32_208 : i32
    %803 = arith.index_cast %c11_i32_208 : i32 to index
    %c0_210 = arith.constant 0 : index
    %c0_211 = arith.constant 0 : index
    %804 = vector.load %arg16[%803, %c0_210, %c0_211] : memref<12x2x128xf32, #tpu.memory_space<vmem>>, vector<1x2x128xf32>
    %805 = vector.shape_cast %804 : vector<1x2x128xf32> to vector<2x128xf32>
    %806 = arith.truncf %762 : vector<2x32xf32> to vector<2x32xbf16>
    %cst_212 = arith.constant dense<0.000000e+00> : vector<2x128xf32>
    %807 = tpu.matmul %806, %18, %cst_212 {dimension_numbers = #tpu.dot_dimension_numbers<[1], [0], [0], [1], [0, 0, 1, 1], [], []>} : vector<2x32xbf16>, vector<32x128xbf16>, vector<2x128xf32> -> vector<2x128xf32>
    %808 = arith.addf %805, %807 : vector<2x128xf32>
    %809 = vector.extract_strided_slice %808 {offsets = [0, 0], sizes = [2, 32], strides = [1, 1]} : vector<2x128xf32> to vector<2x32xf32>
    %810 = arith.negf %809 : vector<2x32xf32>
    %811 = math.exp %810 : vector<2x32xf32>
    %cst_213 = arith.constant 1.000000e+00 : f32
    %812 = vector.broadcast %cst_213 : f32 to vector<2x32xf32>
    %813 = arith.addf %812, %811 : vector<2x32xf32>
    %814 = arith.divf %812, %813 : vector<2x32xf32>
    %815 = vector.extract_strided_slice %808 {offsets = [0, 32], sizes = [2, 32], strides = [1, 1]} : vector<2x128xf32> to vector<2x32xf32>
    %816 = arith.negf %815 : vector<2x32xf32>
    %817 = math.exp %816 : vector<2x32xf32>
    %cst_214 = arith.constant 1.000000e+00 : f32
    %818 = vector.broadcast %cst_214 : f32 to vector<2x32xf32>
    %819 = arith.addf %818, %817 : vector<2x32xf32>
    %820 = arith.divf %818, %819 : vector<2x32xf32>
    %821 = vector.extract_strided_slice %808 {offsets = [0, 64], sizes = [2, 32], strides = [1, 1]} : vector<2x128xf32> to vector<2x32xf32>
    %822 = math.tanh %821 : vector<2x32xf32>
    %823 = vector.extract_strided_slice %808 {offsets = [0, 96], sizes = [2, 32], strides = [1, 1]} : vector<2x128xf32> to vector<2x32xf32>
    %824 = arith.negf %823 : vector<2x32xf32>
    %825 = math.exp %824 : vector<2x32xf32>
    %cst_215 = arith.constant 1.000000e+00 : f32
    %826 = vector.broadcast %cst_215 : f32 to vector<2x32xf32>
    %827 = arith.addf %826, %825 : vector<2x32xf32>
    %828 = arith.divf %826, %827 : vector<2x32xf32>
    %829 = arith.mulf %820, %760 : vector<2x32xf32>
    %830 = arith.mulf %814, %822 : vector<2x32xf32>
    %831 = arith.addf %829, %830 : vector<2x32xf32>
    %832 = math.tanh %831 : vector<2x32xf32>
    %833 = arith.mulf %828, %832 : vector<2x32xf32>
    %834 = arith.index_cast %802 : i32 to index
    %c0_216 = arith.constant 0 : index
    %c0_217 = arith.constant 0 : index
    %835 = vector.load %arg17[%834, %c0_216, %c0_217] : memref<12x2x128xf32, #tpu.memory_space<vmem>>, vector<1x2x128xf32>
    %836 = vector.shape_cast %835 : vector<1x2x128xf32> to vector<2x128xf32>
    %837 = arith.truncf %793 : vector<2x32xf32> to vector<2x32xbf16>
    %cst_218 = arith.constant dense<0.000000e+00> : vector<2x128xf32>
    %838 = tpu.matmul %837, %19, %cst_218 {dimension_numbers = #tpu.dot_dimension_numbers<[1], [0], [0], [1], [0, 0, 1, 1], [], []>} : vector<2x32xbf16>, vector<32x128xbf16>, vector<2x128xf32> -> vector<2x128xf32>
    %839 = arith.addf %836, %838 : vector<2x128xf32>
    %840 = vector.extract_strided_slice %839 {offsets = [0, 0], sizes = [2, 32], strides = [1, 1]} : vector<2x128xf32> to vector<2x32xf32>
    %841 = arith.negf %840 : vector<2x32xf32>
    %842 = math.exp %841 : vector<2x32xf32>
    %cst_219 = arith.constant 1.000000e+00 : f32
    %843 = vector.broadcast %cst_219 : f32 to vector<2x32xf32>
    %844 = arith.addf %843, %842 : vector<2x32xf32>
    %845 = arith.divf %843, %844 : vector<2x32xf32>
    %846 = vector.extract_strided_slice %839 {offsets = [0, 32], sizes = [2, 32], strides = [1, 1]} : vector<2x128xf32> to vector<2x32xf32>
    %847 = arith.negf %846 : vector<2x32xf32>
    %848 = math.exp %847 : vector<2x32xf32>
    %cst_220 = arith.constant 1.000000e+00 : f32
    %849 = vector.broadcast %cst_220 : f32 to vector<2x32xf32>
    %850 = arith.addf %849, %848 : vector<2x32xf32>
    %851 = arith.divf %849, %850 : vector<2x32xf32>
    %852 = vector.extract_strided_slice %839 {offsets = [0, 64], sizes = [2, 32], strides = [1, 1]} : vector<2x128xf32> to vector<2x32xf32>
    %853 = math.tanh %852 : vector<2x32xf32>
    %854 = vector.extract_strided_slice %839 {offsets = [0, 96], sizes = [2, 32], strides = [1, 1]} : vector<2x128xf32> to vector<2x32xf32>
    %855 = arith.negf %854 : vector<2x32xf32>
    %856 = math.exp %855 : vector<2x32xf32>
    %cst_221 = arith.constant 1.000000e+00 : f32
    %857 = vector.broadcast %cst_221 : f32 to vector<2x32xf32>
    %858 = arith.addf %857, %856 : vector<2x32xf32>
    %859 = arith.divf %857, %858 : vector<2x32xf32>
    %860 = arith.mulf %851, %791 : vector<2x32xf32>
    %861 = arith.mulf %845, %853 : vector<2x32xf32>
    %862 = arith.addf %860, %861 : vector<2x32xf32>
    %863 = math.tanh %862 : vector<2x32xf32>
    %864 = arith.mulf %859, %863 : vector<2x32xf32>
    %865 = arith.index_cast %c11_i32_208 : i32 to index
    %c0_222 = arith.constant 0 : index
    %c0_223 = arith.constant 0 : index
    %866 = vector.load %arg18[%865, %c0_222, %c0_223] : memref<12x2x32xf32, #tpu.memory_space<vmem>>, vector<1x2x32xf32>
    %867 = vector.shape_cast %866 : vector<1x2x32xf32> to vector<2x32xf32>
    %868 = vector.shape_cast %833 : vector<2x32xf32> to vector<1x2x32xf32>
    tpu.vector_store %arg18[%865, %c0_222, %c0_223], %868 {strides = array<i32>} : memref<12x2x32xf32, #tpu.memory_space<vmem>>, vector<1x2x32xf32>,
    %869 = arith.index_cast %802 : i32 to index
    %c0_224 = arith.constant 0 : index
    %c0_225 = arith.constant 0 : index
    %870 = vector.load %arg19[%869, %c0_224, %c0_225] : memref<12x2x32xf32, #tpu.memory_space<vmem>>, vector<1x2x32xf32>
    %871 = vector.shape_cast %870 : vector<1x2x32xf32> to vector<2x32xf32>
    %872 = vector.shape_cast %864 : vector<2x32xf32> to vector<1x2x32xf32>
    tpu.vector_store %arg19[%869, %c0_224, %c0_225], %872 {strides = array<i32>} : memref<12x2x32xf32, #tpu.memory_space<vmem>>, vector<1x2x32xf32>,
    %c12_i32 = arith.constant 12 : i32
    %c0_226 = arith.constant 0 : index
    %c0_227 = arith.constant 0 : index
    %c0_228 = arith.constant 0 : index
    %873 = vector.load %arg18[%c0_226, %c0_227, %c0_228] : memref<12x2x32xf32, #tpu.memory_space<vmem>>, vector<12x2x32xf32>
    %874 = vector.shape_cast %873 : vector<12x2x32xf32> to vector<24x32xf32>
    %c0_229 = arith.constant 0 : index
    %c0_230 = arith.constant 0 : index
    %c0_231 = arith.constant 0 : index
    %875 = vector.load %arg19[%c0_229, %c0_230, %c0_231] : memref<12x2x32xf32, #tpu.memory_space<vmem>>, vector<12x2x32xf32>
    %876 = vector.shape_cast %875 : vector<12x2x32xf32> to vector<24x32xf32>
    %c0_232 = arith.constant 0 : index
    %c0_233 = arith.constant 0 : index
    %877 = vector.load %arg9[%c0_232, %c0_233] : memref<1x128xf32, #tpu.memory_space<vmem>>, vector<1x128xf32>
    %878 = arith.truncf %874 : vector<24x32xf32> to vector<24x32xbf16>
    %c0_234 = arith.constant 0 : index
    %c0_235 = arith.constant 0 : index
    %879 = vector.load %arg7[%c0_234, %c0_235] : memref<64x128xbf16, #tpu.memory_space<vmem>>, vector<32x128xbf16>
    %cst_236 = arith.constant dense<0.000000e+00> : vector<24x128xf32>
    %880 = tpu.matmul %878, %879, %cst_236 {dimension_numbers = #tpu.dot_dimension_numbers<[1], [0], [0], [1], [0, 0, 1, 1], [], []>} : vector<24x32xbf16>, vector<32x128xbf16>, vector<24x128xf32> -> vector<24x128xf32>
    %881 = vector.broadcast %877 : vector<1x128xf32> to vector<24x128xf32>
    %882 = arith.addf %881, %880 : vector<24x128xf32>
    %883 = arith.truncf %876 : vector<24x32xf32> to vector<24x32xbf16>
    %c32 = arith.constant 32 : index
    %c0_237 = arith.constant 0 : index
    %884 = vector.load %arg7[%c32, %c0_237] : memref<64x128xbf16, #tpu.memory_space<vmem>>, vector<32x128xbf16>
    %cst_238 = arith.constant dense<0.000000e+00> : vector<24x128xf32>
    %885 = tpu.matmul %883, %884, %cst_238 {dimension_numbers = #tpu.dot_dimension_numbers<[1], [0], [0], [1], [0, 0, 1, 1], [], []>} : vector<24x32xbf16>, vector<32x128xbf16>, vector<24x128xf32> -> vector<24x128xf32>
    %886 = arith.addf %882, %885 : vector<24x128xf32>
    %887 = vector.shape_cast %886 : vector<24x128xf32> to vector<12x2x128xf32>
    %c0_239 = arith.constant 0 : index
    %c0_240 = arith.constant 0 : index
    %c0_241 = arith.constant 0 : index
    %888 = vector.load %arg16[%c0_239, %c0_240, %c0_241] : memref<12x2x128xf32, #tpu.memory_space<vmem>>, vector<12x2x128xf32>
    tpu.vector_store %arg16[%c0_239, %c0_240, %c0_241], %887 {strides = array<i32>} : memref<12x2x128xf32, #tpu.memory_space<vmem>>, vector<12x2x128xf32>,
    %c0_242 = arith.constant 0 : index
    %c0_243 = arith.constant 0 : index
    %889 = vector.load %arg12[%c0_242, %c0_243] : memref<1x128xf32, #tpu.memory_space<vmem>>, vector<1x128xf32>
    %890 = arith.truncf %874 : vector<24x32xf32> to vector<24x32xbf16>
    %c0_244 = arith.constant 0 : index
    %c0_245 = arith.constant 0 : index
    %891 = vector.load %arg10[%c0_244, %c0_245] : memref<64x128xbf16, #tpu.memory_space<vmem>>, vector<32x128xbf16>
    %cst_246 = arith.constant dense<0.000000e+00> : vector<24x128xf32>
    %892 = tpu.matmul %890, %891, %cst_246 {dimension_numbers = #tpu.dot_dimension_numbers<[1], [0], [0], [1], [0, 0, 1, 1], [], []>} : vector<24x32xbf16>, vector<32x128xbf16>, vector<24x128xf32> -> vector<24x128xf32>
    %893 = vector.broadcast %889 : vector<1x128xf32> to vector<24x128xf32>
    %894 = arith.addf %893, %892 : vector<24x128xf32>
    %895 = arith.truncf %876 : vector<24x32xf32> to vector<24x32xbf16>
    %c32_247 = arith.constant 32 : index
    %c0_248 = arith.constant 0 : index
    %896 = vector.load %arg10[%c32_247, %c0_248] : memref<64x128xbf16, #tpu.memory_space<vmem>>, vector<32x128xbf16>
    %cst_249 = arith.constant dense<0.000000e+00> : vector<24x128xf32>
    %897 = tpu.matmul %895, %896, %cst_249 {dimension_numbers = #tpu.dot_dimension_numbers<[1], [0], [0], [1], [0, 0, 1, 1], [], []>} : vector<24x32xbf16>, vector<32x128xbf16>, vector<24x128xf32> -> vector<24x128xf32>
    %898 = arith.addf %894, %897 : vector<24x128xf32>
    %899 = vector.shape_cast %898 : vector<24x128xf32> to vector<12x2x128xf32>
    %c0_250 = arith.constant 0 : index
    %c0_251 = arith.constant 0 : index
    %c0_252 = arith.constant 0 : index
    %900 = vector.load %arg17[%c0_250, %c0_251, %c0_252] : memref<12x2x128xf32, #tpu.memory_space<vmem>>, vector<12x2x128xf32>
    tpu.vector_store %arg17[%c0_250, %c0_251, %c0_252], %899 {strides = array<i32>} : memref<12x2x128xf32, #tpu.memory_space<vmem>>, vector<12x2x128xf32>,
    %c0_253 = arith.constant 0 : index
    %c0_254 = arith.constant 0 : index
    %901 = vector.load %arg8[%c0_253, %c0_254] : memref<32x128xbf16, #tpu.memory_space<vmem>>, vector<32x128xbf16>
    %c0_255 = arith.constant 0 : index
    %c0_256 = arith.constant 0 : index
    %902 = vector.load %arg11[%c0_255, %c0_256] : memref<32x128xbf16, #tpu.memory_space<vmem>>, vector<32x128xbf16>
    %cst_257 = arith.constant 0.000000e+00 : f32
    %903 = vector.broadcast %cst_257 : f32 to vector<2x32xf32>
    %c0_i32_258 = arith.constant 0 : i32
    %c11_i32_259 = arith.constant 11 : i32
    %904 = arith.subi %c11_i32_259, %c0_i32_258 : i32
    %905 = arith.index_cast %c0_i32_258 : i32 to index
    %c0_260 = arith.constant 0 : index
    %c0_261 = arith.constant 0 : index
    %906 = vector.load %arg16[%905, %c0_260, %c0_261] : memref<12x2x128xf32, #tpu.memory_space<vmem>>, vector<1x2x128xf32>
    %907 = vector.shape_cast %906 : vector<1x2x128xf32> to vector<2x128xf32>
    %908 = arith.truncf %903 : vector<2x32xf32> to vector<2x32xbf16>
    %cst_262 = arith.constant dense<0.000000e+00> : vector<2x128xf32>
    %909 = tpu.matmul %908, %901, %cst_262 {dimension_numbers = #tpu.dot_dimension_numbers<[1], [0], [0], [1], [0, 0, 1, 1], [], []>} : vector<2x32xbf16>, vector<32x128xbf16>, vector<2x128xf32> -> vector<2x128xf32>
    %910 = arith.addf %907, %909 : vector<2x128xf32>
    %911 = vector.extract_strided_slice %910 {offsets = [0, 0], sizes = [2, 32], strides = [1, 1]} : vector<2x128xf32> to vector<2x32xf32>
    %912 = arith.negf %911 : vector<2x32xf32>
    %913 = math.exp %912 : vector<2x32xf32>
    %cst_263 = arith.constant 1.000000e+00 : f32
    %914 = vector.broadcast %cst_263 : f32 to vector<2x32xf32>
    %915 = arith.addf %914, %913 : vector<2x32xf32>
    %916 = arith.divf %914, %915 : vector<2x32xf32>
    %917 = vector.extract_strided_slice %910 {offsets = [0, 32], sizes = [2, 32], strides = [1, 1]} : vector<2x128xf32> to vector<2x32xf32>
    %918 = arith.negf %917 : vector<2x32xf32>
    %919 = math.exp %918 : vector<2x32xf32>
    %cst_264 = arith.constant 1.000000e+00 : f32
    %920 = vector.broadcast %cst_264 : f32 to vector<2x32xf32>
    %921 = arith.addf %920, %919 : vector<2x32xf32>
    %922 = arith.divf %920, %921 : vector<2x32xf32>
    %923 = vector.extract_strided_slice %910 {offsets = [0, 64], sizes = [2, 32], strides = [1, 1]} : vector<2x128xf32> to vector<2x32xf32>
    %924 = math.tanh %923 : vector<2x32xf32>
    %925 = vector.extract_strided_slice %910 {offsets = [0, 96], sizes = [2, 32], strides = [1, 1]} : vector<2x128xf32> to vector<2x32xf32>
    %926 = arith.negf %925 : vector<2x32xf32>
    %927 = math.exp %926 : vector<2x32xf32>
    %cst_265 = arith.constant 1.000000e+00 : f32
    %928 = vector.broadcast %cst_265 : f32 to vector<2x32xf32>
    %929 = arith.addf %928, %927 : vector<2x32xf32>
    %930 = arith.divf %928, %929 : vector<2x32xf32>
    %931 = arith.mulf %922, %903 : vector<2x32xf32>
    %932 = arith.mulf %916, %924 : vector<2x32xf32>
    %933 = arith.addf %931, %932 : vector<2x32xf32>
    %934 = math.tanh %933 : vector<2x32xf32>
    %935 = arith.mulf %930, %934 : vector<2x32xf32>
    %936 = arith.index_cast %904 : i32 to index
    %c0_266 = arith.constant 0 : index
    %c0_267 = arith.constant 0 : index
    %937 = vector.load %arg17[%936, %c0_266, %c0_267] : memref<12x2x128xf32, #tpu.memory_space<vmem>>, vector<1x2x128xf32>
    %938 = vector.shape_cast %937 : vector<1x2x128xf32> to vector<2x128xf32>
    %939 = arith.truncf %903 : vector<2x32xf32> to vector<2x32xbf16>
    %cst_268 = arith.constant dense<0.000000e+00> : vector<2x128xf32>
    %940 = tpu.matmul %939, %902, %cst_268 {dimension_numbers = #tpu.dot_dimension_numbers<[1], [0], [0], [1], [0, 0, 1, 1], [], []>} : vector<2x32xbf16>, vector<32x128xbf16>, vector<2x128xf32> -> vector<2x128xf32>
    %941 = arith.addf %938, %940 : vector<2x128xf32>
    %942 = vector.extract_strided_slice %941 {offsets = [0, 0], sizes = [2, 32], strides = [1, 1]} : vector<2x128xf32> to vector<2x32xf32>
    %943 = arith.negf %942 : vector<2x32xf32>
    %944 = math.exp %943 : vector<2x32xf32>
    %cst_269 = arith.constant 1.000000e+00 : f32
    %945 = vector.broadcast %cst_269 : f32 to vector<2x32xf32>
    %946 = arith.addf %945, %944 : vector<2x32xf32>
    %947 = arith.divf %945, %946 : vector<2x32xf32>
    %948 = vector.extract_strided_slice %941 {offsets = [0, 32], sizes = [2, 32], strides = [1, 1]} : vector<2x128xf32> to vector<2x32xf32>
    %949 = arith.negf %948 : vector<2x32xf32>
    %950 = math.exp %949 : vector<2x32xf32>
    %cst_270 = arith.constant 1.000000e+00 : f32
    %951 = vector.broadcast %cst_270 : f32 to vector<2x32xf32>
    %952 = arith.addf %951, %950 : vector<2x32xf32>
    %953 = arith.divf %951, %952 : vector<2x32xf32>
    %954 = vector.extract_strided_slice %941 {offsets = [0, 64], sizes = [2, 32], strides = [1, 1]} : vector<2x128xf32> to vector<2x32xf32>
    %955 = math.tanh %954 : vector<2x32xf32>
    %956 = vector.extract_strided_slice %941 {offsets = [0, 96], sizes = [2, 32], strides = [1, 1]} : vector<2x128xf32> to vector<2x32xf32>
    %957 = arith.negf %956 : vector<2x32xf32>
    %958 = math.exp %957 : vector<2x32xf32>
    %cst_271 = arith.constant 1.000000e+00 : f32
    %959 = vector.broadcast %cst_271 : f32 to vector<2x32xf32>
    %960 = arith.addf %959, %958 : vector<2x32xf32>
    %961 = arith.divf %959, %960 : vector<2x32xf32>
    %962 = arith.mulf %953, %903 : vector<2x32xf32>
    %963 = arith.mulf %947, %955 : vector<2x32xf32>
    %964 = arith.addf %962, %963 : vector<2x32xf32>
    %965 = math.tanh %964 : vector<2x32xf32>
    %966 = arith.mulf %961, %965 : vector<2x32xf32>
    %967 = arith.index_cast %c0_i32_258 : i32 to index
    %c0_272 = arith.constant 0 : index
    %c0_273 = arith.constant 0 : index
    %968 = vector.load %arg18[%967, %c0_272, %c0_273] : memref<12x2x32xf32, #tpu.memory_space<vmem>>, vector<1x2x32xf32>
    %969 = vector.shape_cast %968 : vector<1x2x32xf32> to vector<2x32xf32>
    %970 = vector.shape_cast %935 : vector<2x32xf32> to vector<1x2x32xf32>
    tpu.vector_store %arg18[%967, %c0_272, %c0_273], %970 {strides = array<i32>} : memref<12x2x32xf32, #tpu.memory_space<vmem>>, vector<1x2x32xf32>,
    %971 = arith.index_cast %904 : i32 to index
    %c0_274 = arith.constant 0 : index
    %c0_275 = arith.constant 0 : index
    %972 = vector.load %arg19[%971, %c0_274, %c0_275] : memref<12x2x32xf32, #tpu.memory_space<vmem>>, vector<1x2x32xf32>
    %973 = vector.shape_cast %972 : vector<1x2x32xf32> to vector<2x32xf32>
    %974 = vector.shape_cast %966 : vector<2x32xf32> to vector<1x2x32xf32>
    tpu.vector_store %arg19[%971, %c0_274, %c0_275], %974 {strides = array<i32>} : memref<12x2x32xf32, #tpu.memory_space<vmem>>, vector<1x2x32xf32>,
    %c1_i32_276 = arith.constant 1 : i32
    %c11_i32_277 = arith.constant 11 : i32
    %975 = arith.subi %c11_i32_277, %c1_i32_276 : i32
    %976 = arith.index_cast %c1_i32_276 : i32 to index
    %c0_278 = arith.constant 0 : index
    %c0_279 = arith.constant 0 : index
    %977 = vector.load %arg16[%976, %c0_278, %c0_279] : memref<12x2x128xf32, #tpu.memory_space<vmem>>, vector<1x2x128xf32>
    %978 = vector.shape_cast %977 : vector<1x2x128xf32> to vector<2x128xf32>
    %979 = arith.truncf %935 : vector<2x32xf32> to vector<2x32xbf16>
    %cst_280 = arith.constant dense<0.000000e+00> : vector<2x128xf32>
    %980 = tpu.matmul %979, %901, %cst_280 {dimension_numbers = #tpu.dot_dimension_numbers<[1], [0], [0], [1], [0, 0, 1, 1], [], []>} : vector<2x32xbf16>, vector<32x128xbf16>, vector<2x128xf32> -> vector<2x128xf32>
    %981 = arith.addf %978, %980 : vector<2x128xf32>
    %982 = vector.extract_strided_slice %981 {offsets = [0, 0], sizes = [2, 32], strides = [1, 1]} : vector<2x128xf32> to vector<2x32xf32>
    %983 = arith.negf %982 : vector<2x32xf32>
    %984 = math.exp %983 : vector<2x32xf32>
    %cst_281 = arith.constant 1.000000e+00 : f32
    %985 = vector.broadcast %cst_281 : f32 to vector<2x32xf32>
    %986 = arith.addf %985, %984 : vector<2x32xf32>
    %987 = arith.divf %985, %986 : vector<2x32xf32>
    %988 = vector.extract_strided_slice %981 {offsets = [0, 32], sizes = [2, 32], strides = [1, 1]} : vector<2x128xf32> to vector<2x32xf32>
    %989 = arith.negf %988 : vector<2x32xf32>
    %990 = math.exp %989 : vector<2x32xf32>
    %cst_282 = arith.constant 1.000000e+00 : f32
    %991 = vector.broadcast %cst_282 : f32 to vector<2x32xf32>
    %992 = arith.addf %991, %990 : vector<2x32xf32>
    %993 = arith.divf %991, %992 : vector<2x32xf32>
    %994 = vector.extract_strided_slice %981 {offsets = [0, 64], sizes = [2, 32], strides = [1, 1]} : vector<2x128xf32> to vector<2x32xf32>
    %995 = math.tanh %994 : vector<2x32xf32>
    %996 = vector.extract_strided_slice %981 {offsets = [0, 96], sizes = [2, 32], strides = [1, 1]} : vector<2x128xf32> to vector<2x32xf32>
    %997 = arith.negf %996 : vector<2x32xf32>
    %998 = math.exp %997 : vector<2x32xf32>
    %cst_283 = arith.constant 1.000000e+00 : f32
    %999 = vector.broadcast %cst_283 : f32 to vector<2x32xf32>
    %1000 = arith.addf %999, %998 : vector<2x32xf32>
    %1001 = arith.divf %999, %1000 : vector<2x32xf32>
    %1002 = arith.mulf %993, %933 : vector<2x32xf32>
    %1003 = arith.mulf %987, %995 : vector<2x32xf32>
    %1004 = arith.addf %1002, %1003 : vector<2x32xf32>
    %1005 = math.tanh %1004 : vector<2x32xf32>
    %1006 = arith.mulf %1001, %1005 : vector<2x32xf32>
    %1007 = arith.index_cast %975 : i32 to index
    %c0_284 = arith.constant 0 : index
    %c0_285 = arith.constant 0 : index
    %1008 = vector.load %arg17[%1007, %c0_284, %c0_285] : memref<12x2x128xf32, #tpu.memory_space<vmem>>, vector<1x2x128xf32>
    %1009 = vector.shape_cast %1008 : vector<1x2x128xf32> to vector<2x128xf32>
    %1010 = arith.truncf %966 : vector<2x32xf32> to vector<2x32xbf16>
    %cst_286 = arith.constant dense<0.000000e+00> : vector<2x128xf32>
    %1011 = tpu.matmul %1010, %902, %cst_286 {dimension_numbers = #tpu.dot_dimension_numbers<[1], [0], [0], [1], [0, 0, 1, 1], [], []>} : vector<2x32xbf16>, vector<32x128xbf16>, vector<2x128xf32> -> vector<2x128xf32>
    %1012 = arith.addf %1009, %1011 : vector<2x128xf32>
    %1013 = vector.extract_strided_slice %1012 {offsets = [0, 0], sizes = [2, 32], strides = [1, 1]} : vector<2x128xf32> to vector<2x32xf32>
    %1014 = arith.negf %1013 : vector<2x32xf32>
    %1015 = math.exp %1014 : vector<2x32xf32>
    %cst_287 = arith.constant 1.000000e+00 : f32
    %1016 = vector.broadcast %cst_287 : f32 to vector<2x32xf32>
    %1017 = arith.addf %1016, %1015 : vector<2x32xf32>
    %1018 = arith.divf %1016, %1017 : vector<2x32xf32>
    %1019 = vector.extract_strided_slice %1012 {offsets = [0, 32], sizes = [2, 32], strides = [1, 1]} : vector<2x128xf32> to vector<2x32xf32>
    %1020 = arith.negf %1019 : vector<2x32xf32>
    %1021 = math.exp %1020 : vector<2x32xf32>
    %cst_288 = arith.constant 1.000000e+00 : f32
    %1022 = vector.broadcast %cst_288 : f32 to vector<2x32xf32>
    %1023 = arith.addf %1022, %1021 : vector<2x32xf32>
    %1024 = arith.divf %1022, %1023 : vector<2x32xf32>
    %1025 = vector.extract_strided_slice %1012 {offsets = [0, 64], sizes = [2, 32], strides = [1, 1]} : vector<2x128xf32> to vector<2x32xf32>
    %1026 = math.tanh %1025 : vector<2x32xf32>
    %1027 = vector.extract_strided_slice %1012 {offsets = [0, 96], sizes = [2, 32], strides = [1, 1]} : vector<2x128xf32> to vector<2x32xf32>
    %1028 = arith.negf %1027 : vector<2x32xf32>
    %1029 = math.exp %1028 : vector<2x32xf32>
    %cst_289 = arith.constant 1.000000e+00 : f32
    %1030 = vector.broadcast %cst_289 : f32 to vector<2x32xf32>
    %1031 = arith.addf %1030, %1029 : vector<2x32xf32>
    %1032 = arith.divf %1030, %1031 : vector<2x32xf32>
    %1033 = arith.mulf %1024, %964 : vector<2x32xf32>
    %1034 = arith.mulf %1018, %1026 : vector<2x32xf32>
    %1035 = arith.addf %1033, %1034 : vector<2x32xf32>
    %1036 = math.tanh %1035 : vector<2x32xf32>
    %1037 = arith.mulf %1032, %1036 : vector<2x32xf32>
    %1038 = arith.index_cast %c1_i32_276 : i32 to index
    %c0_290 = arith.constant 0 : index
    %c0_291 = arith.constant 0 : index
    %1039 = vector.load %arg18[%1038, %c0_290, %c0_291] : memref<12x2x32xf32, #tpu.memory_space<vmem>>, vector<1x2x32xf32>
    %1040 = vector.shape_cast %1039 : vector<1x2x32xf32> to vector<2x32xf32>
    %1041 = vector.shape_cast %1006 : vector<2x32xf32> to vector<1x2x32xf32>
    tpu.vector_store %arg18[%1038, %c0_290, %c0_291], %1041 {strides = array<i32>} : memref<12x2x32xf32, #tpu.memory_space<vmem>>, vector<1x2x32xf32>,
    %1042 = arith.index_cast %975 : i32 to index
    %c0_292 = arith.constant 0 : index
    %c0_293 = arith.constant 0 : index
    %1043 = vector.load %arg19[%1042, %c0_292, %c0_293] : memref<12x2x32xf32, #tpu.memory_space<vmem>>, vector<1x2x32xf32>
    %1044 = vector.shape_cast %1043 : vector<1x2x32xf32> to vector<2x32xf32>
    %1045 = vector.shape_cast %1037 : vector<2x32xf32> to vector<1x2x32xf32>
    tpu.vector_store %arg19[%1042, %c0_292, %c0_293], %1045 {strides = array<i32>} : memref<12x2x32xf32, #tpu.memory_space<vmem>>, vector<1x2x32xf32>,
    %c2_i32_294 = arith.constant 2 : i32
    %c11_i32_295 = arith.constant 11 : i32
    %1046 = arith.subi %c11_i32_295, %c2_i32_294 : i32
    %1047 = arith.index_cast %c2_i32_294 : i32 to index
    %c0_296 = arith.constant 0 : index
    %c0_297 = arith.constant 0 : index
    %1048 = vector.load %arg16[%1047, %c0_296, %c0_297] : memref<12x2x128xf32, #tpu.memory_space<vmem>>, vector<1x2x128xf32>
    %1049 = vector.shape_cast %1048 : vector<1x2x128xf32> to vector<2x128xf32>
    %1050 = arith.truncf %1006 : vector<2x32xf32> to vector<2x32xbf16>
    %cst_298 = arith.constant dense<0.000000e+00> : vector<2x128xf32>
    %1051 = tpu.matmul %1050, %901, %cst_298 {dimension_numbers = #tpu.dot_dimension_numbers<[1], [0], [0], [1], [0, 0, 1, 1], [], []>} : vector<2x32xbf16>, vector<32x128xbf16>, vector<2x128xf32> -> vector<2x128xf32>
    %1052 = arith.addf %1049, %1051 : vector<2x128xf32>
    %1053 = vector.extract_strided_slice %1052 {offsets = [0, 0], sizes = [2, 32], strides = [1, 1]} : vector<2x128xf32> to vector<2x32xf32>
    %1054 = arith.negf %1053 : vector<2x32xf32>
    %1055 = math.exp %1054 : vector<2x32xf32>
    %cst_299 = arith.constant 1.000000e+00 : f32
    %1056 = vector.broadcast %cst_299 : f32 to vector<2x32xf32>
    %1057 = arith.addf %1056, %1055 : vector<2x32xf32>
    %1058 = arith.divf %1056, %1057 : vector<2x32xf32>
    %1059 = vector.extract_strided_slice %1052 {offsets = [0, 32], sizes = [2, 32], strides = [1, 1]} : vector<2x128xf32> to vector<2x32xf32>
    %1060 = arith.negf %1059 : vector<2x32xf32>
    %1061 = math.exp %1060 : vector<2x32xf32>
    %cst_300 = arith.constant 1.000000e+00 : f32
    %1062 = vector.broadcast %cst_300 : f32 to vector<2x32xf32>
    %1063 = arith.addf %1062, %1061 : vector<2x32xf32>
    %1064 = arith.divf %1062, %1063 : vector<2x32xf32>
    %1065 = vector.extract_strided_slice %1052 {offsets = [0, 64], sizes = [2, 32], strides = [1, 1]} : vector<2x128xf32> to vector<2x32xf32>
    %1066 = math.tanh %1065 : vector<2x32xf32>
    %1067 = vector.extract_strided_slice %1052 {offsets = [0, 96], sizes = [2, 32], strides = [1, 1]} : vector<2x128xf32> to vector<2x32xf32>
    %1068 = arith.negf %1067 : vector<2x32xf32>
    %1069 = math.exp %1068 : vector<2x32xf32>
    %cst_301 = arith.constant 1.000000e+00 : f32
    %1070 = vector.broadcast %cst_301 : f32 to vector<2x32xf32>
    %1071 = arith.addf %1070, %1069 : vector<2x32xf32>
    %1072 = arith.divf %1070, %1071 : vector<2x32xf32>
    %1073 = arith.mulf %1064, %1004 : vector<2x32xf32>
    %1074 = arith.mulf %1058, %1066 : vector<2x32xf32>
    %1075 = arith.addf %1073, %1074 : vector<2x32xf32>
    %1076 = math.tanh %1075 : vector<2x32xf32>
    %1077 = arith.mulf %1072, %1076 : vector<2x32xf32>
    %1078 = arith.index_cast %1046 : i32 to index
    %c0_302 = arith.constant 0 : index
    %c0_303 = arith.constant 0 : index
    %1079 = vector.load %arg17[%1078, %c0_302, %c0_303] : memref<12x2x128xf32, #tpu.memory_space<vmem>>, vector<1x2x128xf32>
    %1080 = vector.shape_cast %1079 : vector<1x2x128xf32> to vector<2x128xf32>
    %1081 = arith.truncf %1037 : vector<2x32xf32> to vector<2x32xbf16>
    %cst_304 = arith.constant dense<0.000000e+00> : vector<2x128xf32>
    %1082 = tpu.matmul %1081, %902, %cst_304 {dimension_numbers = #tpu.dot_dimension_numbers<[1], [0], [0], [1], [0, 0, 1, 1], [], []>} : vector<2x32xbf16>, vector<32x128xbf16>, vector<2x128xf32> -> vector<2x128xf32>
    %1083 = arith.addf %1080, %1082 : vector<2x128xf32>
    %1084 = vector.extract_strided_slice %1083 {offsets = [0, 0], sizes = [2, 32], strides = [1, 1]} : vector<2x128xf32> to vector<2x32xf32>
    %1085 = arith.negf %1084 : vector<2x32xf32>
    %1086 = math.exp %1085 : vector<2x32xf32>
    %cst_305 = arith.constant 1.000000e+00 : f32
    %1087 = vector.broadcast %cst_305 : f32 to vector<2x32xf32>
    %1088 = arith.addf %1087, %1086 : vector<2x32xf32>
    %1089 = arith.divf %1087, %1088 : vector<2x32xf32>
    %1090 = vector.extract_strided_slice %1083 {offsets = [0, 32], sizes = [2, 32], strides = [1, 1]} : vector<2x128xf32> to vector<2x32xf32>
    %1091 = arith.negf %1090 : vector<2x32xf32>
    %1092 = math.exp %1091 : vector<2x32xf32>
    %cst_306 = arith.constant 1.000000e+00 : f32
    %1093 = vector.broadcast %cst_306 : f32 to vector<2x32xf32>
    %1094 = arith.addf %1093, %1092 : vector<2x32xf32>
    %1095 = arith.divf %1093, %1094 : vector<2x32xf32>
    %1096 = vector.extract_strided_slice %1083 {offsets = [0, 64], sizes = [2, 32], strides = [1, 1]} : vector<2x128xf32> to vector<2x32xf32>
    %1097 = math.tanh %1096 : vector<2x32xf32>
    %1098 = vector.extract_strided_slice %1083 {offsets = [0, 96], sizes = [2, 32], strides = [1, 1]} : vector<2x128xf32> to vector<2x32xf32>
    %1099 = arith.negf %1098 : vector<2x32xf32>
    %1100 = math.exp %1099 : vector<2x32xf32>
    %cst_307 = arith.constant 1.000000e+00 : f32
    %1101 = vector.broadcast %cst_307 : f32 to vector<2x32xf32>
    %1102 = arith.addf %1101, %1100 : vector<2x32xf32>
    %1103 = arith.divf %1101, %1102 : vector<2x32xf32>
    %1104 = arith.mulf %1095, %1035 : vector<2x32xf32>
    %1105 = arith.mulf %1089, %1097 : vector<2x32xf32>
    %1106 = arith.addf %1104, %1105 : vector<2x32xf32>
    %1107 = math.tanh %1106 : vector<2x32xf32>
    %1108 = arith.mulf %1103, %1107 : vector<2x32xf32>
    %1109 = arith.index_cast %c2_i32_294 : i32 to index
    %c0_308 = arith.constant 0 : index
    %c0_309 = arith.constant 0 : index
    %1110 = vector.load %arg18[%1109, %c0_308, %c0_309] : memref<12x2x32xf32, #tpu.memory_space<vmem>>, vector<1x2x32xf32>
    %1111 = vector.shape_cast %1110 : vector<1x2x32xf32> to vector<2x32xf32>
    %1112 = vector.shape_cast %1077 : vector<2x32xf32> to vector<1x2x32xf32>
    tpu.vector_store %arg18[%1109, %c0_308, %c0_309], %1112 {strides = array<i32>} : memref<12x2x32xf32, #tpu.memory_space<vmem>>, vector<1x2x32xf32>,
    %1113 = arith.index_cast %1046 : i32 to index
    %c0_310 = arith.constant 0 : index
    %c0_311 = arith.constant 0 : index
    %1114 = vector.load %arg19[%1113, %c0_310, %c0_311] : memref<12x2x32xf32, #tpu.memory_space<vmem>>, vector<1x2x32xf32>
    %1115 = vector.shape_cast %1114 : vector<1x2x32xf32> to vector<2x32xf32>
    %1116 = vector.shape_cast %1108 : vector<2x32xf32> to vector<1x2x32xf32>
    tpu.vector_store %arg19[%1113, %c0_310, %c0_311], %1116 {strides = array<i32>} : memref<12x2x32xf32, #tpu.memory_space<vmem>>, vector<1x2x32xf32>,
    %c3_i32_312 = arith.constant 3 : i32
    %c11_i32_313 = arith.constant 11 : i32
    %1117 = arith.subi %c11_i32_313, %c3_i32_312 : i32
    %1118 = arith.index_cast %c3_i32_312 : i32 to index
    %c0_314 = arith.constant 0 : index
    %c0_315 = arith.constant 0 : index
    %1119 = vector.load %arg16[%1118, %c0_314, %c0_315] : memref<12x2x128xf32, #tpu.memory_space<vmem>>, vector<1x2x128xf32>
    %1120 = vector.shape_cast %1119 : vector<1x2x128xf32> to vector<2x128xf32>
    %1121 = arith.truncf %1077 : vector<2x32xf32> to vector<2x32xbf16>
    %cst_316 = arith.constant dense<0.000000e+00> : vector<2x128xf32>
    %1122 = tpu.matmul %1121, %901, %cst_316 {dimension_numbers = #tpu.dot_dimension_numbers<[1], [0], [0], [1], [0, 0, 1, 1], [], []>} : vector<2x32xbf16>, vector<32x128xbf16>, vector<2x128xf32> -> vector<2x128xf32>
    %1123 = arith.addf %1120, %1122 : vector<2x128xf32>
    %1124 = vector.extract_strided_slice %1123 {offsets = [0, 0], sizes = [2, 32], strides = [1, 1]} : vector<2x128xf32> to vector<2x32xf32>
    %1125 = arith.negf %1124 : vector<2x32xf32>
    %1126 = math.exp %1125 : vector<2x32xf32>
    %cst_317 = arith.constant 1.000000e+00 : f32
    %1127 = vector.broadcast %cst_317 : f32 to vector<2x32xf32>
    %1128 = arith.addf %1127, %1126 : vector<2x32xf32>
    %1129 = arith.divf %1127, %1128 : vector<2x32xf32>
    %1130 = vector.extract_strided_slice %1123 {offsets = [0, 32], sizes = [2, 32], strides = [1, 1]} : vector<2x128xf32> to vector<2x32xf32>
    %1131 = arith.negf %1130 : vector<2x32xf32>
    %1132 = math.exp %1131 : vector<2x32xf32>
    %cst_318 = arith.constant 1.000000e+00 : f32
    %1133 = vector.broadcast %cst_318 : f32 to vector<2x32xf32>
    %1134 = arith.addf %1133, %1132 : vector<2x32xf32>
    %1135 = arith.divf %1133, %1134 : vector<2x32xf32>
    %1136 = vector.extract_strided_slice %1123 {offsets = [0, 64], sizes = [2, 32], strides = [1, 1]} : vector<2x128xf32> to vector<2x32xf32>
    %1137 = math.tanh %1136 : vector<2x32xf32>
    %1138 = vector.extract_strided_slice %1123 {offsets = [0, 96], sizes = [2, 32], strides = [1, 1]} : vector<2x128xf32> to vector<2x32xf32>
    %1139 = arith.negf %1138 : vector<2x32xf32>
    %1140 = math.exp %1139 : vector<2x32xf32>
    %cst_319 = arith.constant 1.000000e+00 : f32
    %1141 = vector.broadcast %cst_319 : f32 to vector<2x32xf32>
    %1142 = arith.addf %1141, %1140 : vector<2x32xf32>
    %1143 = arith.divf %1141, %1142 : vector<2x32xf32>
    %1144 = arith.mulf %1135, %1075 : vector<2x32xf32>
    %1145 = arith.mulf %1129, %1137 : vector<2x32xf32>
    %1146 = arith.addf %1144, %1145 : vector<2x32xf32>
    %1147 = math.tanh %1146 : vector<2x32xf32>
    %1148 = arith.mulf %1143, %1147 : vector<2x32xf32>
    %1149 = arith.index_cast %1117 : i32 to index
    %c0_320 = arith.constant 0 : index
    %c0_321 = arith.constant 0 : index
    %1150 = vector.load %arg17[%1149, %c0_320, %c0_321] : memref<12x2x128xf32, #tpu.memory_space<vmem>>, vector<1x2x128xf32>
    %1151 = vector.shape_cast %1150 : vector<1x2x128xf32> to vector<2x128xf32>
    %1152 = arith.truncf %1108 : vector<2x32xf32> to vector<2x32xbf16>
    %cst_322 = arith.constant dense<0.000000e+00> : vector<2x128xf32>
    %1153 = tpu.matmul %1152, %902, %cst_322 {dimension_numbers = #tpu.dot_dimension_numbers<[1], [0], [0], [1], [0, 0, 1, 1], [], []>} : vector<2x32xbf16>, vector<32x128xbf16>, vector<2x128xf32> -> vector<2x128xf32>
    %1154 = arith.addf %1151, %1153 : vector<2x128xf32>
    %1155 = vector.extract_strided_slice %1154 {offsets = [0, 0], sizes = [2, 32], strides = [1, 1]} : vector<2x128xf32> to vector<2x32xf32>
    %1156 = arith.negf %1155 : vector<2x32xf32>
    %1157 = math.exp %1156 : vector<2x32xf32>
    %cst_323 = arith.constant 1.000000e+00 : f32
    %1158 = vector.broadcast %cst_323 : f32 to vector<2x32xf32>
    %1159 = arith.addf %1158, %1157 : vector<2x32xf32>
    %1160 = arith.divf %1158, %1159 : vector<2x32xf32>
    %1161 = vector.extract_strided_slice %1154 {offsets = [0, 32], sizes = [2, 32], strides = [1, 1]} : vector<2x128xf32> to vector<2x32xf32>
    %1162 = arith.negf %1161 : vector<2x32xf32>
    %1163 = math.exp %1162 : vector<2x32xf32>
    %cst_324 = arith.constant 1.000000e+00 : f32
    %1164 = vector.broadcast %cst_324 : f32 to vector<2x32xf32>
    %1165 = arith.addf %1164, %1163 : vector<2x32xf32>
    %1166 = arith.divf %1164, %1165 : vector<2x32xf32>
    %1167 = vector.extract_strided_slice %1154 {offsets = [0, 64], sizes = [2, 32], strides = [1, 1]} : vector<2x128xf32> to vector<2x32xf32>
    %1168 = math.tanh %1167 : vector<2x32xf32>
    %1169 = vector.extract_strided_slice %1154 {offsets = [0, 96], sizes = [2, 32], strides = [1, 1]} : vector<2x128xf32> to vector<2x32xf32>
    %1170 = arith.negf %1169 : vector<2x32xf32>
    %1171 = math.exp %1170 : vector<2x32xf32>
    %cst_325 = arith.constant 1.000000e+00 : f32
    %1172 = vector.broadcast %cst_325 : f32 to vector<2x32xf32>
    %1173 = arith.addf %1172, %1171 : vector<2x32xf32>
    %1174 = arith.divf %1172, %1173 : vector<2x32xf32>
    %1175 = arith.mulf %1166, %1106 : vector<2x32xf32>
    %1176 = arith.mulf %1160, %1168 : vector<2x32xf32>
    %1177 = arith.addf %1175, %1176 : vector<2x32xf32>
    %1178 = math.tanh %1177 : vector<2x32xf32>
    %1179 = arith.mulf %1174, %1178 : vector<2x32xf32>
    %1180 = arith.index_cast %c3_i32_312 : i32 to index
    %c0_326 = arith.constant 0 : index
    %c0_327 = arith.constant 0 : index
    %1181 = vector.load %arg18[%1180, %c0_326, %c0_327] : memref<12x2x32xf32, #tpu.memory_space<vmem>>, vector<1x2x32xf32>
    %1182 = vector.shape_cast %1181 : vector<1x2x32xf32> to vector<2x32xf32>
    %1183 = vector.shape_cast %1148 : vector<2x32xf32> to vector<1x2x32xf32>
    tpu.vector_store %arg18[%1180, %c0_326, %c0_327], %1183 {strides = array<i32>} : memref<12x2x32xf32, #tpu.memory_space<vmem>>, vector<1x2x32xf32>,
    %1184 = arith.index_cast %1117 : i32 to index
    %c0_328 = arith.constant 0 : index
    %c0_329 = arith.constant 0 : index
    %1185 = vector.load %arg19[%1184, %c0_328, %c0_329] : memref<12x2x32xf32, #tpu.memory_space<vmem>>, vector<1x2x32xf32>
    %1186 = vector.shape_cast %1185 : vector<1x2x32xf32> to vector<2x32xf32>
    %1187 = vector.shape_cast %1179 : vector<2x32xf32> to vector<1x2x32xf32>
    tpu.vector_store %arg19[%1184, %c0_328, %c0_329], %1187 {strides = array<i32>} : memref<12x2x32xf32, #tpu.memory_space<vmem>>, vector<1x2x32xf32>,
    %c4_i32_330 = arith.constant 4 : i32
    %c11_i32_331 = arith.constant 11 : i32
    %1188 = arith.subi %c11_i32_331, %c4_i32_330 : i32
    %1189 = arith.index_cast %c4_i32_330 : i32 to index
    %c0_332 = arith.constant 0 : index
    %c0_333 = arith.constant 0 : index
    %1190 = vector.load %arg16[%1189, %c0_332, %c0_333] : memref<12x2x128xf32, #tpu.memory_space<vmem>>, vector<1x2x128xf32>
    %1191 = vector.shape_cast %1190 : vector<1x2x128xf32> to vector<2x128xf32>
    %1192 = arith.truncf %1148 : vector<2x32xf32> to vector<2x32xbf16>
    %cst_334 = arith.constant dense<0.000000e+00> : vector<2x128xf32>
    %1193 = tpu.matmul %1192, %901, %cst_334 {dimension_numbers = #tpu.dot_dimension_numbers<[1], [0], [0], [1], [0, 0, 1, 1], [], []>} : vector<2x32xbf16>, vector<32x128xbf16>, vector<2x128xf32> -> vector<2x128xf32>
    %1194 = arith.addf %1191, %1193 : vector<2x128xf32>
    %1195 = vector.extract_strided_slice %1194 {offsets = [0, 0], sizes = [2, 32], strides = [1, 1]} : vector<2x128xf32> to vector<2x32xf32>
    %1196 = arith.negf %1195 : vector<2x32xf32>
    %1197 = math.exp %1196 : vector<2x32xf32>
    %cst_335 = arith.constant 1.000000e+00 : f32
    %1198 = vector.broadcast %cst_335 : f32 to vector<2x32xf32>
    %1199 = arith.addf %1198, %1197 : vector<2x32xf32>
    %1200 = arith.divf %1198, %1199 : vector<2x32xf32>
    %1201 = vector.extract_strided_slice %1194 {offsets = [0, 32], sizes = [2, 32], strides = [1, 1]} : vector<2x128xf32> to vector<2x32xf32>
    %1202 = arith.negf %1201 : vector<2x32xf32>
    %1203 = math.exp %1202 : vector<2x32xf32>
    %cst_336 = arith.constant 1.000000e+00 : f32
    %1204 = vector.broadcast %cst_336 : f32 to vector<2x32xf32>
    %1205 = arith.addf %1204, %1203 : vector<2x32xf32>
    %1206 = arith.divf %1204, %1205 : vector<2x32xf32>
    %1207 = vector.extract_strided_slice %1194 {offsets = [0, 64], sizes = [2, 32], strides = [1, 1]} : vector<2x128xf32> to vector<2x32xf32>
    %1208 = math.tanh %1207 : vector<2x32xf32>
    %1209 = vector.extract_strided_slice %1194 {offsets = [0, 96], sizes = [2, 32], strides = [1, 1]} : vector<2x128xf32> to vector<2x32xf32>
    %1210 = arith.negf %1209 : vector<2x32xf32>
    %1211 = math.exp %1210 : vector<2x32xf32>
    %cst_337 = arith.constant 1.000000e+00 : f32
    %1212 = vector.broadcast %cst_337 : f32 to vector<2x32xf32>
    %1213 = arith.addf %1212, %1211 : vector<2x32xf32>
    %1214 = arith.divf %1212, %1213 : vector<2x32xf32>
    %1215 = arith.mulf %1206, %1146 : vector<2x32xf32>
    %1216 = arith.mulf %1200, %1208 : vector<2x32xf32>
    %1217 = arith.addf %1215, %1216 : vector<2x32xf32>
    %1218 = math.tanh %1217 : vector<2x32xf32>
    %1219 = arith.mulf %1214, %1218 : vector<2x32xf32>
    %1220 = arith.index_cast %1188 : i32 to index
    %c0_338 = arith.constant 0 : index
    %c0_339 = arith.constant 0 : index
    %1221 = vector.load %arg17[%1220, %c0_338, %c0_339] : memref<12x2x128xf32, #tpu.memory_space<vmem>>, vector<1x2x128xf32>
    %1222 = vector.shape_cast %1221 : vector<1x2x128xf32> to vector<2x128xf32>
    %1223 = arith.truncf %1179 : vector<2x32xf32> to vector<2x32xbf16>
    %cst_340 = arith.constant dense<0.000000e+00> : vector<2x128xf32>
    %1224 = tpu.matmul %1223, %902, %cst_340 {dimension_numbers = #tpu.dot_dimension_numbers<[1], [0], [0], [1], [0, 0, 1, 1], [], []>} : vector<2x32xbf16>, vector<32x128xbf16>, vector<2x128xf32> -> vector<2x128xf32>
    %1225 = arith.addf %1222, %1224 : vector<2x128xf32>
    %1226 = vector.extract_strided_slice %1225 {offsets = [0, 0], sizes = [2, 32], strides = [1, 1]} : vector<2x128xf32> to vector<2x32xf32>
    %1227 = arith.negf %1226 : vector<2x32xf32>
    %1228 = math.exp %1227 : vector<2x32xf32>
    %cst_341 = arith.constant 1.000000e+00 : f32
    %1229 = vector.broadcast %cst_341 : f32 to vector<2x32xf32>
    %1230 = arith.addf %1229, %1228 : vector<2x32xf32>
    %1231 = arith.divf %1229, %1230 : vector<2x32xf32>
    %1232 = vector.extract_strided_slice %1225 {offsets = [0, 32], sizes = [2, 32], strides = [1, 1]} : vector<2x128xf32> to vector<2x32xf32>
    %1233 = arith.negf %1232 : vector<2x32xf32>
    %1234 = math.exp %1233 : vector<2x32xf32>
    %cst_342 = arith.constant 1.000000e+00 : f32
    %1235 = vector.broadcast %cst_342 : f32 to vector<2x32xf32>
    %1236 = arith.addf %1235, %1234 : vector<2x32xf32>
    %1237 = arith.divf %1235, %1236 : vector<2x32xf32>
    %1238 = vector.extract_strided_slice %1225 {offsets = [0, 64], sizes = [2, 32], strides = [1, 1]} : vector<2x128xf32> to vector<2x32xf32>
    %1239 = math.tanh %1238 : vector<2x32xf32>
    %1240 = vector.extract_strided_slice %1225 {offsets = [0, 96], sizes = [2, 32], strides = [1, 1]} : vector<2x128xf32> to vector<2x32xf32>
    %1241 = arith.negf %1240 : vector<2x32xf32>
    %1242 = math.exp %1241 : vector<2x32xf32>
    %cst_343 = arith.constant 1.000000e+00 : f32
    %1243 = vector.broadcast %cst_343 : f32 to vector<2x32xf32>
    %1244 = arith.addf %1243, %1242 : vector<2x32xf32>
    %1245 = arith.divf %1243, %1244 : vector<2x32xf32>
    %1246 = arith.mulf %1237, %1177 : vector<2x32xf32>
    %1247 = arith.mulf %1231, %1239 : vector<2x32xf32>
    %1248 = arith.addf %1246, %1247 : vector<2x32xf32>
    %1249 = math.tanh %1248 : vector<2x32xf32>
    %1250 = arith.mulf %1245, %1249 : vector<2x32xf32>
    %1251 = arith.index_cast %c4_i32_330 : i32 to index
    %c0_344 = arith.constant 0 : index
    %c0_345 = arith.constant 0 : index
    %1252 = vector.load %arg18[%1251, %c0_344, %c0_345] : memref<12x2x32xf32, #tpu.memory_space<vmem>>, vector<1x2x32xf32>
    %1253 = vector.shape_cast %1252 : vector<1x2x32xf32> to vector<2x32xf32>
    %1254 = vector.shape_cast %1219 : vector<2x32xf32> to vector<1x2x32xf32>
    tpu.vector_store %arg18[%1251, %c0_344, %c0_345], %1254 {strides = array<i32>} : memref<12x2x32xf32, #tpu.memory_space<vmem>>, vector<1x2x32xf32>,
    %1255 = arith.index_cast %1188 : i32 to index
    %c0_346 = arith.constant 0 : index
    %c0_347 = arith.constant 0 : index
    %1256 = vector.load %arg19[%1255, %c0_346, %c0_347] : memref<12x2x32xf32, #tpu.memory_space<vmem>>, vector<1x2x32xf32>
    %1257 = vector.shape_cast %1256 : vector<1x2x32xf32> to vector<2x32xf32>
    %1258 = vector.shape_cast %1250 : vector<2x32xf32> to vector<1x2x32xf32>
    tpu.vector_store %arg19[%1255, %c0_346, %c0_347], %1258 {strides = array<i32>} : memref<12x2x32xf32, #tpu.memory_space<vmem>>, vector<1x2x32xf32>,
    %c5_i32_348 = arith.constant 5 : i32
    %c11_i32_349 = arith.constant 11 : i32
    %1259 = arith.subi %c11_i32_349, %c5_i32_348 : i32
    %1260 = arith.index_cast %c5_i32_348 : i32 to index
    %c0_350 = arith.constant 0 : index
    %c0_351 = arith.constant 0 : index
    %1261 = vector.load %arg16[%1260, %c0_350, %c0_351] : memref<12x2x128xf32, #tpu.memory_space<vmem>>, vector<1x2x128xf32>
    %1262 = vector.shape_cast %1261 : vector<1x2x128xf32> to vector<2x128xf32>
    %1263 = arith.truncf %1219 : vector<2x32xf32> to vector<2x32xbf16>
    %cst_352 = arith.constant dense<0.000000e+00> : vector<2x128xf32>
    %1264 = tpu.matmul %1263, %901, %cst_352 {dimension_numbers = #tpu.dot_dimension_numbers<[1], [0], [0], [1], [0, 0, 1, 1], [], []>} : vector<2x32xbf16>, vector<32x128xbf16>, vector<2x128xf32> -> vector<2x128xf32>
    %1265 = arith.addf %1262, %1264 : vector<2x128xf32>
    %1266 = vector.extract_strided_slice %1265 {offsets = [0, 0], sizes = [2, 32], strides = [1, 1]} : vector<2x128xf32> to vector<2x32xf32>
    %1267 = arith.negf %1266 : vector<2x32xf32>
    %1268 = math.exp %1267 : vector<2x32xf32>
    %cst_353 = arith.constant 1.000000e+00 : f32
    %1269 = vector.broadcast %cst_353 : f32 to vector<2x32xf32>
    %1270 = arith.addf %1269, %1268 : vector<2x32xf32>
    %1271 = arith.divf %1269, %1270 : vector<2x32xf32>
    %1272 = vector.extract_strided_slice %1265 {offsets = [0, 32], sizes = [2, 32], strides = [1, 1]} : vector<2x128xf32> to vector<2x32xf32>
    %1273 = arith.negf %1272 : vector<2x32xf32>
    %1274 = math.exp %1273 : vector<2x32xf32>
    %cst_354 = arith.constant 1.000000e+00 : f32
    %1275 = vector.broadcast %cst_354 : f32 to vector<2x32xf32>
    %1276 = arith.addf %1275, %1274 : vector<2x32xf32>
    %1277 = arith.divf %1275, %1276 : vector<2x32xf32>
    %1278 = vector.extract_strided_slice %1265 {offsets = [0, 64], sizes = [2, 32], strides = [1, 1]} : vector<2x128xf32> to vector<2x32xf32>
    %1279 = math.tanh %1278 : vector<2x32xf32>
    %1280 = vector.extract_strided_slice %1265 {offsets = [0, 96], sizes = [2, 32], strides = [1, 1]} : vector<2x128xf32> to vector<2x32xf32>
    %1281 = arith.negf %1280 : vector<2x32xf32>
    %1282 = math.exp %1281 : vector<2x32xf32>
    %cst_355 = arith.constant 1.000000e+00 : f32
    %1283 = vector.broadcast %cst_355 : f32 to vector<2x32xf32>
    %1284 = arith.addf %1283, %1282 : vector<2x32xf32>
    %1285 = arith.divf %1283, %1284 : vector<2x32xf32>
    %1286 = arith.mulf %1277, %1217 : vector<2x32xf32>
    %1287 = arith.mulf %1271, %1279 : vector<2x32xf32>
    %1288 = arith.addf %1286, %1287 : vector<2x32xf32>
    %1289 = math.tanh %1288 : vector<2x32xf32>
    %1290 = arith.mulf %1285, %1289 : vector<2x32xf32>
    %1291 = arith.index_cast %1259 : i32 to index
    %c0_356 = arith.constant 0 : index
    %c0_357 = arith.constant 0 : index
    %1292 = vector.load %arg17[%1291, %c0_356, %c0_357] : memref<12x2x128xf32, #tpu.memory_space<vmem>>, vector<1x2x128xf32>
    %1293 = vector.shape_cast %1292 : vector<1x2x128xf32> to vector<2x128xf32>
    %1294 = arith.truncf %1250 : vector<2x32xf32> to vector<2x32xbf16>
    %cst_358 = arith.constant dense<0.000000e+00> : vector<2x128xf32>
    %1295 = tpu.matmul %1294, %902, %cst_358 {dimension_numbers = #tpu.dot_dimension_numbers<[1], [0], [0], [1], [0, 0, 1, 1], [], []>} : vector<2x32xbf16>, vector<32x128xbf16>, vector<2x128xf32> -> vector<2x128xf32>
    %1296 = arith.addf %1293, %1295 : vector<2x128xf32>
    %1297 = vector.extract_strided_slice %1296 {offsets = [0, 0], sizes = [2, 32], strides = [1, 1]} : vector<2x128xf32> to vector<2x32xf32>
    %1298 = arith.negf %1297 : vector<2x32xf32>
    %1299 = math.exp %1298 : vector<2x32xf32>
    %cst_359 = arith.constant 1.000000e+00 : f32
    %1300 = vector.broadcast %cst_359 : f32 to vector<2x32xf32>
    %1301 = arith.addf %1300, %1299 : vector<2x32xf32>
    %1302 = arith.divf %1300, %1301 : vector<2x32xf32>
    %1303 = vector.extract_strided_slice %1296 {offsets = [0, 32], sizes = [2, 32], strides = [1, 1]} : vector<2x128xf32> to vector<2x32xf32>
    %1304 = arith.negf %1303 : vector<2x32xf32>
    %1305 = math.exp %1304 : vector<2x32xf32>
    %cst_360 = arith.constant 1.000000e+00 : f32
    %1306 = vector.broadcast %cst_360 : f32 to vector<2x32xf32>
    %1307 = arith.addf %1306, %1305 : vector<2x32xf32>
    %1308 = arith.divf %1306, %1307 : vector<2x32xf32>
    %1309 = vector.extract_strided_slice %1296 {offsets = [0, 64], sizes = [2, 32], strides = [1, 1]} : vector<2x128xf32> to vector<2x32xf32>
    %1310 = math.tanh %1309 : vector<2x32xf32>
    %1311 = vector.extract_strided_slice %1296 {offsets = [0, 96], sizes = [2, 32], strides = [1, 1]} : vector<2x128xf32> to vector<2x32xf32>
    %1312 = arith.negf %1311 : vector<2x32xf32>
    %1313 = math.exp %1312 : vector<2x32xf32>
    %cst_361 = arith.constant 1.000000e+00 : f32
    %1314 = vector.broadcast %cst_361 : f32 to vector<2x32xf32>
    %1315 = arith.addf %1314, %1313 : vector<2x32xf32>
    %1316 = arith.divf %1314, %1315 : vector<2x32xf32>
    %1317 = arith.mulf %1308, %1248 : vector<2x32xf32>
    %1318 = arith.mulf %1302, %1310 : vector<2x32xf32>
    %1319 = arith.addf %1317, %1318 : vector<2x32xf32>
    %1320 = math.tanh %1319 : vector<2x32xf32>
    %1321 = arith.mulf %1316, %1320 : vector<2x32xf32>
    %1322 = arith.index_cast %c5_i32_348 : i32 to index
    %c0_362 = arith.constant 0 : index
    %c0_363 = arith.constant 0 : index
    %1323 = vector.load %arg18[%1322, %c0_362, %c0_363] : memref<12x2x32xf32, #tpu.memory_space<vmem>>, vector<1x2x32xf32>
    %1324 = vector.shape_cast %1323 : vector<1x2x32xf32> to vector<2x32xf32>
    %1325 = vector.shape_cast %1290 : vector<2x32xf32> to vector<1x2x32xf32>
    tpu.vector_store %arg18[%1322, %c0_362, %c0_363], %1325 {strides = array<i32>} : memref<12x2x32xf32, #tpu.memory_space<vmem>>, vector<1x2x32xf32>,
    %1326 = arith.index_cast %1259 : i32 to index
    %c0_364 = arith.constant 0 : index
    %c0_365 = arith.constant 0 : index
    %1327 = vector.load %arg19[%1326, %c0_364, %c0_365] : memref<12x2x32xf32, #tpu.memory_space<vmem>>, vector<1x2x32xf32>
    %1328 = vector.shape_cast %1327 : vector<1x2x32xf32> to vector<2x32xf32>
    %1329 = vector.shape_cast %1321 : vector<2x32xf32> to vector<1x2x32xf32>
    tpu.vector_store %arg19[%1326, %c0_364, %c0_365], %1329 {strides = array<i32>} : memref<12x2x32xf32, #tpu.memory_space<vmem>>, vector<1x2x32xf32>,
    %c6_i32_366 = arith.constant 6 : i32
    %c11_i32_367 = arith.constant 11 : i32
    %1330 = arith.subi %c11_i32_367, %c6_i32_366 : i32
    %1331 = arith.index_cast %c6_i32_366 : i32 to index
    %c0_368 = arith.constant 0 : index
    %c0_369 = arith.constant 0 : index
    %1332 = vector.load %arg16[%1331, %c0_368, %c0_369] : memref<12x2x128xf32, #tpu.memory_space<vmem>>, vector<1x2x128xf32>
    %1333 = vector.shape_cast %1332 : vector<1x2x128xf32> to vector<2x128xf32>
    %1334 = arith.truncf %1290 : vector<2x32xf32> to vector<2x32xbf16>
    %cst_370 = arith.constant dense<0.000000e+00> : vector<2x128xf32>
    %1335 = tpu.matmul %1334, %901, %cst_370 {dimension_numbers = #tpu.dot_dimension_numbers<[1], [0], [0], [1], [0, 0, 1, 1], [], []>} : vector<2x32xbf16>, vector<32x128xbf16>, vector<2x128xf32> -> vector<2x128xf32>
    %1336 = arith.addf %1333, %1335 : vector<2x128xf32>
    %1337 = vector.extract_strided_slice %1336 {offsets = [0, 0], sizes = [2, 32], strides = [1, 1]} : vector<2x128xf32> to vector<2x32xf32>
    %1338 = arith.negf %1337 : vector<2x32xf32>
    %1339 = math.exp %1338 : vector<2x32xf32>
    %cst_371 = arith.constant 1.000000e+00 : f32
    %1340 = vector.broadcast %cst_371 : f32 to vector<2x32xf32>
    %1341 = arith.addf %1340, %1339 : vector<2x32xf32>
    %1342 = arith.divf %1340, %1341 : vector<2x32xf32>
    %1343 = vector.extract_strided_slice %1336 {offsets = [0, 32], sizes = [2, 32], strides = [1, 1]} : vector<2x128xf32> to vector<2x32xf32>
    %1344 = arith.negf %1343 : vector<2x32xf32>
    %1345 = math.exp %1344 : vector<2x32xf32>
    %cst_372 = arith.constant 1.000000e+00 : f32
    %1346 = vector.broadcast %cst_372 : f32 to vector<2x32xf32>
    %1347 = arith.addf %1346, %1345 : vector<2x32xf32>
    %1348 = arith.divf %1346, %1347 : vector<2x32xf32>
    %1349 = vector.extract_strided_slice %1336 {offsets = [0, 64], sizes = [2, 32], strides = [1, 1]} : vector<2x128xf32> to vector<2x32xf32>
    %1350 = math.tanh %1349 : vector<2x32xf32>
    %1351 = vector.extract_strided_slice %1336 {offsets = [0, 96], sizes = [2, 32], strides = [1, 1]} : vector<2x128xf32> to vector<2x32xf32>
    %1352 = arith.negf %1351 : vector<2x32xf32>
    %1353 = math.exp %1352 : vector<2x32xf32>
    %cst_373 = arith.constant 1.000000e+00 : f32
    %1354 = vector.broadcast %cst_373 : f32 to vector<2x32xf32>
    %1355 = arith.addf %1354, %1353 : vector<2x32xf32>
    %1356 = arith.divf %1354, %1355 : vector<2x32xf32>
    %1357 = arith.mulf %1348, %1288 : vector<2x32xf32>
    %1358 = arith.mulf %1342, %1350 : vector<2x32xf32>
    %1359 = arith.addf %1357, %1358 : vector<2x32xf32>
    %1360 = math.tanh %1359 : vector<2x32xf32>
    %1361 = arith.mulf %1356, %1360 : vector<2x32xf32>
    %1362 = arith.index_cast %1330 : i32 to index
    %c0_374 = arith.constant 0 : index
    %c0_375 = arith.constant 0 : index
    %1363 = vector.load %arg17[%1362, %c0_374, %c0_375] : memref<12x2x128xf32, #tpu.memory_space<vmem>>, vector<1x2x128xf32>
    %1364 = vector.shape_cast %1363 : vector<1x2x128xf32> to vector<2x128xf32>
    %1365 = arith.truncf %1321 : vector<2x32xf32> to vector<2x32xbf16>
    %cst_376 = arith.constant dense<0.000000e+00> : vector<2x128xf32>
    %1366 = tpu.matmul %1365, %902, %cst_376 {dimension_numbers = #tpu.dot_dimension_numbers<[1], [0], [0], [1], [0, 0, 1, 1], [], []>} : vector<2x32xbf16>, vector<32x128xbf16>, vector<2x128xf32> -> vector<2x128xf32>
    %1367 = arith.addf %1364, %1366 : vector<2x128xf32>
    %1368 = vector.extract_strided_slice %1367 {offsets = [0, 0], sizes = [2, 32], strides = [1, 1]} : vector<2x128xf32> to vector<2x32xf32>
    %1369 = arith.negf %1368 : vector<2x32xf32>
    %1370 = math.exp %1369 : vector<2x32xf32>
    %cst_377 = arith.constant 1.000000e+00 : f32
    %1371 = vector.broadcast %cst_377 : f32 to vector<2x32xf32>
    %1372 = arith.addf %1371, %1370 : vector<2x32xf32>
    %1373 = arith.divf %1371, %1372 : vector<2x32xf32>
    %1374 = vector.extract_strided_slice %1367 {offsets = [0, 32], sizes = [2, 32], strides = [1, 1]} : vector<2x128xf32> to vector<2x32xf32>
    %1375 = arith.negf %1374 : vector<2x32xf32>
    %1376 = math.exp %1375 : vector<2x32xf32>
    %cst_378 = arith.constant 1.000000e+00 : f32
    %1377 = vector.broadcast %cst_378 : f32 to vector<2x32xf32>
    %1378 = arith.addf %1377, %1376 : vector<2x32xf32>
    %1379 = arith.divf %1377, %1378 : vector<2x32xf32>
    %1380 = vector.extract_strided_slice %1367 {offsets = [0, 64], sizes = [2, 32], strides = [1, 1]} : vector<2x128xf32> to vector<2x32xf32>
    %1381 = math.tanh %1380 : vector<2x32xf32>
    %1382 = vector.extract_strided_slice %1367 {offsets = [0, 96], sizes = [2, 32], strides = [1, 1]} : vector<2x128xf32> to vector<2x32xf32>
    %1383 = arith.negf %1382 : vector<2x32xf32>
    %1384 = math.exp %1383 : vector<2x32xf32>
    %cst_379 = arith.constant 1.000000e+00 : f32
    %1385 = vector.broadcast %cst_379 : f32 to vector<2x32xf32>
    %1386 = arith.addf %1385, %1384 : vector<2x32xf32>
    %1387 = arith.divf %1385, %1386 : vector<2x32xf32>
    %1388 = arith.mulf %1379, %1319 : vector<2x32xf32>
    %1389 = arith.mulf %1373, %1381 : vector<2x32xf32>
    %1390 = arith.addf %1388, %1389 : vector<2x32xf32>
    %1391 = math.tanh %1390 : vector<2x32xf32>
    %1392 = arith.mulf %1387, %1391 : vector<2x32xf32>
    %1393 = arith.index_cast %c6_i32_366 : i32 to index
    %c0_380 = arith.constant 0 : index
    %c0_381 = arith.constant 0 : index
    %1394 = vector.load %arg18[%1393, %c0_380, %c0_381] : memref<12x2x32xf32, #tpu.memory_space<vmem>>, vector<1x2x32xf32>
    %1395 = vector.shape_cast %1394 : vector<1x2x32xf32> to vector<2x32xf32>
    %1396 = vector.shape_cast %1361 : vector<2x32xf32> to vector<1x2x32xf32>
    tpu.vector_store %arg18[%1393, %c0_380, %c0_381], %1396 {strides = array<i32>} : memref<12x2x32xf32, #tpu.memory_space<vmem>>, vector<1x2x32xf32>,
    %1397 = arith.index_cast %1330 : i32 to index
    %c0_382 = arith.constant 0 : index
    %c0_383 = arith.constant 0 : index
    %1398 = vector.load %arg19[%1397, %c0_382, %c0_383] : memref<12x2x32xf32, #tpu.memory_space<vmem>>, vector<1x2x32xf32>
    %1399 = vector.shape_cast %1398 : vector<1x2x32xf32> to vector<2x32xf32>
    %1400 = vector.shape_cast %1392 : vector<2x32xf32> to vector<1x2x32xf32>
    tpu.vector_store %arg19[%1397, %c0_382, %c0_383], %1400 {strides = array<i32>} : memref<12x2x32xf32, #tpu.memory_space<vmem>>, vector<1x2x32xf32>,
    %c7_i32_384 = arith.constant 7 : i32
    %c11_i32_385 = arith.constant 11 : i32
    %1401 = arith.subi %c11_i32_385, %c7_i32_384 : i32
    %1402 = arith.index_cast %c7_i32_384 : i32 to index
    %c0_386 = arith.constant 0 : index
    %c0_387 = arith.constant 0 : index
    %1403 = vector.load %arg16[%1402, %c0_386, %c0_387] : memref<12x2x128xf32, #tpu.memory_space<vmem>>, vector<1x2x128xf32>
    %1404 = vector.shape_cast %1403 : vector<1x2x128xf32> to vector<2x128xf32>
    %1405 = arith.truncf %1361 : vector<2x32xf32> to vector<2x32xbf16>
    %cst_388 = arith.constant dense<0.000000e+00> : vector<2x128xf32>
    %1406 = tpu.matmul %1405, %901, %cst_388 {dimension_numbers = #tpu.dot_dimension_numbers<[1], [0], [0], [1], [0, 0, 1, 1], [], []>} : vector<2x32xbf16>, vector<32x128xbf16>, vector<2x128xf32> -> vector<2x128xf32>
    %1407 = arith.addf %1404, %1406 : vector<2x128xf32>
    %1408 = vector.extract_strided_slice %1407 {offsets = [0, 0], sizes = [2, 32], strides = [1, 1]} : vector<2x128xf32> to vector<2x32xf32>
    %1409 = arith.negf %1408 : vector<2x32xf32>
    %1410 = math.exp %1409 : vector<2x32xf32>
    %cst_389 = arith.constant 1.000000e+00 : f32
    %1411 = vector.broadcast %cst_389 : f32 to vector<2x32xf32>
    %1412 = arith.addf %1411, %1410 : vector<2x32xf32>
    %1413 = arith.divf %1411, %1412 : vector<2x32xf32>
    %1414 = vector.extract_strided_slice %1407 {offsets = [0, 32], sizes = [2, 32], strides = [1, 1]} : vector<2x128xf32> to vector<2x32xf32>
    %1415 = arith.negf %1414 : vector<2x32xf32>
    %1416 = math.exp %1415 : vector<2x32xf32>
    %cst_390 = arith.constant 1.000000e+00 : f32
    %1417 = vector.broadcast %cst_390 : f32 to vector<2x32xf32>
    %1418 = arith.addf %1417, %1416 : vector<2x32xf32>
    %1419 = arith.divf %1417, %1418 : vector<2x32xf32>
    %1420 = vector.extract_strided_slice %1407 {offsets = [0, 64], sizes = [2, 32], strides = [1, 1]} : vector<2x128xf32> to vector<2x32xf32>
    %1421 = math.tanh %1420 : vector<2x32xf32>
    %1422 = vector.extract_strided_slice %1407 {offsets = [0, 96], sizes = [2, 32], strides = [1, 1]} : vector<2x128xf32> to vector<2x32xf32>
    %1423 = arith.negf %1422 : vector<2x32xf32>
    %1424 = math.exp %1423 : vector<2x32xf32>
    %cst_391 = arith.constant 1.000000e+00 : f32
    %1425 = vector.broadcast %cst_391 : f32 to vector<2x32xf32>
    %1426 = arith.addf %1425, %1424 : vector<2x32xf32>
    %1427 = arith.divf %1425, %1426 : vector<2x32xf32>
    %1428 = arith.mulf %1419, %1359 : vector<2x32xf32>
    %1429 = arith.mulf %1413, %1421 : vector<2x32xf32>
    %1430 = arith.addf %1428, %1429 : vector<2x32xf32>
    %1431 = math.tanh %1430 : vector<2x32xf32>
    %1432 = arith.mulf %1427, %1431 : vector<2x32xf32>
    %1433 = arith.index_cast %1401 : i32 to index
    %c0_392 = arith.constant 0 : index
    %c0_393 = arith.constant 0 : index
    %1434 = vector.load %arg17[%1433, %c0_392, %c0_393] : memref<12x2x128xf32, #tpu.memory_space<vmem>>, vector<1x2x128xf32>
    %1435 = vector.shape_cast %1434 : vector<1x2x128xf32> to vector<2x128xf32>
    %1436 = arith.truncf %1392 : vector<2x32xf32> to vector<2x32xbf16>
    %cst_394 = arith.constant dense<0.000000e+00> : vector<2x128xf32>
    %1437 = tpu.matmul %1436, %902, %cst_394 {dimension_numbers = #tpu.dot_dimension_numbers<[1], [0], [0], [1], [0, 0, 1, 1], [], []>} : vector<2x32xbf16>, vector<32x128xbf16>, vector<2x128xf32> -> vector<2x128xf32>
    %1438 = arith.addf %1435, %1437 : vector<2x128xf32>
    %1439 = vector.extract_strided_slice %1438 {offsets = [0, 0], sizes = [2, 32], strides = [1, 1]} : vector<2x128xf32> to vector<2x32xf32>
    %1440 = arith.negf %1439 : vector<2x32xf32>
    %1441 = math.exp %1440 : vector<2x32xf32>
    %cst_395 = arith.constant 1.000000e+00 : f32
    %1442 = vector.broadcast %cst_395 : f32 to vector<2x32xf32>
    %1443 = arith.addf %1442, %1441 : vector<2x32xf32>
    %1444 = arith.divf %1442, %1443 : vector<2x32xf32>
    %1445 = vector.extract_strided_slice %1438 {offsets = [0, 32], sizes = [2, 32], strides = [1, 1]} : vector<2x128xf32> to vector<2x32xf32>
    %1446 = arith.negf %1445 : vector<2x32xf32>
    %1447 = math.exp %1446 : vector<2x32xf32>
    %cst_396 = arith.constant 1.000000e+00 : f32
    %1448 = vector.broadcast %cst_396 : f32 to vector<2x32xf32>
    %1449 = arith.addf %1448, %1447 : vector<2x32xf32>
    %1450 = arith.divf %1448, %1449 : vector<2x32xf32>
    %1451 = vector.extract_strided_slice %1438 {offsets = [0, 64], sizes = [2, 32], strides = [1, 1]} : vector<2x128xf32> to vector<2x32xf32>
    %1452 = math.tanh %1451 : vector<2x32xf32>
    %1453 = vector.extract_strided_slice %1438 {offsets = [0, 96], sizes = [2, 32], strides = [1, 1]} : vector<2x128xf32> to vector<2x32xf32>
    %1454 = arith.negf %1453 : vector<2x32xf32>
    %1455 = math.exp %1454 : vector<2x32xf32>
    %cst_397 = arith.constant 1.000000e+00 : f32
    %1456 = vector.broadcast %cst_397 : f32 to vector<2x32xf32>
    %1457 = arith.addf %1456, %1455 : vector<2x32xf32>
    %1458 = arith.divf %1456, %1457 : vector<2x32xf32>
    %1459 = arith.mulf %1450, %1390 : vector<2x32xf32>
    %1460 = arith.mulf %1444, %1452 : vector<2x32xf32>
    %1461 = arith.addf %1459, %1460 : vector<2x32xf32>
    %1462 = math.tanh %1461 : vector<2x32xf32>
    %1463 = arith.mulf %1458, %1462 : vector<2x32xf32>
    %1464 = arith.index_cast %c7_i32_384 : i32 to index
    %c0_398 = arith.constant 0 : index
    %c0_399 = arith.constant 0 : index
    %1465 = vector.load %arg18[%1464, %c0_398, %c0_399] : memref<12x2x32xf32, #tpu.memory_space<vmem>>, vector<1x2x32xf32>
    %1466 = vector.shape_cast %1465 : vector<1x2x32xf32> to vector<2x32xf32>
    %1467 = vector.shape_cast %1432 : vector<2x32xf32> to vector<1x2x32xf32>
    tpu.vector_store %arg18[%1464, %c0_398, %c0_399], %1467 {strides = array<i32>} : memref<12x2x32xf32, #tpu.memory_space<vmem>>, vector<1x2x32xf32>,
    %1468 = arith.index_cast %1401 : i32 to index
    %c0_400 = arith.constant 0 : index
    %c0_401 = arith.constant 0 : index
    %1469 = vector.load %arg19[%1468, %c0_400, %c0_401] : memref<12x2x32xf32, #tpu.memory_space<vmem>>, vector<1x2x32xf32>
    %1470 = vector.shape_cast %1469 : vector<1x2x32xf32> to vector<2x32xf32>
    %1471 = vector.shape_cast %1463 : vector<2x32xf32> to vector<1x2x32xf32>
    tpu.vector_store %arg19[%1468, %c0_400, %c0_401], %1471 {strides = array<i32>} : memref<12x2x32xf32, #tpu.memory_space<vmem>>, vector<1x2x32xf32>,
    %c8_i32_402 = arith.constant 8 : i32
    %c11_i32_403 = arith.constant 11 : i32
    %1472 = arith.subi %c11_i32_403, %c8_i32_402 : i32
    %1473 = arith.index_cast %c8_i32_402 : i32 to index
    %c0_404 = arith.constant 0 : index
    %c0_405 = arith.constant 0 : index
    %1474 = vector.load %arg16[%1473, %c0_404, %c0_405] : memref<12x2x128xf32, #tpu.memory_space<vmem>>, vector<1x2x128xf32>
    %1475 = vector.shape_cast %1474 : vector<1x2x128xf32> to vector<2x128xf32>
    %1476 = arith.truncf %1432 : vector<2x32xf32> to vector<2x32xbf16>
    %cst_406 = arith.constant dense<0.000000e+00> : vector<2x128xf32>
    %1477 = tpu.matmul %1476, %901, %cst_406 {dimension_numbers = #tpu.dot_dimension_numbers<[1], [0], [0], [1], [0, 0, 1, 1], [], []>} : vector<2x32xbf16>, vector<32x128xbf16>, vector<2x128xf32> -> vector<2x128xf32>
    %1478 = arith.addf %1475, %1477 : vector<2x128xf32>
    %1479 = vector.extract_strided_slice %1478 {offsets = [0, 0], sizes = [2, 32], strides = [1, 1]} : vector<2x128xf32> to vector<2x32xf32>
    %1480 = arith.negf %1479 : vector<2x32xf32>
    %1481 = math.exp %1480 : vector<2x32xf32>
    %cst_407 = arith.constant 1.000000e+00 : f32
    %1482 = vector.broadcast %cst_407 : f32 to vector<2x32xf32>
    %1483 = arith.addf %1482, %1481 : vector<2x32xf32>
    %1484 = arith.divf %1482, %1483 : vector<2x32xf32>
    %1485 = vector.extract_strided_slice %1478 {offsets = [0, 32], sizes = [2, 32], strides = [1, 1]} : vector<2x128xf32> to vector<2x32xf32>
    %1486 = arith.negf %1485 : vector<2x32xf32>
    %1487 = math.exp %1486 : vector<2x32xf32>
    %cst_408 = arith.constant 1.000000e+00 : f32
    %1488 = vector.broadcast %cst_408 : f32 to vector<2x32xf32>
    %1489 = arith.addf %1488, %1487 : vector<2x32xf32>
    %1490 = arith.divf %1488, %1489 : vector<2x32xf32>
    %1491 = vector.extract_strided_slice %1478 {offsets = [0, 64], sizes = [2, 32], strides = [1, 1]} : vector<2x128xf32> to vector<2x32xf32>
    %1492 = math.tanh %1491 : vector<2x32xf32>
    %1493 = vector.extract_strided_slice %1478 {offsets = [0, 96], sizes = [2, 32], strides = [1, 1]} : vector<2x128xf32> to vector<2x32xf32>
    %1494 = arith.negf %1493 : vector<2x32xf32>
    %1495 = math.exp %1494 : vector<2x32xf32>
    %cst_409 = arith.constant 1.000000e+00 : f32
    %1496 = vector.broadcast %cst_409 : f32 to vector<2x32xf32>
    %1497 = arith.addf %1496, %1495 : vector<2x32xf32>
    %1498 = arith.divf %1496, %1497 : vector<2x32xf32>
    %1499 = arith.mulf %1490, %1430 : vector<2x32xf32>
    %1500 = arith.mulf %1484, %1492 : vector<2x32xf32>
    %1501 = arith.addf %1499, %1500 : vector<2x32xf32>
    %1502 = math.tanh %1501 : vector<2x32xf32>
    %1503 = arith.mulf %1498, %1502 : vector<2x32xf32>
    %1504 = arith.index_cast %1472 : i32 to index
    %c0_410 = arith.constant 0 : index
    %c0_411 = arith.constant 0 : index
    %1505 = vector.load %arg17[%1504, %c0_410, %c0_411] : memref<12x2x128xf32, #tpu.memory_space<vmem>>, vector<1x2x128xf32>
    %1506 = vector.shape_cast %1505 : vector<1x2x128xf32> to vector<2x128xf32>
    %1507 = arith.truncf %1463 : vector<2x32xf32> to vector<2x32xbf16>
    %cst_412 = arith.constant dense<0.000000e+00> : vector<2x128xf32>
    %1508 = tpu.matmul %1507, %902, %cst_412 {dimension_numbers = #tpu.dot_dimension_numbers<[1], [0], [0], [1], [0, 0, 1, 1], [], []>} : vector<2x32xbf16>, vector<32x128xbf16>, vector<2x128xf32> -> vector<2x128xf32>
    %1509 = arith.addf %1506, %1508 : vector<2x128xf32>
    %1510 = vector.extract_strided_slice %1509 {offsets = [0, 0], sizes = [2, 32], strides = [1, 1]} : vector<2x128xf32> to vector<2x32xf32>
    %1511 = arith.negf %1510 : vector<2x32xf32>
    %1512 = math.exp %1511 : vector<2x32xf32>
    %cst_413 = arith.constant 1.000000e+00 : f32
    %1513 = vector.broadcast %cst_413 : f32 to vector<2x32xf32>
    %1514 = arith.addf %1513, %1512 : vector<2x32xf32>
    %1515 = arith.divf %1513, %1514 : vector<2x32xf32>
    %1516 = vector.extract_strided_slice %1509 {offsets = [0, 32], sizes = [2, 32], strides = [1, 1]} : vector<2x128xf32> to vector<2x32xf32>
    %1517 = arith.negf %1516 : vector<2x32xf32>
    %1518 = math.exp %1517 : vector<2x32xf32>
    %cst_414 = arith.constant 1.000000e+00 : f32
    %1519 = vector.broadcast %cst_414 : f32 to vector<2x32xf32>
    %1520 = arith.addf %1519, %1518 : vector<2x32xf32>
    %1521 = arith.divf %1519, %1520 : vector<2x32xf32>
    %1522 = vector.extract_strided_slice %1509 {offsets = [0, 64], sizes = [2, 32], strides = [1, 1]} : vector<2x128xf32> to vector<2x32xf32>
    %1523 = math.tanh %1522 : vector<2x32xf32>
    %1524 = vector.extract_strided_slice %1509 {offsets = [0, 96], sizes = [2, 32], strides = [1, 1]} : vector<2x128xf32> to vector<2x32xf32>
    %1525 = arith.negf %1524 : vector<2x32xf32>
    %1526 = math.exp %1525 : vector<2x32xf32>
    %cst_415 = arith.constant 1.000000e+00 : f32
    %1527 = vector.broadcast %cst_415 : f32 to vector<2x32xf32>
    %1528 = arith.addf %1527, %1526 : vector<2x32xf32>
    %1529 = arith.divf %1527, %1528 : vector<2x32xf32>
    %1530 = arith.mulf %1521, %1461 : vector<2x32xf32>
    %1531 = arith.mulf %1515, %1523 : vector<2x32xf32>
    %1532 = arith.addf %1530, %1531 : vector<2x32xf32>
    %1533 = math.tanh %1532 : vector<2x32xf32>
    %1534 = arith.mulf %1529, %1533 : vector<2x32xf32>
    %1535 = arith.index_cast %c8_i32_402 : i32 to index
    %c0_416 = arith.constant 0 : index
    %c0_417 = arith.constant 0 : index
    %1536 = vector.load %arg18[%1535, %c0_416, %c0_417] : memref<12x2x32xf32, #tpu.memory_space<vmem>>, vector<1x2x32xf32>
    %1537 = vector.shape_cast %1536 : vector<1x2x32xf32> to vector<2x32xf32>
    %1538 = vector.shape_cast %1503 : vector<2x32xf32> to vector<1x2x32xf32>
    tpu.vector_store %arg18[%1535, %c0_416, %c0_417], %1538 {strides = array<i32>} : memref<12x2x32xf32, #tpu.memory_space<vmem>>, vector<1x2x32xf32>,
    %1539 = arith.index_cast %1472 : i32 to index
    %c0_418 = arith.constant 0 : index
    %c0_419 = arith.constant 0 : index
    %1540 = vector.load %arg19[%1539, %c0_418, %c0_419] : memref<12x2x32xf32, #tpu.memory_space<vmem>>, vector<1x2x32xf32>
    %1541 = vector.shape_cast %1540 : vector<1x2x32xf32> to vector<2x32xf32>
    %1542 = vector.shape_cast %1534 : vector<2x32xf32> to vector<1x2x32xf32>
    tpu.vector_store %arg19[%1539, %c0_418, %c0_419], %1542 {strides = array<i32>} : memref<12x2x32xf32, #tpu.memory_space<vmem>>, vector<1x2x32xf32>,
    %c9_i32_420 = arith.constant 9 : i32
    %c11_i32_421 = arith.constant 11 : i32
    %1543 = arith.subi %c11_i32_421, %c9_i32_420 : i32
    %1544 = arith.index_cast %c9_i32_420 : i32 to index
    %c0_422 = arith.constant 0 : index
    %c0_423 = arith.constant 0 : index
    %1545 = vector.load %arg16[%1544, %c0_422, %c0_423] : memref<12x2x128xf32, #tpu.memory_space<vmem>>, vector<1x2x128xf32>
    %1546 = vector.shape_cast %1545 : vector<1x2x128xf32> to vector<2x128xf32>
    %1547 = arith.truncf %1503 : vector<2x32xf32> to vector<2x32xbf16>
    %cst_424 = arith.constant dense<0.000000e+00> : vector<2x128xf32>
    %1548 = tpu.matmul %1547, %901, %cst_424 {dimension_numbers = #tpu.dot_dimension_numbers<[1], [0], [0], [1], [0, 0, 1, 1], [], []>} : vector<2x32xbf16>, vector<32x128xbf16>, vector<2x128xf32> -> vector<2x128xf32>
    %1549 = arith.addf %1546, %1548 : vector<2x128xf32>
    %1550 = vector.extract_strided_slice %1549 {offsets = [0, 0], sizes = [2, 32], strides = [1, 1]} : vector<2x128xf32> to vector<2x32xf32>
    %1551 = arith.negf %1550 : vector<2x32xf32>
    %1552 = math.exp %1551 : vector<2x32xf32>
    %cst_425 = arith.constant 1.000000e+00 : f32
    %1553 = vector.broadcast %cst_425 : f32 to vector<2x32xf32>
    %1554 = arith.addf %1553, %1552 : vector<2x32xf32>
    %1555 = arith.divf %1553, %1554 : vector<2x32xf32>
    %1556 = vector.extract_strided_slice %1549 {offsets = [0, 32], sizes = [2, 32], strides = [1, 1]} : vector<2x128xf32> to vector<2x32xf32>
    %1557 = arith.negf %1556 : vector<2x32xf32>
    %1558 = math.exp %1557 : vector<2x32xf32>
    %cst_426 = arith.constant 1.000000e+00 : f32
    %1559 = vector.broadcast %cst_426 : f32 to vector<2x32xf32>
    %1560 = arith.addf %1559, %1558 : vector<2x32xf32>
    %1561 = arith.divf %1559, %1560 : vector<2x32xf32>
    %1562 = vector.extract_strided_slice %1549 {offsets = [0, 64], sizes = [2, 32], strides = [1, 1]} : vector<2x128xf32> to vector<2x32xf32>
    %1563 = math.tanh %1562 : vector<2x32xf32>
    %1564 = vector.extract_strided_slice %1549 {offsets = [0, 96], sizes = [2, 32], strides = [1, 1]} : vector<2x128xf32> to vector<2x32xf32>
    %1565 = arith.negf %1564 : vector<2x32xf32>
    %1566 = math.exp %1565 : vector<2x32xf32>
    %cst_427 = arith.constant 1.000000e+00 : f32
    %1567 = vector.broadcast %cst_427 : f32 to vector<2x32xf32>
    %1568 = arith.addf %1567, %1566 : vector<2x32xf32>
    %1569 = arith.divf %1567, %1568 : vector<2x32xf32>
    %1570 = arith.mulf %1561, %1501 : vector<2x32xf32>
    %1571 = arith.mulf %1555, %1563 : vector<2x32xf32>
    %1572 = arith.addf %1570, %1571 : vector<2x32xf32>
    %1573 = math.tanh %1572 : vector<2x32xf32>
    %1574 = arith.mulf %1569, %1573 : vector<2x32xf32>
    %1575 = arith.index_cast %1543 : i32 to index
    %c0_428 = arith.constant 0 : index
    %c0_429 = arith.constant 0 : index
    %1576 = vector.load %arg17[%1575, %c0_428, %c0_429] : memref<12x2x128xf32, #tpu.memory_space<vmem>>, vector<1x2x128xf32>
    %1577 = vector.shape_cast %1576 : vector<1x2x128xf32> to vector<2x128xf32>
    %1578 = arith.truncf %1534 : vector<2x32xf32> to vector<2x32xbf16>
    %cst_430 = arith.constant dense<0.000000e+00> : vector<2x128xf32>
    %1579 = tpu.matmul %1578, %902, %cst_430 {dimension_numbers = #tpu.dot_dimension_numbers<[1], [0], [0], [1], [0, 0, 1, 1], [], []>} : vector<2x32xbf16>, vector<32x128xbf16>, vector<2x128xf32> -> vector<2x128xf32>
    %1580 = arith.addf %1577, %1579 : vector<2x128xf32>
    %1581 = vector.extract_strided_slice %1580 {offsets = [0, 0], sizes = [2, 32], strides = [1, 1]} : vector<2x128xf32> to vector<2x32xf32>
    %1582 = arith.negf %1581 : vector<2x32xf32>
    %1583 = math.exp %1582 : vector<2x32xf32>
    %cst_431 = arith.constant 1.000000e+00 : f32
    %1584 = vector.broadcast %cst_431 : f32 to vector<2x32xf32>
    %1585 = arith.addf %1584, %1583 : vector<2x32xf32>
    %1586 = arith.divf %1584, %1585 : vector<2x32xf32>
    %1587 = vector.extract_strided_slice %1580 {offsets = [0, 32], sizes = [2, 32], strides = [1, 1]} : vector<2x128xf32> to vector<2x32xf32>
    %1588 = arith.negf %1587 : vector<2x32xf32>
    %1589 = math.exp %1588 : vector<2x32xf32>
    %cst_432 = arith.constant 1.000000e+00 : f32
    %1590 = vector.broadcast %cst_432 : f32 to vector<2x32xf32>
    %1591 = arith.addf %1590, %1589 : vector<2x32xf32>
    %1592 = arith.divf %1590, %1591 : vector<2x32xf32>
    %1593 = vector.extract_strided_slice %1580 {offsets = [0, 64], sizes = [2, 32], strides = [1, 1]} : vector<2x128xf32> to vector<2x32xf32>
    %1594 = math.tanh %1593 : vector<2x32xf32>
    %1595 = vector.extract_strided_slice %1580 {offsets = [0, 96], sizes = [2, 32], strides = [1, 1]} : vector<2x128xf32> to vector<2x32xf32>
    %1596 = arith.negf %1595 : vector<2x32xf32>
    %1597 = math.exp %1596 : vector<2x32xf32>
    %cst_433 = arith.constant 1.000000e+00 : f32
    %1598 = vector.broadcast %cst_433 : f32 to vector<2x32xf32>
    %1599 = arith.addf %1598, %1597 : vector<2x32xf32>
    %1600 = arith.divf %1598, %1599 : vector<2x32xf32>
    %1601 = arith.mulf %1592, %1532 : vector<2x32xf32>
    %1602 = arith.mulf %1586, %1594 : vector<2x32xf32>
    %1603 = arith.addf %1601, %1602 : vector<2x32xf32>
    %1604 = math.tanh %1603 : vector<2x32xf32>
    %1605 = arith.mulf %1600, %1604 : vector<2x32xf32>
    %1606 = arith.index_cast %c9_i32_420 : i32 to index
    %c0_434 = arith.constant 0 : index
    %c0_435 = arith.constant 0 : index
    %1607 = vector.load %arg18[%1606, %c0_434, %c0_435] : memref<12x2x32xf32, #tpu.memory_space<vmem>>, vector<1x2x32xf32>
    %1608 = vector.shape_cast %1607 : vector<1x2x32xf32> to vector<2x32xf32>
    %1609 = vector.shape_cast %1574 : vector<2x32xf32> to vector<1x2x32xf32>
    tpu.vector_store %arg18[%1606, %c0_434, %c0_435], %1609 {strides = array<i32>} : memref<12x2x32xf32, #tpu.memory_space<vmem>>, vector<1x2x32xf32>,
    %1610 = arith.index_cast %1543 : i32 to index
    %c0_436 = arith.constant 0 : index
    %c0_437 = arith.constant 0 : index
    %1611 = vector.load %arg19[%1610, %c0_436, %c0_437] : memref<12x2x32xf32, #tpu.memory_space<vmem>>, vector<1x2x32xf32>
    %1612 = vector.shape_cast %1611 : vector<1x2x32xf32> to vector<2x32xf32>
    %1613 = vector.shape_cast %1605 : vector<2x32xf32> to vector<1x2x32xf32>
    tpu.vector_store %arg19[%1610, %c0_436, %c0_437], %1613 {strides = array<i32>} : memref<12x2x32xf32, #tpu.memory_space<vmem>>, vector<1x2x32xf32>,
    %c10_i32_438 = arith.constant 10 : i32
    %c11_i32_439 = arith.constant 11 : i32
    %1614 = arith.subi %c11_i32_439, %c10_i32_438 : i32
    %1615 = arith.index_cast %c10_i32_438 : i32 to index
    %c0_440 = arith.constant 0 : index
    %c0_441 = arith.constant 0 : index
    %1616 = vector.load %arg16[%1615, %c0_440, %c0_441] : memref<12x2x128xf32, #tpu.memory_space<vmem>>, vector<1x2x128xf32>
    %1617 = vector.shape_cast %1616 : vector<1x2x128xf32> to vector<2x128xf32>
    %1618 = arith.truncf %1574 : vector<2x32xf32> to vector<2x32xbf16>
    %cst_442 = arith.constant dense<0.000000e+00> : vector<2x128xf32>
    %1619 = tpu.matmul %1618, %901, %cst_442 {dimension_numbers = #tpu.dot_dimension_numbers<[1], [0], [0], [1], [0, 0, 1, 1], [], []>} : vector<2x32xbf16>, vector<32x128xbf16>, vector<2x128xf32> -> vector<2x128xf32>
    %1620 = arith.addf %1617, %1619 : vector<2x128xf32>
    %1621 = vector.extract_strided_slice %1620 {offsets = [0, 0], sizes = [2, 32], strides = [1, 1]} : vector<2x128xf32> to vector<2x32xf32>
    %1622 = arith.negf %1621 : vector<2x32xf32>
    %1623 = math.exp %1622 : vector<2x32xf32>
    %cst_443 = arith.constant 1.000000e+00 : f32
    %1624 = vector.broadcast %cst_443 : f32 to vector<2x32xf32>
    %1625 = arith.addf %1624, %1623 : vector<2x32xf32>
    %1626 = arith.divf %1624, %1625 : vector<2x32xf32>
    %1627 = vector.extract_strided_slice %1620 {offsets = [0, 32], sizes = [2, 32], strides = [1, 1]} : vector<2x128xf32> to vector<2x32xf32>
    %1628 = arith.negf %1627 : vector<2x32xf32>
    %1629 = math.exp %1628 : vector<2x32xf32>
    %cst_444 = arith.constant 1.000000e+00 : f32
    %1630 = vector.broadcast %cst_444 : f32 to vector<2x32xf32>
    %1631 = arith.addf %1630, %1629 : vector<2x32xf32>
    %1632 = arith.divf %1630, %1631 : vector<2x32xf32>
    %1633 = vector.extract_strided_slice %1620 {offsets = [0, 64], sizes = [2, 32], strides = [1, 1]} : vector<2x128xf32> to vector<2x32xf32>
    %1634 = math.tanh %1633 : vector<2x32xf32>
    %1635 = vector.extract_strided_slice %1620 {offsets = [0, 96], sizes = [2, 32], strides = [1, 1]} : vector<2x128xf32> to vector<2x32xf32>
    %1636 = arith.negf %1635 : vector<2x32xf32>
    %1637 = math.exp %1636 : vector<2x32xf32>
    %cst_445 = arith.constant 1.000000e+00 : f32
    %1638 = vector.broadcast %cst_445 : f32 to vector<2x32xf32>
    %1639 = arith.addf %1638, %1637 : vector<2x32xf32>
    %1640 = arith.divf %1638, %1639 : vector<2x32xf32>
    %1641 = arith.mulf %1632, %1572 : vector<2x32xf32>
    %1642 = arith.mulf %1626, %1634 : vector<2x32xf32>
    %1643 = arith.addf %1641, %1642 : vector<2x32xf32>
    %1644 = math.tanh %1643 : vector<2x32xf32>
    %1645 = arith.mulf %1640, %1644 : vector<2x32xf32>
    %1646 = arith.index_cast %1614 : i32 to index
    %c0_446 = arith.constant 0 : index
    %c0_447 = arith.constant 0 : index
    %1647 = vector.load %arg17[%1646, %c0_446, %c0_447] : memref<12x2x128xf32, #tpu.memory_space<vmem>>, vector<1x2x128xf32>
    %1648 = vector.shape_cast %1647 : vector<1x2x128xf32> to vector<2x128xf32>
    %1649 = arith.truncf %1605 : vector<2x32xf32> to vector<2x32xbf16>
    %cst_448 = arith.constant dense<0.000000e+00> : vector<2x128xf32>
    %1650 = tpu.matmul %1649, %902, %cst_448 {dimension_numbers = #tpu.dot_dimension_numbers<[1], [0], [0], [1], [0, 0, 1, 1], [], []>} : vector<2x32xbf16>, vector<32x128xbf16>, vector<2x128xf32> -> vector<2x128xf32>
    %1651 = arith.addf %1648, %1650 : vector<2x128xf32>
    %1652 = vector.extract_strided_slice %1651 {offsets = [0, 0], sizes = [2, 32], strides = [1, 1]} : vector<2x128xf32> to vector<2x32xf32>
    %1653 = arith.negf %1652 : vector<2x32xf32>
    %1654 = math.exp %1653 : vector<2x32xf32>
    %cst_449 = arith.constant 1.000000e+00 : f32
    %1655 = vector.broadcast %cst_449 : f32 to vector<2x32xf32>
    %1656 = arith.addf %1655, %1654 : vector<2x32xf32>
    %1657 = arith.divf %1655, %1656 : vector<2x32xf32>
    %1658 = vector.extract_strided_slice %1651 {offsets = [0, 32], sizes = [2, 32], strides = [1, 1]} : vector<2x128xf32> to vector<2x32xf32>
    %1659 = arith.negf %1658 : vector<2x32xf32>
    %1660 = math.exp %1659 : vector<2x32xf32>
    %cst_450 = arith.constant 1.000000e+00 : f32
    %1661 = vector.broadcast %cst_450 : f32 to vector<2x32xf32>
    %1662 = arith.addf %1661, %1660 : vector<2x32xf32>
    %1663 = arith.divf %1661, %1662 : vector<2x32xf32>
    %1664 = vector.extract_strided_slice %1651 {offsets = [0, 64], sizes = [2, 32], strides = [1, 1]} : vector<2x128xf32> to vector<2x32xf32>
    %1665 = math.tanh %1664 : vector<2x32xf32>
    %1666 = vector.extract_strided_slice %1651 {offsets = [0, 96], sizes = [2, 32], strides = [1, 1]} : vector<2x128xf32> to vector<2x32xf32>
    %1667 = arith.negf %1666 : vector<2x32xf32>
    %1668 = math.exp %1667 : vector<2x32xf32>
    %cst_451 = arith.constant 1.000000e+00 : f32
    %1669 = vector.broadcast %cst_451 : f32 to vector<2x32xf32>
    %1670 = arith.addf %1669, %1668 : vector<2x32xf32>
    %1671 = arith.divf %1669, %1670 : vector<2x32xf32>
    %1672 = arith.mulf %1663, %1603 : vector<2x32xf32>
    %1673 = arith.mulf %1657, %1665 : vector<2x32xf32>
    %1674 = arith.addf %1672, %1673 : vector<2x32xf32>
    %1675 = math.tanh %1674 : vector<2x32xf32>
    %1676 = arith.mulf %1671, %1675 : vector<2x32xf32>
    %1677 = arith.index_cast %c10_i32_438 : i32 to index
    %c0_452 = arith.constant 0 : index
    %c0_453 = arith.constant 0 : index
    %1678 = vector.load %arg18[%1677, %c0_452, %c0_453] : memref<12x2x32xf32, #tpu.memory_space<vmem>>, vector<1x2x32xf32>
    %1679 = vector.shape_cast %1678 : vector<1x2x32xf32> to vector<2x32xf32>
    %1680 = vector.shape_cast %1645 : vector<2x32xf32> to vector<1x2x32xf32>
    tpu.vector_store %arg18[%1677, %c0_452, %c0_453], %1680 {strides = array<i32>} : memref<12x2x32xf32, #tpu.memory_space<vmem>>, vector<1x2x32xf32>,
    %1681 = arith.index_cast %1614 : i32 to index
    %c0_454 = arith.constant 0 : index
    %c0_455 = arith.constant 0 : index
    %1682 = vector.load %arg19[%1681, %c0_454, %c0_455] : memref<12x2x32xf32, #tpu.memory_space<vmem>>, vector<1x2x32xf32>
    %1683 = vector.shape_cast %1682 : vector<1x2x32xf32> to vector<2x32xf32>
    %1684 = vector.shape_cast %1676 : vector<2x32xf32> to vector<1x2x32xf32>
    tpu.vector_store %arg19[%1681, %c0_454, %c0_455], %1684 {strides = array<i32>} : memref<12x2x32xf32, #tpu.memory_space<vmem>>, vector<1x2x32xf32>,
    %c11_i32_456 = arith.constant 11 : i32
    %c11_i32_457 = arith.constant 11 : i32
    %1685 = arith.subi %c11_i32_457, %c11_i32_456 : i32
    %1686 = arith.index_cast %c11_i32_456 : i32 to index
    %c0_458 = arith.constant 0 : index
    %c0_459 = arith.constant 0 : index
    %1687 = vector.load %arg16[%1686, %c0_458, %c0_459] : memref<12x2x128xf32, #tpu.memory_space<vmem>>, vector<1x2x128xf32>
    %1688 = vector.shape_cast %1687 : vector<1x2x128xf32> to vector<2x128xf32>
    %1689 = arith.truncf %1645 : vector<2x32xf32> to vector<2x32xbf16>
    %cst_460 = arith.constant dense<0.000000e+00> : vector<2x128xf32>
    %1690 = tpu.matmul %1689, %901, %cst_460 {dimension_numbers = #tpu.dot_dimension_numbers<[1], [0], [0], [1], [0, 0, 1, 1], [], []>} : vector<2x32xbf16>, vector<32x128xbf16>, vector<2x128xf32> -> vector<2x128xf32>
    %1691 = arith.addf %1688, %1690 : vector<2x128xf32>
    %1692 = vector.extract_strided_slice %1691 {offsets = [0, 0], sizes = [2, 32], strides = [1, 1]} : vector<2x128xf32> to vector<2x32xf32>
    %1693 = arith.negf %1692 : vector<2x32xf32>
    %1694 = math.exp %1693 : vector<2x32xf32>
    %cst_461 = arith.constant 1.000000e+00 : f32
    %1695 = vector.broadcast %cst_461 : f32 to vector<2x32xf32>
    %1696 = arith.addf %1695, %1694 : vector<2x32xf32>
    %1697 = arith.divf %1695, %1696 : vector<2x32xf32>
    %1698 = vector.extract_strided_slice %1691 {offsets = [0, 32], sizes = [2, 32], strides = [1, 1]} : vector<2x128xf32> to vector<2x32xf32>
    %1699 = arith.negf %1698 : vector<2x32xf32>
    %1700 = math.exp %1699 : vector<2x32xf32>
    %cst_462 = arith.constant 1.000000e+00 : f32
    %1701 = vector.broadcast %cst_462 : f32 to vector<2x32xf32>
    %1702 = arith.addf %1701, %1700 : vector<2x32xf32>
    %1703 = arith.divf %1701, %1702 : vector<2x32xf32>
    %1704 = vector.extract_strided_slice %1691 {offsets = [0, 64], sizes = [2, 32], strides = [1, 1]} : vector<2x128xf32> to vector<2x32xf32>
    %1705 = math.tanh %1704 : vector<2x32xf32>
    %1706 = vector.extract_strided_slice %1691 {offsets = [0, 96], sizes = [2, 32], strides = [1, 1]} : vector<2x128xf32> to vector<2x32xf32>
    %1707 = arith.negf %1706 : vector<2x32xf32>
    %1708 = math.exp %1707 : vector<2x32xf32>
    %cst_463 = arith.constant 1.000000e+00 : f32
    %1709 = vector.broadcast %cst_463 : f32 to vector<2x32xf32>
    %1710 = arith.addf %1709, %1708 : vector<2x32xf32>
    %1711 = arith.divf %1709, %1710 : vector<2x32xf32>
    %1712 = arith.mulf %1703, %1643 : vector<2x32xf32>
    %1713 = arith.mulf %1697, %1705 : vector<2x32xf32>
    %1714 = arith.addf %1712, %1713 : vector<2x32xf32>
    %1715 = math.tanh %1714 : vector<2x32xf32>
    %1716 = arith.mulf %1711, %1715 : vector<2x32xf32>
    %1717 = arith.index_cast %1685 : i32 to index
    %c0_464 = arith.constant 0 : index
    %c0_465 = arith.constant 0 : index
    %1718 = vector.load %arg17[%1717, %c0_464, %c0_465] : memref<12x2x128xf32, #tpu.memory_space<vmem>>, vector<1x2x128xf32>
    %1719 = vector.shape_cast %1718 : vector<1x2x128xf32> to vector<2x128xf32>
    %1720 = arith.truncf %1676 : vector<2x32xf32> to vector<2x32xbf16>
    %cst_466 = arith.constant dense<0.000000e+00> : vector<2x128xf32>
    %1721 = tpu.matmul %1720, %902, %cst_466 {dimension_numbers = #tpu.dot_dimension_numbers<[1], [0], [0], [1], [0, 0, 1, 1], [], []>} : vector<2x32xbf16>, vector<32x128xbf16>, vector<2x128xf32> -> vector<2x128xf32>
    %1722 = arith.addf %1719, %1721 : vector<2x128xf32>
    %1723 = vector.extract_strided_slice %1722 {offsets = [0, 0], sizes = [2, 32], strides = [1, 1]} : vector<2x128xf32> to vector<2x32xf32>
    %1724 = arith.negf %1723 : vector<2x32xf32>
    %1725 = math.exp %1724 : vector<2x32xf32>
    %cst_467 = arith.constant 1.000000e+00 : f32
    %1726 = vector.broadcast %cst_467 : f32 to vector<2x32xf32>
    %1727 = arith.addf %1726, %1725 : vector<2x32xf32>
    %1728 = arith.divf %1726, %1727 : vector<2x32xf32>
    %1729 = vector.extract_strided_slice %1722 {offsets = [0, 32], sizes = [2, 32], strides = [1, 1]} : vector<2x128xf32> to vector<2x32xf32>
    %1730 = arith.negf %1729 : vector<2x32xf32>
    %1731 = math.exp %1730 : vector<2x32xf32>
    %cst_468 = arith.constant 1.000000e+00 : f32
    %1732 = vector.broadcast %cst_468 : f32 to vector<2x32xf32>
    %1733 = arith.addf %1732, %1731 : vector<2x32xf32>
    %1734 = arith.divf %1732, %1733 : vector<2x32xf32>
    %1735 = vector.extract_strided_slice %1722 {offsets = [0, 64], sizes = [2, 32], strides = [1, 1]} : vector<2x128xf32> to vector<2x32xf32>
    %1736 = math.tanh %1735 : vector<2x32xf32>
    %1737 = vector.extract_strided_slice %1722 {offsets = [0, 96], sizes = [2, 32], strides = [1, 1]} : vector<2x128xf32> to vector<2x32xf32>
    %1738 = arith.negf %1737 : vector<2x32xf32>
    %1739 = math.exp %1738 : vector<2x32xf32>
    %cst_469 = arith.constant 1.000000e+00 : f32
    %1740 = vector.broadcast %cst_469 : f32 to vector<2x32xf32>
    %1741 = arith.addf %1740, %1739 : vector<2x32xf32>
    %1742 = arith.divf %1740, %1741 : vector<2x32xf32>
    %1743 = arith.mulf %1734, %1674 : vector<2x32xf32>
    %1744 = arith.mulf %1728, %1736 : vector<2x32xf32>
    %1745 = arith.addf %1743, %1744 : vector<2x32xf32>
    %1746 = math.tanh %1745 : vector<2x32xf32>
    %1747 = arith.mulf %1742, %1746 : vector<2x32xf32>
    %1748 = arith.index_cast %c11_i32_456 : i32 to index
    %c0_470 = arith.constant 0 : index
    %c0_471 = arith.constant 0 : index
    %1749 = vector.load %arg18[%1748, %c0_470, %c0_471] : memref<12x2x32xf32, #tpu.memory_space<vmem>>, vector<1x2x32xf32>
    %1750 = vector.shape_cast %1749 : vector<1x2x32xf32> to vector<2x32xf32>
    %1751 = vector.shape_cast %1716 : vector<2x32xf32> to vector<1x2x32xf32>
    tpu.vector_store %arg18[%1748, %c0_470, %c0_471], %1751 {strides = array<i32>} : memref<12x2x32xf32, #tpu.memory_space<vmem>>, vector<1x2x32xf32>,
    %1752 = arith.index_cast %1685 : i32 to index
    %c0_472 = arith.constant 0 : index
    %c0_473 = arith.constant 0 : index
    %1753 = vector.load %arg19[%1752, %c0_472, %c0_473] : memref<12x2x32xf32, #tpu.memory_space<vmem>>, vector<1x2x32xf32>
    %1754 = vector.shape_cast %1753 : vector<1x2x32xf32> to vector<2x32xf32>
    %1755 = vector.shape_cast %1747 : vector<2x32xf32> to vector<1x2x32xf32>
    tpu.vector_store %arg19[%1752, %c0_472, %c0_473], %1755 {strides = array<i32>} : memref<12x2x32xf32, #tpu.memory_space<vmem>>, vector<1x2x32xf32>,
    %c12_i32_474 = arith.constant 12 : i32
    %c0_475 = arith.constant 0 : index
    %c0_476 = arith.constant 0 : index
    %c0_477 = arith.constant 0 : index
    %1756 = vector.load %arg18[%c0_475, %c0_476, %c0_477] : memref<12x2x32xf32, #tpu.memory_space<vmem>>, vector<12x2x32xf32>
    %1757 = vector.shape_cast %1756 : vector<12x2x32xf32> to vector<24x32xf32>
    %c0_478 = arith.constant 0 : index
    %c0_479 = arith.constant 0 : index
    %c0_480 = arith.constant 0 : index
    %1758 = vector.load %arg19[%c0_478, %c0_479, %c0_480] : memref<12x2x32xf32, #tpu.memory_space<vmem>>, vector<12x2x32xf32>
    %1759 = vector.shape_cast %1758 : vector<12x2x32xf32> to vector<24x32xf32>
    %c0_481 = arith.constant 0 : index
    %c0_482 = arith.constant 0 : index
    %1760 = vector.load %arg14[%c0_481, %c0_482] : memref<1x128xf32, #tpu.memory_space<vmem>>, vector<1x128xf32>
    %1761 = arith.truncf %1757 : vector<24x32xf32> to vector<24x32xbf16>
    %c0_483 = arith.constant 0 : index
    %c0_484 = arith.constant 0 : index
    %1762 = vector.load %arg13[%c0_483, %c0_484] : memref<64x128xbf16, #tpu.memory_space<vmem>>, vector<32x128xbf16>
    %cst_485 = arith.constant dense<0.000000e+00> : vector<24x128xf32>
    %1763 = tpu.matmul %1761, %1762, %cst_485 {dimension_numbers = #tpu.dot_dimension_numbers<[1], [0], [0], [1], [0, 0, 1, 1], [], []>} : vector<24x32xbf16>, vector<32x128xbf16>, vector<24x128xf32> -> vector<24x128xf32>
    %1764 = vector.broadcast %1760 : vector<1x128xf32> to vector<24x128xf32>
    %1765 = arith.addf %1764, %1763 : vector<24x128xf32>
    %1766 = arith.truncf %1759 : vector<24x32xf32> to vector<24x32xbf16>
    %c32_486 = arith.constant 32 : index
    %c0_487 = arith.constant 0 : index
    %1767 = vector.load %arg13[%c32_486, %c0_487] : memref<64x128xbf16, #tpu.memory_space<vmem>>, vector<32x128xbf16>
    %cst_488 = arith.constant dense<0.000000e+00> : vector<24x128xf32>
    %1768 = tpu.matmul %1766, %1767, %cst_488 {dimension_numbers = #tpu.dot_dimension_numbers<[1], [0], [0], [1], [0, 0, 1, 1], [], []>} : vector<24x32xbf16>, vector<32x128xbf16>, vector<24x128xf32> -> vector<24x128xf32>
    %1769 = arith.addf %1765, %1768 : vector<24x128xf32>
    %c0_489 = arith.constant 0 : index
    %c0_490 = arith.constant 0 : index
    %1770 = vector.load %arg15[%c0_489, %c0_490] : memref<24x128xf32, #tpu.memory_space<vmem>>, vector<24x128xf32>
    tpu.vector_store %arg15[%c0_489, %c0_490], %1769 {strides = array<i32>} : memref<24x128xf32, #tpu.memory_space<vmem>>, vector<24x128xf32>,
    return
  }
}

</mosaic_0001>

<llo_original>
// kernel: _lambda_.1
$region0: #{_lambda_.1}
  #allocation0 [shape = 'u32[]', space=smem, size = 0x4, offset = 0x4, fixed_abs, tag = 'smem constant byte address 0x4 - core index']
  #allocation1 [shape = 'u32[144,128]{1,0:T(1,128)}', space=vmem, size = 0x12000, scoped, tag = 'internal scratch']
  #allocation2 [shape = 'f32[12,2,128]{2,1,0:T(2,128)}', space=vmem, size = 0x3000, scoped, tag = 'scratch operand']
  #allocation3 [shape = 'f32[12,2,128]{2,1,0:T(2,128)}', space=vmem, size = 0x3000, scoped, tag = 'scratch operand']
  #allocation4 [shape = 'f32[12,2,32]{2,1,0:T(2,128)}', space=vmem, size = 0x3000, scoped, tag = 'scratch operand']
  #allocation5 [shape = 'f32[12,2,32]{2,1,0:T(2,128)}', space=vmem, size = 0x3000, scoped, tag = 'scratch operand']
  %s0 = inlined_call_operand.vmem [shape: f32[12,2,16], index: 0, kind: input, shape index: {}]
  %s1 = inlined_call_operand.vmem [shape: bf16[16,128], index: 1, kind: input, shape index: {}]
  %s2 = inlined_call_operand.vmem [shape: bf16[32,128], index: 2, kind: input, shape index: {}]
  %s3 = inlined_call_operand.vmem [shape: f32[1,128], index: 3, kind: input, shape index: {}]
  %s4 = inlined_call_operand.vmem [shape: bf16[16,128], index: 4, kind: input, shape index: {}]
  %s5 = inlined_call_operand.vmem [shape: bf16[32,128], index: 5, kind: input, shape index: {}]
  %s6 = inlined_call_operand.vmem [shape: f32[1,128], index: 6, kind: input, shape index: {}]
  %s7 = inlined_call_operand.vmem [shape: bf16[64,128], index: 7, kind: input, shape index: {}]
  %s8 = inlined_call_operand.vmem [shape: bf16[32,128], index: 8, kind: input, shape index: {}]
  %s9 = inlined_call_operand.vmem [shape: f32[1,128], index: 9, kind: input, shape index: {}]
  %s10 = inlined_call_operand.vmem [shape: bf16[64,128], index: 10, kind: input, shape index: {}]
  %s11 = inlined_call_operand.vmem [shape: bf16[32,128], index: 11, kind: input, shape index: {}]
  %s12 = inlined_call_operand.vmem [shape: f32[1,128], index: 12, kind: input, shape index: {}]
  %s13 = inlined_call_operand.vmem [shape: bf16[64,128], index: 13, kind: input, shape index: {}]
  %s14 = inlined_call_operand.vmem [shape: f32[1,128], index: 14, kind: input, shape index: {}]
  %s15 = inlined_call_operand.vmem [shape: f32[24,128], index: 15, kind: output, shape index: {}]
  %s16 = sld [smem:[#allocation0]]
  $region70: #{_lambda_.1} parent=0
    _
  %s18 = ssub.s32 1, %s16
  %s19 = scalar_select 0, %s18, %s16
  // Predicated region
  $region2: #{_lambda_.1} parent=0 // pred_check
    _
  $region3: #{_lambda_.1} parent=0 // pred_check_branch
    %21 = sbr.rel (0) target = $region5
  $region4: #{_lambda_.1} parent=0 // pred_region
    _
  $region5: #{_lambda_.1} parent=0 // pred_fallthru
    _
  // Predicated region
  $region6: #{_lambda_.1} parent=0 // pred_check
    _
  $region7: #{_lambda_.1} parent=0 // pred_check_branch
    %23 = sbr.rel (0) target = $region9
  $region8: #{_lambda_.1} parent=0 // pred_region
    _
  $region9: #{_lambda_.1} parent=0 // pred_fallthru
    _
  // Predicated region
  $region10: #{_lambda_.1} parent=0 // pred_check
    _
  $region11: #{_lambda_.1} parent=0 // pred_check_branch
    %25 = sbr.rel (0) target = $region13
  $region12: #{_lambda_.1} parent=0 // pred_region
    _
  $region13: #{_lambda_.1} parent=0 // pred_fallthru
    _
  // Predicated region
  $region14: #{_lambda_.1} parent=0 // pred_check
    _
  $region15: #{_lambda_.1} parent=0 // pred_check_branch
    %27 = sbr.rel (0) target = $region17
  $region16: #{_lambda_.1} parent=0 // pred_region
    _
  $region17: #{_lambda_.1} parent=0 // pred_fallthru
    _
  // Predicated region
  $region18: #{_lambda_.1} parent=0 // pred_check
    _
  $region19: #{_lambda_.1} parent=0 // pred_check_branch
    %29 = sbr.rel (0) target = $region21
  $region20: #{_lambda_.1} parent=0 // pred_region
    _
  $region21: #{_lambda_.1} parent=0 // pred_fallthru
    _
  // Predicated region
  $region22: #{_lambda_.1} parent=0 // pred_check
    _
  $region23: #{_lambda_.1} parent=0 // pred_check_branch
    %31 = sbr.rel (0) target = $region25
  $region24: #{_lambda_.1} parent=0 // pred_region
    _
  $region25: #{_lambda_.1} parent=0 // pred_fallthru
    _
  // Predicated region
  $region26: #{_lambda_.1} parent=0 // pred_check
    _
  $region27: #{_lambda_.1} parent=0 // pred_check_branch
    %33 = sbr.rel (0) target = $region29
  $region28: #{_lambda_.1} parent=0 // pred_region
    _
  $region29: #{_lambda_.1} parent=0 // pred_fallthru
    _
  // Predicated region
  $region30: #{_lambda_.1} parent=0 // pred_check
    _
  $region31: #{_lambda_.1} parent=0 // pred_check_branch
    %35 = sbr.rel (0) target = $region33
  $region32: #{_lambda_.1} parent=0 // pred_region
    _
  $region33: #{_lambda_.1} parent=0 // pred_fallthru
    _
  // Predicated region
  $region34: #{_lambda_.1} parent=0 // pred_check
    _
  $region35: #{_lambda_.1} parent=0 // pred_check_branch
    %37 = sbr.rel (0) target = $region37
  $region36: #{_lambda_.1} parent=0 // pred_region
    _
  $region37: #{_lambda_.1} parent=0 // pred_fallthru
    _
  // Predicated region
  $region38: #{_lambda_.1} parent=0 // pred_check
    _
  $region39: #{_lambda_.1} parent=0 // pred_check_branch
    %39 = sbr.rel (0) target = $region41
  $region40: #{_lambda_.1} parent=0 // pred_region
    _
  $region41: #{_lambda_.1} parent=0 // pred_fallthru
    _
  // Predicated region
  $region42: #{_lambda_.1} parent=0 // pred_check
    _
  $region43: #{_lambda_.1} parent=0 // pred_check_branch
    %41 = sbr.rel (0) target = $region45
  $region44: #{_lambda_.1} parent=0 // pred_region
    _
  $region45: #{_lambda_.1} parent=0 // pred_fallthru
    _
  // Predicated region
  $region46: #{_lambda_.1} parent=0 // pred_check
    _
  $region47: #{_lambda_.1} parent=0 // pred_check_branch
    %43 = sbr.rel (0) target = $region49
  $region48: #{_lambda_.1} parent=0 // pred_region
    _
  $region49: #{_lambda_.1} parent=0 // pred_fallthru
    _
  // Predicated region
  $region50: #{_lambda_.1} parent=0 // pred_check
    _
  $region51: #{_lambda_.1} parent=0 // pred_check_branch
    %45 = sbr.rel (0) target = $region53
  $region52: #{_lambda_.1} parent=0 // pred_region
    _
  $region53: #{_lambda_.1} parent=0 // pred_fallthru
    _
  // Predicated region
  $region54: #{_lambda_.1} parent=0 // pred_check
    _
  $region55: #{_lambda_.1} parent=0 // pred_check_branch
    %47 = sbr.rel (0) target = $region57
  $region56: #{_lambda_.1} parent=0 // pred_region
    _
  $region57: #{_lambda_.1} parent=0 // pred_fallthru
    _
  // Predicated region
  $region58: #{_lambda_.1} parent=0 // pred_check
    _
  $region59: #{_lambda_.1} parent=0 // pred_check_branch
    %49 = sbr.rel (0) target = $region61
  $region60: #{_lambda_.1} parent=0 // pred_region
    _
  $region61: #{_lambda_.1} parent=0 // pred_fallthru
    _
  %v51 = vld [vmem:[%s0] sm:$0x3]
  %v52 = vld [vmem:[%s0 + $0x2] sm:$0x3]
  %v53 = vld [vmem:[%s0 + $0x4] sm:$0x3]
  %v54 = vld [vmem:[%s0 + $0x6] sm:$0x3]
  %v55 = vld [vmem:[%s0 + $0x8] sm:$0x3]
  %v56 = vld [vmem:[%s0 + $0xa] sm:$0x3]
  %v57 = vld [vmem:[%s0 + $0xc] sm:$0x3]
  %v58 = vld [vmem:[%s0 + $0xe] sm:$0x3]
  %v59 = vld [vmem:[%s0 + $0x10] sm:$0x3]
  %v60 = vld [vmem:[%s0 + $0x12] sm:$0x3]
  %v61 = vld [vmem:[%s0 + $0x14] sm:$0x3]
  %v62 = vld [vmem:[%s0 + $0x16] sm:$0x3]
  %v63 = vld [vmem:[%s3] sm:$0x1]
  %v76 = vcombine.low %v51, %v52
  %v77 = vcombine.low %v53, %v54
  %v79 = vunpack.c.l.s4 1983009808
  %v80 = vunpack.c.0.s8 %v79
  %v81 = vlaneseq
  %v82 = vshrl.u32 %v81, 7
  %v83 = vsub.s32 %v80, %v82
  %v84 = vrot.slane %v76, %v83
  %v86 = vunpack.c.l.s4 1983009808
  %v87 = vunpack.c.0.s8 %v86
  %v88 = vlaneseq
  %v89 = vshrl.u32 %v88, 7
  %v90 = vsub.s32 %v87, %v89
  %v91 = vrot.slane %v77, %v90
  %v92 = vcombine.low %v84, %v91
  %v93 = vcombine.low %v55, %v56
  %v94 = vcombine.low %v57, %v58
  %v96 = vunpack.c.l.s4 1983009808
  %v97 = vunpack.c.0.s8 %v96
  %v98 = vlaneseq
  %v99 = vshrl.u32 %v98, 7
  %v100 = vsub.s32 %v97, %v99
  %v101 = vrot.slane %v93, %v100
  %v103 = vunpack.c.l.s4 1983009808
  %v104 = vunpack.c.0.s8 %v103
  %v105 = vlaneseq
  %v106 = vshrl.u32 %v105, 7
  %v107 = vsub.s32 %v104, %v106
  %v108 = vrot.slane %v94, %v107
  %v109 = vcombine.low %v101, %v108
  %v110 = vcombine.low %v59, %v60
  %v111 = vcombine.low %v61, %v62
  %v113 = vunpack.c.l.s4 1983009808
  %v114 = vunpack.c.0.s8 %v113
  %v115 = vlaneseq
  %v116 = vshrl.u32 %v115, 7
  %v117 = vsub.s32 %v114, %v116
  %v118 = vrot.slane %v110, %v117
  %v120 = vunpack.c.l.s4 1983009808
  %v121 = vunpack.c.0.s8 %v120
  %v122 = vlaneseq
  %v123 = vshrl.u32 %v122, 7
  %v124 = vsub.s32 %v121, %v123
  %v125 = vrot.slane %v111, %v124
  %v126 = vcombine.low %v118, %v125
  %v130 = vpack.c.bf16 %v109, %v92
  %v131 = vpack.c.bf16 %v126, %v126
  %v132 = vld [vmem:[%s1] sm:$0xf]
  %v133 = vld [vmem:[%s1 + $0x4] sm:$0xf]
  %v136 = vunpack.c.l.b16 %v132
  %v137 = vunpack.c.l.b16 %v133
  %v138 = vpack.c.b16 %v137, %v136
  %vm140 = vcmask 130048
  %v142 = vsel %vm140, %v130, 0
  %v145 = vsel %vm140, %v131, 0
  %147 = vmatprep.subr.bf16.mxu0 0
  %148 = vmatpush1.bf16.msra.mxu0 %v138
  %149 = vmatprep.subr.bf16.mxu0 0
  %150 = vmatpush1.bf16.msra.mxu0 0
  %151 = vmatprep.subr.bf16.mxu0 0
  %152 = vmatpush1.bf16.msra.mxu0 0
  %153 = vmatprep.subr.bf16.mxu0 0
  %154 = vmatpush1.bf16.msra.mxu0 0
  %155 = vmatprep.subr.bf16.mxu0 0
  %156 = vmatpush1.bf16.msra.mxu0 0
  %157 = vmatprep.subr.bf16.mxu0 0
  %158 = vmatpush1.bf16.msra.mxu0 0
  %159 = vmatprep.subr.bf16.mxu0 0
  %160 = vmatpush1.bf16.msra.mxu0 0
  %161 = vmatprep.subr.bf16.mxu0 0
  %162 = vmatpush1.bf16.msra.mxu0 0
  %163 = vmatprep.subr.bf16.mxu0 0
  %164 = vmatpush1.bf16.msra.mxu0 0
  %165 = vmatprep.subr.bf16.mxu0 0
  %166 = vmatpush1.bf16.msra.mxu0 0
  %167 = vmatprep.subr.bf16.mxu0 0
  %168 = vmatpush1.bf16.msra.mxu0 0
  %169 = vmatprep.subr.bf16.mxu0 0
  %170 = vmatpush1.bf16.msra.mxu0 0
  %171 = vmatprep.subr.bf16.mxu0 0
  %172 = vmatpush1.bf16.msra.mxu0 0
  %173 = vmatprep.subr.bf16.mxu0 0
  %174 = vmatpush1.bf16.msra.mxu0 0
  %175 = vmatprep.subr.bf16.mxu0 0
  %176 = vmatpush1.bf16.msra.mxu0 0
  %177 = vmatprep.subr.bf16.mxu0 0
  %178 = vmatpush1.bf16.msra.mxu0 0
  %179 = vmatprep.mubr.bf16.mxu0 0
  %180 = vmatmul.mubr.bf16.gmra.mrb[0].mxu0 %v142
  %v181 = vpop.f32.mrb[0].mxu0
  %v182 = vadd.f32 0.0, %v181
  %v183 = vpop.f32.mrb[0].mxu0
  %v184 = vpop.f32.mrb[0].mxu0
  %v185 = vadd.f32 0.0, %v184
  %v186 = vpop.f32.mrb[0].mxu0
  %187 = vmatprep.mubr.bf16.mxu0 0
  %188 = vmatmul.mubr.bf16.gmra.mrb[0].mxu0 %v145
  %v189 = vpop.f32.mrb[0].mxu0
  %v190 = vadd.f32 0.0, %v189
  %v191 = vpop.f32.mrb[0].mxu0
  %v192 = vpop.f32.mrb[0].mxu0
  %v193 = vpop.f32.mrb[0].mxu0
  %194 = vdwg.mxu0
  %v196 = vlaneseq
  %v197 = vshrl.u32 %v196, 7
  %v198 = vsub.s32 0, %v197
  %v199 = vrot.slane %v63, %v198
  %v201 = vadd.f32 %v199, %v182
  %v202 = vadd.f32 %v199, %v185
  %v203 = vadd.f32 %v199, %v190
  %v207 = vcombine.high %v201, %v201
  %v209 = vunpack.c.l.s4 1983009808
  %v210 = vunpack.c.0.s8 %v209
  %v211 = vlaneseq
  %v212 = vshrl.u32 %v211, 7
  %v213 = vsub.s32 %v210, %v212
  %v214 = vrot.slane %v201, %v213
  %v216 = vunpack.c.l.s4 1983009808
  %v217 = vunpack.c.0.s8 %v216
  %v218 = vlaneseq
  %v219 = vshrl.u32 %v218, 7
  %v220 = vsub.s32 %v217, %v219
  %v221 = vrot.slane %v207, %v220
  %v222 = vcombine.high %v214, %v214
  %v223 = vcombine.high %v221, %v221
  %v224 = vcombine.high %v202, %v202
  %v226 = vunpack.c.l.s4 1983009808
  %v227 = vunpack.c.0.s8 %v226
  %v228 = vlaneseq
  %v229 = vshrl.u32 %v228, 7
  %v230 = vsub.s32 %v227, %v229
  %v231 = vrot.slane %v202, %v230
  %v233 = vunpack.c.l.s4 1983009808
  %v234 = vunpack.c.0.s8 %v233
  %v235 = vlaneseq
  %v236 = vshrl.u32 %v235, 7
  %v237 = vsub.s32 %v234, %v236
  %v238 = vrot.slane %v224, %v237
  %v239 = vcombine.high %v231, %v231
  %v240 = vcombine.high %v238, %v238
  %v241 = vcombine.high %v203, %v203
  %v243 = vunpack.c.l.s4 1983009808
  %v244 = vunpack.c.0.s8 %v243
  %v245 = vlaneseq
  %v246 = vshrl.u32 %v245, 7
  %v247 = vsub.s32 %v244, %v246
  %v248 = vrot.slane %v203, %v247
  %v250 = vunpack.c.l.s4 1983009808
  %v251 = vunpack.c.0.s8 %v250
  %v252 = vlaneseq
  %v253 = vshrl.u32 %v252, 7
  %v254 = vsub.s32 %v251, %v253
  %v255 = vrot.slane %v241, %v254
  %v256 = vcombine.high %v248, %v248
  %v257 = vcombine.high %v255, %v255
  %270 = vst [vmem:[#allocation2] sm:$0x3] %v214
  %271 = vst [vmem:[#allocation2 + $0x2] sm:$0x3] %v222
  %272 = vst [vmem:[#allocation2 + $0x4] sm:$0x3] %v221
  %273 = vst [vmem:[#allocation2 + $0x6] sm:$0x3] %v223
  %274 = vst [vmem:[#allocation2 + $0x8] sm:$0x3] %v231
  %275 = vst [vmem:[#allocation2 + $0xa] sm:$0x3] %v239
  %276 = vst [vmem:[#allocation2 + $0xc] sm:$0x3] %v238
  %277 = vst [vmem:[#allocation2 + $0xe] sm:$0x3] %v240
  %278 = vst [vmem:[#allocation2 + $0x10] sm:$0x3] %v248
  %279 = vst [vmem:[#allocation2 + $0x12] sm:$0x3] %v256
  %280 = vst [vmem:[#allocation2 + $0x14] sm:$0x3] %v255
  %281 = vst [vmem:[#allocation2 + $0x16] sm:$0x3] %v257
  %v282 = vld [vmem:[%s6] sm:$0x1]
  %v283 = vld [vmem:[%s4] sm:$0xf]
  %v284 = vld [vmem:[%s4 + $0x4] sm:$0xf]
  %v287 = vunpack.c.l.b16 %v283
  %v288 = vunpack.c.l.b16 %v284
  %v289 = vpack.c.b16 %v288, %v287
  %291 = vmatprep.subr.bf16.mxu0 0
  %292 = vmatpush1.bf16.msra.mxu0 %v289
  %293 = vmatprep.subr.bf16.mxu0 0
  %294 = vmatpush1.bf16.msra.mxu0 0
  %295 = vmatprep.subr.bf16.mxu0 0
  %296 = vmatpush1.bf16.msra.mxu0 0
  %297 = vmatprep.subr.bf16.mxu0 0
  %298 = vmatpush1.bf16.msra.mxu0 0
  %299 = vmatprep.subr.bf16.mxu0 0
  %300 = vmatpush1.bf16.msra.mxu0 0
  %301 = vmatprep.subr.bf16.mxu0 0
  %302 = vmatpush1.bf16.msra.mxu0 0
  %303 = vmatprep.subr.bf16.mxu0 0
  %304 = vmatpush1.bf16.msra.mxu0 0
  %305 = vmatprep.subr.bf16.mxu0 0
  %306 = vmatpush1.bf16.msra.mxu0 0
  %307 = vmatprep.subr.bf16.mxu0 0
  %308 = vmatpush1.bf16.msra.mxu0 0
  %309 = vmatprep.subr.bf16.mxu0 0
  %310 = vmatpush1.bf16.msra.mxu0 0
  %311 = vmatprep.subr.bf16.mxu0 0
  %312 = vmatpush1.bf16.msra.mxu0 0
  %313 = vmatprep.subr.bf16.mxu0 0
  %314 = vmatpush1.bf16.msra.mxu0 0
  %315 = vmatprep.subr.bf16.mxu0 0
  %316 = vmatpush1.bf16.msra.mxu0 0
  %317 = vmatprep.subr.bf16.mxu0 0
  %318 = vmatpush1.bf16.msra.mxu0 0
  %319 = vmatprep.subr.bf16.mxu0 0
  %320 = vmatpush1.bf16.msra.mxu0 0
  %321 = vmatprep.subr.bf16.mxu0 0
  %322 = vmatpush1.bf16.msra.mxu0 0
  %323 = vmatprep.mubr.bf16.mxu0 0
  %324 = vmatmul.mubr.bf16.gmra.mrb[0].mxu0 %v142
  %v325 = vpop.f32.mrb[0].mxu0
  %v326 = vadd.f32 0.0, %v325
  %v327 = vpop.f32.mrb[0].mxu0
  %v328 = vpop.f32.mrb[0].mxu0
  %v329 = vadd.f32 0.0, %v328
  %v330 = vpop.f32.mrb[0].mxu0
  %331 = vmatprep.mubr.bf16.mxu0 0
  %332 = vmatmul.mubr.bf16.gmra.mrb[0].mxu0 %v145
  %v333 = vpop.f32.mrb[0].mxu0
  %v334 = vadd.f32 0.0, %v333
  %v335 = vpop.f32.mrb[0].mxu0
  %v336 = vpop.f32.mrb[0].mxu0
  %v337 = vpop.f32.mrb[0].mxu0
  %338 = vdwg.mxu0
  %v340 = vlaneseq
  %v341 = vshrl.u32 %v340, 7
  %v342 = vsub.s32 0, %v341
  %v343 = vrot.slane %v282, %v342
  %v345 = vadd.f32 %v343, %v326
  %v346 = vadd.f32 %v343, %v329
  %v347 = vadd.f32 %v343, %v334
  %v351 = vcombine.high %v345, %v345
  %v353 = vunpack.c.l.s4 1983009808
  %v354 = vunpack.c.0.s8 %v353
  %v355 = vlaneseq
  %v356 = vshrl.u32 %v355, 7
  %v357 = vsub.s32 %v354, %v356
  %v358 = vrot.slane %v345, %v357
  %v360 = vunpack.c.l.s4 1983009808
  %v361 = vunpack.c.0.s8 %v360
  %v362 = vlaneseq
  %v363 = vshrl.u32 %v362, 7
  %v364 = vsub.s32 %v361, %v363
  %v365 = vrot.slane %v351, %v364
  %v366 = vcombine.high %v358, %v358
  %v367 = vcombine.high %v365, %v365
  %v368 = vcombine.high %v346, %v346
  %v370 = vunpack.c.l.s4 1983009808
  %v371 = vunpack.c.0.s8 %v370
  %v372 = vlaneseq
  %v373 = vshrl.u32 %v372, 7
  %v374 = vsub.s32 %v371, %v373
  %v375 = vrot.slane %v346, %v374
  %v377 = vunpack.c.l.s4 1983009808
  %v378 = vunpack.c.0.s8 %v377
  %v379 = vlaneseq
  %v380 = vshrl.u32 %v379, 7
  %v381 = vsub.s32 %v378, %v380
  %v382 = vrot.slane %v368, %v381
  %v383 = vcombine.high %v375, %v375
  %v384 = vcombine.high %v382, %v382
  %v385 = vcombine.high %v347, %v347
  %v387 = vunpack.c.l.s4 1983009808
  %v388 = vunpack.c.0.s8 %v387
  %v389 = vlaneseq
  %v390 = vshrl.u32 %v389, 7
  %v391 = vsub.s32 %v388, %v390
  %v392 = vrot.slane %v347, %v391
  %v394 = vunpack.c.l.s4 1983009808
  %v395 = vunpack.c.0.s8 %v394
  %v396 = vlaneseq
  %v397 = vshrl.u32 %v396, 7
  %v398 = vsub.s32 %v395, %v397
  %v399 = vrot.slane %v385, %v398
  %v400 = vcombine.high %v392, %v392
  %v401 = vcombine.high %v399, %v399
  %414 = vst [vmem:[#allocation3] sm:$0x3] %v358
  %415 = vst [vmem:[#allocation3 + $0x2] sm:$0x3] %v366
  %416 = vst [vmem:[#allocation3 + $0x4] sm:$0x3] %v365
  %417 = vst [vmem:[#allocation3 + $0x6] sm:$0x3] %v367
  %418 = vst [vmem:[#allocation3 + $0x8] sm:$0x3] %v375
  %419 = vst [vmem:[#allocation3 + $0xa] sm:$0x3] %v383
  %420 = vst [vmem:[#allocation3 + $0xc] sm:$0x3] %v382
  %421 = vst [vmem:[#allocation3 + $0xe] sm:$0x3] %v384
  %422 = vst [vmem:[#allocation3 + $0x10] sm:$0x3] %v392
  %423 = vst [vmem:[#allocation3 + $0x12] sm:$0x3] %v400
  %424 = vst [vmem:[#allocation3 + $0x14] sm:$0x3] %v399
  %425 = vst [vmem:[#allocation3 + $0x16] sm:$0x3] %v401
  %v426 = vld [vmem:[%s2] sm:$0xf]
  %v427 = vld [vmem:[%s2 + $0x4] sm:$0xf]
  %v428 = vld [vmem:[%s2 + $0x8] sm:$0xf]
  %v429 = vld [vmem:[%s2 + $0xc] sm:$0xf]
  %v430 = vld [vmem:[%s5] sm:$0xf]
  %v431 = vld [vmem:[%s5 + $0x4] sm:$0xf]
  %v432 = vld [vmem:[%s5 + $0x8] sm:$0xf]
  %v433 = vld [vmem:[%s5 + $0xc] sm:$0xf]
  %v434 = vld [vmem:[#allocation2] sm:$0x3]
  %v439 = vunpack.c.l.b16 %v426
  %v440 = vunpack.c.l.b16 %v427
  %v441 = vunpack.c.l.b16 %v428
  %v442 = vunpack.c.l.b16 %v429
  %v443 = vpack.c.b16 %v440, %v439
  %v444 = vpack.c.b16 %v442, %v441
  %vm447 = vcmask 261120
  %v449 = vsel %vm447, 0, 0
  %451 = vmatprep.subr.bf16.mxu0 0
  %452 = vmatpush1.bf16.msra.mxu0 %v443
  %453 = vmatprep.subr.bf16.mxu0 0
  %454 = vmatpush1.bf16.msra.mxu0 %v444
  %455 = vmatprep.subr.bf16.mxu0 0
  %456 = vmatpush1.bf16.msra.mxu0 0
  %457 = vmatprep.subr.bf16.mxu0 0
  %458 = vmatpush1.bf16.msra.mxu0 0
  %459 = vmatprep.subr.bf16.mxu0 0
  %460 = vmatpush1.bf16.msra.mxu0 0
  %461 = vmatprep.subr.bf16.mxu0 0
  %462 = vmatpush1.bf16.msra.mxu0 0
  %463 = vmatprep.subr.bf16.mxu0 0
  %464 = vmatpush1.bf16.msra.mxu0 0
  %465 = vmatprep.subr.bf16.mxu0 0
  %466 = vmatpush1.bf16.msra.mxu0 0
  %467 = vmatprep.subr.bf16.mxu0 0
  %468 = vmatpush1.bf16.msra.mxu0 0
  %469 = vmatprep.subr.bf16.mxu0 0
  %470 = vmatpush1.bf16.msra.mxu0 0
  %471 = vmatprep.subr.bf16.mxu0 0
  %472 = vmatpush1.bf16.msra.mxu0 0
  %473 = vmatprep.subr.bf16.mxu0 0
  %474 = vmatpush1.bf16.msra.mxu0 0
  %475 = vmatprep.subr.bf16.mxu0 0
  %476 = vmatpush1.bf16.msra.mxu0 0
  %477 = vmatprep.subr.bf16.mxu0 0
  %478 = vmatpush1.bf16.msra.mxu0 0
  %479 = vmatprep.subr.bf16.mxu0 0
  %480 = vmatpush1.bf16.msra.mxu0 0
  %481 = vmatprep.subr.bf16.mxu0 0
  %482 = vmatpush1.bf16.msra.mxu0 0
  %483 = vmatprep.mubr.bf16.mxu0 0
  %484 = vmatmul.mubr.bf16.gmra.mrb[0].mxu0 %v449
  %v485 = vpop.f32.mrb[0].mxu0
  %v486 = vadd.f32 0.0, %v485
  %v487 = vpop.f32.mrb[0].mxu0
  %v488 = vpop.f32.mrb[0].mxu0
  %v489 = vpop.f32.mrb[0].mxu0
  %490 = vdwg.mxu0
  %v491 = vadd.f32 %v434, %v486
  %v492 = vxor.u32 %v491, 2147483648
  %v493 = vmul.f32 %v492, 1.442695
  %v494 = vpow.pop %v493
  %v495 = vadd.f32 %v494, 1.0
  %v496 = vrcp.pop %v495
  %v497 = vmul.f32 1.0, %v496
  %v498 = vtanh.pop %v491
  %v499 = vmul.f32 %v497, 0.0
  %501 = vrot.lane.b32.xlu0 %v498, 64
  %v502 = vpop.permute.xlu0 %501
  %v504 = vmul.f32 %v497, %v502
  %506 = vrot.lane.b32.xlu0 %v504, 32
  %v507 = vpop.permute.xlu0 %506
  %v509 = vadd.f32 %v499, %v507
  %v510 = vtanh.pop %v509
  %512 = vrot.lane.b32.xlu0 %v510, 64
  %v513 = vpop.permute.xlu0 %512
  %v515 = vmul.f32 %v497, %v513
  %s516 = scalar_lea.vmem [#allocation3], 22
  %v517 = vld [vmem:[%s516] sm:$0x3]
  %v522 = vunpack.c.l.b16 %v430
  %v523 = vunpack.c.l.b16 %v431
  %v524 = vunpack.c.l.b16 %v432
  %v525 = vunpack.c.l.b16 %v433
  %v526 = vpack.c.b16 %v523, %v522
  %v527 = vpack.c.b16 %v525, %v524
  %530 = vmatprep.subr.bf16.mxu0 0
  %531 = vmatpush1.bf16.msra.mxu0 %v526
  %532 = vmatprep.subr.bf16.mxu0 0
  %533 = vmatpush1.bf16.msra.mxu0 %v527
  %534 = vmatprep.subr.bf16.mxu0 0
  %535 = vmatpush1.bf16.msra.mxu0 0
  %536 = vmatprep.subr.bf16.mxu0 0
  %537 = vmatpush1.bf16.msra.mxu0 0
  %538 = vmatprep.subr.bf16.mxu0 0
  %539 = vmatpush1.bf16.msra.mxu0 0
  %540 = vmatprep.subr.bf16.mxu0 0
  %541 = vmatpush1.bf16.msra.mxu0 0
  %542 = vmatprep.subr.bf16.mxu0 0
  %543 = vmatpush1.bf16.msra.mxu0 0
  %544 = vmatprep.subr.bf16.mxu0 0
  %545 = vmatpush1.bf16.msra.mxu0 0
  %546 = vmatprep.subr.bf16.mxu0 0
  %547 = vmatpush1.bf16.msra.mxu0 0
  %548 = vmatprep.subr.bf16.mxu0 0
  %549 = vmatpush1.bf16.msra.mxu0 0
  %550 = vmatprep.subr.bf16.mxu0 0
  %551 = vmatpush1.bf16.msra.mxu0 0
  %552 = vmatprep.subr.bf16.mxu0 0
  %553 = vmatpush1.bf16.msra.mxu0 0
  %554 = vmatprep.subr.bf16.mxu0 0
  %555 = vmatpush1.bf16.msra.mxu0 0
  %556 = vmatprep.subr.bf16.mxu0 0
  %557 = vmatpush1.bf16.msra.mxu0 0
  %558 = vmatprep.subr.bf16.mxu0 0
  %559 = vmatpush1.bf16.msra.mxu0 0
  %560 = vmatprep.subr.bf16.mxu0 0
  %561 = vmatpush1.bf16.msra.mxu0 0
  %562 = vmatprep.mubr.bf16.mxu0 0
  %563 = vmatmul.mubr.bf16.gmra.mrb[0].mxu0 %v449
  %v564 = vpop.f32.mrb[0].mxu0
  %v565 = vadd.f32 0.0, %v564
  %v566 = vpop.f32.mrb[0].mxu0
  %v567 = vpop.f32.mrb[0].mxu0
  %v568 = vpop.f32.mrb[0].mxu0
  %569 = vdwg.mxu0
  %v570 = vadd.f32 %v517, %v565
  %v571 = vxor.u32 %v570, 2147483648
  %v572 = vmul.f32 %v571, 1.442695
  %v573 = vpow.pop %v572
  %v574 = vadd.f32 %v573, 1.0
  %v575 = vrcp.pop %v574
  %v576 = vmul.f32 1.0, %v575
  %v577 = vtanh.pop %v570
  %v578 = vmul.f32 %v576, 0.0
  %580 = vrot.lane.b32.xlu0 %v577, 64
  %v581 = vpop.permute.xlu0 %580
  %v583 = vmul.f32 %v576, %v581
  %585 = vrot.lane.b32.xlu0 %v583, 32
  %v586 = vpop.permute.xlu0 %585
  %v588 = vadd.f32 %v578, %v586
  %v589 = vtanh.pop %v588
  %591 = vrot.lane.b32.xlu0 %v589, 64
  %v592 = vpop.permute.xlu0 %591
  %v594 = vmul.f32 %v576, %v592
  %596 = vrot.lane.b32.xlu0 %v515, 32
  %v597 = vpop.permute.xlu0 %596
  %vm599 = vcmask 254976
  %600 = vst.msk [vmem:[#allocation4] sm:$0x3] %vm599, %v597
  %602 = vrot.lane.b32.xlu0 %v594, 32
  %v603 = vpop.permute.xlu0 %602
  %s605 = scalar_lea.vmem [#allocation5], 22
  %606 = vst.msk [vmem:[%s605] sm:$0x3] %vm599, %v603
  %s607 = scalar_lea.vmem [#allocation2], 2
  %v608 = vld [vmem:[%s607] sm:$0x3]
  %v609 = vpack.c.bf16 %v515, %v515
  %611 = vrot.lane.b32.xlu0 %v609, 32
  %v612 = vpop.permute.xlu0 %611
  %v614 = vsel %vm447, %v612, 0
  %616 = vmatprep.subr.bf16.mxu0 0
  %617 = vmatpush1.bf16.msra.mxu0 %v443
  %618 = vmatprep.subr.bf16.mxu0 0
  %619 = vmatpush1.bf16.msra.mxu0 %v444
  %620 = vmatprep.subr.bf16.mxu0 0
  %621 = vmatpush1.bf16.msra.mxu0 0
  %622 = vmatprep.subr.bf16.mxu0 0
  %623 = vmatpush1.bf16.msra.mxu0 0
  %624 = vmatprep.subr.bf16.mxu0 0
  %625 = vmatpush1.bf16.msra.mxu0 0
  %626 = vmatprep.subr.bf16.mxu0 0
  %627 = vmatpush1.bf16.msra.mxu0 0
  %628 = vmatprep.subr.bf16.mxu0 0
  %629 = vmatpush1.bf16.msra.mxu0 0
  %630 = vmatprep.subr.bf16.mxu0 0
  %631 = vmatpush1.bf16.msra.mxu0 0
  %632 = vmatprep.subr.bf16.mxu0 0
  %633 = vmatpush1.bf16.msra.mxu0 0
  %634 = vmatprep.subr.bf16.mxu0 0
  %635 = vmatpush1.bf16.msra.mxu0 0
  %636 = vmatprep.subr.bf16.mxu0 0
  %637 = vmatpush1.bf16.msra.mxu0 0
  %638 = vmatprep.subr.bf16.mxu0 0
  %639 = vmatpush1.bf16.msra.mxu0 0
  %640 = vmatprep.subr.bf16.mxu0 0
  %641 = vmatpush1.bf16.msra.mxu0 0
  %642 = vmatprep.subr.bf16.mxu0 0
  %643 = vmatpush1.bf16.msra.mxu0 0
  %644 = vmatprep.subr.bf16.mxu0 0
  %645 = vmatpush1.bf16.msra.mxu0 0
  %646 = vmatprep.subr.bf16.mxu0 0
  %647 = vmatpush1.bf16.msra.mxu0 0
  %648 = vmatprep.mubr.bf16.mxu0 0
  %649 = vmatmul.mubr.bf16.gmra.mrb[0].mxu0 %v614
  %v650 = vpop.f32.mrb[0].mxu0
  %v651 = vadd.f32 0.0, %v650
  %v652 = vpop.f32.mrb[0].mxu0
  %v653 = vpop.f32.mrb[0].mxu0
  %v654 = vpop.f32.mrb[0].mxu0
  %655 = vdwg.mxu0
  %v656 = vadd.f32 %v608, %v651
  %v657 = vxor.u32 %v656, 2147483648
  %v658 = vmul.f32 %v657, 1.442695
  %v659 = vpow.pop %v658
  %v660 = vadd.f32 %v659, 1.0
  %v661 = vrcp.pop %v660
  %v662 = vmul.f32 1.0, %v661
  %v663 = vtanh.pop %v656
  %v664 = vmul.f32 %v662, %v509
  %666 = vrot.lane.b32.xlu0 %v663, 64
  %v667 = vpop.permute.xlu0 %666
  %v669 = vmul.f32 %v662, %v667
  %671 = vrot.lane.b32.xlu0 %v669, 32
  %v672 = vpop.permute.xlu0 %671
  %v674 = vadd.f32 %v664, %v672
  %v675 = vtanh.pop %v674
  %677 = vrot.lane.b32.xlu0 %v675, 64
  %v678 = vpop.permute.xlu0 %677
  %v680 = vmul.f32 %v662, %v678
  %s681 = scalar_lea.vmem [#allocation3], 20
  %v682 = vld [vmem:[%s681] sm:$0x3]
  %v683 = vpack.c.bf16 %v594, %v594
  %685 = vrot.lane.b32.xlu0 %v683, 32
  %v686 = vpop.permute.xlu0 %685
  %v688 = vsel %vm447, %v686, 0
  %690 = vmatprep.subr.bf16.mxu0 0
  %691 = vmatpush1.bf16.msra.mxu0 %v526
  %692 = vmatprep.subr.bf16.mxu0 0
  %693 = vmatpush1.bf16.msra.mxu0 %v527
  %694 = vmatprep.subr.bf16.mxu0 0
  %695 = vmatpush1.bf16.msra.mxu0 0
  %696 = vmatprep.subr.bf16.mxu0 0
  %697 = vmatpush1.bf16.msra.mxu0 0
  %698 = vmatprep.subr.bf16.mxu0 0
  %699 = vmatpush1.bf16.msra.mxu0 0
  %700 = vmatprep.subr.bf16.mxu0 0
  %701 = vmatpush1.bf16.msra.mxu0 0
  %702 = vmatprep.subr.bf16.mxu0 0
  %703 = vmatpush1.bf16.msra.mxu0 0
  %704 = vmatprep.subr.bf16.mxu0 0
  %705 = vmatpush1.bf16.msra.mxu0 0
  %706 = vmatprep.subr.bf16.mxu0 0
  %707 = vmatpush1.bf16.msra.mxu0 0
  %708 = vmatprep.subr.bf16.mxu0 0
  %709 = vmatpush1.bf16.msra.mxu0 0
  %710 = vmatprep.subr.bf16.mxu0 0
  %711 = vmatpush1.bf16.msra.mxu0 0
  %712 = vmatprep.subr.bf16.mxu0 0
  %713 = vmatpush1.bf16.msra.mxu0 0
  %714 = vmatprep.subr.bf16.mxu0 0
  %715 = vmatpush1.bf16.msra.mxu0 0
  %716 = vmatprep.subr.bf16.mxu0 0
  %717 = vmatpush1.bf16.msra.mxu0 0
  %718 = vmatprep.subr.bf16.mxu0 0
  %719 = vmatpush1.bf16.msra.mxu0 0
  %720 = vmatprep.subr.bf16.mxu0 0
  %721 = vmatpush1.bf16.msra.mxu0 0
  %722 = vmatprep.mubr.bf16.mxu0 0
  %723 = vmatmul.mubr.bf16.gmra.mrb[0].mxu0 %v688
  %v724 = vpop.f32.mrb[0].mxu0
  %v725 = vadd.f32 0.0, %v724
  %v726 = vpop.f32.mrb[0].mxu0
  %v727 = vpop.f32.mrb[0].mxu0
  %v728 = vpop.f32.mrb[0].mxu0
  %729 = vdwg.mxu0
  %v730 = vadd.f32 %v682, %v725
  %v731 = vxor.u32 %v730, 2147483648
  %v732 = vmul.f32 %v731, 1.442695
  %v733 = vpow.pop %v732
  %v734 = vadd.f32 %v733, 1.0
  %v735 = vrcp.pop %v734
  %v736 = vmul.f32 1.0, %v735
  %v737 = vtanh.pop %v730
  %v738 = vmul.f32 %v736, %v588
  %740 = vrot.lane.b32.xlu0 %v737, 64
  %v741 = vpop.permute.xlu0 %740
  %v743 = vmul.f32 %v736, %v741
  %745 = vrot.lane.b32.xlu0 %v743, 32
  %v746 = vpop.permute.xlu0 %745
  %v748 = vadd.f32 %v738, %v746
  %v749 = vtanh.pop %v748
  %751 = vrot.lane.b32.xlu0 %v749, 64
  %v752 = vpop.permute.xlu0 %751
  %v754 = vmul.f32 %v736, %v752
  %756 = vrot.lane.b32.xlu0 %v680, 32
  %v757 = vpop.permute.xlu0 %756
  %s759 = scalar_lea.vmem [#allocation4], 2
  %760 = vst.msk [vmem:[%s759] sm:$0x3] %vm599, %v757
  %762 = vrot.lane.b32.xlu0 %v754, 32
  %v763 = vpop.permute.xlu0 %762
  %s765 = scalar_lea.vmem [#allocation5], 20
  %766 = vst.msk [vmem:[%s765] sm:$0x3] %vm599, %v763
  %s767 = scalar_lea.vmem [#allocation2], 4
  %v768 = vld [vmem:[%s767] sm:$0x3]
  %v769 = vpack.c.bf16 %v680, %v680
  %771 = vrot.lane.b32.xlu0 %v769, 32
  %v772 = vpop.permute.xlu0 %771
  %v774 = vsel %vm447, %v772, 0
  %776 = vmatprep.subr.bf16.mxu0 0
  %777 = vmatpush1.bf16.msra.mxu0 %v443
  %778 = vmatprep.subr.bf16.mxu0 0
  %779 = vmatpush1.bf16.msra.mxu0 %v444
  %780 = vmatprep.subr.bf16.mxu0 0
  %781 = vmatpush1.bf16.msra.mxu0 0
  %782 = vmatprep.subr.bf16.mxu0 0
  %783 = vmatpush1.bf16.msra.mxu0 0
  %784 = vmatprep.subr.bf16.mxu0 0
  %785 = vmatpush1.bf16.msra.mxu0 0
  %786 = vmatprep.subr.bf16.mxu0 0
  %787 = vmatpush1.bf16.msra.mxu0 0
  %788 = vmatprep.subr.bf16.mxu0 0
  %789 = vmatpush1.bf16.msra.mxu0 0
  %790 = vmatprep.subr.bf16.mxu0 0
  %791 = vmatpush1.bf16.msra.mxu0 0
  %792 = vmatprep.subr.bf16.mxu0 0
  %793 = vmatpush1.bf16.msra.mxu0 0
  %794 = vmatprep.subr.bf16.mxu0 0
  %795 = vmatpush1.bf16.msra.mxu0 0
  %796 = vmatprep.subr.bf16.mxu0 0
  %797 = vmatpush1.bf16.msra.mxu0 0
  %798 = vmatprep.subr.bf16.mxu0 0
  %799 = vmatpush1.bf16.msra.mxu0 0
  %800 = vmatprep.subr.bf16.mxu0 0
  %801 = vmatpush1.bf16.msra.mxu0 0
  %802 = vmatprep.subr.bf16.mxu0 0
  %803 = vmatpush1.bf16.msra.mxu0 0
  %804 = vmatprep.subr.bf16.mxu0 0
  %805 = vmatpush1.bf16.msra.mxu0 0
  %806 = vmatprep.subr.bf16.mxu0 0
  %807 = vmatpush1.bf16.msra.mxu0 0
  %808 = vmatprep.mubr.bf16.mxu0 0
  %809 = vmatmul.mubr.bf16.gmra.mrb[0].mxu0 %v774
  %v810 = vpop.f32.mrb[0].mxu0
  %v811 = vadd.f32 0.0, %v810
  %v812 = vpop.f32.mrb[0].mxu0
  %v813 = vpop.f32.mrb[0].mxu0
  %v814 = vpop.f32.mrb[0].mxu0
  %815 = vdwg.mxu0
  %v816 = vadd.f32 %v768, %v811
  %v817 = vxor.u32 %v816, 2147483648
  %v818 = vmul.f32 %v817, 1.442695
  %v819 = vpow.pop %v818
  %v820 = vadd.f32 %v819, 1.0
  %v821 = vrcp.pop %v820
  %v822 = vmul.f32 1.0, %v821
  %v823 = vtanh.pop %v816
  %v824 = vmul.f32 %v822, %v674
  %826 = vrot.lane.b32.xlu0 %v823, 64
  %v827 = vpop.permute.xlu0 %826
  %v829 = vmul.f32 %v822, %v827
  %831 = vrot.lane.b32.xlu0 %v829, 32
  %v832 = vpop.permute.xlu0 %831
  %v834 = vadd.f32 %v824, %v832
  %v835 = vtanh.pop %v834
  %837 = vrot.lane.b32.xlu0 %v835, 64
  %v838 = vpop.permute.xlu0 %837
  %v840 = vmul.f32 %v822, %v838
  %s841 = scalar_lea.vmem [#allocation3], 18
  %v842 = vld [vmem:[%s841] sm:$0x3]
  %v843 = vpack.c.bf16 %v754, %v754
  %845 = vrot.lane.b32.xlu0 %v843, 32
  %v846 = vpop.permute.xlu0 %845
  %v848 = vsel %vm447, %v846, 0
  %850 = vmatprep.subr.bf16.mxu0 0
  %851 = vmatpush1.bf16.msra.mxu0 %v526
  %852 = vmatprep.subr.bf16.mxu0 0
  %853 = vmatpush1.bf16.msra.mxu0 %v527
  %854 = vmatprep.subr.bf16.mxu0 0
  %855 = vmatpush1.bf16.msra.mxu0 0
  %856 = vmatprep.subr.bf16.mxu0 0
  %857 = vmatpush1.bf16.msra.mxu0 0
  %858 = vmatprep.subr.bf16.mxu0 0
  %859 = vmatpush1.bf16.msra.mxu0 0
  %860 = vmatprep.subr.bf16.mxu0 0
  %861 = vmatpush1.bf16.msra.mxu0 0
  %862 = vmatprep.subr.bf16.mxu0 0
  %863 = vmatpush1.bf16.msra.mxu0 0
  %864 = vmatprep.subr.bf16.mxu0 0
  %865 = vmatpush1.bf16.msra.mxu0 0
  %866 = vmatprep.subr.bf16.mxu0 0
  %867 = vmatpush1.bf16.msra.mxu0 0
  %868 = vmatprep.subr.bf16.mxu0 0
  %869 = vmatpush1.bf16.msra.mxu0 0
  %870 = vmatprep.subr.bf16.mxu0 0
  %871 = vmatpush1.bf16.msra.mxu0 0
  %872 = vmatprep.subr.bf16.mxu0 0
  %873 = vmatpush1.bf16.msra.mxu0 0
  %874 = vmatprep.subr.bf16.mxu0 0
  %875 = vmatpush1.bf16.msra.mxu0 0
  %876 = vmatprep.subr.bf16.mxu0 0
  %877 = vmatpush1.bf16.msra.mxu0 0
  %878 = vmatprep.subr.bf16.mxu0 0
  %879 = vmatpush1.bf16.msra.mxu0 0
  %880 = vmatprep.subr.bf16.mxu0 0
  %881 = vmatpush1.bf16.msra.mxu0 0
  %882 = vmatprep.mubr.bf16.mxu0 0
  %883 = vmatmul.mubr.bf16.gmra.mrb[0].mxu0 %v848
  %v884 = vpop.f32.mrb[0].mxu0
  %v885 = vadd.f32 0.0, %v884
  %v886 = vpop.f32.mrb[0].mxu0
  %v887 = vpop.f32.mrb[0].mxu0
  %v888 = vpop.f32.mrb[0].mxu0
  %889 = vdwg.mxu0
  %v890 = vadd.f32 %v842, %v885
  %v891 = vxor.u32 %v890, 2147483648
  %v892 = vmul.f32 %v891, 1.442695
  %v893 = vpow.pop %v892
  %v894 = vadd.f32 %v893, 1.0
  %v895 = vrcp.pop %v894
  %v896 = vmul.f32 1.0, %v895
  %v897 = vtanh.pop %v890
  %v898 = vmul.f32 %v896, %v748
  %900 = vrot.lane.b32.xlu0 %v897, 64
  %v901 = vpop.permute.xlu0 %900
  %v903 = vmul.f32 %v896, %v901
  %905 = vrot.lane.b32.xlu0 %v903, 32
  %v906 = vpop.permute.xlu0 %905
  %v908 = vadd.f32 %v898, %v906
  %v909 = vtanh.pop %v908
  %911 = vrot.lane.b32.xlu0 %v909, 64
  %v912 = vpop.permute.xlu0 %911
  %v914 = vmul.f32 %v896, %v912
  %916 = vrot.lane.b32.xlu0 %v840, 32
  %v917 = vpop.permute.xlu0 %916
  %s919 = scalar_lea.vmem [#allocation4], 4
  %920 = vst.msk [vmem:[%s919] sm:$0x3] %vm599, %v917
  %922 = vrot.lane.b32.xlu0 %v914, 32
  %v923 = vpop.permute.xlu0 %922
  %s925 = scalar_lea.vmem [#allocation5], 18
  %926 = vst.msk [vmem:[%s925] sm:$0x3] %vm599, %v923
  %s927 = scalar_lea.vmem [#allocation2], 6
  %v928 = vld [vmem:[%s927] sm:$0x3]
  %v929 = vpack.c.bf16 %v840, %v840
  %931 = vrot.lane.b32.xlu0 %v929, 32
  %v932 = vpop.permute.xlu0 %931
  %v934 = vsel %vm447, %v932, 0
  %936 = vmatprep.subr.bf16.mxu0 0
  %937 = vmatpush1.bf16.msra.mxu0 %v443
  %938 = vmatprep.subr.bf16.mxu0 0
  %939 = vmatpush1.bf16.msra.mxu0 %v444
  %940 = vmatprep.subr.bf16.mxu0 0
  %941 = vmatpush1.bf16.msra.mxu0 0
  %942 = vmatprep.subr.bf16.mxu0 0
  %943 = vmatpush1.bf16.msra.mxu0 0
  %944 = vmatprep.subr.bf16.mxu0 0
  %945 = vmatpush1.bf16.msra.mxu0 0
  %946 = vmatprep.subr.bf16.mxu0 0
  %947 = vmatpush1.bf16.msra.mxu0 0
  %948 = vmatprep.subr.bf16.mxu0 0
  %949 = vmatpush1.bf16.msra.mxu0 0
  %950 = vmatprep.subr.bf16.mxu0 0
  %951 = vmatpush1.bf16.msra.mxu0 0
  %952 = vmatprep.subr.bf16.mxu0 0
  %953 = vmatpush1.bf16.msra.mxu0 0
  %954 = vmatprep.subr.bf16.mxu0 0
  %955 = vmatpush1.bf16.msra.mxu0 0
  %956 = vmatprep.subr.bf16.mxu0 0
  %957 = vmatpush1.bf16.msra.mxu0 0
  %958 = vmatprep.subr.bf16.mxu0 0
  %959 = vmatpush1.bf16.msra.mxu0 0
  %960 = vmatprep.subr.bf16.mxu0 0
  %961 = vmatpush1.bf16.msra.mxu0 0
  %962 = vmatprep.subr.bf16.mxu0 0
  %963 = vmatpush1.bf16.msra.mxu0 0
  %964 = vmatprep.subr.bf16.mxu0 0
  %965 = vmatpush1.bf16.msra.mxu0 0
  %966 = vmatprep.subr.bf16.mxu0 0
  %967 = vmatpush1.bf16.msra.mxu0 0
  %968 = vmatprep.mubr.bf16.mxu0 0
  %969 = vmatmul.mubr.bf16.gmra.mrb[0].mxu0 %v934
  %v970 = vpop.f32.mrb[0].mxu0
  %v971 = vadd.f32 0.0, %v970
  %v972 = vpop.f32.mrb[0].mxu0
  %v973 = vpop.f32.mrb[0].mxu0
  %v974 = vpop.f32.mrb[0].mxu0
  %975 = vdwg.mxu0
  %v976 = vadd.f32 %v928, %v971
  %v977 = vxor.u32 %v976, 2147483648
  %v978 = vmul.f32 %v977, 1.442695
  %v979 = vpow.pop %v978
  %v980 = vadd.f32 %v979, 1.0
  %v981 = vrcp.pop %v980
  %v982 = vmul.f32 1.0, %v981
  %v983 = vtanh.pop %v976
  %v984 = vmul.f32 %v982, %v834
  %986 = vrot.lane.b32.xlu0 %v983, 64
  %v987 = vpop.permute.xlu0 %986
  %v989 = vmul.f32 %v982, %v987
  %991 = vrot.lane.b32.xlu0 %v989, 32
  %v992 = vpop.permute.xlu0 %991
  %v994 = vadd.f32 %v984, %v992
  %v995 = vtanh.pop %v994
  %997 = vrot.lane.b32.xlu0 %v995, 64
  %v998 = vpop.permute.xlu0 %997
  %v1000 = vmul.f32 %v982, %v998
  %s1001 = scalar_lea.vmem [#allocation3], 16
  %v1002 = vld [vmem:[%s1001] sm:$0x3]
  %v1003 = vpack.c.bf16 %v914, %v914
  %1005 = vrot.lane.b32.xlu0 %v1003, 32
  %v1006 = vpop.permute.xlu0 %1005
  %v1008 = vsel %vm447, %v1006, 0
  %1010 = vmatprep.subr.bf16.mxu0 0
  %1011 = vmatpush1.bf16.msra.mxu0 %v526
  %1012 = vmatprep.subr.bf16.mxu0 0
  %1013 = vmatpush1.bf16.msra.mxu0 %v527
  %1014 = vmatprep.subr.bf16.mxu0 0
  %1015 = vmatpush1.bf16.msra.mxu0 0
  %1016 = vmatprep.subr.bf16.mxu0 0
  %1017 = vmatpush1.bf16.msra.mxu0 0
  %1018 = vmatprep.subr.bf16.mxu0 0
  %1019 = vmatpush1.bf16.msra.mxu0 0
  %1020 = vmatprep.subr.bf16.mxu0 0
  %1021 = vmatpush1.bf16.msra.mxu0 0
  %1022 = vmatprep.subr.bf16.mxu0 0
  %1023 = vmatpush1.bf16.msra.mxu0 0
  %1024 = vmatprep.subr.bf16.mxu0 0
  %1025 = vmatpush1.bf16.msra.mxu0 0
  %1026 = vmatprep.subr.bf16.mxu0 0
  %1027 = vmatpush1.bf16.msra.mxu0 0
  %1028 = vmatprep.subr.bf16.mxu0 0
  %1029 = vmatpush1.bf16.msra.mxu0 0
  %1030 = vmatprep.subr.bf16.mxu0 0
  %1031 = vmatpush1.bf16.msra.mxu0 0
  %1032 = vmatprep.subr.bf16.mxu0 0
  %1033 = vmatpush1.bf16.msra.mxu0 0
  %1034 = vmatprep.subr.bf16.mxu0 0
  %1035 = vmatpush1.bf16.msra.mxu0 0
  %1036 = vmatprep.subr.bf16.mxu0 0
  %1037 = vmatpush1.bf16.msra.mxu0 0
  %1038 = vmatprep.subr.bf16.mxu0 0
  %1039 = vmatpush1.bf16.msra.mxu0 0
  %1040 = vmatprep.subr.bf16.mxu0 0
  %1041 = vmatpush1.bf16.msra.mxu0 0
  %1042 = vmatprep.mubr.bf16.mxu0 0
  %1043 = vmatmul.mubr.bf16.gmra.mrb[0].mxu0 %v1008
  %v1044 = vpop.f32.mrb[0].mxu0
  %v1045 = vadd.f32 0.0, %v1044
  %v1046 = vpop.f32.mrb[0].mxu0
  %v1047 = vpop.f32.mrb[0].mxu0
  %v1048 = vpop.f32.mrb[0].mxu0
  %1049 = vdwg.mxu0
  %v1050 = vadd.f32 %v1002, %v1045
  %v1051 = vxor.u32 %v1050, 2147483648
  %v1052 = vmul.f32 %v1051, 1.442695
  %v1053 = vpow.pop %v1052
  %v1054 = vadd.f32 %v1053, 1.0
  %v1055 = vrcp.pop %v1054
  %v1056 = vmul.f32 1.0, %v1055
  %v1057 = vtanh.pop %v1050
  %v1058 = vmul.f32 %v1056, %v908
  %1060 = vrot.lane.b32.xlu0 %v1057, 64
  %v1061 = vpop.permute.xlu0 %1060
  %v1063 = vmul.f32 %v1056, %v1061
  %1065 = vrot.lane.b32.xlu0 %v1063, 32
  %v1066 = vpop.permute.xlu0 %1065
  %v1068 = vadd.f32 %v1058, %v1066
  %v1069 = vtanh.pop %v1068
  %1071 = vrot.lane.b32.xlu0 %v1069, 64
  %v1072 = vpop.permute.xlu0 %1071
  %v1074 = vmul.f32 %v1056, %v1072
  %1076 = vrot.lane.b32.xlu0 %v1000, 32
  %v1077 = vpop.permute.xlu0 %1076
  %s1079 = scalar_lea.vmem [#allocation4], 6
  %1080 = vst.msk [vmem:[%s1079] sm:$0x3] %vm599, %v1077
  %1082 = vrot.lane.b32.xlu0 %v1074, 32
  %v1083 = vpop.permute.xlu0 %1082
  %s1085 = scalar_lea.vmem [#allocation5], 16
  %1086 = vst.msk [vmem:[%s1085] sm:$0x3] %vm599, %v1083
  %s1087 = scalar_lea.vmem [#allocation2], 8
  %v1088 = vld [vmem:[%s1087] sm:$0x3]
  %v1089 = vpack.c.bf16 %v1000, %v1000
  %1091 = vrot.lane.b32.xlu0 %v1089, 32
  %v1092 = vpop.permute.xlu0 %1091
  %v1094 = vsel %vm447, %v1092, 0
  %1096 = vmatprep.subr.bf16.mxu0 0
  %1097 = vmatpush1.bf16.msra.mxu0 %v443
  %1098 = vmatprep.subr.bf16.mxu0 0
  %1099 = vmatpush1.bf16.msra.mxu0 %v444
  %1100 = vmatprep.subr.bf16.mxu0 0
  %1101 = vmatpush1.bf16.msra.mxu0 0
  %1102 = vmatprep.subr.bf16.mxu0 0
  %1103 = vmatpush1.bf16.msra.mxu0 0
  %1104 = vmatprep.subr.bf16.mxu0 0
  %1105 = vmatpush1.bf16.msra.mxu0 0
  %1106 = vmatprep.subr.bf16.mxu0 0
  %1107 = vmatpush1.bf16.msra.mxu0 0
  %1108 = vmatprep.subr.bf16.mxu0 0
  %1109 = vmatpush1.bf16.msra.mxu0 0
  %1110 = vmatprep.subr.bf16.mxu0 0
  %1111 = vmatpush1.bf16.msra.mxu0 0
  %1112 = vmatprep.subr.bf16.mxu0 0
  %1113 = vmatpush1.bf16.msra.mxu0 0
  %1114 = vmatprep.subr.bf16.mxu0 0
  %1115 = vmatpush1.bf16.msra.mxu0 0
  %1116 = vmatprep.subr.bf16.mxu0 0
  %1117 = vmatpush1.bf16.msra.mxu0 0
  %1118 = vmatprep.subr.bf16.mxu0 0
  %1119 = vmatpush1.bf16.msra.mxu0 0
  %1120 = vmatprep.subr.bf16.mxu0 0
  %1121 = vmatpush1.bf16.msra.mxu0 0
  %1122 = vmatprep.subr.bf16.mxu0 0
  %1123 = vmatpush1.bf16.msra.mxu0 0
  %1124 = vmatprep.subr.bf16.mxu0 0
  %1125 = vmatpush1.bf16.msra.mxu0 0
  %1126 = vmatprep.subr.bf16.mxu0 0
  %1127 = vmatpush1.bf16.msra.mxu0 0
  %1128 = vmatprep.mubr.bf16.mxu0 0
  %1129 = vmatmul.mubr.bf16.gmra.mrb[0].mxu0 %v1094
  %v1130 = vpop.f32.mrb[0].mxu0
  %v1131 = vadd.f32 0.0, %v1130
  %v1132 = vpop.f32.mrb[0].mxu0
  %v1133 = vpop.f32.mrb[0].mxu0
  %v1134 = vpop.f32.mrb[0].mxu0
  %1135 = vdwg.mxu0
  %v1136 = vadd.f32 %v1088, %v1131
  %v1137 = vxor.u32 %v1136, 2147483648
  %v1138 = vmul.f32 %v1137, 1.442695
  %v1139 = vpow.pop %v1138
  %v1140 = vadd.f32 %v1139, 1.0
  %v1141 = vrcp.pop %v1140
  %v1142 = vmul.f32 1.0, %v1141
  %v1143 = vtanh.pop %v1136
  %v1144 = vmul.f32 %v1142, %v994
  %1146 = vrot.lane.b32.xlu0 %v1143, 64
  %v1147 = vpop.permute.xlu0 %1146
  %v1149 = vmul.f32 %v1142, %v1147
  %1151 = vrot.lane.b32.xlu0 %v1149, 32
  %v1152 = vpop.permute.xlu0 %1151
  %v1154 = vadd.f32 %v1144, %v1152
  %v1155 = vtanh.pop %v1154
  %1157 = vrot.lane.b32.xlu0 %v1155, 64
  %v1158 = vpop.permute.xlu0 %1157
  %v1160 = vmul.f32 %v1142, %v1158
  %s1161 = scalar_lea.vmem [#allocation3], 14
  %v1162 = vld [vmem:[%s1161] sm:$0x3]
  %v1163 = vpack.c.bf16 %v1074, %v1074
  %1165 = vrot.lane.b32.xlu0 %v1163, 32
  %v1166 = vpop.permute.xlu0 %1165
  %v1168 = vsel %vm447, %v1166, 0
  %1170 = vmatprep.subr.bf16.mxu0 0
  %1171 = vmatpush1.bf16.msra.mxu0 %v526
  %1172 = vmatprep.subr.bf16.mxu0 0
  %1173 = vmatpush1.bf16.msra.mxu0 %v527
  %1174 = vmatprep.subr.bf16.mxu0 0
  %1175 = vmatpush1.bf16.msra.mxu0 0
  %1176 = vmatprep.subr.bf16.mxu0 0
  %1177 = vmatpush1.bf16.msra.mxu0 0
  %1178 = vmatprep.subr.bf16.mxu0 0
  %1179 = vmatpush1.bf16.msra.mxu0 0
  %1180 = vmatprep.subr.bf16.mxu0 0
  %1181 = vmatpush1.bf16.msra.mxu0 0
  %1182 = vmatprep.subr.bf16.mxu0 0
  %1183 = vmatpush1.bf16.msra.mxu0 0
  %1184 = vmatprep.subr.bf16.mxu0 0
  %1185 = vmatpush1.bf16.msra.mxu0 0
  %1186 = vmatprep.subr.bf16.mxu0 0
  %1187 = vmatpush1.bf16.msra.mxu0 0
  %1188 = vmatprep.subr.bf16.mxu0 0
  %1189 = vmatpush1.bf16.msra.mxu0 0
  %1190 = vmatprep.subr.bf16.mxu0 0
  %1191 = vmatpush1.bf16.msra.mxu0 0
  %1192 = vmatprep.subr.bf16.mxu0 0
  %1193 = vmatpush1.bf16.msra.mxu0 0
  %1194 = vmatprep.subr.bf16.mxu0 0
  %1195 = vmatpush1.bf16.msra.mxu0 0
  %1196 = vmatprep.subr.bf16.mxu0 0
  %1197 = vmatpush1.bf16.msra.mxu0 0
  %1198 = vmatprep.subr.bf16.mxu0 0
  %1199 = vmatpush1.bf16.msra.mxu0 0
  %1200 = vmatprep.subr.bf16.mxu0 0
  %1201 = vmatpush1.bf16.msra.mxu0 0
  %1202 = vmatprep.mubr.bf16.mxu0 0
  %1203 = vmatmul.mubr.bf16.gmra.mrb[0].mxu0 %v1168
  %v1204 = vpop.f32.mrb[0].mxu0
  %v1205 = vadd.f32 0.0, %v1204
  %v1206 = vpop.f32.mrb[0].mxu0
  %v1207 = vpop.f32.mrb[0].mxu0
  %v1208 = vpop.f32.mrb[0].mxu0
  %1209 = vdwg.mxu0
  %v1210 = vadd.f32 %v1162, %v1205
  %v1211 = vxor.u32 %v1210, 2147483648
  %v1212 = vmul.f32 %v1211, 1.442695
  %v1213 = vpow.pop %v1212
  %v1214 = vadd.f32 %v1213, 1.0
  %v1215 = vrcp.pop %v1214
  %v1216 = vmul.f32 1.0, %v1215
  %v1217 = vtanh.pop %v1210
  %v1218 = vmul.f32 %v1216, %v1068
  %1220 = vrot.lane.b32.xlu0 %v1217, 64
  %v1221 = vpop.permute.xlu0 %1220
  %v1223 = vmul.f32 %v1216, %v1221
  %1225 = vrot.lane.b32.xlu0 %v1223, 32
  %v1226 = vpop.permute.xlu0 %1225
  %v1228 = vadd.f32 %v1218, %v1226
  %v1229 = vtanh.pop %v1228
  %1231 = vrot.lane.b32.xlu0 %v1229, 64
  %v1232 = vpop.permute.xlu0 %1231
  %v1234 = vmul.f32 %v1216, %v1232
  %1236 = vrot.lane.b32.xlu0 %v1160, 32
  %v1237 = vpop.permute.xlu0 %1236
  %s1239 = scalar_lea.vmem [#allocation4], 8
  %1240 = vst.msk [vmem:[%s1239] sm:$0x3] %vm599, %v1237
  %1242 = vrot.lane.b32.xlu0 %v1234, 32
  %v1243 = vpop.permute.xlu0 %1242
  %s1245 = scalar_lea.vmem [#allocation5], 14
  %1246 = vst.msk [vmem:[%s1245] sm:$0x3] %vm599, %v1243
  %s1247 = scalar_lea.vmem [#allocation2], 10
  %v1248 = vld [vmem:[%s1247] sm:$0x3]
  %v1249 = vpack.c.bf16 %v1160, %v1160
  %1251 = vrot.lane.b32.xlu0 %v1249, 32
  %v1252 = vpop.permute.xlu0 %1251
  %v1254 = vsel %vm447, %v1252, 0
  %1256 = vmatprep.subr.bf16.mxu0 0
  %1257 = vmatpush1.bf16.msra.mxu0 %v443
  %1258 = vmatprep.subr.bf16.mxu0 0
  %1259 = vmatpush1.bf16.msra.mxu0 %v444
  %1260 = vmatprep.subr.bf16.mxu0 0
  %1261 = vmatpush1.bf16.msra.mxu0 0
  %1262 = vmatprep.subr.bf16.mxu0 0
  %1263 = vmatpush1.bf16.msra.mxu0 0
  %1264 = vmatprep.subr.bf16.mxu0 0
  %1265 = vmatpush1.bf16.msra.mxu0 0
  %1266 = vmatprep.subr.bf16.mxu0 0
  %1267 = vmatpush1.bf16.msra.mxu0 0
  %1268 = vmatprep.subr.bf16.mxu0 0
  %1269 = vmatpush1.bf16.msra.mxu0 0
  %1270 = vmatprep.subr.bf16.mxu0 0
  %1271 = vmatpush1.bf16.msra.mxu0 0
  %1272 = vmatprep.subr.bf16.mxu0 0
  %1273 = vmatpush1.bf16.msra.mxu0 0
  %1274 = vmatprep.subr.bf16.mxu0 0
  %1275 = vmatpush1.bf16.msra.mxu0 0
  %1276 = vmatprep.subr.bf16.mxu0 0
  %1277 = vmatpush1.bf16.msra.mxu0 0
  %1278 = vmatprep.subr.bf16.mxu0 0
  %1279 = vmatpush1.bf16.msra.mxu0 0
  %1280 = vmatprep.subr.bf16.mxu0 0
  %1281 = vmatpush1.bf16.msra.mxu0 0
  %1282 = vmatprep.subr.bf16.mxu0 0
  %1283 = vmatpush1.bf16.msra.mxu0 0
  %1284 = vmatprep.subr.bf16.mxu0 0
  %1285 = vmatpush1.bf16.msra.mxu0 0
  %1286 = vmatprep.subr.bf16.mxu0 0
  %1287 = vmatpush1.bf16.msra.mxu0 0
  %1288 = vmatprep.mubr.bf16.mxu0 0
  %1289 = vmatmul.mubr.bf16.gmra.mrb[0].mxu0 %v1254
  %v1290 = vpop.f32.mrb[0].mxu0
  %v1291 = vadd.f32 0.0, %v1290
  %v1292 = vpop.f32.mrb[0].mxu0
  %v1293 = vpop.f32.mrb[0].mxu0
  %v1294 = vpop.f32.mrb[0].mxu0
  %1295 = vdwg.mxu0
  %v1296 = vadd.f32 %v1248, %v1291
  %v1297 = vxor.u32 %v1296, 2147483648
  %v1298 = vmul.f32 %v1297, 1.442695
  %v1299 = vpow.pop %v1298
  %v1300 = vadd.f32 %v1299, 1.0
  %v1301 = vrcp.pop %v1300
  %v1302 = vmul.f32 1.0, %v1301
  %v1303 = vtanh.pop %v1296
  %v1304 = vmul.f32 %v1302, %v1154
  %1306 = vrot.lane.b32.xlu0 %v1303, 64
  %v1307 = vpop.permute.xlu0 %1306
  %v1309 = vmul.f32 %v1302, %v1307
  %1311 = vrot.lane.b32.xlu0 %v1309, 32
  %v1312 = vpop.permute.xlu0 %1311
  %v1314 = vadd.f32 %v1304, %v1312
  %v1315 = vtanh.pop %v1314
  %1317 = vrot.lane.b32.xlu0 %v1315, 64
  %v1318 = vpop.permute.xlu0 %1317
  %v1320 = vmul.f32 %v1302, %v1318
  %s1321 = scalar_lea.vmem [#allocation3], 12
  %v1322 = vld [vmem:[%s1321] sm:$0x3]
  %v1323 = vpack.c.bf16 %v1234, %v1234
  %1325 = vrot.lane.b32.xlu0 %v1323, 32
  %v1326 = vpop.permute.xlu0 %1325
  %v1328 = vsel %vm447, %v1326, 0
  %1330 = vmatprep.subr.bf16.mxu0 0
  %1331 = vmatpush1.bf16.msra.mxu0 %v526
  %1332 = vmatprep.subr.bf16.mxu0 0
  %1333 = vmatpush1.bf16.msra.mxu0 %v527
  %1334 = vmatprep.subr.bf16.mxu0 0
  %1335 = vmatpush1.bf16.msra.mxu0 0
  %1336 = vmatprep.subr.bf16.mxu0 0
  %1337 = vmatpush1.bf16.msra.mxu0 0
  %1338 = vmatprep.subr.bf16.mxu0 0
  %1339 = vmatpush1.bf16.msra.mxu0 0
  %1340 = vmatprep.subr.bf16.mxu0 0
  %1341 = vmatpush1.bf16.msra.mxu0 0
  %1342 = vmatprep.subr.bf16.mxu0 0
  %1343 = vmatpush1.bf16.msra.mxu0 0
  %1344 = vmatprep.subr.bf16.mxu0 0
  %1345 = vmatpush1.bf16.msra.mxu0 0
  %1346 = vmatprep.subr.bf16.mxu0 0
  %1347 = vmatpush1.bf16.msra.mxu0 0
  %1348 = vmatprep.subr.bf16.mxu0 0
  %1349 = vmatpush1.bf16.msra.mxu0 0
  %1350 = vmatprep.subr.bf16.mxu0 0
  %1351 = vmatpush1.bf16.msra.mxu0 0
  %1352 = vmatprep.subr.bf16.mxu0 0
  %1353 = vmatpush1.bf16.msra.mxu0 0
  %1354 = vmatprep.subr.bf16.mxu0 0
  %1355 = vmatpush1.bf16.msra.mxu0 0
  %1356 = vmatprep.subr.bf16.mxu0 0
  %1357 = vmatpush1.bf16.msra.mxu0 0
  %1358 = vmatprep.subr.bf16.mxu0 0
  %1359 = vmatpush1.bf16.msra.mxu0 0
  %1360 = vmatprep.subr.bf16.mxu0 0
  %1361 = vmatpush1.bf16.msra.mxu0 0
  %1362 = vmatprep.mubr.bf16.mxu0 0
  %1363 = vmatmul.mubr.bf16.gmra.mrb[0].mxu0 %v1328
  %v1364 = vpop.f32.mrb[0].mxu0
  %v1365 = vadd.f32 0.0, %v1364
  %v1366 = vpop.f32.mrb[0].mxu0
  %v1367 = vpop.f32.mrb[0].mxu0
  %v1368 = vpop.f32.mrb[0].mxu0
  %1369 = vdwg.mxu0
  %v1370 = vadd.f32 %v1322, %v1365
  %v1371 = vxor.u32 %v1370, 2147483648
  %v1372 = vmul.f32 %v1371, 1.442695
  %v1373 = vpow.pop %v1372
  %v1374 = vadd.f32 %v1373, 1.0
  %v1375 = vrcp.pop %v1374
  %v1376 = vmul.f32 1.0, %v1375
  %v1377 = vtanh.pop %v1370
  %v1378 = vmul.f32 %v1376, %v1228
  %1380 = vrot.lane.b32.xlu0 %v1377, 64
  %v1381 = vpop.permute.xlu0 %1380
  %v1383 = vmul.f32 %v1376, %v1381
  %1385 = vrot.lane.b32.xlu0 %v1383, 32
  %v1386 = vpop.permute.xlu0 %1385
  %v1388 = vadd.f32 %v1378, %v1386
  %v1389 = vtanh.pop %v1388
  %1391 = vrot.lane.b32.xlu0 %v1389, 64
  %v1392 = vpop.permute.xlu0 %1391
  %v1394 = vmul.f32 %v1376, %v1392
  %1396 = vrot.lane.b32.xlu0 %v1320, 32
  %v1397 = vpop.permute.xlu0 %1396
  %s1399 = scalar_lea.vmem [#allocation4], 10
  %1400 = vst.msk [vmem:[%s1399] sm:$0x3] %vm599, %v1397
  %1402 = vrot.lane.b32.xlu0 %v1394, 32
  %v1403 = vpop.permute.xlu0 %1402
  %s1405 = scalar_lea.vmem [#allocation5], 12
  %1406 = vst.msk [vmem:[%s1405] sm:$0x3] %vm599, %v1403
  %s1407 = scalar_lea.vmem [#allocation2], 12
  %v1408 = vld [vmem:[%s1407] sm:$0x3]
  %v1409 = vpack.c.bf16 %v1320, %v1320
  %1411 = vrot.lane.b32.xlu0 %v1409, 32
  %v1412 = vpop.permute.xlu0 %1411
  %v1414 = vsel %vm447, %v1412, 0
  %1416 = vmatprep.subr.bf16.mxu0 0
  %1417 = vmatpush1.bf16.msra.mxu0 %v443
  %1418 = vmatprep.subr.bf16.mxu0 0
  %1419 = vmatpush1.bf16.msra.mxu0 %v444
  %1420 = vmatprep.subr.bf16.mxu0 0
  %1421 = vmatpush1.bf16.msra.mxu0 0
  %1422 = vmatprep.subr.bf16.mxu0 0
  %1423 = vmatpush1.bf16.msra.mxu0 0
  %1424 = vmatprep.subr.bf16.mxu0 0
  %1425 = vmatpush1.bf16.msra.mxu0 0
  %1426 = vmatprep.subr.bf16.mxu0 0
  %1427 = vmatpush1.bf16.msra.mxu0 0
  %1428 = vmatprep.subr.bf16.mxu0 0
  %1429 = vmatpush1.bf16.msra.mxu0 0
  %1430 = vmatprep.subr.bf16.mxu0 0
  %1431 = vmatpush1.bf16.msra.mxu0 0
  %1432 = vmatprep.subr.bf16.mxu0 0
  %1433 = vmatpush1.bf16.msra.mxu0 0
  %1434 = vmatprep.subr.bf16.mxu0 0
  %1435 = vmatpush1.bf16.msra.mxu0 0
  %1436 = vmatprep.subr.bf16.mxu0 0
  %1437 = vmatpush1.bf16.msra.mxu0 0
  %1438 = vmatprep.subr.bf16.mxu0 0
  %1439 = vmatpush1.bf16.msra.mxu0 0
  %1440 = vmatprep.subr.bf16.mxu0 0
  %1441 = vmatpush1.bf16.msra.mxu0 0
  %1442 = vmatprep.subr.bf16.mxu0 0
  %1443 = vmatpush1.bf16.msra.mxu0 0
  %1444 = vmatprep.subr.bf16.mxu0 0
  %1445 = vmatpush1.bf16.msra.mxu0 0
  %1446 = vmatprep.subr.bf16.mxu0 0
  %1447 = vmatpush1.bf16.msra.mxu0 0
  %1448 = vmatprep.mubr.bf16.mxu0 0
  %1449 = vmatmul.mubr.bf16.gmra.mrb[0].mxu0 %v1414
  %v1450 = vpop.f32.mrb[0].mxu0
  %v1451 = vadd.f32 0.0, %v1450
  %v1452 = vpop.f32.mrb[0].mxu0
  %v1453 = vpop.f32.mrb[0].mxu0
  %v1454 = vpop.f32.mrb[0].mxu0
  %1455 = vdwg.mxu0
  %v1456 = vadd.f32 %v1408, %v1451
  %v1457 = vxor.u32 %v1456, 2147483648
  %v1458 = vmul.f32 %v1457, 1.442695
  %v1459 = vpow.pop %v1458
  %v1460 = vadd.f32 %v1459, 1.0
  %v1461 = vrcp.pop %v1460
  %v1462 = vmul.f32 1.0, %v1461
  %v1463 = vtanh.pop %v1456
  %v1464 = vmul.f32 %v1462, %v1314
  %1466 = vrot.lane.b32.xlu0 %v1463, 64
  %v1467 = vpop.permute.xlu0 %1466
  %v1469 = vmul.f32 %v1462, %v1467
  %1471 = vrot.lane.b32.xlu0 %v1469, 32
  %v1472 = vpop.permute.xlu0 %1471
  %v1474 = vadd.f32 %v1464, %v1472
  %v1475 = vtanh.pop %v1474
  %1477 = vrot.lane.b32.xlu0 %v1475, 64
  %v1478 = vpop.permute.xlu0 %1477
  %v1480 = vmul.f32 %v1462, %v1478
  %s1481 = scalar_lea.vmem [#allocation3], 10
  %v1482 = vld [vmem:[%s1481] sm:$0x3]
  %v1483 = vpack.c.bf16 %v1394, %v1394
  %1485 = vrot.lane.b32.xlu0 %v1483, 32
  %v1486 = vpop.permute.xlu0 %1485
  %v1488 = vsel %vm447, %v1486, 0
  %1490 = vmatprep.subr.bf16.mxu0 0
  %1491 = vmatpush1.bf16.msra.mxu0 %v526
  %1492 = vmatprep.subr.bf16.mxu0 0
  %1493 = vmatpush1.bf16.msra.mxu0 %v527
  %1494 = vmatprep.subr.bf16.mxu0 0
  %1495 = vmatpush1.bf16.msra.mxu0 0
  %1496 = vmatprep.subr.bf16.mxu0 0
  %1497 = vmatpush1.bf16.msra.mxu0 0
  %1498 = vmatprep.subr.bf16.mxu0 0
  %1499 = vmatpush1.bf16.msra.mxu0 0
  %1500 = vmatprep.subr.bf16.mxu0 0
  %1501 = vmatpush1.bf16.msra.mxu0 0
  %1502 = vmatprep.subr.bf16.mxu0 0
  %1503 = vmatpush1.bf16.msra.mxu0 0
  %1504 = vmatprep.subr.bf16.mxu0 0
  %1505 = vmatpush1.bf16.msra.mxu0 0
  %1506 = vmatprep.subr.bf16.mxu0 0
  %1507 = vmatpush1.bf16.msra.mxu0 0
  %1508 = vmatprep.subr.bf16.mxu0 0
  %1509 = vmatpush1.bf16.msra.mxu0 0
  %1510 = vmatprep.subr.bf16.mxu0 0
  %1511 = vmatpush1.bf16.msra.mxu0 0
  %1512 = vmatprep.subr.bf16.mxu0 0
  %1513 = vmatpush1.bf16.msra.mxu0 0
  %1514 = vmatprep.subr.bf16.mxu0 0
  %1515 = vmatpush1.bf16.msra.mxu0 0
  %1516 = vmatprep.subr.bf16.mxu0 0
  %1517 = vmatpush1.bf16.msra.mxu0 0
  %1518 = vmatprep.subr.bf16.mxu0 0
  %1519 = vmatpush1.bf16.msra.mxu0 0
  %1520 = vmatprep.subr.bf16.mxu0 0
  %1521 = vmatpush1.bf16.msra.mxu0 0
  %1522 = vmatprep.mubr.bf16.mxu0 0
  %1523 = vmatmul.mubr.bf16.gmra.mrb[0].mxu0 %v1488
  %v1524 = vpop.f32.mrb[0].mxu0
  %v1525 = vadd.f32 0.0, %v1524
  %v1526 = vpop.f32.mrb[0].mxu0
  %v1527 = vpop.f32.mrb[0].mxu0
  %v1528 = vpop.f32.mrb[0].mxu0
  %1529 = vdwg.mxu0
  %v1530 = vadd.f32 %v1482, %v1525
  %v1531 = vxor.u32 %v1530, 2147483648
  %v1532 = vmul.f32 %v1531, 1.442695
  %v1533 = vpow.pop %v1532
  %v1534 = vadd.f32 %v1533, 1.0
  %v1535 = vrcp.pop %v1534
  %v1536 = vmul.f32 1.0, %v1535
  %v1537 = vtanh.pop %v1530
  %v1538 = vmul.f32 %v1536, %v1388
  %1540 = vrot.lane.b32.xlu0 %v1537, 64
  %v1541 = vpop.permute.xlu0 %1540
  %v1543 = vmul.f32 %v1536, %v1541
  %1545 = vrot.lane.b32.xlu0 %v1543, 32
  %v1546 = vpop.permute.xlu0 %1545
  %v1548 = vadd.f32 %v1538, %v1546
  %v1549 = vtanh.pop %v1548
  %1551 = vrot.lane.b32.xlu0 %v1549, 64
  %v1552 = vpop.permute.xlu0 %1551
  %v1554 = vmul.f32 %v1536, %v1552
  %1556 = vrot.lane.b32.xlu0 %v1480, 32
  %v1557 = vpop.permute.xlu0 %1556
  %s1559 = scalar_lea.vmem [#allocation4], 12
  %1560 = vst.msk [vmem:[%s1559] sm:$0x3] %vm599, %v1557
  %1562 = vrot.lane.b32.xlu0 %v1554, 32
  %v1563 = vpop.permute.xlu0 %1562
  %s1565 = scalar_lea.vmem [#allocation5], 10
  %1566 = vst.msk [vmem:[%s1565] sm:$0x3] %vm599, %v1563
  %s1567 = scalar_lea.vmem [#allocation2], 14
  %v1568 = vld [vmem:[%s1567] sm:$0x3]
  %v1569 = vpack.c.bf16 %v1480, %v1480
  %1571 = vrot.lane.b32.xlu0 %v1569, 32
  %v1572 = vpop.permute.xlu0 %1571
  %v1574 = vsel %vm447, %v1572, 0
  %1576 = vmatprep.subr.bf16.mxu0 0
  %1577 = vmatpush1.bf16.msra.mxu0 %v443
  %1578 = vmatprep.subr.bf16.mxu0 0
  %1579 = vmatpush1.bf16.msra.mxu0 %v444
  %1580 = vmatprep.subr.bf16.mxu0 0
  %1581 = vmatpush1.bf16.msra.mxu0 0
  %1582 = vmatprep.subr.bf16.mxu0 0
  %1583 = vmatpush1.bf16.msra.mxu0 0
  %1584 = vmatprep.subr.bf16.mxu0 0
  %1585 = vmatpush1.bf16.msra.mxu0 0
  %1586 = vmatprep.subr.bf16.mxu0 0
  %1587 = vmatpush1.bf16.msra.mxu0 0
  %1588 = vmatprep.subr.bf16.mxu0 0
  %1589 = vmatpush1.bf16.msra.mxu0 0
  %1590 = vmatprep.subr.bf16.mxu0 0
  %1591 = vmatpush1.bf16.msra.mxu0 0
  %1592 = vmatprep.subr.bf16.mxu0 0
  %1593 = vmatpush1.bf16.msra.mxu0 0
  %1594 = vmatprep.subr.bf16.mxu0 0
  %1595 = vmatpush1.bf16.msra.mxu0 0
  %1596 = vmatprep.subr.bf16.mxu0 0
  %1597 = vmatpush1.bf16.msra.mxu0 0
  %1598 = vmatprep.subr.bf16.mxu0 0
  %1599 = vmatpush1.bf16.msra.mxu0 0
  %1600 = vmatprep.subr.bf16.mxu0 0
  %1601 = vmatpush1.bf16.msra.mxu0 0
  %1602 = vmatprep.subr.bf16.mxu0 0
  %1603 = vmatpush1.bf16.msra.mxu0 0
  %1604 = vmatprep.subr.bf16.mxu0 0
  %1605 = vmatpush1.bf16.msra.mxu0 0
  %1606 = vmatprep.subr.bf16.mxu0 0
  %1607 = vmatpush1.bf16.msra.mxu0 0
  %1608 = vmatprep.mubr.bf16.mxu0 0
  %1609 = vmatmul.mubr.bf16.gmra.mrb[0].mxu0 %v1574
  %v1610 = vpop.f32.mrb[0].mxu0
  %v1611 = vadd.f32 0.0, %v1610
  %v1612 = vpop.f32.mrb[0].mxu0
  %v1613 = vpop.f32.mrb[0].mxu0
  %v1614 = vpop.f32.mrb[0].mxu0
  %1615 = vdwg.mxu0
  %v1616 = vadd.f32 %v1568, %v1611
  %v1617 = vxor.u32 %v1616, 2147483648
  %v1618 = vmul.f32 %v1617, 1.442695
  %v1619 = vpow.pop %v1618
  %v1620 = vadd.f32 %v1619, 1.0
  %v1621 = vrcp.pop %v1620
  %v1622 = vmul.f32 1.0, %v1621
  %v1623 = vtanh.pop %v1616
  %v1624 = vmul.f32 %v1622, %v1474
  %1626 = vrot.lane.b32.xlu0 %v1623, 64
  %v1627 = vpop.permute.xlu0 %1626
  %v1629 = vmul.f32 %v1622, %v1627
  %1631 = vrot.lane.b32.xlu0 %v1629, 32
  %v1632 = vpop.permute.xlu0 %1631
  %v1634 = vadd.f32 %v1624, %v1632
  %v1635 = vtanh.pop %v1634
  %1637 = vrot.lane.b32.xlu0 %v1635, 64
  %v1638 = vpop.permute.xlu0 %1637
  %v1640 = vmul.f32 %v1622, %v1638
  %s1641 = scalar_lea.vmem [#allocation3], 8
  %v1642 = vld [vmem:[%s1641] sm:$0x3]
  %v1643 = vpack.c.bf16 %v1554, %v1554
  %1645 = vrot.lane.b32.xlu0 %v1643, 32
  %v1646 = vpop.permute.xlu0 %1645
  %v1648 = vsel %vm447, %v1646, 0
  %1650 = vmatprep.subr.bf16.mxu0 0
  %1651 = vmatpush1.bf16.msra.mxu0 %v526
  %1652 = vmatprep.subr.bf16.mxu0 0
  %1653 = vmatpush1.bf16.msra.mxu0 %v527
  %1654 = vmatprep.subr.bf16.mxu0 0
  %1655 = vmatpush1.bf16.msra.mxu0 0
  %1656 = vmatprep.subr.bf16.mxu0 0
  %1657 = vmatpush1.bf16.msra.mxu0 0
  %1658 = vmatprep.subr.bf16.mxu0 0
  %1659 = vmatpush1.bf16.msra.mxu0 0
  %1660 = vmatprep.subr.bf16.mxu0 0
  %1661 = vmatpush1.bf16.msra.mxu0 0
  %1662 = vmatprep.subr.bf16.mxu0 0
  %1663 = vmatpush1.bf16.msra.mxu0 0
  %1664 = vmatprep.subr.bf16.mxu0 0
  %1665 = vmatpush1.bf16.msra.mxu0 0
  %1666 = vmatprep.subr.bf16.mxu0 0
  %1667 = vmatpush1.bf16.msra.mxu0 0
  %1668 = vmatprep.subr.bf16.mxu0 0
  %1669 = vmatpush1.bf16.msra.mxu0 0
  %1670 = vmatprep.subr.bf16.mxu0 0
  %1671 = vmatpush1.bf16.msra.mxu0 0
  %1672 = vmatprep.subr.bf16.mxu0 0
  %1673 = vmatpush1.bf16.msra.mxu0 0
  %1674 = vmatprep.subr.bf16.mxu0 0
  %1675 = vmatpush1.bf16.msra.mxu0 0
  %1676 = vmatprep.subr.bf16.mxu0 0
  %1677 = vmatpush1.bf16.msra.mxu0 0
  %1678 = vmatprep.subr.bf16.mxu0 0
  %1679 = vmatpush1.bf16.msra.mxu0 0
  %1680 = vmatprep.subr.bf16.mxu0 0
  %1681 = vmatpush1.bf16.msra.mxu0 0
  %1682 = vmatprep.mubr.bf16.mxu0 0
  %1683 = vmatmul.mubr.bf16.gmra.mrb[0].mxu0 %v1648
  %v1684 = vpop.f32.mrb[0].mxu0
  %v1685 = vadd.f32 0.0, %v1684
  %v1686 = vpop.f32.mrb[0].mxu0
  %v1687 = vpop.f32.mrb[0].mxu0
  %v1688 = vpop.f32.mrb[0].mxu0
  %1689 = vdwg.mxu0
  %v1690 = vadd.f32 %v1642, %v1685
  %v1691 = vxor.u32 %v1690, 2147483648
  %v1692 = vmul.f32 %v1691, 1.442695
  %v1693 = vpow.pop %v1692
  %v1694 = vadd.f32 %v1693, 1.0
  %v1695 = vrcp.pop %v1694
  %v1696 = vmul.f32 1.0, %v1695
  %v1697 = vtanh.pop %v1690
  %v1698 = vmul.f32 %v1696, %v1548
  %1700 = vrot.lane.b32.xlu0 %v1697, 64
  %v1701 = vpop.permute.xlu0 %1700
  %v1703 = vmul.f32 %v1696, %v1701
  %1705 = vrot.lane.b32.xlu0 %v1703, 32
  %v1706 = vpop.permute.xlu0 %1705
  %v1708 = vadd.f32 %v1698, %v1706
  %v1709 = vtanh.pop %v1708
  %1711 = vrot.lane.b32.xlu0 %v1709, 64
  %v1712 = vpop.permute.xlu0 %1711
  %v1714 = vmul.f32 %v1696, %v1712
  %1716 = vrot.lane.b32.xlu0 %v1640, 32
  %v1717 = vpop.permute.xlu0 %1716
  %s1719 = scalar_lea.vmem [#allocation4], 14
  %1720 = vst.msk [vmem:[%s1719] sm:$0x3] %vm599, %v1717
  %1722 = vrot.lane.b32.xlu0 %v1714, 32
  %v1723 = vpop.permute.xlu0 %1722
  %s1725 = scalar_lea.vmem [#allocation5], 8
  %1726 = vst.msk [vmem:[%s1725] sm:$0x3] %vm599, %v1723
  %s1727 = scalar_lea.vmem [#allocation2], 16
  %v1728 = vld [vmem:[%s1727] sm:$0x3]
  %v1729 = vpack.c.bf16 %v1640, %v1640
  %1731 = vrot.lane.b32.xlu0 %v1729, 32
  %v1732 = vpop.permute.xlu0 %1731
  %v1734 = vsel %vm447, %v1732, 0
  %1736 = vmatprep.subr.bf16.mxu0 0
  %1737 = vmatpush1.bf16.msra.mxu0 %v443
  %1738 = vmatprep.subr.bf16.mxu0 0
  %1739 = vmatpush1.bf16.msra.mxu0 %v444
  %1740 = vmatprep.subr.bf16.mxu0 0
  %1741 = vmatpush1.bf16.msra.mxu0 0
  %1742 = vmatprep.subr.bf16.mxu0 0
  %1743 = vmatpush1.bf16.msra.mxu0 0
  %1744 = vmatprep.subr.bf16.mxu0 0
  %1745 = vmatpush1.bf16.msra.mxu0 0
  %1746 = vmatprep.subr.bf16.mxu0 0
  %1747 = vmatpush1.bf16.msra.mxu0 0
  %1748 = vmatprep.subr.bf16.mxu0 0
  %1749 = vmatpush1.bf16.msra.mxu0 0
  %1750 = vmatprep.subr.bf16.mxu0 0
  %1751 = vmatpush1.bf16.msra.mxu0 0
  %1752 = vmatprep.subr.bf16.mxu0 0
  %1753 = vmatpush1.bf16.msra.mxu0 0
  %1754 = vmatprep.subr.bf16.mxu0 0
  %1755 = vmatpush1.bf16.msra.mxu0 0
  %1756 = vmatprep.subr.bf16.mxu0 0
  %1757 = vmatpush1.bf16.msra.mxu0 0
  %1758 = vmatprep.subr.bf16.mxu0 0
  %1759 = vmatpush1.bf16.msra.mxu0 0
  %1760 = vmatprep.subr.bf16.mxu0 0
  %1761 = vmatpush1.bf16.msra.mxu0 0
  %1762 = vmatprep.subr.bf16.mxu0 0
  %1763 = vmatpush1.bf16.msra.mxu0 0
  %1764 = vmatprep.subr.bf16.mxu0 0
  %1765 = vmatpush1.bf16.msra.mxu0 0
  %1766 = vmatprep.subr.bf16.mxu0 0
  %1767 = vmatpush1.bf16.msra.mxu0 0
  %1768 = vmatprep.mubr.bf16.mxu0 0
  %1769 = vmatmul.mubr.bf16.gmra.mrb[0].mxu0 %v1734
  %v1770 = vpop.f32.mrb[0].mxu0
  %v1771 = vadd.f32 0.0, %v1770
  %v1772 = vpop.f32.mrb[0].mxu0
  %v1773 = vpop.f32.mrb[0].mxu0
  %v1774 = vpop.f32.mrb[0].mxu0
  %1775 = vdwg.mxu0
  %v1776 = vadd.f32 %v1728, %v1771
  %v1777 = vxor.u32 %v1776, 2147483648
  %v1778 = vmul.f32 %v1777, 1.442695
  %v1779 = vpow.pop %v1778
  %v1780 = vadd.f32 %v1779, 1.0
  %v1781 = vrcp.pop %v1780
  %v1782 = vmul.f32 1.0, %v1781
  %v1783 = vtanh.pop %v1776
  %v1784 = vmul.f32 %v1782, %v1634
  %1786 = vrot.lane.b32.xlu0 %v1783, 64
  %v1787 = vpop.permute.xlu0 %1786
  %v1789 = vmul.f32 %v1782, %v1787
  %1791 = vrot.lane.b32.xlu0 %v1789, 32
  %v1792 = vpop.permute.xlu0 %1791
  %v1794 = vadd.f32 %v1784, %v1792
  %v1795 = vtanh.pop %v1794
  %1797 = vrot.lane.b32.xlu0 %v1795, 64
  %v1798 = vpop.permute.xlu0 %1797
  %v1800 = vmul.f32 %v1782, %v1798
  %s1801 = scalar_lea.vmem [#allocation3], 6
  %v1802 = vld [vmem:[%s1801] sm:$0x3]
  %v1803 = vpack.c.bf16 %v1714, %v1714
  %1805 = vrot.lane.b32.xlu0 %v1803, 32
  %v1806 = vpop.permute.xlu0 %1805
  %v1808 = vsel %vm447, %v1806, 0
  %1810 = vmatprep.subr.bf16.mxu0 0
  %1811 = vmatpush1.bf16.msra.mxu0 %v526
  %1812 = vmatprep.subr.bf16.mxu0 0
  %1813 = vmatpush1.bf16.msra.mxu0 %v527
  %1814 = vmatprep.subr.bf16.mxu0 0
  %1815 = vmatpush1.bf16.msra.mxu0 0
  %1816 = vmatprep.subr.bf16.mxu0 0
  %1817 = vmatpush1.bf16.msra.mxu0 0
  %1818 = vmatprep.subr.bf16.mxu0 0
  %1819 = vmatpush1.bf16.msra.mxu0 0
  %1820 = vmatprep.subr.bf16.mxu0 0
  %1821 = vmatpush1.bf16.msra.mxu0 0
  %1822 = vmatprep.subr.bf16.mxu0 0
  %1823 = vmatpush1.bf16.msra.mxu0 0
  %1824 = vmatprep.subr.bf16.mxu0 0
  %1825 = vmatpush1.bf16.msra.mxu0 0
  %1826 = vmatprep.subr.bf16.mxu0 0
  %1827 = vmatpush1.bf16.msra.mxu0 0
  %1828 = vmatprep.subr.bf16.mxu0 0
  %1829 = vmatpush1.bf16.msra.mxu0 0
  %1830 = vmatprep.subr.bf16.mxu0 0
  %1831 = vmatpush1.bf16.msra.mxu0 0
  %1832 = vmatprep.subr.bf16.mxu0 0
  %1833 = vmatpush1.bf16.msra.mxu0 0
  %1834 = vmatprep.subr.bf16.mxu0 0
  %1835 = vmatpush1.bf16.msra.mxu0 0
  %1836 = vmatprep.subr.bf16.mxu0 0
  %1837 = vmatpush1.bf16.msra.mxu0 0
  %1838 = vmatprep.subr.bf16.mxu0 0
  %1839 = vmatpush1.bf16.msra.mxu0 0
  %1840 = vmatprep.subr.bf16.mxu0 0
  %1841 = vmatpush1.bf16.msra.mxu0 0
  %1842 = vmatprep.mubr.bf16.mxu0 0
  %1843 = vmatmul.mubr.bf16.gmra.mrb[0].mxu0 %v1808
  %v1844 = vpop.f32.mrb[0].mxu0
  %v1845 = vadd.f32 0.0, %v1844
  %v1846 = vpop.f32.mrb[0].mxu0
  %v1847 = vpop.f32.mrb[0].mxu0
  %v1848 = vpop.f32.mrb[0].mxu0
  %1849 = vdwg.mxu0
  %v1850 = vadd.f32 %v1802, %v1845
  %v1851 = vxor.u32 %v1850, 2147483648
  %v1852 = vmul.f32 %v1851, 1.442695
  %v1853 = vpow.pop %v1852
  %v1854 = vadd.f32 %v1853, 1.0
  %v1855 = vrcp.pop %v1854
  %v1856 = vmul.f32 1.0, %v1855
  %v1857 = vtanh.pop %v1850
  %v1858 = vmul.f32 %v1856, %v1708
  %1860 = vrot.lane.b32.xlu0 %v1857, 64
  %v1861 = vpop.permute.xlu0 %1860
  %v1863 = vmul.f32 %v1856, %v1861
  %1865 = vrot.lane.b32.xlu0 %v1863, 32
  %v1866 = vpop.permute.xlu0 %1865
  %v1868 = vadd.f32 %v1858, %v1866
  %v1869 = vtanh.pop %v1868
  %1871 = vrot.lane.b32.xlu0 %v1869, 64
  %v1872 = vpop.permute.xlu0 %1871
  %v1874 = vmul.f32 %v1856, %v1872
  %1876 = vrot.lane.b32.xlu0 %v1800, 32
  %v1877 = vpop.permute.xlu0 %1876
  %s1879 = scalar_lea.vmem [#allocation4], 16
  %1880 = vst.msk [vmem:[%s1879] sm:$0x3] %vm599, %v1877
  %1882 = vrot.lane.b32.xlu0 %v1874, 32
  %v1883 = vpop.permute.xlu0 %1882
  %s1885 = scalar_lea.vmem [#allocation5], 6
  %1886 = vst.msk [vmem:[%s1885] sm:$0x3] %vm599, %v1883
  %s1887 = scalar_lea.vmem [#allocation2], 18
  %v1888 = vld [vmem:[%s1887] sm:$0x3]
  %v1889 = vpack.c.bf16 %v1800, %v1800
  %1891 = vrot.lane.b32.xlu0 %v1889, 32
  %v1892 = vpop.permute.xlu0 %1891
  %v1894 = vsel %vm447, %v1892, 0
  %1896 = vmatprep.subr.bf16.mxu0 0
  %1897 = vmatpush1.bf16.msra.mxu0 %v443
  %1898 = vmatprep.subr.bf16.mxu0 0
  %1899 = vmatpush1.bf16.msra.mxu0 %v444
  %1900 = vmatprep.subr.bf16.mxu0 0
  %1901 = vmatpush1.bf16.msra.mxu0 0
  %1902 = vmatprep.subr.bf16.mxu0 0
  %1903 = vmatpush1.bf16.msra.mxu0 0
  %1904 = vmatprep.subr.bf16.mxu0 0
  %1905 = vmatpush1.bf16.msra.mxu0 0
  %1906 = vmatprep.subr.bf16.mxu0 0
  %1907 = vmatpush1.bf16.msra.mxu0 0
  %1908 = vmatprep.subr.bf16.mxu0 0
  %1909 = vmatpush1.bf16.msra.mxu0 0
  %1910 = vmatprep.subr.bf16.mxu0 0
  %1911 = vmatpush1.bf16.msra.mxu0 0
  %1912 = vmatprep.subr.bf16.mxu0 0
  %1913 = vmatpush1.bf16.msra.mxu0 0
  %1914 = vmatprep.subr.bf16.mxu0 0
  %1915 = vmatpush1.bf16.msra.mxu0 0
  %1916 = vmatprep.subr.bf16.mxu0 0
  %1917 = vmatpush1.bf16.msra.mxu0 0
  %1918 = vmatprep.subr.bf16.mxu0 0
  %1919 = vmatpush1.bf16.msra.mxu0 0
  %1920 = vmatprep.subr.bf16.mxu0 0
  %1921 = vmatpush1.bf16.msra.mxu0 0
  %1922 = vmatprep.subr.bf16.mxu0 0
  %1923 = vmatpush1.bf16.msra.mxu0 0
  %1924 = vmatprep.subr.bf16.mxu0 0
  %1925 = vmatpush1.bf16.msra.mxu0 0
  %1926 = vmatprep.subr.bf16.mxu0 0
  %1927 = vmatpush1.bf16.msra.mxu0 0
  %1928 = vmatprep.mubr.bf16.mxu0 0
  %1929 = vmatmul.mubr.bf16.gmra.mrb[0].mxu0 %v1894
  %v1930 = vpop.f32.mrb[0].mxu0
  %v1931 = vadd.f32 0.0, %v1930
  %v1932 = vpop.f32.mrb[0].mxu0
  %v1933 = vpop.f32.mrb[0].mxu0
  %v1934 = vpop.f32.mrb[0].mxu0
  %1935 = vdwg.mxu0
  %v1936 = vadd.f32 %v1888, %v1931
  %v1937 = vxor.u32 %v1936, 2147483648
  %v1938 = vmul.f32 %v1937, 1.442695
  %v1939 = vpow.pop %v1938
  %v1940 = vadd.f32 %v1939, 1.0
  %v1941 = vrcp.pop %v1940
  %v1942 = vmul.f32 1.0, %v1941
  %v1943 = vtanh.pop %v1936
  %v1944 = vmul.f32 %v1942, %v1794
  %1946 = vrot.lane.b32.xlu0 %v1943, 64
  %v1947 = vpop.permute.xlu0 %1946
  %v1949 = vmul.f32 %v1942, %v1947
  %1951 = vrot.lane.b32.xlu0 %v1949, 32
  %v1952 = vpop.permute.xlu0 %1951
  %v1954 = vadd.f32 %v1944, %v1952
  %v1955 = vtanh.pop %v1954
  %1957 = vrot.lane.b32.xlu0 %v1955, 64
  %v1958 = vpop.permute.xlu0 %1957
  %v1960 = vmul.f32 %v1942, %v1958
  %s1961 = scalar_lea.vmem [#allocation3], 4
  %v1962 = vld [vmem:[%s1961] sm:$0x3]
  %v1963 = vpack.c.bf16 %v1874, %v1874
  %1965 = vrot.lane.b32.xlu0 %v1963, 32
  %v1966 = vpop.permute.xlu0 %1965
  %v1968 = vsel %vm447, %v1966, 0
  %1970 = vmatprep.subr.bf16.mxu0 0
  %1971 = vmatpush1.bf16.msra.mxu0 %v526
  %1972 = vmatprep.subr.bf16.mxu0 0
  %1973 = vmatpush1.bf16.msra.mxu0 %v527
  %1974 = vmatprep.subr.bf16.mxu0 0
  %1975 = vmatpush1.bf16.msra.mxu0 0
  %1976 = vmatprep.subr.bf16.mxu0 0
  %1977 = vmatpush1.bf16.msra.mxu0 0
  %1978 = vmatprep.subr.bf16.mxu0 0
  %1979 = vmatpush1.bf16.msra.mxu0 0
  %1980 = vmatprep.subr.bf16.mxu0 0
  %1981 = vmatpush1.bf16.msra.mxu0 0
  %1982 = vmatprep.subr.bf16.mxu0 0
  %1983 = vmatpush1.bf16.msra.mxu0 0
  %1984 = vmatprep.subr.bf16.mxu0 0
  %1985 = vmatpush1.bf16.msra.mxu0 0
  %1986 = vmatprep.subr.bf16.mxu0 0
  %1987 = vmatpush1.bf16.msra.mxu0 0
  %1988 = vmatprep.subr.bf16.mxu0 0
  %1989 = vmatpush1.bf16.msra.mxu0 0
  %1990 = vmatprep.subr.bf16.mxu0 0
  %1991 = vmatpush1.bf16.msra.mxu0 0
  %1992 = vmatprep.subr.bf16.mxu0 0
  %1993 = vmatpush1.bf16.msra.mxu0 0
  %1994 = vmatprep.subr.bf16.mxu0 0
  %1995 = vmatpush1.bf16.msra.mxu0 0
  %1996 = vmatprep.subr.bf16.mxu0 0
  %1997 = vmatpush1.bf16.msra.mxu0 0
  %1998 = vmatprep.subr.bf16.mxu0 0
  %1999 = vmatpush1.bf16.msra.mxu0 0
  %2000 = vmatprep.subr.bf16.mxu0 0
  %2001 = vmatpush1.bf16.msra.mxu0 0
  %2002 = vmatprep.mubr.bf16.mxu0 0
  %2003 = vmatmul.mubr.bf16.gmra.mrb[0].mxu0 %v1968
  %v2004 = vpop.f32.mrb[0].mxu0
  %v2005 = vadd.f32 0.0, %v2004
  %v2006 = vpop.f32.mrb[0].mxu0
  %v2007 = vpop.f32.mrb[0].mxu0
  %v2008 = vpop.f32.mrb[0].mxu0
  %2009 = vdwg.mxu0
  %v2010 = vadd.f32 %v1962, %v2005
  %v2011 = vxor.u32 %v2010, 2147483648
  %v2012 = vmul.f32 %v2011, 1.442695
  %v2013 = vpow.pop %v2012
  %v2014 = vadd.f32 %v2013, 1.0
  %v2015 = vrcp.pop %v2014
  %v2016 = vmul.f32 1.0, %v2015
  %v2017 = vtanh.pop %v2010
  %v2018 = vmul.f32 %v2016, %v1868
  %2020 = vrot.lane.b32.xlu0 %v2017, 64
  %v2021 = vpop.permute.xlu0 %2020
  %v2023 = vmul.f32 %v2016, %v2021
  %2025 = vrot.lane.b32.xlu0 %v2023, 32
  %v2026 = vpop.permute.xlu0 %2025
  %v2028 = vadd.f32 %v2018, %v2026
  %v2029 = vtanh.pop %v2028
  %2031 = vrot.lane.b32.xlu0 %v2029, 64
  %v2032 = vpop.permute.xlu0 %2031
  %v2034 = vmul.f32 %v2016, %v2032
  %2036 = vrot.lane.b32.xlu0 %v1960, 32
  %v2037 = vpop.permute.xlu0 %2036
  %s2039 = scalar_lea.vmem [#allocation4], 18
  %2040 = vst.msk [vmem:[%s2039] sm:$0x3] %vm599, %v2037
  %2042 = vrot.lane.b32.xlu0 %v2034, 32
  %v2043 = vpop.permute.xlu0 %2042
  %s2045 = scalar_lea.vmem [#allocation5], 4
  %2046 = vst.msk [vmem:[%s2045] sm:$0x3] %vm599, %v2043
  %s2047 = scalar_lea.vmem [#allocation2], 20
  %v2048 = vld [vmem:[%s2047] sm:$0x3]
  %v2049 = vpack.c.bf16 %v1960, %v1960
  %2051 = vrot.lane.b32.xlu0 %v2049, 32
  %v2052 = vpop.permute.xlu0 %2051
  %v2054 = vsel %vm447, %v2052, 0
  %2056 = vmatprep.subr.bf16.mxu0 0
  %2057 = vmatpush1.bf16.msra.mxu0 %v443
  %2058 = vmatprep.subr.bf16.mxu0 0
  %2059 = vmatpush1.bf16.msra.mxu0 %v444
  %2060 = vmatprep.subr.bf16.mxu0 0
  %2061 = vmatpush1.bf16.msra.mxu0 0
  %2062 = vmatprep.subr.bf16.mxu0 0
  %2063 = vmatpush1.bf16.msra.mxu0 0
  %2064 = vmatprep.subr.bf16.mxu0 0
  %2065 = vmatpush1.bf16.msra.mxu0 0
  %2066 = vmatprep.subr.bf16.mxu0 0
  %2067 = vmatpush1.bf16.msra.mxu0 0
  %2068 = vmatprep.subr.bf16.mxu0 0
  %2069 = vmatpush1.bf16.msra.mxu0 0
  %2070 = vmatprep.subr.bf16.mxu0 0
  %2071 = vmatpush1.bf16.msra.mxu0 0
  %2072 = vmatprep.subr.bf16.mxu0 0
  %2073 = vmatpush1.bf16.msra.mxu0 0
  %2074 = vmatprep.subr.bf16.mxu0 0
  %2075 = vmatpush1.bf16.msra.mxu0 0
  %2076 = vmatprep.subr.bf16.mxu0 0
  %2077 = vmatpush1.bf16.msra.mxu0 0
  %2078 = vmatprep.subr.bf16.mxu0 0
  %2079 = vmatpush1.bf16.msra.mxu0 0
  %2080 = vmatprep.subr.bf16.mxu0 0
  %2081 = vmatpush1.bf16.msra.mxu0 0
  %2082 = vmatprep.subr.bf16.mxu0 0
  %2083 = vmatpush1.bf16.msra.mxu0 0
  %2084 = vmatprep.subr.bf16.mxu0 0
  %2085 = vmatpush1.bf16.msra.mxu0 0
  %2086 = vmatprep.subr.bf16.mxu0 0
  %2087 = vmatpush1.bf16.msra.mxu0 0
  %2088 = vmatprep.mubr.bf16.mxu0 0
  %2089 = vmatmul.mubr.bf16.gmra.mrb[0].mxu0 %v2054
  %v2090 = vpop.f32.mrb[0].mxu0
  %v2091 = vadd.f32 0.0, %v2090
  %v2092 = vpop.f32.mrb[0].mxu0
  %v2093 = vpop.f32.mrb[0].mxu0
  %v2094 = vpop.f32.mrb[0].mxu0
  %2095 = vdwg.mxu0
  %v2096 = vadd.f32 %v2048, %v2091
  %v2097 = vxor.u32 %v2096, 2147483648
  %v2098 = vmul.f32 %v2097, 1.442695
  %v2099 = vpow.pop %v2098
  %v2100 = vadd.f32 %v2099, 1.0
  %v2101 = vrcp.pop %v2100
  %v2102 = vmul.f32 1.0, %v2101
  %v2103 = vtanh.pop %v2096
  %v2104 = vmul.f32 %v2102, %v1954
  %2106 = vrot.lane.b32.xlu0 %v2103, 64
  %v2107 = vpop.permute.xlu0 %2106
  %v2109 = vmul.f32 %v2102, %v2107
  %2111 = vrot.lane.b32.xlu0 %v2109, 32
  %v2112 = vpop.permute.xlu0 %2111
  %v2114 = vadd.f32 %v2104, %v2112
  %v2115 = vtanh.pop %v2114
  %2117 = vrot.lane.b32.xlu0 %v2115, 64
  %v2118 = vpop.permute.xlu0 %2117
  %v2120 = vmul.f32 %v2102, %v2118
  %s2121 = scalar_lea.vmem [#allocation3], 2
  %v2122 = vld [vmem:[%s2121] sm:$0x3]
  %v2123 = vpack.c.bf16 %v2034, %v2034
  %2125 = vrot.lane.b32.xlu0 %v2123, 32
  %v2126 = vpop.permute.xlu0 %2125
  %v2128 = vsel %vm447, %v2126, 0
  %2130 = vmatprep.subr.bf16.mxu0 0
  %2131 = vmatpush1.bf16.msra.mxu0 %v526
  %2132 = vmatprep.subr.bf16.mxu0 0
  %2133 = vmatpush1.bf16.msra.mxu0 %v527
  %2134 = vmatprep.subr.bf16.mxu0 0
  %2135 = vmatpush1.bf16.msra.mxu0 0
  %2136 = vmatprep.subr.bf16.mxu0 0
  %2137 = vmatpush1.bf16.msra.mxu0 0
  %2138 = vmatprep.subr.bf16.mxu0 0
  %2139 = vmatpush1.bf16.msra.mxu0 0
  %2140 = vmatprep.subr.bf16.mxu0 0
  %2141 = vmatpush1.bf16.msra.mxu0 0
  %2142 = vmatprep.subr.bf16.mxu0 0
  %2143 = vmatpush1.bf16.msra.mxu0 0
  %2144 = vmatprep.subr.bf16.mxu0 0
  %2145 = vmatpush1.bf16.msra.mxu0 0
  %2146 = vmatprep.subr.bf16.mxu0 0
  %2147 = vmatpush1.bf16.msra.mxu0 0
  %2148 = vmatprep.subr.bf16.mxu0 0
  %2149 = vmatpush1.bf16.msra.mxu0 0
  %2150 = vmatprep.subr.bf16.mxu0 0
  %2151 = vmatpush1.bf16.msra.mxu0 0
  %2152 = vmatprep.subr.bf16.mxu0 0
  %2153 = vmatpush1.bf16.msra.mxu0 0
  %2154 = vmatprep.subr.bf16.mxu0 0
  %2155 = vmatpush1.bf16.msra.mxu0 0
  %2156 = vmatprep.subr.bf16.mxu0 0
  %2157 = vmatpush1.bf16.msra.mxu0 0
  %2158 = vmatprep.subr.bf16.mxu0 0
  %2159 = vmatpush1.bf16.msra.mxu0 0
  %2160 = vmatprep.subr.bf16.mxu0 0
  %2161 = vmatpush1.bf16.msra.mxu0 0
  %2162 = vmatprep.mubr.bf16.mxu0 0
  %2163 = vmatmul.mubr.bf16.gmra.mrb[0].mxu0 %v2128
  %v2164 = vpop.f32.mrb[0].mxu0
  %v2165 = vadd.f32 0.0, %v2164
  %v2166 = vpop.f32.mrb[0].mxu0
  %v2167 = vpop.f32.mrb[0].mxu0
  %v2168 = vpop.f32.mrb[0].mxu0
  %2169 = vdwg.mxu0
  %v2170 = vadd.f32 %v2122, %v2165
  %v2171 = vxor.u32 %v2170, 2147483648
  %v2172 = vmul.f32 %v2171, 1.442695
  %v2173 = vpow.pop %v2172
  %v2174 = vadd.f32 %v2173, 1.0
  %v2175 = vrcp.pop %v2174
  %v2176 = vmul.f32 1.0, %v2175
  %v2177 = vtanh.pop %v2170
  %v2178 = vmul.f32 %v2176, %v2028
  %2180 = vrot.lane.b32.xlu0 %v2177, 64
  %v2181 = vpop.permute.xlu0 %2180
  %v2183 = vmul.f32 %v2176, %v2181
  %2185 = vrot.lane.b32.xlu0 %v2183, 32
  %v2186 = vpop.permute.xlu0 %2185
  %v2188 = vadd.f32 %v2178, %v2186
  %v2189 = vtanh.pop %v2188
  %2191 = vrot.lane.b32.xlu0 %v2189, 64
  %v2192 = vpop.permute.xlu0 %2191
  %v2194 = vmul.f32 %v2176, %v2192
  %2196 = vrot.lane.b32.xlu0 %v2120, 32
  %v2197 = vpop.permute.xlu0 %2196
  %s2199 = scalar_lea.vmem [#allocation4], 20
  %2200 = vst.msk [vmem:[%s2199] sm:$0x3] %vm599, %v2197
  %2202 = vrot.lane.b32.xlu0 %v2194, 32
  %v2203 = vpop.permute.xlu0 %2202
  %s2205 = scalar_lea.vmem [#allocation5], 2
  %2206 = vst.msk [vmem:[%s2205] sm:$0x3] %vm599, %v2203
  %s2207 = scalar_lea.vmem [#allocation2], 22
  %v2208 = vld [vmem:[%s2207] sm:$0x3]
  %v2209 = vpack.c.bf16 %v2120, %v2120
  %2211 = vrot.lane.b32.xlu0 %v2209, 32
  %v2212 = vpop.permute.xlu0 %2211
  %v2214 = vsel %vm447, %v2212, 0
  %2216 = vmatprep.subr.bf16.mxu0 0
  %2217 = vmatpush1.bf16.msra.mxu0 %v443
  %2218 = vmatprep.subr.bf16.mxu0 0
  %2219 = vmatpush1.bf16.msra.mxu0 %v444
  %2220 = vmatprep.subr.bf16.mxu0 0
  %2221 = vmatpush1.bf16.msra.mxu0 0
  %2222 = vmatprep.subr.bf16.mxu0 0
  %2223 = vmatpush1.bf16.msra.mxu0 0
  %2224 = vmatprep.subr.bf16.mxu0 0
  %2225 = vmatpush1.bf16.msra.mxu0 0
  %2226 = vmatprep.subr.bf16.mxu0 0
  %2227 = vmatpush1.bf16.msra.mxu0 0
  %2228 = vmatprep.subr.bf16.mxu0 0
  %2229 = vmatpush1.bf16.msra.mxu0 0
  %2230 = vmatprep.subr.bf16.mxu0 0
  %2231 = vmatpush1.bf16.msra.mxu0 0
  %2232 = vmatprep.subr.bf16.mxu0 0
  %2233 = vmatpush1.bf16.msra.mxu0 0
  %2234 = vmatprep.subr.bf16.mxu0 0
  %2235 = vmatpush1.bf16.msra.mxu0 0
  %2236 = vmatprep.subr.bf16.mxu0 0
  %2237 = vmatpush1.bf16.msra.mxu0 0
  %2238 = vmatprep.subr.bf16.mxu0 0
  %2239 = vmatpush1.bf16.msra.mxu0 0
  %2240 = vmatprep.subr.bf16.mxu0 0
  %2241 = vmatpush1.bf16.msra.mxu0 0
  %2242 = vmatprep.subr.bf16.mxu0 0
  %2243 = vmatpush1.bf16.msra.mxu0 0
  %2244 = vmatprep.subr.bf16.mxu0 0
  %2245 = vmatpush1.bf16.msra.mxu0 0
  %2246 = vmatprep.subr.bf16.mxu0 0
  %2247 = vmatpush1.bf16.msra.mxu0 0
  %2248 = vmatprep.mubr.bf16.mxu0 0
  %2249 = vmatmul.mubr.bf16.gmra.mrb[0].mxu0 %v2214
  %v2250 = vpop.f32.mrb[0].mxu0
  %v2251 = vadd.f32 0.0, %v2250
  %v2252 = vpop.f32.mrb[0].mxu0
  %v2253 = vpop.f32.mrb[0].mxu0
  %v2254 = vpop.f32.mrb[0].mxu0
  %2255 = vdwg.mxu0
  %v2256 = vadd.f32 %v2208, %v2251
  %v2257 = vxor.u32 %v2256, 2147483648
  %v2258 = vmul.f32 %v2257, 1.442695
  %v2259 = vpow.pop %v2258
  %v2260 = vadd.f32 %v2259, 1.0
  %v2261 = vrcp.pop %v2260
  %v2262 = vmul.f32 1.0, %v2261
  %v2263 = vtanh.pop %v2256
  %v2264 = vmul.f32 %v2262, %v2114
  %2266 = vrot.lane.b32.xlu0 %v2263, 64
  %v2267 = vpop.permute.xlu0 %2266
  %v2269 = vmul.f32 %v2262, %v2267
  %2271 = vrot.lane.b32.xlu0 %v2269, 32
  %v2272 = vpop.permute.xlu0 %2271
  %v2274 = vadd.f32 %v2264, %v2272
  %v2275 = vtanh.pop %v2274
  %2277 = vrot.lane.b32.xlu0 %v2275, 64
  %v2278 = vpop.permute.xlu0 %2277
  %v2280 = vmul.f32 %v2262, %v2278
  %v2281 = vld [vmem:[#allocation3] sm:$0x3]
  %v2282 = vpack.c.bf16 %v2194, %v2194
  %2284 = vrot.lane.b32.xlu0 %v2282, 32
  %v2285 = vpop.permute.xlu0 %2284
  %v2287 = vsel %vm447, %v2285, 0
  %2289 = vmatprep.subr.bf16.mxu0 0
  %2290 = vmatpush1.bf16.msra.mxu0 %v526
  %2291 = vmatprep.subr.bf16.mxu0 0
  %2292 = vmatpush1.bf16.msra.mxu0 %v527
  %2293 = vmatprep.subr.bf16.mxu0 0
  %2294 = vmatpush1.bf16.msra.mxu0 0
  %2295 = vmatprep.subr.bf16.mxu0 0
  %2296 = vmatpush1.bf16.msra.mxu0 0
  %2297 = vmatprep.subr.bf16.mxu0 0
  %2298 = vmatpush1.bf16.msra.mxu0 0
  %2299 = vmatprep.subr.bf16.mxu0 0
  %2300 = vmatpush1.bf16.msra.mxu0 0
  %2301 = vmatprep.subr.bf16.mxu0 0
  %2302 = vmatpush1.bf16.msra.mxu0 0
  %2303 = vmatprep.subr.bf16.mxu0 0
  %2304 = vmatpush1.bf16.msra.mxu0 0
  %2305 = vmatprep.subr.bf16.mxu0 0
  %2306 = vmatpush1.bf16.msra.mxu0 0
  %2307 = vmatprep.subr.bf16.mxu0 0
  %2308 = vmatpush1.bf16.msra.mxu0 0
  %2309 = vmatprep.subr.bf16.mxu0 0
  %2310 = vmatpush1.bf16.msra.mxu0 0
  %2311 = vmatprep.subr.bf16.mxu0 0
  %2312 = vmatpush1.bf16.msra.mxu0 0
  %2313 = vmatprep.subr.bf16.mxu0 0
  %2314 = vmatpush1.bf16.msra.mxu0 0
  %2315 = vmatprep.subr.bf16.mxu0 0
  %2316 = vmatpush1.bf16.msra.mxu0 0
  %2317 = vmatprep.subr.bf16.mxu0 0
  %2318 = vmatpush1.bf16.msra.mxu0 0
  %2319 = vmatprep.subr.bf16.mxu0 0
  %2320 = vmatpush1.bf16.msra.mxu0 0
  %2321 = vmatprep.mubr.bf16.mxu0 0
  %2322 = vmatmul.mubr.bf16.gmra.mrb[0].mxu0 %v2287
  %v2323 = vpop.f32.mrb[0].mxu0
  %v2324 = vadd.f32 0.0, %v2323
  %v2325 = vpop.f32.mrb[0].mxu0
  %v2326 = vpop.f32.mrb[0].mxu0
  %v2327 = vpop.f32.mrb[0].mxu0
  %2328 = vdwg.mxu0
  %v2329 = vadd.f32 %v2281, %v2324
  %v2330 = vxor.u32 %v2329, 2147483648
  %v2331 = vmul.f32 %v2330, 1.442695
  %v2332 = vpow.pop %v2331
  %v2333 = vadd.f32 %v2332, 1.0
  %v2334 = vrcp.pop %v2333
  %v2335 = vmul.f32 1.0, %v2334
  %v2336 = vtanh.pop %v2329
  %v2337 = vmul.f32 %v2335, %v2188
  %2339 = vrot.lane.b32.xlu0 %v2336, 64
  %v2340 = vpop.permute.xlu0 %2339
  %v2342 = vmul.f32 %v2335, %v2340
  %2344 = vrot.lane.b32.xlu0 %v2342, 32
  %v2345 = vpop.permute.xlu0 %2344
  %v2347 = vadd.f32 %v2337, %v2345
  %v2348 = vtanh.pop %v2347
  %2350 = vrot.lane.b32.xlu0 %v2348, 64
  %v2351 = vpop.permute.xlu0 %2350
  %v2353 = vmul.f32 %v2335, %v2351
  %2355 = vrot.lane.b32.xlu0 %v2280, 32
  %v2356 = vpop.permute.xlu0 %2355
  %s2358 = scalar_lea.vmem [#allocation4], 22
  %2359 = vst.msk [vmem:[%s2358] sm:$0x3] %vm599, %v2356
  %2361 = vrot.lane.b32.xlu0 %v2353, 32
  %v2362 = vpop.permute.xlu0 %2361
  %2364 = vst.msk [vmem:[#allocation5] sm:$0x3] %vm599, %v2362
  %v2365 = vld [vmem:[#allocation4] sm:$0x3]
  %v2366 = vld [vmem:[#allocation4 + $0x2] sm:$0x3]
  %v2367 = vld [vmem:[#allocation4 + $0x4] sm:$0x3]
  %v2368 = vld [vmem:[#allocation4 + $0x6] sm:$0x3]
  %v2369 = vld [vmem:[#allocation4 + $0x8] sm:$0x3]
  %v2370 = vld [vmem:[#allocation4 + $0xa] sm:$0x3]
  %v2371 = vld [vmem:[#allocation4 + $0xc] sm:$0x3]
  %v2372 = vld [vmem:[#allocation4 + $0xe] sm:$0x3]
  %v2373 = vld [vmem:[#allocation4 + $0x10] sm:$0x3]
  %v2374 = vld [vmem:[#allocation4 + $0x12] sm:$0x3]
  %v2375 = vld [vmem:[#allocation4 + $0x14] sm:$0x3]
  %v2376 = vld [vmem:[#allocation4 + $0x16] sm:$0x3]
  %v2377 = vld [vmem:[#allocation5] sm:$0x3]
  %v2378 = vld [vmem:[#allocation5 + $0x2] sm:$0x3]
  %v2379 = vld [vmem:[#allocation5 + $0x4] sm:$0x3]
  %v2380 = vld [vmem:[#allocation5 + $0x6] sm:$0x3]
  %v2381 = vld [vmem:[#allocation5 + $0x8] sm:$0x3]
  %v2382 = vld [vmem:[#allocation5 + $0xa] sm:$0x3]
  %v2383 = vld [vmem:[#allocation5 + $0xc] sm:$0x3]
  %v2384 = vld [vmem:[#allocation5 + $0xe] sm:$0x3]
  %v2385 = vld [vmem:[#allocation5 + $0x10] sm:$0x3]
  %v2386 = vld [vmem:[#allocation5 + $0x12] sm:$0x3]
  %v2387 = vld [vmem:[#allocation5 + $0x14] sm:$0x3]
  %v2388 = vld [vmem:[#allocation5 + $0x16] sm:$0x3]
  %v2389 = vld [vmem:[%s9] sm:$0x1]
  %v2402 = vcombine.low %v2365, %v2366
  %v2403 = vcombine.low %v2367, %v2368
  %v2405 = vunpack.c.l.s4 1983009808
  %v2406 = vunpack.c.0.s8 %v2405
  %v2407 = vlaneseq
  %v2408 = vshrl.u32 %v2407, 7
  %v2409 = vsub.s32 %v2406, %v2408
  %v2410 = vrot.slane %v2402, %v2409
  %v2412 = vunpack.c.l.s4 1983009808
  %v2413 = vunpack.c.0.s8 %v2412
  %v2414 = vlaneseq
  %v2415 = vshrl.u32 %v2414, 7
  %v2416 = vsub.s32 %v2413, %v2415
  %v2417 = vrot.slane %v2403, %v2416
  %v2418 = vcombine.low %v2410, %v2417
  %v2419 = vcombine.low %v2369, %v2370
  %v2420 = vcombine.low %v2371, %v2372
  %v2422 = vunpack.c.l.s4 1983009808
  %v2423 = vunpack.c.0.s8 %v2422
  %v2424 = vlaneseq
  %v2425 = vshrl.u32 %v2424, 7
  %v2426 = vsub.s32 %v2423, %v2425
  %v2427 = vrot.slane %v2419, %v2426
  %v2429 = vunpack.c.l.s4 1983009808
  %v2430 = vunpack.c.0.s8 %v2429
  %v2431 = vlaneseq
  %v2432 = vshrl.u32 %v2431, 7
  %v2433 = vsub.s32 %v2430, %v2432
  %v2434 = vrot.slane %v2420, %v2433
  %v2435 = vcombine.low %v2427, %v2434
  %v2436 = vcombine.low %v2373, %v2374
  %v2437 = vcombine.low %v2375, %v2376
  %v2439 = vunpack.c.l.s4 1983009808
  %v2440 = vunpack.c.0.s8 %v2439
  %v2441 = vlaneseq
  %v2442 = vshrl.u32 %v2441, 7
  %v2443 = vsub.s32 %v2440, %v2442
  %v2444 = vrot.slane %v2436, %v2443
  %v2446 = vunpack.c.l.s4 1983009808
  %v2447 = vunpack.c.0.s8 %v2446
  %v2448 = vlaneseq
  %v2449 = vshrl.u32 %v2448, 7
  %v2450 = vsub.s32 %v2447, %v2449
  %v2451 = vrot.slane %v2437, %v2450
  %v2452 = vcombine.low %v2444, %v2451
  %v2456 = vpack.c.bf16 %v2435, %v2418
  %v2457 = vpack.c.bf16 %v2452, %v2452
  %v2458 = vld [vmem:[%s7] sm:$0xf]
  %v2459 = vld [vmem:[%s7 + $0x4] sm:$0xf]
  %v2460 = vld [vmem:[%s7 + $0x8] sm:$0xf]
  %v2461 = vld [vmem:[%s7 + $0xc] sm:$0xf]
  %v2466 = vunpack.c.l.b16 %v2458
  %v2467 = vunpack.c.l.b16 %v2459
  %v2468 = vunpack.c.l.b16 %v2460
  %v2469 = vunpack.c.l.b16 %v2461
  %v2470 = vpack.c.b16 %v2467, %v2466
  %v2471 = vpack.c.b16 %v2469, %v2468
  %v2475 = vsel %vm447, %v2456, 0
  %v2478 = vsel %vm447, %v2457, 0
  %2480 = vmatprep.subr.bf16.mxu0 0
  %2481 = vmatpush1.bf16.msra.mxu0 %v2470
  %2482 = vmatprep.subr.bf16.mxu0 0
  %2483 = vmatpush1.bf16.msra.mxu0 %v2471
  %2484 = vmatprep.subr.bf16.mxu0 0
  %2485 = vmatpush1.bf16.msra.mxu0 0
  %2486 = vmatprep.subr.bf16.mxu0 0
  %2487 = vmatpush1.bf16.msra.mxu0 0
  %2488 = vmatprep.subr.bf16.mxu0 0
  %2489 = vmatpush1.bf16.msra.mxu0 0
  %2490 = vmatprep.subr.bf16.mxu0 0
  %2491 = vmatpush1.bf16.msra.mxu0 0
  %2492 = vmatprep.subr.bf16.mxu0 0
  %2493 = vmatpush1.bf16.msra.mxu0 0
  %2494 = vmatprep.subr.bf16.mxu0 0
  %2495 = vmatpush1.bf16.msra.mxu0 0
  %2496 = vmatprep.subr.bf16.mxu0 0
  %2497 = vmatpush1.bf16.msra.mxu0 0
  %2498 = vmatprep.subr.bf16.mxu0 0
  %2499 = vmatpush1.bf16.msra.mxu0 0
  %2500 = vmatprep.subr.bf16.mxu0 0
  %2501 = vmatpush1.bf16.msra.mxu0 0
  %2502 = vmatprep.subr.bf16.mxu0 0
  %2503 = vmatpush1.bf16.msra.mxu0 0
  %2504 = vmatprep.subr.bf16.mxu0 0
  %2505 = vmatpush1.bf16.msra.mxu0 0
  %2506 = vmatprep.subr.bf16.mxu0 0
  %2507 = vmatpush1.bf16.msra.mxu0 0
  %2508 = vmatprep.subr.bf16.mxu0 0
  %2509 = vmatpush1.bf16.msra.mxu0 0
  %2510 = vmatprep.subr.bf16.mxu0 0
  %2511 = vmatpush1.bf16.msra.mxu0 0
  %2512 = vmatprep.mubr.bf16.mxu0 0
  %2513 = vmatmul.mubr.bf16.gmra.mrb[0].mxu0 %v2475
  %v2514 = vpop.f32.mrb[0].mxu0
  %v2515 = vadd.f32 0.0, %v2514
  %v2516 = vpop.f32.mrb[0].mxu0
  %v2517 = vpop.f32.mrb[0].mxu0
  %v2518 = vadd.f32 0.0, %v2517
  %v2519 = vpop.f32.mrb[0].mxu0
  %2520 = vmatprep.mubr.bf16.mxu0 0
  %2521 = vmatmul.mubr.bf16.gmra.mrb[0].mxu0 %v2478
  %v2522 = vpop.f32.mrb[0].mxu0
  %v2523 = vadd.f32 0.0, %v2522
  %v2524 = vpop.f32.mrb[0].mxu0
  %v2525 = vpop.f32.mrb[0].mxu0
  %v2526 = vpop.f32.mrb[0].mxu0
  %2527 = vdwg.mxu0
  %v2529 = vlaneseq
  %v2530 = vshrl.u32 %v2529, 7
  %v2531 = vsub.s32 0, %v2530
  %v2532 = vrot.slane %v2389, %v2531
  %v2534 = vadd.f32 %v2532, %v2515
  %v2535 = vadd.f32 %v2532, %v2518
  %v2536 = vadd.f32 %v2532, %v2523
  %v2549 = vcombine.low %v2377, %v2378
  %v2550 = vcombine.low %v2379, %v2380
  %v2552 = vunpack.c.l.s4 1983009808
  %v2553 = vunpack.c.0.s8 %v2552
  %v2554 = vlaneseq
  %v2555 = vshrl.u32 %v2554, 7
  %v2556 = vsub.s32 %v2553, %v2555
  %v2557 = vrot.slane %v2549, %v2556
  %v2559 = vunpack.c.l.s4 1983009808
  %v2560 = vunpack.c.0.s8 %v2559
  %v2561 = vlaneseq
  %v2562 = vshrl.u32 %v2561, 7
  %v2563 = vsub.s32 %v2560, %v2562
  %v2564 = vrot.slane %v2550, %v2563
  %v2565 = vcombine.low %v2557, %v2564
  %v2566 = vcombine.low %v2381, %v2382
  %v2567 = vcombine.low %v2383, %v2384
  %v2569 = vunpack.c.l.s4 1983009808
  %v2570 = vunpack.c.0.s8 %v2569
  %v2571 = vlaneseq
  %v2572 = vshrl.u32 %v2571, 7
  %v2573 = vsub.s32 %v2570, %v2572
  %v2574 = vrot.slane %v2566, %v2573
  %v2576 = vunpack.c.l.s4 1983009808
  %v2577 = vunpack.c.0.s8 %v2576
  %v2578 = vlaneseq
  %v2579 = vshrl.u32 %v2578, 7
  %v2580 = vsub.s32 %v2577, %v2579
  %v2581 = vrot.slane %v2567, %v2580
  %v2582 = vcombine.low %v2574, %v2581
  %v2583 = vcombine.low %v2385, %v2386
  %v2584 = vcombine.low %v2387, %v2388
  %v2586 = vunpack.c.l.s4 1983009808
  %v2587 = vunpack.c.0.s8 %v2586
  %v2588 = vlaneseq
  %v2589 = vshrl.u32 %v2588, 7
  %v2590 = vsub.s32 %v2587, %v2589
  %v2591 = vrot.slane %v2583, %v2590
  %v2593 = vunpack.c.l.s4 1983009808
  %v2594 = vunpack.c.0.s8 %v2593
  %v2595 = vlaneseq
  %v2596 = vshrl.u32 %v2595, 7
  %v2597 = vsub.s32 %v2594, %v2596
  %v2598 = vrot.slane %v2584, %v2597
  %v2599 = vcombine.low %v2591, %v2598
  %v2603 = vpack.c.bf16 %v2582, %v2565
  %v2604 = vpack.c.bf16 %v2599, %v2599
  %v2605 = vld [vmem:[%s7 + $0x10] sm:$0xf]
  %v2606 = vld [vmem:[%s7 + $0x14] sm:$0xf]
  %v2607 = vld [vmem:[%s7 + $0x18] sm:$0xf]
  %v2608 = vld [vmem:[%s7 + $0x1c] sm:$0xf]
  %v2613 = vunpack.c.l.b16 %v2605
  %v2614 = vunpack.c.l.b16 %v2606
  %v2615 = vunpack.c.l.b16 %v2607
  %v2616 = vunpack.c.l.b16 %v2608
  %v2617 = vpack.c.b16 %v2614, %v2613
  %v2618 = vpack.c.b16 %v2616, %v2615
  %v2622 = vsel %vm447, %v2603, 0
  %v2625 = vsel %vm447, %v2604, 0
  %2627 = vmatprep.subr.bf16.mxu0 0
  %2628 = vmatpush1.bf16.msra.mxu0 %v2617
  %2629 = vmatprep.subr.bf16.mxu0 0
  %2630 = vmatpush1.bf16.msra.mxu0 %v2618
  %2631 = vmatprep.subr.bf16.mxu0 0
  %2632 = vmatpush1.bf16.msra.mxu0 0
  %2633 = vmatprep.subr.bf16.mxu0 0
  %2634 = vmatpush1.bf16.msra.mxu0 0
  %2635 = vmatprep.subr.bf16.mxu0 0
  %2636 = vmatpush1.bf16.msra.mxu0 0
  %2637 = vmatprep.subr.bf16.mxu0 0
  %2638 = vmatpush1.bf16.msra.mxu0 0
  %2639 = vmatprep.subr.bf16.mxu0 0
  %2640 = vmatpush1.bf16.msra.mxu0 0
  %2641 = vmatprep.subr.bf16.mxu0 0
  %2642 = vmatpush1.bf16.msra.mxu0 0
  %2643 = vmatprep.subr.bf16.mxu0 0
  %2644 = vmatpush1.bf16.msra.mxu0 0
  %2645 = vmatprep.subr.bf16.mxu0 0
  %2646 = vmatpush1.bf16.msra.mxu0 0
  %2647 = vmatprep.subr.bf16.mxu0 0
  %2648 = vmatpush1.bf16.msra.mxu0 0
  %2649 = vmatprep.subr.bf16.mxu0 0
  %2650 = vmatpush1.bf16.msra.mxu0 0
  %2651 = vmatprep.subr.bf16.mxu0 0
  %2652 = vmatpush1.bf16.msra.mxu0 0
  %2653 = vmatprep.subr.bf16.mxu0 0
  %2654 = vmatpush1.bf16.msra.mxu0 0
  %2655 = vmatprep.subr.bf16.mxu0 0
  %2656 = vmatpush1.bf16.msra.mxu0 0
  %2657 = vmatprep.subr.bf16.mxu0 0
  %2658 = vmatpush1.bf16.msra.mxu0 0
  %2659 = vmatprep.mubr.bf16.mxu0 0
  %2660 = vmatmul.mubr.bf16.gmra.mrb[0].mxu0 %v2622
  %v2661 = vpop.f32.mrb[0].mxu0
  %v2662 = vadd.f32 0.0, %v2661
  %v2663 = vpop.f32.mrb[0].mxu0
  %v2664 = vpop.f32.mrb[0].mxu0
  %v2665 = vadd.f32 0.0, %v2664
  %v2666 = vpop.f32.mrb[0].mxu0
  %2667 = vmatprep.mubr.bf16.mxu0 0
  %2668 = vmatmul.mubr.bf16.gmra.mrb[0].mxu0 %v2625
  %v2669 = vpop.f32.mrb[0].mxu0
  %v2670 = vadd.f32 0.0, %v2669
  %v2671 = vpop.f32.mrb[0].mxu0
  %v2672 = vpop.f32.mrb[0].mxu0
  %v2673 = vpop.f32.mrb[0].mxu0
  %2674 = vdwg.mxu0
  %v2675 = vadd.f32 %v2534, %v2662
  %v2676 = vadd.f32 %v2535, %v2665
  %v2677 = vadd.f32 %v2536, %v2670
  %v2681 = vcombine.high %v2675, %v2675
  %v2683 = vunpack.c.l.s4 1983009808
  %v2684 = vunpack.c.0.s8 %v2683
  %v2685 = vlaneseq
  %v2686 = vshrl.u32 %v2685, 7
  %v2687 = vsub.s32 %v2684, %v2686
  %v2688 = vrot.slane %v2675, %v2687
  %v2690 = vunpack.c.l.s4 1983009808
  %v2691 = vunpack.c.0.s8 %v2690
  %v2692 = vlaneseq
  %v2693 = vshrl.u32 %v2692, 7
  %v2694 = vsub.s32 %v2691, %v2693
  %v2695 = vrot.slane %v2681, %v2694
  %v2696 = vcombine.high %v2688, %v2688
  %v2697 = vcombine.high %v2695, %v2695
  %v2698 = vcombine.high %v2676, %v2676
  %v2700 = vunpack.c.l.s4 1983009808
  %v2701 = vunpack.c.0.s8 %v2700
  %v2702 = vlaneseq
  %v2703 = vshrl.u32 %v2702, 7
  %v2704 = vsub.s32 %v2701, %v2703
  %v2705 = vrot.slane %v2676, %v2704
  %v2707 = vunpack.c.l.s4 1983009808
  %v2708 = vunpack.c.0.s8 %v2707
  %v2709 = vlaneseq
  %v2710 = vshrl.u32 %v2709, 7
  %v2711 = vsub.s32 %v2708, %v2710
  %v2712 = vrot.slane %v2698, %v2711
  %v2713 = vcombine.high %v2705, %v2705
  %v2714 = vcombine.high %v2712, %v2712
  %v2715 = vcombine.high %v2677, %v2677
  %v2717 = vunpack.c.l.s4 1983009808
  %v2718 = vunpack.c.0.s8 %v2717
  %v2719 = vlaneseq
  %v2720 = vshrl.u32 %v2719, 7
  %v2721 = vsub.s32 %v2718, %v2720
  %v2722 = vrot.slane %v2677, %v2721
  %v2724 = vunpack.c.l.s4 1983009808
  %v2725 = vunpack.c.0.s8 %v2724
  %v2726 = vlaneseq
  %v2727 = vshrl.u32 %v2726, 7
  %v2728 = vsub.s32 %v2725, %v2727
  %v2729 = vrot.slane %v2715, %v2728
  %v2730 = vcombine.high %v2722, %v2722
  %v2731 = vcombine.high %v2729, %v2729
  %2744 = vst [vmem:[#allocation2] sm:$0x3] %v2688
  %2745 = vst [vmem:[#allocation2 + $0x2] sm:$0x3] %v2696
  %2746 = vst [vmem:[#allocation2 + $0x4] sm:$0x3] %v2695
  %2747 = vst [vmem:[#allocation2 + $0x6] sm:$0x3] %v2697
  %2748 = vst [vmem:[#allocation2 + $0x8] sm:$0x3] %v2705
  %2749 = vst [vmem:[#allocation2 + $0xa] sm:$0x3] %v2713
  %2750 = vst [vmem:[#allocation2 + $0xc] sm:$0x3] %v2712
  %2751 = vst [vmem:[#allocation2 + $0xe] sm:$0x3] %v2714
  %2752 = vst [vmem:[#allocation2 + $0x10] sm:$0x3] %v2722
  %2753 = vst [vmem:[#allocation2 + $0x12] sm:$0x3] %v2730
  %2754 = vst [vmem:[#allocation2 + $0x14] sm:$0x3] %v2729
  %2755 = vst [vmem:[#allocation2 + $0x16] sm:$0x3] %v2731
  %v2756 = vld [vmem:[%s12] sm:$0x1]
  %v2757 = vld [vmem:[%s10] sm:$0xf]
  %v2758 = vld [vmem:[%s10 + $0x4] sm:$0xf]
  %v2759 = vld [vmem:[%s10 + $0x8] sm:$0xf]
  %v2760 = vld [vmem:[%s10 + $0xc] sm:$0xf]
  %v2765 = vunpack.c.l.b16 %v2757
  %v2766 = vunpack.c.l.b16 %v2758
  %v2767 = vunpack.c.l.b16 %v2759
  %v2768 = vunpack.c.l.b16 %v2760
  %v2769 = vpack.c.b16 %v2766, %v2765
  %v2770 = vpack.c.b16 %v2768, %v2767
  %2773 = vmatprep.subr.bf16.mxu0 0
  %2774 = vmatpush1.bf16.msra.mxu0 %v2769
  %2775 = vmatprep.subr.bf16.mxu0 0
  %2776 = vmatpush1.bf16.msra.mxu0 %v2770
  %2777 = vmatprep.subr.bf16.mxu0 0
  %2778 = vmatpush1.bf16.msra.mxu0 0
  %2779 = vmatprep.subr.bf16.mxu0 0
  %2780 = vmatpush1.bf16.msra.mxu0 0
  %2781 = vmatprep.subr.bf16.mxu0 0
  %2782 = vmatpush1.bf16.msra.mxu0 0
  %2783 = vmatprep.subr.bf16.mxu0 0
  %2784 = vmatpush1.bf16.msra.mxu0 0
  %2785 = vmatprep.subr.bf16.mxu0 0
  %2786 = vmatpush1.bf16.msra.mxu0 0
  %2787 = vmatprep.subr.bf16.mxu0 0
  %2788 = vmatpush1.bf16.msra.mxu0 0
  %2789 = vmatprep.subr.bf16.mxu0 0
  %2790 = vmatpush1.bf16.msra.mxu0 0
  %2791 = vmatprep.subr.bf16.mxu0 0
  %2792 = vmatpush1.bf16.msra.mxu0 0
  %2793 = vmatprep.subr.bf16.mxu0 0
  %2794 = vmatpush1.bf16.msra.mxu0 0
  %2795 = vmatprep.subr.bf16.mxu0 0
  %2796 = vmatpush1.bf16.msra.mxu0 0
  %2797 = vmatprep.subr.bf16.mxu0 0
  %2798 = vmatpush1.bf16.msra.mxu0 0
  %2799 = vmatprep.subr.bf16.mxu0 0
  %2800 = vmatpush1.bf16.msra.mxu0 0
  %2801 = vmatprep.subr.bf16.mxu0 0
  %2802 = vmatpush1.bf16.msra.mxu0 0
  %2803 = vmatprep.subr.bf16.mxu0 0
  %2804 = vmatpush1.bf16.msra.mxu0 0
  %2805 = vmatprep.mubr.bf16.mxu0 0
  %2806 = vmatmul.mubr.bf16.gmra.mrb[0].mxu0 %v2475
  %v2807 = vpop.f32.mrb[0].mxu0
  %v2808 = vadd.f32 0.0, %v2807
  %v2809 = vpop.f32.mrb[0].mxu0
  %v2810 = vpop.f32.mrb[0].mxu0
  %v2811 = vadd.f32 0.0, %v2810
  %v2812 = vpop.f32.mrb[0].mxu0
  %2813 = vmatprep.mubr.bf16.mxu0 0
  %2814 = vmatmul.mubr.bf16.gmra.mrb[0].mxu0 %v2478
  %v2815 = vpop.f32.mrb[0].mxu0
  %v2816 = vadd.f32 0.0, %v2815
  %v2817 = vpop.f32.mrb[0].mxu0
  %v2818 = vpop.f32.mrb[0].mxu0
  %v2819 = vpop.f32.mrb[0].mxu0
  %2820 = vdwg.mxu0
  %v2822 = vlaneseq
  %v2823 = vshrl.u32 %v2822, 7
  %v2824 = vsub.s32 0, %v2823
  %v2825 = vrot.slane %v2756, %v2824
  %v2827 = vadd.f32 %v2825, %v2808
  %v2828 = vadd.f32 %v2825, %v2811
  %v2829 = vadd.f32 %v2825, %v2816
  %v2830 = vld [vmem:[%s10 + $0x10] sm:$0xf]
  %v2831 = vld [vmem:[%s10 + $0x14] sm:$0xf]
  %v2832 = vld [vmem:[%s10 + $0x18] sm:$0xf]
  %v2833 = vld [vmem:[%s10 + $0x1c] sm:$0xf]
  %v2838 = vunpack.c.l.b16 %v2830
  %v2839 = vunpack.c.l.b16 %v2831
  %v2840 = vunpack.c.l.b16 %v2832
  %v2841 = vunpack.c.l.b16 %v2833
  %v2842 = vpack.c.b16 %v2839, %v2838
  %v2843 = vpack.c.b16 %v2841, %v2840
  %2846 = vmatprep.subr.bf16.mxu0 0
  %2847 = vmatpush1.bf16.msra.mxu0 %v2842
  %2848 = vmatprep.subr.bf16.mxu0 0
  %2849 = vmatpush1.bf16.msra.mxu0 %v2843
  %2850 = vmatprep.subr.bf16.mxu0 0
  %2851 = vmatpush1.bf16.msra.mxu0 0
  %2852 = vmatprep.subr.bf16.mxu0 0
  %2853 = vmatpush1.bf16.msra.mxu0 0
  %2854 = vmatprep.subr.bf16.mxu0 0
  %2855 = vmatpush1.bf16.msra.mxu0 0
  %2856 = vmatprep.subr.bf16.mxu0 0
  %2857 = vmatpush1.bf16.msra.mxu0 0
  %2858 = vmatprep.subr.bf16.mxu0 0
  %2859 = vmatpush1.bf16.msra.mxu0 0
  %2860 = vmatprep.subr.bf16.mxu0 0
  %2861 = vmatpush1.bf16.msra.mxu0 0
  %2862 = vmatprep.subr.bf16.mxu0 0
  %2863 = vmatpush1.bf16.msra.mxu0 0
  %2864 = vmatprep.subr.bf16.mxu0 0
  %2865 = vmatpush1.bf16.msra.mxu0 0
  %2866 = vmatprep.subr.bf16.mxu0 0
  %2867 = vmatpush1.bf16.msra.mxu0 0
  %2868 = vmatprep.subr.bf16.mxu0 0
  %2869 = vmatpush1.bf16.msra.mxu0 0
  %2870 = vmatprep.subr.bf16.mxu0 0
  %2871 = vmatpush1.bf16.msra.mxu0 0
  %2872 = vmatprep.subr.bf16.mxu0 0
  %2873 = vmatpush1.bf16.msra.mxu0 0
  %2874 = vmatprep.subr.bf16.mxu0 0
  %2875 = vmatpush1.bf16.msra.mxu0 0
  %2876 = vmatprep.subr.bf16.mxu0 0
  %2877 = vmatpush1.bf16.msra.mxu0 0
  %2878 = vmatprep.mubr.bf16.mxu0 0
  %2879 = vmatmul.mubr.bf16.gmra.mrb[0].mxu0 %v2622
  %v2880 = vpop.f32.mrb[0].mxu0
  %v2881 = vadd.f32 0.0, %v2880
  %v2882 = vpop.f32.mrb[0].mxu0
  %v2883 = vpop.f32.mrb[0].mxu0
  %v2884 = vadd.f32 0.0, %v2883
  %v2885 = vpop.f32.mrb[0].mxu0
  %2886 = vmatprep.mubr.bf16.mxu0 0
  %2887 = vmatmul.mubr.bf16.gmra.mrb[0].mxu0 %v2625
  %v2888 = vpop.f32.mrb[0].mxu0
  %v2889 = vadd.f32 0.0, %v2888
  %v2890 = vpop.f32.mrb[0].mxu0
  %v2891 = vpop.f32.mrb[0].mxu0
  %v2892 = vpop.f32.mrb[0].mxu0
  %2893 = vdwg.mxu0
  %v2894 = vadd.f32 %v2827, %v2881
  %v2895 = vadd.f32 %v2828, %v2884
  %v2896 = vadd.f32 %v2829, %v2889
  %v2900 = vcombine.high %v2894, %v2894
  %v2902 = vunpack.c.l.s4 1983009808
  %v2903 = vunpack.c.0.s8 %v2902
  %v2904 = vlaneseq
  %v2905 = vshrl.u32 %v2904, 7
  %v2906 = vsub.s32 %v2903, %v2905
  %v2907 = vrot.slane %v2894, %v2906
  %v2909 = vunpack.c.l.s4 1983009808
  %v2910 = vunpack.c.0.s8 %v2909
  %v2911 = vlaneseq
  %v2912 = vshrl.u32 %v2911, 7
  %v2913 = vsub.s32 %v2910, %v2912
  %v2914 = vrot.slane %v2900, %v2913
  %v2915 = vcombine.high %v2907, %v2907
  %v2916 = vcombine.high %v2914, %v2914
  %v2917 = vcombine.high %v2895, %v2895
  %v2919 = vunpack.c.l.s4 1983009808
  %v2920 = vunpack.c.0.s8 %v2919
  %v2921 = vlaneseq
  %v2922 = vshrl.u32 %v2921, 7
  %v2923 = vsub.s32 %v2920, %v2922
  %v2924 = vrot.slane %v2895, %v2923
  %v2926 = vunpack.c.l.s4 1983009808
  %v2927 = vunpack.c.0.s8 %v2926
  %v2928 = vlaneseq
  %v2929 = vshrl.u32 %v2928, 7
  %v2930 = vsub.s32 %v2927, %v2929
  %v2931 = vrot.slane %v2917, %v2930
  %v2932 = vcombine.high %v2924, %v2924
  %v2933 = vcombine.high %v2931, %v2931
  %v2934 = vcombine.high %v2896, %v2896
  %v2936 = vunpack.c.l.s4 1983009808
  %v2937 = vunpack.c.0.s8 %v2936
  %v2938 = vlaneseq
  %v2939 = vshrl.u32 %v2938, 7
  %v2940 = vsub.s32 %v2937, %v2939
  %v2941 = vrot.slane %v2896, %v2940
  %v2943 = vunpack.c.l.s4 1983009808
  %v2944 = vunpack.c.0.s8 %v2943
  %v2945 = vlaneseq
  %v2946 = vshrl.u32 %v2945, 7
  %v2947 = vsub.s32 %v2944, %v2946
  %v2948 = vrot.slane %v2934, %v2947
  %v2949 = vcombine.high %v2941, %v2941
  %v2950 = vcombine.high %v2948, %v2948
  %2963 = vst [vmem:[#allocation3] sm:$0x3] %v2907
  %2964 = vst [vmem:[#allocation3 + $0x2] sm:$0x3] %v2915
  %2965 = vst [vmem:[#allocation3 + $0x4] sm:$0x3] %v2914
  %2966 = vst [vmem:[#allocation3 + $0x6] sm:$0x3] %v2916
  %2967 = vst [vmem:[#allocation3 + $0x8] sm:$0x3] %v2924
  %2968 = vst [vmem:[#allocation3 + $0xa] sm:$0x3] %v2932
  %2969 = vst [vmem:[#allocation3 + $0xc] sm:$0x3] %v2931
  %2970 = vst [vmem:[#allocation3 + $0xe] sm:$0x3] %v2933
  %2971 = vst [vmem:[#allocation3 + $0x10] sm:$0x3] %v2941
  %2972 = vst [vmem:[#allocation3 + $0x12] sm:$0x3] %v2949
  %2973 = vst [vmem:[#allocation3 + $0x14] sm:$0x3] %v2948
  %2974 = vst [vmem:[#allocation3 + $0x16] sm:$0x3] %v2950
  %v2975 = vld [vmem:[%s8] sm:$0xf]
  %v2976 = vld [vmem:[%s8 + $0x4] sm:$0xf]
  %v2977 = vld [vmem:[%s8 + $0x8] sm:$0xf]
  %v2978 = vld [vmem:[%s8 + $0xc] sm:$0xf]
  %v2979 = vld [vmem:[%s11] sm:$0xf]
  %v2980 = vld [vmem:[%s11 + $0x4] sm:$0xf]
  %v2981 = vld [vmem:[%s11 + $0x8] sm:$0xf]
  %v2982 = vld [vmem:[%s11 + $0xc] sm:$0xf]
  %v2983 = vld [vmem:[#allocation2] sm:$0x3]
  %v2988 = vunpack.c.l.b16 %v2975
  %v2989 = vunpack.c.l.b16 %v2976
  %v2990 = vunpack.c.l.b16 %v2977
  %v2991 = vunpack.c.l.b16 %v2978
  %v2992 = vpack.c.b16 %v2989, %v2988
  %v2993 = vpack.c.b16 %v2991, %v2990
  %2996 = vmatprep.subr.bf16.mxu0 0
  %2997 = vmatpush1.bf16.msra.mxu0 %v2992
  %2998 = vmatprep.subr.bf16.mxu0 0
  %2999 = vmatpush1.bf16.msra.mxu0 %v2993
  %3000 = vmatprep.subr.bf16.mxu0 0
  %3001 = vmatpush1.bf16.msra.mxu0 0
  %3002 = vmatprep.subr.bf16.mxu0 0
  %3003 = vmatpush1.bf16.msra.mxu0 0
  %3004 = vmatprep.subr.bf16.mxu0 0
  %3005 = vmatpush1.bf16.msra.mxu0 0
  %3006 = vmatprep.subr.bf16.mxu0 0
  %3007 = vmatpush1.bf16.msra.mxu0 0
  %3008 = vmatprep.subr.bf16.mxu0 0
  %3009 = vmatpush1.bf16.msra.mxu0 0
  %3010 = vmatprep.subr.bf16.mxu0 0
  %3011 = vmatpush1.bf16.msra.mxu0 0
  %3012 = vmatprep.subr.bf16.mxu0 0
  %3013 = vmatpush1.bf16.msra.mxu0 0
  %3014 = vmatprep.subr.bf16.mxu0 0
  %3015 = vmatpush1.bf16.msra.mxu0 0
  %3016 = vmatprep.subr.bf16.mxu0 0
  %3017 = vmatpush1.bf16.msra.mxu0 0
  %3018 = vmatprep.subr.bf16.mxu0 0
  %3019 = vmatpush1.bf16.msra.mxu0 0
  %3020 = vmatprep.subr.bf16.mxu0 0
  %3021 = vmatpush1.bf16.msra.mxu0 0
  %3022 = vmatprep.subr.bf16.mxu0 0
  %3023 = vmatpush1.bf16.msra.mxu0 0
  %3024 = vmatprep.subr.bf16.mxu0 0
  %3025 = vmatpush1.bf16.msra.mxu0 0
  %3026 = vmatprep.subr.bf16.mxu0 0
  %3027 = vmatpush1.bf16.msra.mxu0 0
  %3028 = vmatprep.mubr.bf16.mxu0 0
  %3029 = vmatmul.mubr.bf16.gmra.mrb[0].mxu0 %v449
  %v3030 = vpop.f32.mrb[0].mxu0
  %v3031 = vadd.f32 0.0, %v3030
  %v3032 = vpop.f32.mrb[0].mxu0
  %v3033 = vpop.f32.mrb[0].mxu0
  %v3034 = vpop.f32.mrb[0].mxu0
  %3035 = vdwg.mxu0
  %v3036 = vadd.f32 %v2983, %v3031
  %v3037 = vxor.u32 %v3036, 2147483648
  %v3038 = vmul.f32 %v3037, 1.442695
  %v3039 = vpow.pop %v3038
  %v3040 = vadd.f32 %v3039, 1.0
  %v3041 = vrcp.pop %v3040
  %v3042 = vmul.f32 1.0, %v3041
  %v3043 = vtanh.pop %v3036
  %v3044 = vmul.f32 %v3042, 0.0
  %3046 = vrot.lane.b32.xlu0 %v3043, 64
  %v3047 = vpop.permute.xlu0 %3046
  %v3049 = vmul.f32 %v3042, %v3047
  %3051 = vrot.lane.b32.xlu0 %v3049, 32
  %v3052 = vpop.permute.xlu0 %3051
  %v3054 = vadd.f32 %v3044, %v3052
  %v3055 = vtanh.pop %v3054
  %3057 = vrot.lane.b32.xlu0 %v3055, 64
  %v3058 = vpop.permute.xlu0 %3057
  %v3060 = vmul.f32 %v3042, %v3058
  %v3061 = vld [vmem:[%s516] sm:$0x3]
  %v3066 = vunpack.c.l.b16 %v2979
  %v3067 = vunpack.c.l.b16 %v2980
  %v3068 = vunpack.c.l.b16 %v2981
  %v3069 = vunpack.c.l.b16 %v2982
  %v3070 = vpack.c.b16 %v3067, %v3066
  %v3071 = vpack.c.b16 %v3069, %v3068
  %3074 = vmatprep.subr.bf16.mxu0 0
  %3075 = vmatpush1.bf16.msra.mxu0 %v3070
  %3076 = vmatprep.subr.bf16.mxu0 0
  %3077 = vmatpush1.bf16.msra.mxu0 %v3071
  %3078 = vmatprep.subr.bf16.mxu0 0
  %3079 = vmatpush1.bf16.msra.mxu0 0
  %3080 = vmatprep.subr.bf16.mxu0 0
  %3081 = vmatpush1.bf16.msra.mxu0 0
  %3082 = vmatprep.subr.bf16.mxu0 0
  %3083 = vmatpush1.bf16.msra.mxu0 0
  %3084 = vmatprep.subr.bf16.mxu0 0
  %3085 = vmatpush1.bf16.msra.mxu0 0
  %3086 = vmatprep.subr.bf16.mxu0 0
  %3087 = vmatpush1.bf16.msra.mxu0 0
  %3088 = vmatprep.subr.bf16.mxu0 0
  %3089 = vmatpush1.bf16.msra.mxu0 0
  %3090 = vmatprep.subr.bf16.mxu0 0
  %3091 = vmatpush1.bf16.msra.mxu0 0
  %3092 = vmatprep.subr.bf16.mxu0 0
  %3093 = vmatpush1.bf16.msra.mxu0 0
  %3094 = vmatprep.subr.bf16.mxu0 0
  %3095 = vmatpush1.bf16.msra.mxu0 0
  %3096 = vmatprep.subr.bf16.mxu0 0
  %3097 = vmatpush1.bf16.msra.mxu0 0
  %3098 = vmatprep.subr.bf16.mxu0 0
  %3099 = vmatpush1.bf16.msra.mxu0 0
  %3100 = vmatprep.subr.bf16.mxu0 0
  %3101 = vmatpush1.bf16.msra.mxu0 0
  %3102 = vmatprep.subr.bf16.mxu0 0
  %3103 = vmatpush1.bf16.msra.mxu0 0
  %3104 = vmatprep.subr.bf16.mxu0 0
  %3105 = vmatpush1.bf16.msra.mxu0 0
  %3106 = vmatprep.mubr.bf16.mxu0 0
  %3107 = vmatmul.mubr.bf16.gmra.mrb[0].mxu0 %v449
  %v3108 = vpop.f32.mrb[0].mxu0
  %v3109 = vadd.f32 0.0, %v3108
  %v3110 = vpop.f32.mrb[0].mxu0
  %v3111 = vpop.f32.mrb[0].mxu0
  %v3112 = vpop.f32.mrb[0].mxu0
  %3113 = vdwg.mxu0
  %v3114 = vadd.f32 %v3061, %v3109
  %v3115 = vxor.u32 %v3114, 2147483648
  %v3116 = vmul.f32 %v3115, 1.442695
  %v3117 = vpow.pop %v3116
  %v3118 = vadd.f32 %v3117, 1.0
  %v3119 = vrcp.pop %v3118
  %v3120 = vmul.f32 1.0, %v3119
  %v3121 = vtanh.pop %v3114
  %v3122 = vmul.f32 %v3120, 0.0
  %3124 = vrot.lane.b32.xlu0 %v3121, 64
  %v3125 = vpop.permute.xlu0 %3124
  %v3127 = vmul.f32 %v3120, %v3125
  %3129 = vrot.lane.b32.xlu0 %v3127, 32
  %v3130 = vpop.permute.xlu0 %3129
  %v3132 = vadd.f32 %v3122, %v3130
  %v3133 = vtanh.pop %v3132
  %3135 = vrot.lane.b32.xlu0 %v3133, 64
  %v3136 = vpop.permute.xlu0 %3135
  %v3138 = vmul.f32 %v3120, %v3136
  %3140 = vrot.lane.b32.xlu0 %v3060, 32
  %v3141 = vpop.permute.xlu0 %3140
  %3143 = vst.msk [vmem:[#allocation4] sm:$0x3] %vm599, %v3141
  %3145 = vrot.lane.b32.xlu0 %v3138, 32
  %v3146 = vpop.permute.xlu0 %3145
  %3148 = vst.msk [vmem:[%s605] sm:$0x3] %vm599, %v3146
  %v3149 = vld [vmem:[%s607] sm:$0x3]
  %v3150 = vpack.c.bf16 %v3060, %v3060
  %3152 = vrot.lane.b32.xlu0 %v3150, 32
  %v3153 = vpop.permute.xlu0 %3152
  %v3155 = vsel %vm447, %v3153, 0
  %3157 = vmatprep.subr.bf16.mxu0 0
  %3158 = vmatpush1.bf16.msra.mxu0 %v2992
  %3159 = vmatprep.subr.bf16.mxu0 0
  %3160 = vmatpush1.bf16.msra.mxu0 %v2993
  %3161 = vmatprep.subr.bf16.mxu0 0
  %3162 = vmatpush1.bf16.msra.mxu0 0
  %3163 = vmatprep.subr.bf16.mxu0 0
  %3164 = vmatpush1.bf16.msra.mxu0 0
  %3165 = vmatprep.subr.bf16.mxu0 0
  %3166 = vmatpush1.bf16.msra.mxu0 0
  %3167 = vmatprep.subr.bf16.mxu0 0
  %3168 = vmatpush1.bf16.msra.mxu0 0
  %3169 = vmatprep.subr.bf16.mxu0 0
  %3170 = vmatpush1.bf16.msra.mxu0 0
  %3171 = vmatprep.subr.bf16.mxu0 0
  %3172 = vmatpush1.bf16.msra.mxu0 0
  %3173 = vmatprep.subr.bf16.mxu0 0
  %3174 = vmatpush1.bf16.msra.mxu0 0
  %3175 = vmatprep.subr.bf16.mxu0 0
  %3176 = vmatpush1.bf16.msra.mxu0 0
  %3177 = vmatprep.subr.bf16.mxu0 0
  %3178 = vmatpush1.bf16.msra.mxu0 0
  %3179 = vmatprep.subr.bf16.mxu0 0
  %3180 = vmatpush1.bf16.msra.mxu0 0
  %3181 = vmatprep.subr.bf16.mxu0 0
  %3182 = vmatpush1.bf16.msra.mxu0 0
  %3183 = vmatprep.subr.bf16.mxu0 0
  %3184 = vmatpush1.bf16.msra.mxu0 0
  %3185 = vmatprep.subr.bf16.mxu0 0
  %3186 = vmatpush1.bf16.msra.mxu0 0
  %3187 = vmatprep.subr.bf16.mxu0 0
  %3188 = vmatpush1.bf16.msra.mxu0 0
  %3189 = vmatprep.mubr.bf16.mxu0 0
  %3190 = vmatmul.mubr.bf16.gmra.mrb[0].mxu0 %v3155
  %v3191 = vpop.f32.mrb[0].mxu0
  %v3192 = vadd.f32 0.0, %v3191
  %v3193 = vpop.f32.mrb[0].mxu0
  %v3194 = vpop.f32.mrb[0].mxu0
  %v3195 = vpop.f32.mrb[0].mxu0
  %3196 = vdwg.mxu0
  %v3197 = vadd.f32 %v3149, %v3192
  %v3198 = vxor.u32 %v3197, 2147483648
  %v3199 = vmul.f32 %v3198, 1.442695
  %v3200 = vpow.pop %v3199
  %v3201 = vadd.f32 %v3200, 1.0
  %v3202 = vrcp.pop %v3201
  %v3203 = vmul.f32 1.0, %v3202
  %v3204 = vtanh.pop %v3197
  %v3205 = vmul.f32 %v3203, %v3054
  %3207 = vrot.lane.b32.xlu0 %v3204, 64
  %v3208 = vpop.permute.xlu0 %3207
  %v3210 = vmul.f32 %v3203, %v3208
  %3212 = vrot.lane.b32.xlu0 %v3210, 32
  %v3213 = vpop.permute.xlu0 %3212
  %v3215 = vadd.f32 %v3205, %v3213
  %v3216 = vtanh.pop %v3215
  %3218 = vrot.lane.b32.xlu0 %v3216, 64
  %v3219 = vpop.permute.xlu0 %3218
  %v3221 = vmul.f32 %v3203, %v3219
  %v3222 = vld [vmem:[%s681] sm:$0x3]
  %v3223 = vpack.c.bf16 %v3138, %v3138
  %3225 = vrot.lane.b32.xlu0 %v3223, 32
  %v3226 = vpop.permute.xlu0 %3225
  %v3228 = vsel %vm447, %v3226, 0
  %3230 = vmatprep.subr.bf16.mxu0 0
  %3231 = vmatpush1.bf16.msra.mxu0 %v3070
  %3232 = vmatprep.subr.bf16.mxu0 0
  %3233 = vmatpush1.bf16.msra.mxu0 %v3071
  %3234 = vmatprep.subr.bf16.mxu0 0
  %3235 = vmatpush1.bf16.msra.mxu0 0
  %3236 = vmatprep.subr.bf16.mxu0 0
  %3237 = vmatpush1.bf16.msra.mxu0 0
  %3238 = vmatprep.subr.bf16.mxu0 0
  %3239 = vmatpush1.bf16.msra.mxu0 0
  %3240 = vmatprep.subr.bf16.mxu0 0
  %3241 = vmatpush1.bf16.msra.mxu0 0
  %3242 = vmatprep.subr.bf16.mxu0 0
  %3243 = vmatpush1.bf16.msra.mxu0 0
  %3244 = vmatprep.subr.bf16.mxu0 0
  %3245 = vmatpush1.bf16.msra.mxu0 0
  %3246 = vmatprep.subr.bf16.mxu0 0
  %3247 = vmatpush1.bf16.msra.mxu0 0
  %3248 = vmatprep.subr.bf16.mxu0 0
  %3249 = vmatpush1.bf16.msra.mxu0 0
  %3250 = vmatprep.subr.bf16.mxu0 0
  %3251 = vmatpush1.bf16.msra.mxu0 0
  %3252 = vmatprep.subr.bf16.mxu0 0
  %3253 = vmatpush1.bf16.msra.mxu0 0
  %3254 = vmatprep.subr.bf16.mxu0 0
  %3255 = vmatpush1.bf16.msra.mxu0 0
  %3256 = vmatprep.subr.bf16.mxu0 0
  %3257 = vmatpush1.bf16.msra.mxu0 0
  %3258 = vmatprep.subr.bf16.mxu0 0
  %3259 = vmatpush1.bf16.msra.mxu0 0
  %3260 = vmatprep.subr.bf16.mxu0 0
  %3261 = vmatpush1.bf16.msra.mxu0 0
  %3262 = vmatprep.mubr.bf16.mxu0 0
  %3263 = vmatmul.mubr.bf16.gmra.mrb[0].mxu0 %v3228
  %v3264 = vpop.f32.mrb[0].mxu0
  %v3265 = vadd.f32 0.0, %v3264
  %v3266 = vpop.f32.mrb[0].mxu0
  %v3267 = vpop.f32.mrb[0].mxu0
  %v3268 = vpop.f32.mrb[0].mxu0
  %3269 = vdwg.mxu0
  %v3270 = vadd.f32 %v3222, %v3265
  %v3271 = vxor.u32 %v3270, 2147483648
  %v3272 = vmul.f32 %v3271, 1.442695
  %v3273 = vpow.pop %v3272
  %v3274 = vadd.f32 %v3273, 1.0
  %v3275 = vrcp.pop %v3274
  %v3276 = vmul.f32 1.0, %v3275
  %v3277 = vtanh.pop %v3270
  %v3278 = vmul.f32 %v3276, %v3132
  %3280 = vrot.lane.b32.xlu0 %v3277, 64
  %v3281 = vpop.permute.xlu0 %3280
  %v3283 = vmul.f32 %v3276, %v3281
  %3285 = vrot.lane.b32.xlu0 %v3283, 32
  %v3286 = vpop.permute.xlu0 %3285
  %v3288 = vadd.f32 %v3278, %v3286
  %v3289 = vtanh.pop %v3288
  %3291 = vrot.lane.b32.xlu0 %v3289, 64
  %v3292 = vpop.permute.xlu0 %3291
  %v3294 = vmul.f32 %v3276, %v3292
  %3296 = vrot.lane.b32.xlu0 %v3221, 32
  %v3297 = vpop.permute.xlu0 %3296
  %3299 = vst.msk [vmem:[%s759] sm:$0x3] %vm599, %v3297
  %3301 = vrot.lane.b32.xlu0 %v3294, 32
  %v3302 = vpop.permute.xlu0 %3301
  %3304 = vst.msk [vmem:[%s765] sm:$0x3] %vm599, %v3302
  %v3305 = vld [vmem:[%s767] sm:$0x3]
  %v3306 = vpack.c.bf16 %v3221, %v3221
  %3308 = vrot.lane.b32.xlu0 %v3306, 32
  %v3309 = vpop.permute.xlu0 %3308
  %v3311 = vsel %vm447, %v3309, 0
  %3313 = vmatprep.subr.bf16.mxu0 0
  %3314 = vmatpush1.bf16.msra.mxu0 %v2992
  %3315 = vmatprep.subr.bf16.mxu0 0
  %3316 = vmatpush1.bf16.msra.mxu0 %v2993
  %3317 = vmatprep.subr.bf16.mxu0 0
  %3318 = vmatpush1.bf16.msra.mxu0 0
  %3319 = vmatprep.subr.bf16.mxu0 0
  %3320 = vmatpush1.bf16.msra.mxu0 0
  %3321 = vmatprep.subr.bf16.mxu0 0
  %3322 = vmatpush1.bf16.msra.mxu0 0
  %3323 = vmatprep.subr.bf16.mxu0 0
  %3324 = vmatpush1.bf16.msra.mxu0 0
  %3325 = vmatprep.subr.bf16.mxu0 0
  %3326 = vmatpush1.bf16.msra.mxu0 0
  %3327 = vmatprep.subr.bf16.mxu0 0
  %3328 = vmatpush1.bf16.msra.mxu0 0
  %3329 = vmatprep.subr.bf16.mxu0 0
  %3330 = vmatpush1.bf16.msra.mxu0 0
  %3331 = vmatprep.subr.bf16.mxu0 0
  %3332 = vmatpush1.bf16.msra.mxu0 0
  %3333 = vmatprep.subr.bf16.mxu0 0
  %3334 = vmatpush1.bf16.msra.mxu0 0
  %3335 = vmatprep.subr.bf16.mxu0 0
  %3336 = vmatpush1.bf16.msra.mxu0 0
  %3337 = vmatprep.subr.bf16.mxu0 0
  %3338 = vmatpush1.bf16.msra.mxu0 0
  %3339 = vmatprep.subr.bf16.mxu0 0
  %3340 = vmatpush1.bf16.msra.mxu0 0
  %3341 = vmatprep.subr.bf16.mxu0 0
  %3342 = vmatpush1.bf16.msra.mxu0 0
  %3343 = vmatprep.subr.bf16.mxu0 0
  %3344 = vmatpush1.bf16.msra.mxu0 0
  %3345 = vmatprep.mubr.bf16.mxu0 0
  %3346 = vmatmul.mubr.bf16.gmra.mrb[0].mxu0 %v3311
  %v3347 = vpop.f32.mrb[0].mxu0
  %v3348 = vadd.f32 0.0, %v3347
  %v3349 = vpop.f32.mrb[0].mxu0
  %v3350 = vpop.f32.mrb[0].mxu0
  %v3351 = vpop.f32.mrb[0].mxu0
  %3352 = vdwg.mxu0
  %v3353 = vadd.f32 %v3305, %v3348
  %v3354 = vxor.u32 %v3353, 2147483648
  %v3355 = vmul.f32 %v3354, 1.442695
  %v3356 = vpow.pop %v3355
  %v3357 = vadd.f32 %v3356, 1.0
  %v3358 = vrcp.pop %v3357
  %v3359 = vmul.f32 1.0, %v3358
  %v3360 = vtanh.pop %v3353
  %v3361 = vmul.f32 %v3359, %v3215
  %3363 = vrot.lane.b32.xlu0 %v3360, 64
  %v3364 = vpop.permute.xlu0 %3363
  %v3366 = vmul.f32 %v3359, %v3364
  %3368 = vrot.lane.b32.xlu0 %v3366, 32
  %v3369 = vpop.permute.xlu0 %3368
  %v3371 = vadd.f32 %v3361, %v3369
  %v3372 = vtanh.pop %v3371
  %3374 = vrot.lane.b32.xlu0 %v3372, 64
  %v3375 = vpop.permute.xlu0 %3374
  %v3377 = vmul.f32 %v3359, %v3375
  %v3378 = vld [vmem:[%s841] sm:$0x3]
  %v3379 = vpack.c.bf16 %v3294, %v3294
  %3381 = vrot.lane.b32.xlu0 %v3379, 32
  %v3382 = vpop.permute.xlu0 %3381
  %v3384 = vsel %vm447, %v3382, 0
  %3386 = vmatprep.subr.bf16.mxu0 0
  %3387 = vmatpush1.bf16.msra.mxu0 %v3070
  %3388 = vmatprep.subr.bf16.mxu0 0
  %3389 = vmatpush1.bf16.msra.mxu0 %v3071
  %3390 = vmatprep.subr.bf16.mxu0 0
  %3391 = vmatpush1.bf16.msra.mxu0 0
  %3392 = vmatprep.subr.bf16.mxu0 0
  %3393 = vmatpush1.bf16.msra.mxu0 0
  %3394 = vmatprep.subr.bf16.mxu0 0
  %3395 = vmatpush1.bf16.msra.mxu0 0
  %3396 = vmatprep.subr.bf16.mxu0 0
  %3397 = vmatpush1.bf16.msra.mxu0 0
  %3398 = vmatprep.subr.bf16.mxu0 0
  %3399 = vmatpush1.bf16.msra.mxu0 0
  %3400 = vmatprep.subr.bf16.mxu0 0
  %3401 = vmatpush1.bf16.msra.mxu0 0
  %3402 = vmatprep.subr.bf16.mxu0 0
  %3403 = vmatpush1.bf16.msra.mxu0 0
  %3404 = vmatprep.subr.bf16.mxu0 0
  %3405 = vmatpush1.bf16.msra.mxu0 0
  %3406 = vmatprep.subr.bf16.mxu0 0
  %3407 = vmatpush1.bf16.msra.mxu0 0
  %3408 = vmatprep.subr.bf16.mxu0 0
  %3409 = vmatpush1.bf16.msra.mxu0 0
  %3410 = vmatprep.subr.bf16.mxu0 0
  %3411 = vmatpush1.bf16.msra.mxu0 0
  %3412 = vmatprep.subr.bf16.mxu0 0
  %3413 = vmatpush1.bf16.msra.mxu0 0
  %3414 = vmatprep.subr.bf16.mxu0 0
  %3415 = vmatpush1.bf16.msra.mxu0 0
  %3416 = vmatprep.subr.bf16.mxu0 0
  %3417 = vmatpush1.bf16.msra.mxu0 0
  %3418 = vmatprep.mubr.bf16.mxu0 0
  %3419 = vmatmul.mubr.bf16.gmra.mrb[0].mxu0 %v3384
  %v3420 = vpop.f32.mrb[0].mxu0
  %v3421 = vadd.f32 0.0, %v3420
  %v3422 = vpop.f32.mrb[0].mxu0
  %v3423 = vpop.f32.mrb[0].mxu0
  %v3424 = vpop.f32.mrb[0].mxu0
  %3425 = vdwg.mxu0
  %v3426 = vadd.f32 %v3378, %v3421
  %v3427 = vxor.u32 %v3426, 2147483648
  %v3428 = vmul.f32 %v3427, 1.442695
  %v3429 = vpow.pop %v3428
  %v3430 = vadd.f32 %v3429, 1.0
  %v3431 = vrcp.pop %v3430
  %v3432 = vmul.f32 1.0, %v3431
  %v3433 = vtanh.pop %v3426
  %v3434 = vmul.f32 %v3432, %v3288
  %3436 = vrot.lane.b32.xlu0 %v3433, 64
  %v3437 = vpop.permute.xlu0 %3436
  %v3439 = vmul.f32 %v3432, %v3437
  %3441 = vrot.lane.b32.xlu0 %v3439, 32
  %v3442 = vpop.permute.xlu0 %3441
  %v3444 = vadd.f32 %v3434, %v3442
  %v3445 = vtanh.pop %v3444
  %3447 = vrot.lane.b32.xlu0 %v3445, 64
  %v3448 = vpop.permute.xlu0 %3447
  %v3450 = vmul.f32 %v3432, %v3448
  %3452 = vrot.lane.b32.xlu0 %v3377, 32
  %v3453 = vpop.permute.xlu0 %3452
  %3455 = vst.msk [vmem:[%s919] sm:$0x3] %vm599, %v3453
  %3457 = vrot.lane.b32.xlu0 %v3450, 32
  %v3458 = vpop.permute.xlu0 %3457
  %3460 = vst.msk [vmem:[%s925] sm:$0x3] %vm599, %v3458
  %v3461 = vld [vmem:[%s927] sm:$0x3]
  %v3462 = vpack.c.bf16 %v3377, %v3377
  %3464 = vrot.lane.b32.xlu0 %v3462, 32
  %v3465 = vpop.permute.xlu0 %3464
  %v3467 = vsel %vm447, %v3465, 0
  %3469 = vmatprep.subr.bf16.mxu0 0
  %3470 = vmatpush1.bf16.msra.mxu0 %v2992
  %3471 = vmatprep.subr.bf16.mxu0 0
  %3472 = vmatpush1.bf16.msra.mxu0 %v2993
  %3473 = vmatprep.subr.bf16.mxu0 0
  %3474 = vmatpush1.bf16.msra.mxu0 0
  %3475 = vmatprep.subr.bf16.mxu0 0
  %3476 = vmatpush1.bf16.msra.mxu0 0
  %3477 = vmatprep.subr.bf16.mxu0 0
  %3478 = vmatpush1.bf16.msra.mxu0 0
  %3479 = vmatprep.subr.bf16.mxu0 0
  %3480 = vmatpush1.bf16.msra.mxu0 0
  %3481 = vmatprep.subr.bf16.mxu0 0
  %3482 = vmatpush1.bf16.msra.mxu0 0
  %3483 = vmatprep.subr.bf16.mxu0 0
  %3484 = vmatpush1.bf16.msra.mxu0 0
  %3485 = vmatprep.subr.bf16.mxu0 0
  %3486 = vmatpush1.bf16.msra.mxu0 0
  %3487 = vmatprep.subr.bf16.mxu0 0
  %3488 = vmatpush1.bf16.msra.mxu0 0
  %3489 = vmatprep.subr.bf16.mxu0 0
  %3490 = vmatpush1.bf16.msra.mxu0 0
  %3491 = vmatprep.subr.bf16.mxu0 0
  %3492 = vmatpush1.bf16.msra.mxu0 0
  %3493 = vmatprep.subr.bf16.mxu0 0
  %3494 = vmatpush1.bf16.msra.mxu0 0
  %3495 = vmatprep.subr.bf16.mxu0 0
  %3496 = vmatpush1.bf16.msra.mxu0 0
  %3497 = vmatprep.subr.bf16.mxu0 0
  %3498 = vmatpush1.bf16.msra.mxu0 0
  %3499 = vmatprep.subr.bf16.mxu0 0
  %3500 = vmatpush1.bf16.msra.mxu0 0
  %3501 = vmatprep.mubr.bf16.mxu0 0
  %3502 = vmatmul.mubr.bf16.gmra.mrb[0].mxu0 %v3467
  %v3503 = vpop.f32.mrb[0].mxu0
  %v3504 = vadd.f32 0.0, %v3503
  %v3505 = vpop.f32.mrb[0].mxu0
  %v3506 = vpop.f32.mrb[0].mxu0
  %v3507 = vpop.f32.mrb[0].mxu0
  %3508 = vdwg.mxu0
  %v3509 = vadd.f32 %v3461, %v3504
  %v3510 = vxor.u32 %v3509, 2147483648
  %v3511 = vmul.f32 %v3510, 1.442695
  %v3512 = vpow.pop %v3511
  %v3513 = vadd.f32 %v3512, 1.0
  %v3514 = vrcp.pop %v3513
  %v3515 = vmul.f32 1.0, %v3514
  %v3516 = vtanh.pop %v3509
  %v3517 = vmul.f32 %v3515, %v3371
  %3519 = vrot.lane.b32.xlu0 %v3516, 64
  %v3520 = vpop.permute.xlu0 %3519
  %v3522 = vmul.f32 %v3515, %v3520
  %3524 = vrot.lane.b32.xlu0 %v3522, 32
  %v3525 = vpop.permute.xlu0 %3524
  %v3527 = vadd.f32 %v3517, %v3525
  %v3528 = vtanh.pop %v3527
  %3530 = vrot.lane.b32.xlu0 %v3528, 64
  %v3531 = vpop.permute.xlu0 %3530
  %v3533 = vmul.f32 %v3515, %v3531
  %v3534 = vld [vmem:[%s1001] sm:$0x3]
  %v3535 = vpack.c.bf16 %v3450, %v3450
  %3537 = vrot.lane.b32.xlu0 %v3535, 32
  %v3538 = vpop.permute.xlu0 %3537
  %v3540 = vsel %vm447, %v3538, 0
  %3542 = vmatprep.subr.bf16.mxu0 0
  %3543 = vmatpush1.bf16.msra.mxu0 %v3070
  %3544 = vmatprep.subr.bf16.mxu0 0
  %3545 = vmatpush1.bf16.msra.mxu0 %v3071
  %3546 = vmatprep.subr.bf16.mxu0 0
  %3547 = vmatpush1.bf16.msra.mxu0 0
  %3548 = vmatprep.subr.bf16.mxu0 0
  %3549 = vmatpush1.bf16.msra.mxu0 0
  %3550 = vmatprep.subr.bf16.mxu0 0
  %3551 = vmatpush1.bf16.msra.mxu0 0
  %3552 = vmatprep.subr.bf16.mxu0 0
  %3553 = vmatpush1.bf16.msra.mxu0 0
  %3554 = vmatprep.subr.bf16.mxu0 0
  %3555 = vmatpush1.bf16.msra.mxu0 0
  %3556 = vmatprep.subr.bf16.mxu0 0
  %3557 = vmatpush1.bf16.msra.mxu0 0
  %3558 = vmatprep.subr.bf16.mxu0 0
  %3559 = vmatpush1.bf16.msra.mxu0 0
  %3560 = vmatprep.subr.bf16.mxu0 0
  %3561 = vmatpush1.bf16.msra.mxu0 0
  %3562 = vmatprep.subr.bf16.mxu0 0
  %3563 = vmatpush1.bf16.msra.mxu0 0
  %3564 = vmatprep.subr.bf16.mxu0 0
  %3565 = vmatpush1.bf16.msra.mxu0 0
  %3566 = vmatprep.subr.bf16.mxu0 0
  %3567 = vmatpush1.bf16.msra.mxu0 0
  %3568 = vmatprep.subr.bf16.mxu0 0
  %3569 = vmatpush1.bf16.msra.mxu0 0
  %3570 = vmatprep.subr.bf16.mxu0 0
  %3571 = vmatpush1.bf16.msra.mxu0 0
  %3572 = vmatprep.subr.bf16.mxu0 0
  %3573 = vmatpush1.bf16.msra.mxu0 0
  %3574 = vmatprep.mubr.bf16.mxu0 0
  %3575 = vmatmul.mubr.bf16.gmra.mrb[0].mxu0 %v3540
  %v3576 = vpop.f32.mrb[0].mxu0
  %v3577 = vadd.f32 0.0, %v3576
  %v3578 = vpop.f32.mrb[0].mxu0
  %v3579 = vpop.f32.mrb[0].mxu0
  %v3580 = vpop.f32.mrb[0].mxu0
  %3581 = vdwg.mxu0
  %v3582 = vadd.f32 %v3534, %v3577
  %v3583 = vxor.u32 %v3582, 2147483648
  %v3584 = vmul.f32 %v3583, 1.442695
  %v3585 = vpow.pop %v3584
  %v3586 = vadd.f32 %v3585, 1.0
  %v3587 = vrcp.pop %v3586
  %v3588 = vmul.f32 1.0, %v3587
  %v3589 = vtanh.pop %v3582
  %v3590 = vmul.f32 %v3588, %v3444
  %3592 = vrot.lane.b32.xlu0 %v3589, 64
  %v3593 = vpop.permute.xlu0 %3592
  %v3595 = vmul.f32 %v3588, %v3593
  %3597 = vrot.lane.b32.xlu0 %v3595, 32
  %v3598 = vpop.permute.xlu0 %3597
  %v3600 = vadd.f32 %v3590, %v3598
  %v3601 = vtanh.pop %v3600
  %3603 = vrot.lane.b32.xlu0 %v3601, 64
  %v3604 = vpop.permute.xlu0 %3603
  %v3606 = vmul.f32 %v3588, %v3604
  %3608 = vrot.lane.b32.xlu0 %v3533, 32
  %v3609 = vpop.permute.xlu0 %3608
  %3611 = vst.msk [vmem:[%s1079] sm:$0x3] %vm599, %v3609
  %3613 = vrot.lane.b32.xlu0 %v3606, 32
  %v3614 = vpop.permute.xlu0 %3613
  %3616 = vst.msk [vmem:[%s1085] sm:$0x3] %vm599, %v3614
  %v3617 = vld [vmem:[%s1087] sm:$0x3]
  %v3618 = vpack.c.bf16 %v3533, %v3533
  %3620 = vrot.lane.b32.xlu0 %v3618, 32
  %v3621 = vpop.permute.xlu0 %3620
  %v3623 = vsel %vm447, %v3621, 0
  %3625 = vmatprep.subr.bf16.mxu0 0
  %3626 = vmatpush1.bf16.msra.mxu0 %v2992
  %3627 = vmatprep.subr.bf16.mxu0 0
  %3628 = vmatpush1.bf16.msra.mxu0 %v2993
  %3629 = vmatprep.subr.bf16.mxu0 0
  %3630 = vmatpush1.bf16.msra.mxu0 0
  %3631 = vmatprep.subr.bf16.mxu0 0
  %3632 = vmatpush1.bf16.msra.mxu0 0
  %3633 = vmatprep.subr.bf16.mxu0 0
  %3634 = vmatpush1.bf16.msra.mxu0 0
  %3635 = vmatprep.subr.bf16.mxu0 0
  %3636 = vmatpush1.bf16.msra.mxu0 0
  %3637 = vmatprep.subr.bf16.mxu0 0
  %3638 = vmatpush1.bf16.msra.mxu0 0
  %3639 = vmatprep.subr.bf16.mxu0 0
  %3640 = vmatpush1.bf16.msra.mxu0 0
  %3641 = vmatprep.subr.bf16.mxu0 0
  %3642 = vmatpush1.bf16.msra.mxu0 0
  %3643 = vmatprep.subr.bf16.mxu0 0
  %3644 = vmatpush1.bf16.msra.mxu0 0
  %3645 = vmatprep.subr.bf16.mxu0 0
  %3646 = vmatpush1.bf16.msra.mxu0 0
  %3647 = vmatprep.subr.bf16.mxu0 0
  %3648 = vmatpush1.bf16.msra.mxu0 0
  %3649 = vmatprep.subr.bf16.mxu0 0
  %3650 = vmatpush1.bf16.msra.mxu0 0
  %3651 = vmatprep.subr.bf16.mxu0 0
  %3652 = vmatpush1.bf16.msra.mxu0 0
  %3653 = vmatprep.subr.bf16.mxu0 0
  %3654 = vmatpush1.bf16.msra.mxu0 0
  %3655 = vmatprep.subr.bf16.mxu0 0
  %3656 = vmatpush1.bf16.msra.mxu0 0
  %3657 = vmatprep.mubr.bf16.mxu0 0
  %3658 = vmatmul.mubr.bf16.gmra.mrb[0].mxu0 %v3623
  %v3659 = vpop.f32.mrb[0].mxu0
  %v3660 = vadd.f32 0.0, %v3659
  %v3661 = vpop.f32.mrb[0].mxu0
  %v3662 = vpop.f32.mrb[0].mxu0
  %v3663 = vpop.f32.mrb[0].mxu0
  %3664 = vdwg.mxu0
  %v3665 = vadd.f32 %v3617, %v3660
  %v3666 = vxor.u32 %v3665, 2147483648
  %v3667 = vmul.f32 %v3666, 1.442695
  %v3668 = vpow.pop %v3667
  %v3669 = vadd.f32 %v3668, 1.0
  %v3670 = vrcp.pop %v3669
  %v3671 = vmul.f32 1.0, %v3670
  %v3672 = vtanh.pop %v3665
  %v3673 = vmul.f32 %v3671, %v3527
  %3675 = vrot.lane.b32.xlu0 %v3672, 64
  %v3676 = vpop.permute.xlu0 %3675
  %v3678 = vmul.f32 %v3671, %v3676
  %3680 = vrot.lane.b32.xlu0 %v3678, 32
  %v3681 = vpop.permute.xlu0 %3680
  %v3683 = vadd.f32 %v3673, %v3681
  %v3684 = vtanh.pop %v3683
  %3686 = vrot.lane.b32.xlu0 %v3684, 64
  %v3687 = vpop.permute.xlu0 %3686
  %v3689 = vmul.f32 %v3671, %v3687
  %v3690 = vld [vmem:[%s1161] sm:$0x3]
  %v3691 = vpack.c.bf16 %v3606, %v3606
  %3693 = vrot.lane.b32.xlu0 %v3691, 32
  %v3694 = vpop.permute.xlu0 %3693
  %v3696 = vsel %vm447, %v3694, 0
  %3698 = vmatprep.subr.bf16.mxu0 0
  %3699 = vmatpush1.bf16.msra.mxu0 %v3070
  %3700 = vmatprep.subr.bf16.mxu0 0
  %3701 = vmatpush1.bf16.msra.mxu0 %v3071
  %3702 = vmatprep.subr.bf16.mxu0 0
  %3703 = vmatpush1.bf16.msra.mxu0 0
  %3704 = vmatprep.subr.bf16.mxu0 0
  %3705 = vmatpush1.bf16.msra.mxu0 0
  %3706 = vmatprep.subr.bf16.mxu0 0
  %3707 = vmatpush1.bf16.msra.mxu0 0
  %3708 = vmatprep.subr.bf16.mxu0 0
  %3709 = vmatpush1.bf16.msra.mxu0 0
  %3710 = vmatprep.subr.bf16.mxu0 0
  %3711 = vmatpush1.bf16.msra.mxu0 0
  %3712 = vmatprep.subr.bf16.mxu0 0
  %3713 = vmatpush1.bf16.msra.mxu0 0
  %3714 = vmatprep.subr.bf16.mxu0 0
  %3715 = vmatpush1.bf16.msra.mxu0 0
  %3716 = vmatprep.subr.bf16.mxu0 0
  %3717 = vmatpush1.bf16.msra.mxu0 0
  %3718 = vmatprep.subr.bf16.mxu0 0
  %3719 = vmatpush1.bf16.msra.mxu0 0
  %3720 = vmatprep.subr.bf16.mxu0 0
  %3721 = vmatpush1.bf16.msra.mxu0 0
  %3722 = vmatprep.subr.bf16.mxu0 0
  %3723 = vmatpush1.bf16.msra.mxu0 0
  %3724 = vmatprep.subr.bf16.mxu0 0
  %3725 = vmatpush1.bf16.msra.mxu0 0
  %3726 = vmatprep.subr.bf16.mxu0 0
  %3727 = vmatpush1.bf16.msra.mxu0 0
  %3728 = vmatprep.subr.bf16.mxu0 0
  %3729 = vmatpush1.bf16.msra.mxu0 0
  %3730 = vmatprep.mubr.bf16.mxu0 0
  %3731 = vmatmul.mubr.bf16.gmra.mrb[0].mxu0 %v3696
  %v3732 = vpop.f32.mrb[0].mxu0
  %v3733 = vadd.f32 0.0, %v3732
  %v3734 = vpop.f32.mrb[0].mxu0
  %v3735 = vpop.f32.mrb[0].mxu0
  %v3736 = vpop.f32.mrb[0].mxu0
  %3737 = vdwg.mxu0
  %v3738 = vadd.f32 %v3690, %v3733
  %v3739 = vxor.u32 %v3738, 2147483648
  %v3740 = vmul.f32 %v3739, 1.442695
  %v3741 = vpow.pop %v3740
  %v3742 = vadd.f32 %v3741, 1.0
  %v3743 = vrcp.pop %v3742
  %v3744 = vmul.f32 1.0, %v3743
  %v3745 = vtanh.pop %v3738
  %v3746 = vmul.f32 %v3744, %v3600
  %3748 = vrot.lane.b32.xlu0 %v3745, 64
  %v3749 = vpop.permute.xlu0 %3748
  %v3751 = vmul.f32 %v3744, %v3749
  %3753 = vrot.lane.b32.xlu0 %v3751, 32
  %v3754 = vpop.permute.xlu0 %3753
  %v3756 = vadd.f32 %v3746, %v3754
  %v3757 = vtanh.pop %v3756
  %3759 = vrot.lane.b32.xlu0 %v3757, 64
  %v3760 = vpop.permute.xlu0 %3759
  %v3762 = vmul.f32 %v3744, %v3760
  %3764 = vrot.lane.b32.xlu0 %v3689, 32
  %v3765 = vpop.permute.xlu0 %3764
  %3767 = vst.msk [vmem:[%s1239] sm:$0x3] %vm599, %v3765
  %3769 = vrot.lane.b32.xlu0 %v3762, 32
  %v3770 = vpop.permute.xlu0 %3769
  %3772 = vst.msk [vmem:[%s1245] sm:$0x3] %vm599, %v3770
  %v3773 = vld [vmem:[%s1247] sm:$0x3]
  %v3774 = vpack.c.bf16 %v3689, %v3689
  %3776 = vrot.lane.b32.xlu0 %v3774, 32
  %v3777 = vpop.permute.xlu0 %3776
  %v3779 = vsel %vm447, %v3777, 0
  %3781 = vmatprep.subr.bf16.mxu0 0
  %3782 = vmatpush1.bf16.msra.mxu0 %v2992
  %3783 = vmatprep.subr.bf16.mxu0 0
  %3784 = vmatpush1.bf16.msra.mxu0 %v2993
  %3785 = vmatprep.subr.bf16.mxu0 0
  %3786 = vmatpush1.bf16.msra.mxu0 0
  %3787 = vmatprep.subr.bf16.mxu0 0
  %3788 = vmatpush1.bf16.msra.mxu0 0
  %3789 = vmatprep.subr.bf16.mxu0 0
  %3790 = vmatpush1.bf16.msra.mxu0 0
  %3791 = vmatprep.subr.bf16.mxu0 0
  %3792 = vmatpush1.bf16.msra.mxu0 0
  %3793 = vmatprep.subr.bf16.mxu0 0
  %3794 = vmatpush1.bf16.msra.mxu0 0
  %3795 = vmatprep.subr.bf16.mxu0 0
  %3796 = vmatpush1.bf16.msra.mxu0 0
  %3797 = vmatprep.subr.bf16.mxu0 0
  %3798 = vmatpush1.bf16.msra.mxu0 0
  %3799 = vmatprep.subr.bf16.mxu0 0
  %3800 = vmatpush1.bf16.msra.mxu0 0
  %3801 = vmatprep.subr.bf16.mxu0 0
  %3802 = vmatpush1.bf16.msra.mxu0 0
  %3803 = vmatprep.subr.bf16.mxu0 0
  %3804 = vmatpush1.bf16.msra.mxu0 0
  %3805 = vmatprep.subr.bf16.mxu0 0
  %3806 = vmatpush1.bf16.msra.mxu0 0
  %3807 = vmatprep.subr.bf16.mxu0 0
  %3808 = vmatpush1.bf16.msra.mxu0 0
  %3809 = vmatprep.subr.bf16.mxu0 0
  %3810 = vmatpush1.bf16.msra.mxu0 0
  %3811 = vmatprep.subr.bf16.mxu0 0
  %3812 = vmatpush1.bf16.msra.mxu0 0
  %3813 = vmatprep.mubr.bf16.mxu0 0
  %3814 = vmatmul.mubr.bf16.gmra.mrb[0].mxu0 %v3779
  %v3815 = vpop.f32.mrb[0].mxu0
  %v3816 = vadd.f32 0.0, %v3815
  %v3817 = vpop.f32.mrb[0].mxu0
  %v3818 = vpop.f32.mrb[0].mxu0
  %v3819 = vpop.f32.mrb[0].mxu0
  %3820 = vdwg.mxu0
  %v3821 = vadd.f32 %v3773, %v3816
  %v3822 = vxor.u32 %v3821, 2147483648
  %v3823 = vmul.f32 %v3822, 1.442695
  %v3824 = vpow.pop %v3823
  %v3825 = vadd.f32 %v3824, 1.0
  %v3826 = vrcp.pop %v3825
  %v3827 = vmul.f32 1.0, %v3826
  %v3828 = vtanh.pop %v3821
  %v3829 = vmul.f32 %v3827, %v3683
  %3831 = vrot.lane.b32.xlu0 %v3828, 64
  %v3832 = vpop.permute.xlu0 %3831
  %v3834 = vmul.f32 %v3827, %v3832
  %3836 = vrot.lane.b32.xlu0 %v3834, 32
  %v3837 = vpop.permute.xlu0 %3836
  %v3839 = vadd.f32 %v3829, %v3837
  %v3840 = vtanh.pop %v3839
  %3842 = vrot.lane.b32.xlu0 %v3840, 64
  %v3843 = vpop.permute.xlu0 %3842
  %v3845 = vmul.f32 %v3827, %v3843
  %v3846 = vld [vmem:[%s1321] sm:$0x3]
  %v3847 = vpack.c.bf16 %v3762, %v3762
  %3849 = vrot.lane.b32.xlu0 %v3847, 32
  %v3850 = vpop.permute.xlu0 %3849
  %v3852 = vsel %vm447, %v3850, 0
  %3854 = vmatprep.subr.bf16.mxu0 0
  %3855 = vmatpush1.bf16.msra.mxu0 %v3070
  %3856 = vmatprep.subr.bf16.mxu0 0
  %3857 = vmatpush1.bf16.msra.mxu0 %v3071
  %3858 = vmatprep.subr.bf16.mxu0 0
  %3859 = vmatpush1.bf16.msra.mxu0 0
  %3860 = vmatprep.subr.bf16.mxu0 0
  %3861 = vmatpush1.bf16.msra.mxu0 0
  %3862 = vmatprep.subr.bf16.mxu0 0
  %3863 = vmatpush1.bf16.msra.mxu0 0
  %3864 = vmatprep.subr.bf16.mxu0 0
  %3865 = vmatpush1.bf16.msra.mxu0 0
  %3866 = vmatprep.subr.bf16.mxu0 0
  %3867 = vmatpush1.bf16.msra.mxu0 0
  %3868 = vmatprep.subr.bf16.mxu0 0
  %3869 = vmatpush1.bf16.msra.mxu0 0
  %3870 = vmatprep.subr.bf16.mxu0 0
  %3871 = vmatpush1.bf16.msra.mxu0 0
  %3872 = vmatprep.subr.bf16.mxu0 0
  %3873 = vmatpush1.bf16.msra.mxu0 0
  %3874 = vmatprep.subr.bf16.mxu0 0
  %3875 = vmatpush1.bf16.msra.mxu0 0
  %3876 = vmatprep.subr.bf16.mxu0 0
  %3877 = vmatpush1.bf16.msra.mxu0 0
  %3878 = vmatprep.subr.bf16.mxu0 0
  %3879 = vmatpush1.bf16.msra.mxu0 0
  %3880 = vmatprep.subr.bf16.mxu0 0
  %3881 = vmatpush1.bf16.msra.mxu0 0
  %3882 = vmatprep.subr.bf16.mxu0 0
  %3883 = vmatpush1.bf16.msra.mxu0 0
  %3884 = vmatprep.subr.bf16.mxu0 0
  %3885 = vmatpush1.bf16.msra.mxu0 0
  %3886 = vmatprep.mubr.bf16.mxu0 0
  %3887 = vmatmul.mubr.bf16.gmra.mrb[0].mxu0 %v3852
  %v3888 = vpop.f32.mrb[0].mxu0
  %v3889 = vadd.f32 0.0, %v3888
  %v3890 = vpop.f32.mrb[0].mxu0
  %v3891 = vpop.f32.mrb[0].mxu0
  %v3892 = vpop.f32.mrb[0].mxu0
  %3893 = vdwg.mxu0
  %v3894 = vadd.f32 %v3846, %v3889
  %v3895 = vxor.u32 %v3894, 2147483648
  %v3896 = vmul.f32 %v3895, 1.442695
  %v3897 = vpow.pop %v3896
  %v3898 = vadd.f32 %v3897, 1.0
  %v3899 = vrcp.pop %v3898
  %v3900 = vmul.f32 1.0, %v3899
  %v3901 = vtanh.pop %v3894
  %v3902 = vmul.f32 %v3900, %v3756
  %3904 = vrot.lane.b32.xlu0 %v3901, 64
  %v3905 = vpop.permute.xlu0 %3904
  %v3907 = vmul.f32 %v3900, %v3905
  %3909 = vrot.lane.b32.xlu0 %v3907, 32
  %v3910 = vpop.permute.xlu0 %3909
  %v3912 = vadd.f32 %v3902, %v3910
  %v3913 = vtanh.pop %v3912
  %3915 = vrot.lane.b32.xlu0 %v3913, 64
  %v3916 = vpop.permute.xlu0 %3915
  %v3918 = vmul.f32 %v3900, %v3916
  %3920 = vrot.lane.b32.xlu0 %v3845, 32
  %v3921 = vpop.permute.xlu0 %3920
  %3923 = vst.msk [vmem:[%s1399] sm:$0x3] %vm599, %v3921
  %3925 = vrot.lane.b32.xlu0 %v3918, 32
  %v3926 = vpop.permute.xlu0 %3925
  %3928 = vst.msk [vmem:[%s1405] sm:$0x3] %vm599, %v3926
  %v3929 = vld [vmem:[%s1407] sm:$0x3]
  %v3930 = vpack.c.bf16 %v3845, %v3845
  %3932 = vrot.lane.b32.xlu0 %v3930, 32
  %v3933 = vpop.permute.xlu0 %3932
  %v3935 = vsel %vm447, %v3933, 0
  %3937 = vmatprep.subr.bf16.mxu0 0
  %3938 = vmatpush1.bf16.msra.mxu0 %v2992
  %3939 = vmatprep.subr.bf16.mxu0 0
  %3940 = vmatpush1.bf16.msra.mxu0 %v2993
  %3941 = vmatprep.subr.bf16.mxu0 0
  %3942 = vmatpush1.bf16.msra.mxu0 0
  %3943 = vmatprep.subr.bf16.mxu0 0
  %3944 = vmatpush1.bf16.msra.mxu0 0
  %3945 = vmatprep.subr.bf16.mxu0 0
  %3946 = vmatpush1.bf16.msra.mxu0 0
  %3947 = vmatprep.subr.bf16.mxu0 0
  %3948 = vmatpush1.bf16.msra.mxu0 0
  %3949 = vmatprep.subr.bf16.mxu0 0
  %3950 = vmatpush1.bf16.msra.mxu0 0
  %3951 = vmatprep.subr.bf16.mxu0 0
  %3952 = vmatpush1.bf16.msra.mxu0 0
  %3953 = vmatprep.subr.bf16.mxu0 0
  %3954 = vmatpush1.bf16.msra.mxu0 0
  %3955 = vmatprep.subr.bf16.mxu0 0
  %3956 = vmatpush1.bf16.msra.mxu0 0
  %3957 = vmatprep.subr.bf16.mxu0 0
  %3958 = vmatpush1.bf16.msra.mxu0 0
  %3959 = vmatprep.subr.bf16.mxu0 0
  %3960 = vmatpush1.bf16.msra.mxu0 0
  %3961 = vmatprep.subr.bf16.mxu0 0
  %3962 = vmatpush1.bf16.msra.mxu0 0
  %3963 = vmatprep.subr.bf16.mxu0 0
  %3964 = vmatpush1.bf16.msra.mxu0 0
  %3965 = vmatprep.subr.bf16.mxu0 0
  %3966 = vmatpush1.bf16.msra.mxu0 0
  %3967 = vmatprep.subr.bf16.mxu0 0
  %3968 = vmatpush1.bf16.msra.mxu0 0
  %3969 = vmatprep.mubr.bf16.mxu0 0
  %3970 = vmatmul.mubr.bf16.gmra.mrb[0].mxu0 %v3935
  %v3971 = vpop.f32.mrb[0].mxu0
  %v3972 = vadd.f32 0.0, %v3971
  %v3973 = vpop.f32.mrb[0].mxu0
  %v3974 = vpop.f32.mrb[0].mxu0
  %v3975 = vpop.f32.mrb[0].mxu0
  %3976 = vdwg.mxu0
  %v3977 = vadd.f32 %v3929, %v3972
  %v3978 = vxor.u32 %v3977, 2147483648
  %v3979 = vmul.f32 %v3978, 1.442695
  %v3980 = vpow.pop %v3979
  %v3981 = vadd.f32 %v3980, 1.0
  %v3982 = vrcp.pop %v3981
  %v3983 = vmul.f32 1.0, %v3982
  %v3984 = vtanh.pop %v3977
  %v3985 = vmul.f32 %v3983, %v3839
  %3987 = vrot.lane.b32.xlu0 %v3984, 64
  %v3988 = vpop.permute.xlu0 %3987
  %v3990 = vmul.f32 %v3983, %v3988
  %3992 = vrot.lane.b32.xlu0 %v3990, 32
  %v3993 = vpop.permute.xlu0 %3992
  %v3995 = vadd.f32 %v3985, %v3993
  %v3996 = vtanh.pop %v3995
  %3998 = vrot.lane.b32.xlu0 %v3996, 64
  %v3999 = vpop.permute.xlu0 %3998
  %v4001 = vmul.f32 %v3983, %v3999
  %v4002 = vld [vmem:[%s1481] sm:$0x3]
  %v4003 = vpack.c.bf16 %v3918, %v3918
  %4005 = vrot.lane.b32.xlu0 %v4003, 32
  %v4006 = vpop.permute.xlu0 %4005
  %v4008 = vsel %vm447, %v4006, 0
  %4010 = vmatprep.subr.bf16.mxu0 0
  %4011 = vmatpush1.bf16.msra.mxu0 %v3070
  %4012 = vmatprep.subr.bf16.mxu0 0
  %4013 = vmatpush1.bf16.msra.mxu0 %v3071
  %4014 = vmatprep.subr.bf16.mxu0 0
  %4015 = vmatpush1.bf16.msra.mxu0 0
  %4016 = vmatprep.subr.bf16.mxu0 0
  %4017 = vmatpush1.bf16.msra.mxu0 0
  %4018 = vmatprep.subr.bf16.mxu0 0
  %4019 = vmatpush1.bf16.msra.mxu0 0
  %4020 = vmatprep.subr.bf16.mxu0 0
  %4021 = vmatpush1.bf16.msra.mxu0 0
  %4022 = vmatprep.subr.bf16.mxu0 0
  %4023 = vmatpush1.bf16.msra.mxu0 0
  %4024 = vmatprep.subr.bf16.mxu0 0
  %4025 = vmatpush1.bf16.msra.mxu0 0
  %4026 = vmatprep.subr.bf16.mxu0 0
  %4027 = vmatpush1.bf16.msra.mxu0 0
  %4028 = vmatprep.subr.bf16.mxu0 0
  %4029 = vmatpush1.bf16.msra.mxu0 0
  %4030 = vmatprep.subr.bf16.mxu0 0
  %4031 = vmatpush1.bf16.msra.mxu0 0
  %4032 = vmatprep.subr.bf16.mxu0 0
  %4033 = vmatpush1.bf16.msra.mxu0 0
  %4034 = vmatprep.subr.bf16.mxu0 0
  %4035 = vmatpush1.bf16.msra.mxu0 0
  %4036 = vmatprep.subr.bf16.mxu0 0
  %4037 = vmatpush1.bf16.msra.mxu0 0
  %4038 = vmatprep.subr.bf16.mxu0 0
  %4039 = vmatpush1.bf16.msra.mxu0 0
  %4040 = vmatprep.subr.bf16.mxu0 0
  %4041 = vmatpush1.bf16.msra.mxu0 0
  %4042 = vmatprep.mubr.bf16.mxu0 0
  %4043 = vmatmul.mubr.bf16.gmra.mrb[0].mxu0 %v4008
  %v4044 = vpop.f32.mrb[0].mxu0
  %v4045 = vadd.f32 0.0, %v4044
  %v4046 = vpop.f32.mrb[0].mxu0
  %v4047 = vpop.f32.mrb[0].mxu0
  %v4048 = vpop.f32.mrb[0].mxu0
  %4049 = vdwg.mxu0
  %v4050 = vadd.f32 %v4002, %v4045
  %v4051 = vxor.u32 %v4050, 2147483648
  %v4052 = vmul.f32 %v4051, 1.442695
  %v4053 = vpow.pop %v4052
  %v4054 = vadd.f32 %v4053, 1.0
  %v4055 = vrcp.pop %v4054
  %v4056 = vmul.f32 1.0, %v4055
  %v4057 = vtanh.pop %v4050
  %v4058 = vmul.f32 %v4056, %v3912
  %4060 = vrot.lane.b32.xlu0 %v4057, 64
  %v4061 = vpop.permute.xlu0 %4060
  %v4063 = vmul.f32 %v4056, %v4061
  %4065 = vrot.lane.b32.xlu0 %v4063, 32
  %v4066 = vpop.permute.xlu0 %4065
  %v4068 = vadd.f32 %v4058, %v4066
  %v4069 = vtanh.pop %v4068
  %4071 = vrot.lane.b32.xlu0 %v4069, 64
  %v4072 = vpop.permute.xlu0 %4071
  %v4074 = vmul.f32 %v4056, %v4072
  %4076 = vrot.lane.b32.xlu0 %v4001, 32
  %v4077 = vpop.permute.xlu0 %4076
  %4079 = vst.msk [vmem:[%s1559] sm:$0x3] %vm599, %v4077
  %4081 = vrot.lane.b32.xlu0 %v4074, 32
  %v4082 = vpop.permute.xlu0 %4081
  %4084 = vst.msk [vmem:[%s1565] sm:$0x3] %vm599, %v4082
  %v4085 = vld [vmem:[%s1567] sm:$0x3]
  %v4086 = vpack.c.bf16 %v4001, %v4001
  %4088 = vrot.lane.b32.xlu0 %v4086, 32
  %v4089 = vpop.permute.xlu0 %4088
  %v4091 = vsel %vm447, %v4089, 0
  %4093 = vmatprep.subr.bf16.mxu0 0
  %4094 = vmatpush1.bf16.msra.mxu0 %v2992
  %4095 = vmatprep.subr.bf16.mxu0 0
  %4096 = vmatpush1.bf16.msra.mxu0 %v2993
  %4097 = vmatprep.subr.bf16.mxu0 0
  %4098 = vmatpush1.bf16.msra.mxu0 0
  %4099 = vmatprep.subr.bf16.mxu0 0
  %4100 = vmatpush1.bf16.msra.mxu0 0
  %4101 = vmatprep.subr.bf16.mxu0 0
  %4102 = vmatpush1.bf16.msra.mxu0 0
  %4103 = vmatprep.subr.bf16.mxu0 0
  %4104 = vmatpush1.bf16.msra.mxu0 0
  %4105 = vmatprep.subr.bf16.mxu0 0
  %4106 = vmatpush1.bf16.msra.mxu0 0
  %4107 = vmatprep.subr.bf16.mxu0 0
  %4108 = vmatpush1.bf16.msra.mxu0 0
  %4109 = vmatprep.subr.bf16.mxu0 0
  %4110 = vmatpush1.bf16.msra.mxu0 0
  %4111 = vmatprep.subr.bf16.mxu0 0
  %4112 = vmatpush1.bf16.msra.mxu0 0
  %4113 = vmatprep.subr.bf16.mxu0 0
  %4114 = vmatpush1.bf16.msra.mxu0 0
  %4115 = vmatprep.subr.bf16.mxu0 0
  %4116 = vmatpush1.bf16.msra.mxu0 0
  %4117 = vmatprep.subr.bf16.mxu0 0
  %4118 = vmatpush1.bf16.msra.mxu0 0
  %4119 = vmatprep.subr.bf16.mxu0 0
  %4120 = vmatpush1.bf16.msra.mxu0 0
  %4121 = vmatprep.subr.bf16.mxu0 0
  %4122 = vmatpush1.bf16.msra.mxu0 0
  %4123 = vmatprep.subr.bf16.mxu0 0
  %4124 = vmatpush1.bf16.msra.mxu0 0
  %4125 = vmatprep.mubr.bf16.mxu0 0
  %4126 = vmatmul.mubr.bf16.gmra.mrb[0].mxu0 %v4091
  %v4127 = vpop.f32.mrb[0].mxu0
  %v4128 = vadd.f32 0.0, %v4127
  %v4129 = vpop.f32.mrb[0].mxu0
  %v4130 = vpop.f32.mrb[0].mxu0
  %v4131 = vpop.f32.mrb[0].mxu0
  %4132 = vdwg.mxu0
  %v4133 = vadd.f32 %v4085, %v4128
  %v4134 = vxor.u32 %v4133, 2147483648
  %v4135 = vmul.f32 %v4134, 1.442695
  %v4136 = vpow.pop %v4135
  %v4137 = vadd.f32 %v4136, 1.0
  %v4138 = vrcp.pop %v4137
  %v4139 = vmul.f32 1.0, %v4138
  %v4140 = vtanh.pop %v4133
  %v4141 = vmul.f32 %v4139, %v3995
  %4143 = vrot.lane.b32.xlu0 %v4140, 64
  %v4144 = vpop.permute.xlu0 %4143
  %v4146 = vmul.f32 %v4139, %v4144
  %4148 = vrot.lane.b32.xlu0 %v4146, 32
  %v4149 = vpop.permute.xlu0 %4148
  %v4151 = vadd.f32 %v4141, %v4149
  %v4152 = vtanh.pop %v4151
  %4154 = vrot.lane.b32.xlu0 %v4152, 64
  %v4155 = vpop.permute.xlu0 %4154
  %v4157 = vmul.f32 %v4139, %v4155
  %v4158 = vld [vmem:[%s1641] sm:$0x3]
  %v4159 = vpack.c.bf16 %v4074, %v4074
  %4161 = vrot.lane.b32.xlu0 %v4159, 32
  %v4162 = vpop.permute.xlu0 %4161
  %v4164 = vsel %vm447, %v4162, 0
  %4166 = vmatprep.subr.bf16.mxu0 0
  %4167 = vmatpush1.bf16.msra.mxu0 %v3070
  %4168 = vmatprep.subr.bf16.mxu0 0
  %4169 = vmatpush1.bf16.msra.mxu0 %v3071
  %4170 = vmatprep.subr.bf16.mxu0 0
  %4171 = vmatpush1.bf16.msra.mxu0 0
  %4172 = vmatprep.subr.bf16.mxu0 0
  %4173 = vmatpush1.bf16.msra.mxu0 0
  %4174 = vmatprep.subr.bf16.mxu0 0
  %4175 = vmatpush1.bf16.msra.mxu0 0
  %4176 = vmatprep.subr.bf16.mxu0 0
  %4177 = vmatpush1.bf16.msra.mxu0 0
  %4178 = vmatprep.subr.bf16.mxu0 0
  %4179 = vmatpush1.bf16.msra.mxu0 0
  %4180 = vmatprep.subr.bf16.mxu0 0
  %4181 = vmatpush1.bf16.msra.mxu0 0
  %4182 = vmatprep.subr.bf16.mxu0 0
  %4183 = vmatpush1.bf16.msra.mxu0 0
  %4184 = vmatprep.subr.bf16.mxu0 0
  %4185 = vmatpush1.bf16.msra.mxu0 0
  %4186 = vmatprep.subr.bf16.mxu0 0
  %4187 = vmatpush1.bf16.msra.mxu0 0
  %4188 = vmatprep.subr.bf16.mxu0 0
  %4189 = vmatpush1.bf16.msra.mxu0 0
  %4190 = vmatprep.subr.bf16.mxu0 0
  %4191 = vmatpush1.bf16.msra.mxu0 0
  %4192 = vmatprep.subr.bf16.mxu0 0
  %4193 = vmatpush1.bf16.msra.mxu0 0
  %4194 = vmatprep.subr.bf16.mxu0 0
  %4195 = vmatpush1.bf16.msra.mxu0 0
  %4196 = vmatprep.subr.bf16.mxu0 0
  %4197 = vmatpush1.bf16.msra.mxu0 0
  %4198 = vmatprep.mubr.bf16.mxu0 0
  %4199 = vmatmul.mubr.bf16.gmra.mrb[0].mxu0 %v4164
  %v4200 = vpop.f32.mrb[0].mxu0
  %v4201 = vadd.f32 0.0, %v4200
  %v4202 = vpop.f32.mrb[0].mxu0
  %v4203 = vpop.f32.mrb[0].mxu0
  %v4204 = vpop.f32.mrb[0].mxu0
  %4205 = vdwg.mxu0
  %v4206 = vadd.f32 %v4158, %v4201
  %v4207 = vxor.u32 %v4206, 2147483648
  %v4208 = vmul.f32 %v4207, 1.442695
  %v4209 = vpow.pop %v4208
  %v4210 = vadd.f32 %v4209, 1.0
  %v4211 = vrcp.pop %v4210
  %v4212 = vmul.f32 1.0, %v4211
  %v4213 = vtanh.pop %v4206
  %v4214 = vmul.f32 %v4212, %v4068
  %4216 = vrot.lane.b32.xlu0 %v4213, 64
  %v4217 = vpop.permute.xlu0 %4216
  %v4219 = vmul.f32 %v4212, %v4217
  %4221 = vrot.lane.b32.xlu0 %v4219, 32
  %v4222 = vpop.permute.xlu0 %4221
  %v4224 = vadd.f32 %v4214, %v4222
  %v4225 = vtanh.pop %v4224
  %4227 = vrot.lane.b32.xlu0 %v4225, 64
  %v4228 = vpop.permute.xlu0 %4227
  %v4230 = vmul.f32 %v4212, %v4228
  %4232 = vrot.lane.b32.xlu0 %v4157, 32
  %v4233 = vpop.permute.xlu0 %4232
  %4235 = vst.msk [vmem:[%s1719] sm:$0x3] %vm599, %v4233
  %4237 = vrot.lane.b32.xlu0 %v4230, 32
  %v4238 = vpop.permute.xlu0 %4237
  %4240 = vst.msk [vmem:[%s1725] sm:$0x3] %vm599, %v4238
  %v4241 = vld [vmem:[%s1727] sm:$0x3]
  %v4242 = vpack.c.bf16 %v4157, %v4157
  %4244 = vrot.lane.b32.xlu0 %v4242, 32
  %v4245 = vpop.permute.xlu0 %4244
  %v4247 = vsel %vm447, %v4245, 0
  %4249 = vmatprep.subr.bf16.mxu0 0
  %4250 = vmatpush1.bf16.msra.mxu0 %v2992
  %4251 = vmatprep.subr.bf16.mxu0 0
  %4252 = vmatpush1.bf16.msra.mxu0 %v2993
  %4253 = vmatprep.subr.bf16.mxu0 0
  %4254 = vmatpush1.bf16.msra.mxu0 0
  %4255 = vmatprep.subr.bf16.mxu0 0
  %4256 = vmatpush1.bf16.msra.mxu0 0
  %4257 = vmatprep.subr.bf16.mxu0 0
  %4258 = vmatpush1.bf16.msra.mxu0 0
  %4259 = vmatprep.subr.bf16.mxu0 0
  %4260 = vmatpush1.bf16.msra.mxu0 0
  %4261 = vmatprep.subr.bf16.mxu0 0
  %4262 = vmatpush1.bf16.msra.mxu0 0
  %4263 = vmatprep.subr.bf16.mxu0 0
  %4264 = vmatpush1.bf16.msra.mxu0 0
  %4265 = vmatprep.subr.bf16.mxu0 0
  %4266 = vmatpush1.bf16.msra.mxu0 0
  %4267 = vmatprep.subr.bf16.mxu0 0
  %4268 = vmatpush1.bf16.msra.mxu0 0
  %4269 = vmatprep.subr.bf16.mxu0 0
  %4270 = vmatpush1.bf16.msra.mxu0 0
  %4271 = vmatprep.subr.bf16.mxu0 0
  %4272 = vmatpush1.bf16.msra.mxu0 0
  %4273 = vmatprep.subr.bf16.mxu0 0
  %4274 = vmatpush1.bf16.msra.mxu0 0
  %4275 = vmatprep.subr.bf16.mxu0 0
  %4276 = vmatpush1.bf16.msra.mxu0 0
  %4277 = vmatprep.subr.bf16.mxu0 0
  %4278 = vmatpush1.bf16.msra.mxu0 0
  %4279 = vmatprep.subr.bf16.mxu0 0
  %4280 = vmatpush1.bf16.msra.mxu0 0
  %4281 = vmatprep.mubr.bf16.mxu0 0
  %4282 = vmatmul.mubr.bf16.gmra.mrb[0].mxu0 %v4247
  %v4283 = vpop.f32.mrb[0].mxu0
  %v4284 = vadd.f32 0.0, %v4283
  %v4285 = vpop.f32.mrb[0].mxu0
  %v4286 = vpop.f32.mrb[0].mxu0
  %v4287 = vpop.f32.mrb[0].mxu0
  %4288 = vdwg.mxu0
  %v4289 = vadd.f32 %v4241, %v4284
  %v4290 = vxor.u32 %v4289, 2147483648
  %v4291 = vmul.f32 %v4290, 1.442695
  %v4292 = vpow.pop %v4291
  %v4293 = vadd.f32 %v4292, 1.0
  %v4294 = vrcp.pop %v4293
  %v4295 = vmul.f32 1.0, %v4294
  %v4296 = vtanh.pop %v4289
  %v4297 = vmul.f32 %v4295, %v4151
  %4299 = vrot.lane.b32.xlu0 %v4296, 64
  %v4300 = vpop.permute.xlu0 %4299
  %v4302 = vmul.f32 %v4295, %v4300
  %4304 = vrot.lane.b32.xlu0 %v4302, 32
  %v4305 = vpop.permute.xlu0 %4304
  %v4307 = vadd.f32 %v4297, %v4305
  %v4308 = vtanh.pop %v4307
  %4310 = vrot.lane.b32.xlu0 %v4308, 64
  %v4311 = vpop.permute.xlu0 %4310
  %v4313 = vmul.f32 %v4295, %v4311
  %v4314 = vld [vmem:[%s1801] sm:$0x3]
  %v4315 = vpack.c.bf16 %v4230, %v4230
  %4317 = vrot.lane.b32.xlu0 %v4315, 32
  %v4318 = vpop.permute.xlu0 %4317
  %v4320 = vsel %vm447, %v4318, 0
  %4322 = vmatprep.subr.bf16.mxu0 0
  %4323 = vmatpush1.bf16.msra.mxu0 %v3070
  %4324 = vmatprep.subr.bf16.mxu0 0
  %4325 = vmatpush1.bf16.msra.mxu0 %v3071
  %4326 = vmatprep.subr.bf16.mxu0 0
  %4327 = vmatpush1.bf16.msra.mxu0 0
  %4328 = vmatprep.subr.bf16.mxu0 0
  %4329 = vmatpush1.bf16.msra.mxu0 0
  %4330 = vmatprep.subr.bf16.mxu0 0
  %4331 = vmatpush1.bf16.msra.mxu0 0
  %4332 = vmatprep.subr.bf16.mxu0 0
  %4333 = vmatpush1.bf16.msra.mxu0 0
  %4334 = vmatprep.subr.bf16.mxu0 0
  %4335 = vmatpush1.bf16.msra.mxu0 0
  %4336 = vmatprep.subr.bf16.mxu0 0
  %4337 = vmatpush1.bf16.msra.mxu0 0
  %4338 = vmatprep.subr.bf16.mxu0 0
  %4339 = vmatpush1.bf16.msra.mxu0 0
  %4340 = vmatprep.subr.bf16.mxu0 0
  %4341 = vmatpush1.bf16.msra.mxu0 0
  %4342 = vmatprep.subr.bf16.mxu0 0
  %4343 = vmatpush1.bf16.msra.mxu0 0
  %4344 = vmatprep.subr.bf16.mxu0 0
  %4345 = vmatpush1.bf16.msra.mxu0 0
  %4346 = vmatprep.subr.bf16.mxu0 0
  %4347 = vmatpush1.bf16.msra.mxu0 0
  %4348 = vmatprep.subr.bf16.mxu0 0
  %4349 = vmatpush1.bf16.msra.mxu0 0
  %4350 = vmatprep.subr.bf16.mxu0 0
  %4351 = vmatpush1.bf16.msra.mxu0 0
  %4352 = vmatprep.subr.bf16.mxu0 0
  %4353 = vmatpush1.bf16.msra.mxu0 0
  %4354 = vmatprep.mubr.bf16.mxu0 0
  %4355 = vmatmul.mubr.bf16.gmra.mrb[0].mxu0 %v4320
  %v4356 = vpop.f32.mrb[0].mxu0
  %v4357 = vadd.f32 0.0, %v4356
  %v4358 = vpop.f32.mrb[0].mxu0
  %v4359 = vpop.f32.mrb[0].mxu0
  %v4360 = vpop.f32.mrb[0].mxu0
  %4361 = vdwg.mxu0
  %v4362 = vadd.f32 %v4314, %v4357
  %v4363 = vxor.u32 %v4362, 2147483648
  %v4364 = vmul.f32 %v4363, 1.442695
  %v4365 = vpow.pop %v4364
  %v4366 = vadd.f32 %v4365, 1.0
  %v4367 = vrcp.pop %v4366
  %v4368 = vmul.f32 1.0, %v4367
  %v4369 = vtanh.pop %v4362
  %v4370 = vmul.f32 %v4368, %v4224
  %4372 = vrot.lane.b32.xlu0 %v4369, 64
  %v4373 = vpop.permute.xlu0 %4372
  %v4375 = vmul.f32 %v4368, %v4373
  %4377 = vrot.lane.b32.xlu0 %v4375, 32
  %v4378 = vpop.permute.xlu0 %4377
  %v4380 = vadd.f32 %v4370, %v4378
  %v4381 = vtanh.pop %v4380
  %4383 = vrot.lane.b32.xlu0 %v4381, 64
  %v4384 = vpop.permute.xlu0 %4383
  %v4386 = vmul.f32 %v4368, %v4384
  %4388 = vrot.lane.b32.xlu0 %v4313, 32
  %v4389 = vpop.permute.xlu0 %4388
  %4391 = vst.msk [vmem:[%s1879] sm:$0x3] %vm599, %v4389
  %4393 = vrot.lane.b32.xlu0 %v4386, 32
  %v4394 = vpop.permute.xlu0 %4393
  %4396 = vst.msk [vmem:[%s1885] sm:$0x3] %vm599, %v4394
  %v4397 = vld [vmem:[%s1887] sm:$0x3]
  %v4398 = vpack.c.bf16 %v4313, %v4313
  %4400 = vrot.lane.b32.xlu0 %v4398, 32
  %v4401 = vpop.permute.xlu0 %4400
  %v4403 = vsel %vm447, %v4401, 0
  %4405 = vmatprep.subr.bf16.mxu0 0
  %4406 = vmatpush1.bf16.msra.mxu0 %v2992
  %4407 = vmatprep.subr.bf16.mxu0 0
  %4408 = vmatpush1.bf16.msra.mxu0 %v2993
  %4409 = vmatprep.subr.bf16.mxu0 0
  %4410 = vmatpush1.bf16.msra.mxu0 0
  %4411 = vmatprep.subr.bf16.mxu0 0
  %4412 = vmatpush1.bf16.msra.mxu0 0
  %4413 = vmatprep.subr.bf16.mxu0 0
  %4414 = vmatpush1.bf16.msra.mxu0 0
  %4415 = vmatprep.subr.bf16.mxu0 0
  %4416 = vmatpush1.bf16.msra.mxu0 0
  %4417 = vmatprep.subr.bf16.mxu0 0
  %4418 = vmatpush1.bf16.msra.mxu0 0
  %4419 = vmatprep.subr.bf16.mxu0 0
  %4420 = vmatpush1.bf16.msra.mxu0 0
  %4421 = vmatprep.subr.bf16.mxu0 0
  %4422 = vmatpush1.bf16.msra.mxu0 0
  %4423 = vmatprep.subr.bf16.mxu0 0
  %4424 = vmatpush1.bf16.msra.mxu0 0
  %4425 = vmatprep.subr.bf16.mxu0 0
  %4426 = vmatpush1.bf16.msra.mxu0 0
  %4427 = vmatprep.subr.bf16.mxu0 0
  %4428 = vmatpush1.bf16.msra.mxu0 0
  %4429 = vmatprep.subr.bf16.mxu0 0
  %4430 = vmatpush1.bf16.msra.mxu0 0
  %4431 = vmatprep.subr.bf16.mxu0 0
  %4432 = vmatpush1.bf16.msra.mxu0 0
  %4433 = vmatprep.subr.bf16.mxu0 0
  %4434 = vmatpush1.bf16.msra.mxu0 0
  %4435 = vmatprep.subr.bf16.mxu0 0
  %4436 = vmatpush1.bf16.msra.mxu0 0
  %4437 = vmatprep.mubr.bf16.mxu0 0
  %4438 = vmatmul.mubr.bf16.gmra.mrb[0].mxu0 %v4403
  %v4439 = vpop.f32.mrb[0].mxu0
  %v4440 = vadd.f32 0.0, %v4439
  %v4441 = vpop.f32.mrb[0].mxu0
  %v4442 = vpop.f32.mrb[0].mxu0
  %v4443 = vpop.f32.mrb[0].mxu0
  %4444 = vdwg.mxu0
  %v4445 = vadd.f32 %v4397, %v4440
  %v4446 = vxor.u32 %v4445, 2147483648
  %v4447 = vmul.f32 %v4446, 1.442695
  %v4448 = vpow.pop %v4447
  %v4449 = vadd.f32 %v4448, 1.0
  %v4450 = vrcp.pop %v4449
  %v4451 = vmul.f32 1.0, %v4450
  %v4452 = vtanh.pop %v4445
  %v4453 = vmul.f32 %v4451, %v4307
  %4455 = vrot.lane.b32.xlu0 %v4452, 64
  %v4456 = vpop.permute.xlu0 %4455
  %v4458 = vmul.f32 %v4451, %v4456
  %4460 = vrot.lane.b32.xlu0 %v4458, 32
  %v4461 = vpop.permute.xlu0 %4460
  %v4463 = vadd.f32 %v4453, %v4461
  %v4464 = vtanh.pop %v4463
  %4466 = vrot.lane.b32.xlu0 %v4464, 64
  %v4467 = vpop.permute.xlu0 %4466
  %v4469 = vmul.f32 %v4451, %v4467
  %v4470 = vld [vmem:[%s1961] sm:$0x3]
  %v4471 = vpack.c.bf16 %v4386, %v4386
  %4473 = vrot.lane.b32.xlu0 %v4471, 32
  %v4474 = vpop.permute.xlu0 %4473
  %v4476 = vsel %vm447, %v4474, 0
  %4478 = vmatprep.subr.bf16.mxu0 0
  %4479 = vmatpush1.bf16.msra.mxu0 %v3070
  %4480 = vmatprep.subr.bf16.mxu0 0
  %4481 = vmatpush1.bf16.msra.mxu0 %v3071
  %4482 = vmatprep.subr.bf16.mxu0 0
  %4483 = vmatpush1.bf16.msra.mxu0 0
  %4484 = vmatprep.subr.bf16.mxu0 0
  %4485 = vmatpush1.bf16.msra.mxu0 0
  %4486 = vmatprep.subr.bf16.mxu0 0
  %4487 = vmatpush1.bf16.msra.mxu0 0
  %4488 = vmatprep.subr.bf16.mxu0 0
  %4489 = vmatpush1.bf16.msra.mxu0 0
  %4490 = vmatprep.subr.bf16.mxu0 0
  %4491 = vmatpush1.bf16.msra.mxu0 0
  %4492 = vmatprep.subr.bf16.mxu0 0
  %4493 = vmatpush1.bf16.msra.mxu0 0
  %4494 = vmatprep.subr.bf16.mxu0 0
  %4495 = vmatpush1.bf16.msra.mxu0 0
  %4496 = vmatprep.subr.bf16.mxu0 0
  %4497 = vmatpush1.bf16.msra.mxu0 0
  %4498 = vmatprep.subr.bf16.mxu0 0
  %4499 = vmatpush1.bf16.msra.mxu0 0
  %4500 = vmatprep.subr.bf16.mxu0 0
  %4501 = vmatpush1.bf16.msra.mxu0 0
  %4502 = vmatprep.subr.bf16.mxu0 0
  %4503 = vmatpush1.bf16.msra.mxu0 0
  %4504 = vmatprep.subr.bf16.mxu0 0
  %4505 = vmatpush1.bf16.msra.mxu0 0
  %4506 = vmatprep.subr.bf16.mxu0 0
  %4507 = vmatpush1.bf16.msra.mxu0 0
  %4508 = vmatprep.subr.bf16.mxu0 0
  %4509 = vmatpush1.bf16.msra.mxu0 0
  %4510 = vmatprep.mubr.bf16.mxu0 0
  %4511 = vmatmul.mubr.bf16.gmra.mrb[0].mxu0 %v4476
  %v4512 = vpop.f32.mrb[0].mxu0
  %v4513 = vadd.f32 0.0, %v4512
  %v4514 = vpop.f32.mrb[0].mxu0
  %v4515 = vpop.f32.mrb[0].mxu0
  %v4516 = vpop.f32.mrb[0].mxu0
  %4517 = vdwg.mxu0
  %v4518 = vadd.f32 %v4470, %v4513
  %v4519 = vxor.u32 %v4518, 2147483648
  %v4520 = vmul.f32 %v4519, 1.442695
  %v4521 = vpow.pop %v4520
  %v4522 = vadd.f32 %v4521, 1.0
  %v4523 = vrcp.pop %v4522
  %v4524 = vmul.f32 1.0, %v4523
  %v4525 = vtanh.pop %v4518
  %v4526 = vmul.f32 %v4524, %v4380
  %4528 = vrot.lane.b32.xlu0 %v4525, 64
  %v4529 = vpop.permute.xlu0 %4528
  %v4531 = vmul.f32 %v4524, %v4529
  %4533 = vrot.lane.b32.xlu0 %v4531, 32
  %v4534 = vpop.permute.xlu0 %4533
  %v4536 = vadd.f32 %v4526, %v4534
  %v4537 = vtanh.pop %v4536
  %4539 = vrot.lane.b32.xlu0 %v4537, 64
  %v4540 = vpop.permute.xlu0 %4539
  %v4542 = vmul.f32 %v4524, %v4540
  %4544 = vrot.lane.b32.xlu0 %v4469, 32
  %v4545 = vpop.permute.xlu0 %4544
  %4547 = vst.msk [vmem:[%s2039] sm:$0x3] %vm599, %v4545
  %4549 = vrot.lane.b32.xlu0 %v4542, 32
  %v4550 = vpop.permute.xlu0 %4549
  %4552 = vst.msk [vmem:[%s2045] sm:$0x3] %vm599, %v4550
  %v4553 = vld [vmem:[%s2047] sm:$0x3]
  %v4554 = vpack.c.bf16 %v4469, %v4469
  %4556 = vrot.lane.b32.xlu0 %v4554, 32
  %v4557 = vpop.permute.xlu0 %4556
  %v4559 = vsel %vm447, %v4557, 0
  %4561 = vmatprep.subr.bf16.mxu0 0
  %4562 = vmatpush1.bf16.msra.mxu0 %v2992
  %4563 = vmatprep.subr.bf16.mxu0 0
  %4564 = vmatpush1.bf16.msra.mxu0 %v2993
  %4565 = vmatprep.subr.bf16.mxu0 0
  %4566 = vmatpush1.bf16.msra.mxu0 0
  %4567 = vmatprep.subr.bf16.mxu0 0
  %4568 = vmatpush1.bf16.msra.mxu0 0
  %4569 = vmatprep.subr.bf16.mxu0 0
  %4570 = vmatpush1.bf16.msra.mxu0 0
  %4571 = vmatprep.subr.bf16.mxu0 0
  %4572 = vmatpush1.bf16.msra.mxu0 0
  %4573 = vmatprep.subr.bf16.mxu0 0
  %4574 = vmatpush1.bf16.msra.mxu0 0
  %4575 = vmatprep.subr.bf16.mxu0 0
  %4576 = vmatpush1.bf16.msra.mxu0 0
  %4577 = vmatprep.subr.bf16.mxu0 0
  %4578 = vmatpush1.bf16.msra.mxu0 0
  %4579 = vmatprep.subr.bf16.mxu0 0
  %4580 = vmatpush1.bf16.msra.mxu0 0
  %4581 = vmatprep.subr.bf16.mxu0 0
  %4582 = vmatpush1.bf16.msra.mxu0 0
  %4583 = vmatprep.subr.bf16.mxu0 0
  %4584 = vmatpush1.bf16.msra.mxu0 0
  %4585 = vmatprep.subr.bf16.mxu0 0
  %4586 = vmatpush1.bf16.msra.mxu0 0
  %4587 = vmatprep.subr.bf16.mxu0 0
  %4588 = vmatpush1.bf16.msra.mxu0 0
  %4589 = vmatprep.subr.bf16.mxu0 0
  %4590 = vmatpush1.bf16.msra.mxu0 0
  %4591 = vmatprep.subr.bf16.mxu0 0
  %4592 = vmatpush1.bf16.msra.mxu0 0
  %4593 = vmatprep.mubr.bf16.mxu0 0
  %4594 = vmatmul.mubr.bf16.gmra.mrb[0].mxu0 %v4559
  %v4595 = vpop.f32.mrb[0].mxu0
  %v4596 = vadd.f32 0.0, %v4595
  %v4597 = vpop.f32.mrb[0].mxu0
  %v4598 = vpop.f32.mrb[0].mxu0
  %v4599 = vpop.f32.mrb[0].mxu0
  %4600 = vdwg.mxu0
  %v4601 = vadd.f32 %v4553, %v4596
  %v4602 = vxor.u32 %v4601, 2147483648
  %v4603 = vmul.f32 %v4602, 1.442695
  %v4604 = vpow.pop %v4603
  %v4605 = vadd.f32 %v4604, 1.0
  %v4606 = vrcp.pop %v4605
  %v4607 = vmul.f32 1.0, %v4606
  %v4608 = vtanh.pop %v4601
  %v4609 = vmul.f32 %v4607, %v4463
  %4611 = vrot.lane.b32.xlu0 %v4608, 64
  %v4612 = vpop.permute.xlu0 %4611
  %v4614 = vmul.f32 %v4607, %v4612
  %4616 = vrot.lane.b32.xlu0 %v4614, 32
  %v4617 = vpop.permute.xlu0 %4616
  %v4619 = vadd.f32 %v4609, %v4617
  %v4620 = vtanh.pop %v4619
  %4622 = vrot.lane.b32.xlu0 %v4620, 64
  %v4623 = vpop.permute.xlu0 %4622
  %v4625 = vmul.f32 %v4607, %v4623
  %v4626 = vld [vmem:[%s2121] sm:$0x3]
  %v4627 = vpack.c.bf16 %v4542, %v4542
  %4629 = vrot.lane.b32.xlu0 %v4627, 32
  %v4630 = vpop.permute.xlu0 %4629
  %v4632 = vsel %vm447, %v4630, 0
  %4634 = vmatprep.subr.bf16.mxu0 0
  %4635 = vmatpush1.bf16.msra.mxu0 %v3070
  %4636 = vmatprep.subr.bf16.mxu0 0
  %4637 = vmatpush1.bf16.msra.mxu0 %v3071
  %4638 = vmatprep.subr.bf16.mxu0 0
  %4639 = vmatpush1.bf16.msra.mxu0 0
  %4640 = vmatprep.subr.bf16.mxu0 0
  %4641 = vmatpush1.bf16.msra.mxu0 0
  %4642 = vmatprep.subr.bf16.mxu0 0
  %4643 = vmatpush1.bf16.msra.mxu0 0
  %4644 = vmatprep.subr.bf16.mxu0 0
  %4645 = vmatpush1.bf16.msra.mxu0 0
  %4646 = vmatprep.subr.bf16.mxu0 0
  %4647 = vmatpush1.bf16.msra.mxu0 0
  %4648 = vmatprep.subr.bf16.mxu0 0
  %4649 = vmatpush1.bf16.msra.mxu0 0
  %4650 = vmatprep.subr.bf16.mxu0 0
  %4651 = vmatpush1.bf16.msra.mxu0 0
  %4652 = vmatprep.subr.bf16.mxu0 0
  %4653 = vmatpush1.bf16.msra.mxu0 0
  %4654 = vmatprep.subr.bf16.mxu0 0
  %4655 = vmatpush1.bf16.msra.mxu0 0
  %4656 = vmatprep.subr.bf16.mxu0 0
  %4657 = vmatpush1.bf16.msra.mxu0 0
  %4658 = vmatprep.subr.bf16.mxu0 0
  %4659 = vmatpush1.bf16.msra.mxu0 0
  %4660 = vmatprep.subr.bf16.mxu0 0
  %4661 = vmatpush1.bf16.msra.mxu0 0
  %4662 = vmatprep.subr.bf16.mxu0 0
  %4663 = vmatpush1.bf16.msra.mxu0 0
  %4664 = vmatprep.subr.bf16.mxu0 0
  %4665 = vmatpush1.bf16.msra.mxu0 0
  %4666 = vmatprep.mubr.bf16.mxu0 0
  %4667 = vmatmul.mubr.bf16.gmra.mrb[0].mxu0 %v4632
  %v4668 = vpop.f32.mrb[0].mxu0
  %v4669 = vadd.f32 0.0, %v4668
  %v4670 = vpop.f32.mrb[0].mxu0
  %v4671 = vpop.f32.mrb[0].mxu0
  %v4672 = vpop.f32.mrb[0].mxu0
  %4673 = vdwg.mxu0
  %v4674 = vadd.f32 %v4626, %v4669
  %v4675 = vxor.u32 %v4674, 2147483648
  %v4676 = vmul.f32 %v4675, 1.442695
  %v4677 = vpow.pop %v4676
  %v4678 = vadd.f32 %v4677, 1.0
  %v4679 = vrcp.pop %v4678
  %v4680 = vmul.f32 1.0, %v4679
  %v4681 = vtanh.pop %v4674
  %v4682 = vmul.f32 %v4680, %v4536
  %4684 = vrot.lane.b32.xlu0 %v4681, 64
  %v4685 = vpop.permute.xlu0 %4684
  %v4687 = vmul.f32 %v4680, %v4685
  %4689 = vrot.lane.b32.xlu0 %v4687, 32
  %v4690 = vpop.permute.xlu0 %4689
  %v4692 = vadd.f32 %v4682, %v4690
  %v4693 = vtanh.pop %v4692
  %4695 = vrot.lane.b32.xlu0 %v4693, 64
  %v4696 = vpop.permute.xlu0 %4695
  %v4698 = vmul.f32 %v4680, %v4696
  %4700 = vrot.lane.b32.xlu0 %v4625, 32
  %v4701 = vpop.permute.xlu0 %4700
  %4703 = vst.msk [vmem:[%s2199] sm:$0x3] %vm599, %v4701
  %4705 = vrot.lane.b32.xlu0 %v4698, 32
  %v4706 = vpop.permute.xlu0 %4705
  %4708 = vst.msk [vmem:[%s2205] sm:$0x3] %vm599, %v4706
  %v4709 = vld [vmem:[%s2207] sm:$0x3]
  %v4710 = vpack.c.bf16 %v4625, %v4625
  %4712 = vrot.lane.b32.xlu0 %v4710, 32
  %v4713 = vpop.permute.xlu0 %4712
  %v4715 = vsel %vm447, %v4713, 0
  %4717 = vmatprep.subr.bf16.mxu0 0
  %4718 = vmatpush1.bf16.msra.mxu0 %v2992
  %4719 = vmatprep.subr.bf16.mxu0 0
  %4720 = vmatpush1.bf16.msra.mxu0 %v2993
  %4721 = vmatprep.subr.bf16.mxu0 0
  %4722 = vmatpush1.bf16.msra.mxu0 0
  %4723 = vmatprep.subr.bf16.mxu0 0
  %4724 = vmatpush1.bf16.msra.mxu0 0
  %4725 = vmatprep.subr.bf16.mxu0 0
  %4726 = vmatpush1.bf16.msra.mxu0 0
  %4727 = vmatprep.subr.bf16.mxu0 0
  %4728 = vmatpush1.bf16.msra.mxu0 0
  %4729 = vmatprep.subr.bf16.mxu0 0
  %4730 = vmatpush1.bf16.msra.mxu0 0
  %4731 = vmatprep.subr.bf16.mxu0 0
  %4732 = vmatpush1.bf16.msra.mxu0 0
  %4733 = vmatprep.subr.bf16.mxu0 0
  %4734 = vmatpush1.bf16.msra.mxu0 0
  %4735 = vmatprep.subr.bf16.mxu0 0
  %4736 = vmatpush1.bf16.msra.mxu0 0
  %4737 = vmatprep.subr.bf16.mxu0 0
  %4738 = vmatpush1.bf16.msra.mxu0 0
  %4739 = vmatprep.subr.bf16.mxu0 0
  %4740 = vmatpush1.bf16.msra.mxu0 0
  %4741 = vmatprep.subr.bf16.mxu0 0
  %4742 = vmatpush1.bf16.msra.mxu0 0
  %4743 = vmatprep.subr.bf16.mxu0 0
  %4744 = vmatpush1.bf16.msra.mxu0 0
  %4745 = vmatprep.subr.bf16.mxu0 0
  %4746 = vmatpush1.bf16.msra.mxu0 0
  %4747 = vmatprep.subr.bf16.mxu0 0
  %4748 = vmatpush1.bf16.msra.mxu0 0
  %4749 = vmatprep.mubr.bf16.mxu0 0
  %4750 = vmatmul.mubr.bf16.gmra.mrb[0].mxu0 %v4715
  %v4751 = vpop.f32.mrb[0].mxu0
  %v4752 = vadd.f32 0.0, %v4751
  %v4753 = vpop.f32.mrb[0].mxu0
  %v4754 = vpop.f32.mrb[0].mxu0
  %v4755 = vpop.f32.mrb[0].mxu0
  %4756 = vdwg.mxu0
  %v4757 = vadd.f32 %v4709, %v4752
  %v4758 = vxor.u32 %v4757, 2147483648
  %v4759 = vmul.f32 %v4758, 1.442695
  %v4760 = vpow.pop %v4759
  %v4761 = vadd.f32 %v4760, 1.0
  %v4762 = vrcp.pop %v4761
  %v4763 = vmul.f32 1.0, %v4762
  %v4764 = vtanh.pop %v4757
  %v4765 = vmul.f32 %v4763, %v4619
  %4767 = vrot.lane.b32.xlu0 %v4764, 64
  %v4768 = vpop.permute.xlu0 %4767
  %v4770 = vmul.f32 %v4763, %v4768
  %4772 = vrot.lane.b32.xlu0 %v4770, 32
  %v4773 = vpop.permute.xlu0 %4772
  %v4775 = vadd.f32 %v4765, %v4773
  %v4776 = vtanh.pop %v4775
  %4778 = vrot.lane.b32.xlu0 %v4776, 64
  %v4779 = vpop.permute.xlu0 %4778
  %v4781 = vmul.f32 %v4763, %v4779
  %v4782 = vld [vmem:[#allocation3] sm:$0x3]
  %v4783 = vpack.c.bf16 %v4698, %v4698
  %4785 = vrot.lane.b32.xlu0 %v4783, 32
  %v4786 = vpop.permute.xlu0 %4785
  %v4788 = vsel %vm447, %v4786, 0
  %4790 = vmatprep.subr.bf16.mxu0 0
  %4791 = vmatpush1.bf16.msra.mxu0 %v3070
  %4792 = vmatprep.subr.bf16.mxu0 0
  %4793 = vmatpush1.bf16.msra.mxu0 %v3071
  %4794 = vmatprep.subr.bf16.mxu0 0
  %4795 = vmatpush1.bf16.msra.mxu0 0
  %4796 = vmatprep.subr.bf16.mxu0 0
  %4797 = vmatpush1.bf16.msra.mxu0 0
  %4798 = vmatprep.subr.bf16.mxu0 0
  %4799 = vmatpush1.bf16.msra.mxu0 0
  %4800 = vmatprep.subr.bf16.mxu0 0
  %4801 = vmatpush1.bf16.msra.mxu0 0
  %4802 = vmatprep.subr.bf16.mxu0 0
  %4803 = vmatpush1.bf16.msra.mxu0 0
  %4804 = vmatprep.subr.bf16.mxu0 0
  %4805 = vmatpush1.bf16.msra.mxu0 0
  %4806 = vmatprep.subr.bf16.mxu0 0
  %4807 = vmatpush1.bf16.msra.mxu0 0
  %4808 = vmatprep.subr.bf16.mxu0 0
  %4809 = vmatpush1.bf16.msra.mxu0 0
  %4810 = vmatprep.subr.bf16.mxu0 0
  %4811 = vmatpush1.bf16.msra.mxu0 0
  %4812 = vmatprep.subr.bf16.mxu0 0
  %4813 = vmatpush1.bf16.msra.mxu0 0
  %4814 = vmatprep.subr.bf16.mxu0 0
  %4815 = vmatpush1.bf16.msra.mxu0 0
  %4816 = vmatprep.subr.bf16.mxu0 0
  %4817 = vmatpush1.bf16.msra.mxu0 0
  %4818 = vmatprep.subr.bf16.mxu0 0
  %4819 = vmatpush1.bf16.msra.mxu0 0
  %4820 = vmatprep.subr.bf16.mxu0 0
  %4821 = vmatpush1.bf16.msra.mxu0 0
  %4822 = vmatprep.mubr.bf16.mxu0 0
  %4823 = vmatmul.mubr.bf16.gmra.mrb[0].mxu0 %v4788
  %v4824 = vpop.f32.mrb[0].mxu0
  %v4825 = vadd.f32 0.0, %v4824
  %v4826 = vpop.f32.mrb[0].mxu0
  %v4827 = vpop.f32.mrb[0].mxu0
  %v4828 = vpop.f32.mrb[0].mxu0
  %4829 = vdwg.mxu0
  %v4830 = vadd.f32 %v4782, %v4825
  %v4831 = vxor.u32 %v4830, 2147483648
  %v4832 = vmul.f32 %v4831, 1.442695
  %v4833 = vpow.pop %v4832
  %v4834 = vadd.f32 %v4833, 1.0
  %v4835 = vrcp.pop %v4834
  %v4836 = vmul.f32 1.0, %v4835
  %v4837 = vtanh.pop %v4830
  %v4838 = vmul.f32 %v4836, %v4692
  %4840 = vrot.lane.b32.xlu0 %v4837, 64
  %v4841 = vpop.permute.xlu0 %4840
  %v4843 = vmul.f32 %v4836, %v4841
  %4845 = vrot.lane.b32.xlu0 %v4843, 32
  %v4846 = vpop.permute.xlu0 %4845
  %v4848 = vadd.f32 %v4838, %v4846
  %v4849 = vtanh.pop %v4848
  %4851 = vrot.lane.b32.xlu0 %v4849, 64
  %v4852 = vpop.permute.xlu0 %4851
  %v4854 = vmul.f32 %v4836, %v4852
  %4856 = vrot.lane.b32.xlu0 %v4781, 32
  %v4857 = vpop.permute.xlu0 %4856
  %4859 = vst.msk [vmem:[%s2358] sm:$0x3] %vm599, %v4857
  %4861 = vrot.lane.b32.xlu0 %v4854, 32
  %v4862 = vpop.permute.xlu0 %4861
  %4864 = vst.msk [vmem:[#allocation5] sm:$0x3] %vm599, %v4862
  %v4865 = vld [vmem:[#allocation4] sm:$0x3]
  %v4866 = vld [vmem:[#allocation4 + $0x2] sm:$0x3]
  %v4867 = vld [vmem:[#allocation4 + $0x4] sm:$0x3]
  %v4868 = vld [vmem:[#allocation4 + $0x6] sm:$0x3]
  %v4869 = vld [vmem:[#allocation4 + $0x8] sm:$0x3]
  %v4870 = vld [vmem:[#allocation4 + $0xa] sm:$0x3]
  %v4871 = vld [vmem:[#allocation4 + $0xc] sm:$0x3]
  %v4872 = vld [vmem:[#allocation4 + $0xe] sm:$0x3]
  %v4873 = vld [vmem:[#allocation4 + $0x10] sm:$0x3]
  %v4874 = vld [vmem:[#allocation4 + $0x12] sm:$0x3]
  %v4875 = vld [vmem:[#allocation4 + $0x14] sm:$0x3]
  %v4876 = vld [vmem:[#allocation4 + $0x16] sm:$0x3]
  %v4877 = vld [vmem:[#allocation5] sm:$0x3]
  %v4878 = vld [vmem:[#allocation5 + $0x2] sm:$0x3]
  %v4879 = vld [vmem:[#allocation5 + $0x4] sm:$0x3]
  %v4880 = vld [vmem:[#allocation5 + $0x6] sm:$0x3]
  %v4881 = vld [vmem:[#allocation5 + $0x8] sm:$0x3]
  %v4882 = vld [vmem:[#allocation5 + $0xa] sm:$0x3]
  %v4883 = vld [vmem:[#allocation5 + $0xc] sm:$0x3]
  %v4884 = vld [vmem:[#allocation5 + $0xe] sm:$0x3]
  %v4885 = vld [vmem:[#allocation5 + $0x10] sm:$0x3]
  %v4886 = vld [vmem:[#allocation5 + $0x12] sm:$0x3]
  %v4887 = vld [vmem:[#allocation5 + $0x14] sm:$0x3]
  %v4888 = vld [vmem:[#allocation5 + $0x16] sm:$0x3]
  %v4889 = vld [vmem:[%s14] sm:$0x1]
  %v4902 = vcombine.low %v4865, %v4866
  %v4903 = vcombine.low %v4867, %v4868
  %v4905 = vunpack.c.l.s4 1983009808
  %v4906 = vunpack.c.0.s8 %v4905
  %v4907 = vlaneseq
  %v4908 = vshrl.u32 %v4907, 7
  %v4909 = vsub.s32 %v4906, %v4908
  %v4910 = vrot.slane %v4902, %v4909
  %v4912 = vunpack.c.l.s4 1983009808
  %v4913 = vunpack.c.0.s8 %v4912
  %v4914 = vlaneseq
  %v4915 = vshrl.u32 %v4914, 7
  %v4916 = vsub.s32 %v4913, %v4915
  %v4917 = vrot.slane %v4903, %v4916
  %v4918 = vcombine.low %v4910, %v4917
  %v4919 = vcombine.low %v4869, %v4870
  %v4920 = vcombine.low %v4871, %v4872
  %v4922 = vunpack.c.l.s4 1983009808
  %v4923 = vunpack.c.0.s8 %v4922
  %v4924 = vlaneseq
  %v4925 = vshrl.u32 %v4924, 7
  %v4926 = vsub.s32 %v4923, %v4925
  %v4927 = vrot.slane %v4919, %v4926
  %v4929 = vunpack.c.l.s4 1983009808
  %v4930 = vunpack.c.0.s8 %v4929
  %v4931 = vlaneseq
  %v4932 = vshrl.u32 %v4931, 7
  %v4933 = vsub.s32 %v4930, %v4932
  %v4934 = vrot.slane %v4920, %v4933
  %v4935 = vcombine.low %v4927, %v4934
  %v4936 = vcombine.low %v4873, %v4874
  %v4937 = vcombine.low %v4875, %v4876
  %v4939 = vunpack.c.l.s4 1983009808
  %v4940 = vunpack.c.0.s8 %v4939
  %v4941 = vlaneseq
  %v4942 = vshrl.u32 %v4941, 7
  %v4943 = vsub.s32 %v4940, %v4942
  %v4944 = vrot.slane %v4936, %v4943
  %v4946 = vunpack.c.l.s4 1983009808
  %v4947 = vunpack.c.0.s8 %v4946
  %v4948 = vlaneseq
  %v4949 = vshrl.u32 %v4948, 7
  %v4950 = vsub.s32 %v4947, %v4949
  %v4951 = vrot.slane %v4937, %v4950
  %v4952 = vcombine.low %v4944, %v4951
  %v4956 = vpack.c.bf16 %v4935, %v4918
  %v4957 = vpack.c.bf16 %v4952, %v4952
  %v4958 = vld [vmem:[%s13] sm:$0xf]
  %v4959 = vld [vmem:[%s13 + $0x4] sm:$0xf]
  %v4960 = vld [vmem:[%s13 + $0x8] sm:$0xf]
  %v4961 = vld [vmem:[%s13 + $0xc] sm:$0xf]
  %v4966 = vunpack.c.l.b16 %v4958
  %v4967 = vunpack.c.l.b16 %v4959
  %v4968 = vunpack.c.l.b16 %v4960
  %v4969 = vunpack.c.l.b16 %v4961
  %v4970 = vpack.c.b16 %v4967, %v4966
  %v4971 = vpack.c.b16 %v4969, %v4968
  %v4975 = vsel %vm447, %v4956, 0
  %v4978 = vsel %vm447, %v4957, 0
  %4980 = vmatprep.subr.bf16.mxu0 0
  %4981 = vmatpush1.bf16.msra.mxu0 %v4970
  %4982 = vmatprep.subr.bf16.mxu0 0
  %4983 = vmatpush1.bf16.msra.mxu0 %v4971
  %4984 = vmatprep.subr.bf16.mxu0 0
  %4985 = vmatpush1.bf16.msra.mxu0 0
  %4986 = vmatprep.subr.bf16.mxu0 0
  %4987 = vmatpush1.bf16.msra.mxu0 0
  %4988 = vmatprep.subr.bf16.mxu0 0
  %4989 = vmatpush1.bf16.msra.mxu0 0
  %4990 = vmatprep.subr.bf16.mxu0 0
  %4991 = vmatpush1.bf16.msra.mxu0 0
  %4992 = vmatprep.subr.bf16.mxu0 0
  %4993 = vmatpush1.bf16.msra.mxu0 0
  %4994 = vmatprep.subr.bf16.mxu0 0
  %4995 = vmatpush1.bf16.msra.mxu0 0
  %4996 = vmatprep.subr.bf16.mxu0 0
  %4997 = vmatpush1.bf16.msra.mxu0 0
  %4998 = vmatprep.subr.bf16.mxu0 0
  %4999 = vmatpush1.bf16.msra.mxu0 0
  %5000 = vmatprep.subr.bf16.mxu0 0
  %5001 = vmatpush1.bf16.msra.mxu0 0
  %5002 = vmatprep.subr.bf16.mxu0 0
  %5003 = vmatpush1.bf16.msra.mxu0 0
  %5004 = vmatprep.subr.bf16.mxu0 0
  %5005 = vmatpush1.bf16.msra.mxu0 0
  %5006 = vmatprep.subr.bf16.mxu0 0
  %5007 = vmatpush1.bf16.msra.mxu0 0
  %5008 = vmatprep.subr.bf16.mxu0 0
  %5009 = vmatpush1.bf16.msra.mxu0 0
  %5010 = vmatprep.subr.bf16.mxu0 0
  %5011 = vmatpush1.bf16.msra.mxu0 0
  %5012 = vmatprep.mubr.bf16.mxu0 0
  %5013 = vmatmul.mubr.bf16.gmra.mrb[0].mxu0 %v4975
  %v5014 = vpop.f32.mrb[0].mxu0
  %v5015 = vadd.f32 0.0, %v5014
  %v5016 = vpop.f32.mrb[0].mxu0
  %v5017 = vpop.f32.mrb[0].mxu0
  %v5018 = vadd.f32 0.0, %v5017
  %v5019 = vpop.f32.mrb[0].mxu0
  %5020 = vmatprep.mubr.bf16.mxu0 0
  %5021 = vmatmul.mubr.bf16.gmra.mrb[0].mxu0 %v4978
  %v5022 = vpop.f32.mrb[0].mxu0
  %v5023 = vadd.f32 0.0, %v5022
  %v5024 = vpop.f32.mrb[0].mxu0
  %v5025 = vpop.f32.mrb[0].mxu0
  %v5026 = vpop.f32.mrb[0].mxu0
  %5027 = vdwg.mxu0
  %v5029 = vlaneseq
  %v5030 = vshrl.u32 %v5029, 7
  %v5031 = vsub.s32 0, %v5030
  %v5032 = vrot.slane %v4889, %v5031
  %v5034 = vadd.f32 %v5032, %v5015
  %v5035 = vadd.f32 %v5032, %v5018
  %v5036 = vadd.f32 %v5032, %v5023
  %v5049 = vcombine.low %v4877, %v4878
  %v5050 = vcombine.low %v4879, %v4880
  %v5052 = vunpack.c.l.s4 1983009808
  %v5053 = vunpack.c.0.s8 %v5052
  %v5054 = vlaneseq
  %v5055 = vshrl.u32 %v5054, 7
  %v5056 = vsub.s32 %v5053, %v5055
  %v5057 = vrot.slane %v5049, %v5056
  %v5059 = vunpack.c.l.s4 1983009808
  %v5060 = vunpack.c.0.s8 %v5059
  %v5061 = vlaneseq
  %v5062 = vshrl.u32 %v5061, 7
  %v5063 = vsub.s32 %v5060, %v5062
  %v5064 = vrot.slane %v5050, %v5063
  %v5065 = vcombine.low %v5057, %v5064
  %v5066 = vcombine.low %v4881, %v4882
  %v5067 = vcombine.low %v4883, %v4884
  %v5069 = vunpack.c.l.s4 1983009808
  %v5070 = vunpack.c.0.s8 %v5069
  %v5071 = vlaneseq
  %v5072 = vshrl.u32 %v5071, 7
  %v5073 = vsub.s32 %v5070, %v5072
  %v5074 = vrot.slane %v5066, %v5073
  %v5076 = vunpack.c.l.s4 1983009808
  %v5077 = vunpack.c.0.s8 %v5076
  %v5078 = vlaneseq
  %v5079 = vshrl.u32 %v5078, 7
  %v5080 = vsub.s32 %v5077, %v5079
  %v5081 = vrot.slane %v5067, %v5080
  %v5082 = vcombine.low %v5074, %v5081
  %v5083 = vcombine.low %v4885, %v4886
  %v5084 = vcombine.low %v4887, %v4888
  %v5086 = vunpack.c.l.s4 1983009808
  %v5087 = vunpack.c.0.s8 %v5086
  %v5088 = vlaneseq
  %v5089 = vshrl.u32 %v5088, 7
  %v5090 = vsub.s32 %v5087, %v5089
  %v5091 = vrot.slane %v5083, %v5090
  %v5093 = vunpack.c.l.s4 1983009808
  %v5094 = vunpack.c.0.s8 %v5093
  %v5095 = vlaneseq
  %v5096 = vshrl.u32 %v5095, 7
  %v5097 = vsub.s32 %v5094, %v5096
  %v5098 = vrot.slane %v5084, %v5097
  %v5099 = vcombine.low %v5091, %v5098
  %v5103 = vpack.c.bf16 %v5082, %v5065
  %v5104 = vpack.c.bf16 %v5099, %v5099
  %v5105 = vld [vmem:[%s13 + $0x10] sm:$0xf]
  %v5106 = vld [vmem:[%s13 + $0x14] sm:$0xf]
  %v5107 = vld [vmem:[%s13 + $0x18] sm:$0xf]
  %v5108 = vld [vmem:[%s13 + $0x1c] sm:$0xf]
  %v5113 = vunpack.c.l.b16 %v5105
  %v5114 = vunpack.c.l.b16 %v5106
  %v5115 = vunpack.c.l.b16 %v5107
  %v5116 = vunpack.c.l.b16 %v5108
  %v5117 = vpack.c.b16 %v5114, %v5113
  %v5118 = vpack.c.b16 %v5116, %v5115
  %v5122 = vsel %vm447, %v5103, 0
  %v5125 = vsel %vm447, %v5104, 0
  %5127 = vmatprep.subr.bf16.mxu0 0
  %5128 = vmatpush1.bf16.msra.mxu0 %v5117
  %5129 = vmatprep.subr.bf16.mxu0 0
  %5130 = vmatpush1.bf16.msra.mxu0 %v5118
  %5131 = vmatprep.subr.bf16.mxu0 0
  %5132 = vmatpush1.bf16.msra.mxu0 0
  %5133 = vmatprep.subr.bf16.mxu0 0
  %5134 = vmatpush1.bf16.msra.mxu0 0
  %5135 = vmatprep.subr.bf16.mxu0 0
  %5136 = vmatpush1.bf16.msra.mxu0 0
  %5137 = vmatprep.subr.bf16.mxu0 0
  %5138 = vmatpush1.bf16.msra.mxu0 0
  %5139 = vmatprep.subr.bf16.mxu0 0
  %5140 = vmatpush1.bf16.msra.mxu0 0
  %5141 = vmatprep.subr.bf16.mxu0 0
  %5142 = vmatpush1.bf16.msra.mxu0 0
  %5143 = vmatprep.subr.bf16.mxu0 0
  %5144 = vmatpush1.bf16.msra.mxu0 0
  %5145 = vmatprep.subr.bf16.mxu0 0
  %5146 = vmatpush1.bf16.msra.mxu0 0
  %5147 = vmatprep.subr.bf16.mxu0 0
  %5148 = vmatpush1.bf16.msra.mxu0 0
  %5149 = vmatprep.subr.bf16.mxu0 0
  %5150 = vmatpush1.bf16.msra.mxu0 0
  %5151 = vmatprep.subr.bf16.mxu0 0
  %5152 = vmatpush1.bf16.msra.mxu0 0
  %5153 = vmatprep.subr.bf16.mxu0 0
  %5154 = vmatpush1.bf16.msra.mxu0 0
  %5155 = vmatprep.subr.bf16.mxu0 0
  %5156 = vmatpush1.bf16.msra.mxu0 0
  %5157 = vmatprep.subr.bf16.mxu0 0
  %5158 = vmatpush1.bf16.msra.mxu0 0
  %5159 = vmatprep.mubr.bf16.mxu0 0
  %5160 = vmatmul.mubr.bf16.gmra.mrb[0].mxu0 %v5122
  %v5161 = vpop.f32.mrb[0].mxu0
  %v5162 = vadd.f32 0.0, %v5161
  %v5163 = vpop.f32.mrb[0].mxu0
  %v5164 = vpop.f32.mrb[0].mxu0
  %v5165 = vadd.f32 0.0, %v5164
  %v5166 = vpop.f32.mrb[0].mxu0
  %5167 = vmatprep.mubr.bf16.mxu0 0
  %5168 = vmatmul.mubr.bf16.gmra.mrb[0].mxu0 %v5125
  %v5169 = vpop.f32.mrb[0].mxu0
  %v5170 = vadd.f32 0.0, %v5169
  %v5171 = vpop.f32.mrb[0].mxu0
  %v5172 = vpop.f32.mrb[0].mxu0
  %v5173 = vpop.f32.mrb[0].mxu0
  %5174 = vdwg.mxu0
  %v5175 = vadd.f32 %v5034, %v5162
  %v5176 = vadd.f32 %v5035, %v5165
  %v5177 = vadd.f32 %v5036, %v5170
  %5178 = vst [vmem:[%s15] sm:$0xff] %v5175
  %5179 = vst [vmem:[%s15 + $0x8] sm:$0xff] %v5176
  %5180 = vst [vmem:[%s15 + $0x10] sm:$0xff] %v5177
  // Predicated region
  $region62: #{_lambda_.1} parent=0 // pred_check
    _
  $region63: #{_lambda_.1} parent=0 // pred_check_branch
    %5182 = sbr.rel (0) target = $region65
  $region64: #{_lambda_.1} parent=0 // pred_region
    _
  $region65: #{_lambda_.1} parent=0 // pred_fallthru
    _
  // Predicated region
  $region66: #{_lambda_.1} parent=0 // pred_check
    _
  $region67: #{_lambda_.1} parent=0 // pred_check_branch
    %5184 = sbr.rel (0) target = $region69
  $region68: #{_lambda_.1} parent=0 // pred_region
    _
  $region69: #{_lambda_.1} parent=0 // pred_fallthru
    _

</llo_original>
